<compile_context>
chip_gen: v5e
topology: v5e:2x2
jax: 0.10.0
libtpu: 0.0.40
codegen_flags: <defaults>
</compile_context>

<pallas_src>
import jax
import jax.numpy as jnp
from jax.experimental import pallas as pl
from jax.experimental.pallas import tpu as pltpu


# ----------------------------------------------------------------------------
# Fused kernel: 2-layer LSTM recurrence (grid step 0) + tiled final Linear.
# PyTorch gate order (i, f, g, o); gate blocks padded to Hp lanes each.
# ----------------------------------------------------------------------------
def lstm_linear_kernel(x_ref, wih0_ref, whh0_ref, b0_ref, w1_ref, b1_ref,
                       h0_ref, c0_ref, wlin_ref, blin_ref,
                       pre_ref, hn_ref, cn_ref, hid_ref):
    # x_ref:   (Bp, S, E)
    # wih0:    (E, 4Hp)     whh0: (Hp, 4Hp)     b0: (1, 4Hp)   (b_ih + b_hh)
    # w1:      (2Hp, 4Hp)   = [Wih1; Whh1]      b1: (1, 4Hp)
    # h0/c0:   (2, Bp, Hp)
    # wlin:    (Hp, TW) tile of (Hp, Wp)        blin: (1, TW)
    # pre_ref: (Bp*S, TW) tile                  hn/cn: (2, Bp, Hp)
    # hid_ref: VMEM scratch (Bp, S, Hp) — persists across W-tile grid steps.
    Bp, S, E = x_ref.shape
    Hp = whh0_ref.shape[0]
    j = pl.program_id(0)

    @pl.when(j == 0)
    def _run_recurrence():
        whh0 = whh0_ref[...]
        w1 = w1_ref[...]
        b1 = b1_ref[...]

        # Hoisted layer-0 input projection for ALL timesteps: one MXU matmul.
        x_flat = x_ref[...].reshape(Bp * S, E)
        xg0 = (jnp.dot(x_flat, wih0_ref[...],
                       preferred_element_type=jnp.float32) + b0_ref[...])
        xg0 = xg0.reshape(Bp, S, 4 * Hp)          # B-major rows, layout-identity

        def gate_update(g, c):
            # Hp is a multiple of 128 -> lane-aligned gate slices.
            i = jax.nn.sigmoid(g[:, 0 * Hp:1 * Hp])
            f = jax.nn.sigmoid(g[:, 1 * Hp:2 * Hp])
            gg = jnp.tanh(g[:, 2 * Hp:3 * Hp])
            o = jax.nn.sigmoid(g[:, 3 * Hp:4 * Hp])
            c_new = f * c + i * gg
            h_new = o * jnp.tanh(c_new)
            return h_new, c_new

        h1, c1 = h0_ref[0], c0_ref[0]
        h2, c2 = h0_ref[1], c0_ref[1]
        hs = []
        for t in range(S):                        # fully unrolled (S is static/small)
            # layer 0: input contribution precomputed, only h @ Whh0 on the
            # serial critical path.
            g0 = xg0[:, t, :] + jnp.dot(h1, whh0,
                                        preferred_element_type=jnp.float32)
            h1, c1 = gate_update(g0, c1)
            # layer 1: single fused matmul [h1, h2] @ [Wih1; Whh1].
            g1 = (jnp.dot(jnp.concatenate([h1, h2], axis=1), w1,
                          preferred_element_type=jnp.float32) + b1)
            h2, c2 = gate_update(g1, c2)
            hs.append(h2)

        hid_ref[...] = jnp.stack(hs, axis=1)      # (Bp, S, Hp): B-major flatten order
        hn_ref[0] = h1
        hn_ref[1] = h2
        cn_ref[0] = c1
        cn_ref[1] = c2

    # Final Linear on the VMEM-resident hidden trace, tiled over word_size.
    hid_flat = hid_ref[...].reshape(Bp * S, Hp)   # == Flatten(0,1) of (B,S,H)
    pre_ref[...] = (jnp.dot(hid_flat, wlin_ref[...],
                            preferred_element_type=jnp.float32) + blin_ref[...])


# ----------------------------------------------------------------------------
# Wrapper
# ----------------------------------------------------------------------------
def _round_up(x, m):
    return ((x + m - 1) // m) * m


def init_params(key, embedding_num, hidden_num, word_size):
    """Deterministic parameter init matching PyTorch LSTM/Linear shapes."""
    H, E, W = hidden_num, embedding_num, word_size
    ks = jax.random.split(key, 10)
    bound = 1.0 / jnp.sqrt(H)
    u = lambda k, shape: jax.random.uniform(k, shape, jnp.float32, -bound, bound)
    return dict(
        weight_ih_l0=u(ks[0], (4 * H, E)),
        weight_hh_l0=u(ks[1], (4 * H, H)),
        bias_ih_l0=u(ks[2], (4 * H,)),
        bias_hh_l0=u(ks[3], (4 * H,)),
        weight_ih_l1=u(ks[4], (4 * H, H)),
        weight_hh_l1=u(ks[5], (4 * H, H)),
        bias_ih_l1=u(ks[6], (4 * H,)),
        bias_hh_l1=u(ks[7], (4 * H,)),
        linear_w=u(ks[8], (W, H)),
        linear_b=u(ks[9], (W,)),
    )


@jax.jit
def poetry_forward(params, xs_embedding, h_0=None, c_0=None):
    B, S, E = xs_embedding.shape
    H = params["weight_hh_l0"].shape[1]
    W = params["linear_w"].shape[0]

    Bp = _round_up(B, 8)        # sublane padding
    Hp = _round_up(H, 128)      # lane padding -> lane-aligned gate slices
    Wp = _round_up(W, 128)      # lane-dense output stores

    if h_0 is None or c_0 is None:
        h_0 = jnp.zeros((2, B, H), jnp.float32)
        c_0 = jnp.zeros((2, B, H), jnp.float32)

    # --- weight prep (glue, runs once under jit): transpose + zero-pad -------
    def pad_gate_cols(w_t):
        # (in, 4H), gate-major columns -> (in, 4*Hp), each gate zero-padded.
        in_dim = w_t.shape[0]
        return jnp.pad(w_t.reshape(in_dim, 4, H),
                       ((0, 0), (0, 0), (0, Hp - H))).reshape(in_dim, 4 * Hp)

    def pad_hh(w):
        # (4H, H) -> (Hp, 4Hp); padded rows/cols are zero so padded lanes stay 0.
        return pad_gate_cols(jnp.pad(w.T, ((0, Hp - H), (0, 0))))

    def pad_bias(b_ih, b_hh):
        b = (b_ih + b_hh).reshape(4, H)
        return jnp.pad(b, ((0, 0), (0, Hp - H))).reshape(1, 4 * Hp)

    wih0 = pad_gate_cols(params["weight_ih_l0"].T)                # (E, 4Hp)
    whh0 = pad_hh(params["weight_hh_l0"])                         # (Hp, 4Hp)
    b0 = pad_bias(params["bias_ih_l0"], params["bias_hh_l0"])     # (1, 4Hp)
    wih1 = pad_hh(params["weight_ih_l1"])                         # (Hp, 4Hp)
    whh1 = pad_hh(params["weight_hh_l1"])                         # (Hp, 4Hp)
    w1 = jnp.concatenate([wih1, whh1], axis=0)                    # (2Hp, 4Hp)
    b1 = pad_bias(params["bias_ih_l1"], params["bias_hh_l1"])     # (1, 4Hp)
    wlin = jnp.pad(params["linear_w"].T, ((0, Hp - H), (0, Wp - W)))  # (Hp, Wp)
    blin = jnp.pad(params["linear_b"], (0, Wp - W)).reshape(1, Wp)    # (1, Wp)

    x_p = jnp.pad(xs_embedding.astype(jnp.float32),
                  ((0, Bp - B), (0, 0), (0, 0)))                  # (Bp, S, E)
    h0_p = jnp.pad(h_0.astype(jnp.float32),
                   ((0, 0), (0, Bp - B), (0, Hp - H)))            # (2, Bp, Hp)
    c0_p = jnp.pad(c_0.astype(jnp.float32),
                   ((0, 0), (0, Bp - B), (0, Hp - H)))            # (2, Bp, Hp)

    # word_size tile (lane-dense, >= 128) so large vocabularies don't blow VMEM.
    if Wp <= 512:
        TW = Wp
    elif Wp % 512 == 0:
        TW = 512
    elif Wp % 256 == 0:
        TW = 256
    else:
        TW = 128
    num_w = Wp // TW

    pre_p, hn_p, cn_p = pl.pallas_call(
        lstm_linear_kernel,
        out_shape=(
            jax.ShapeDtypeStruct((Bp * S, Wp), jnp.float32),
            jax.ShapeDtypeStruct((2, Bp, Hp), jnp.float32),
            jax.ShapeDtypeStruct((2, Bp, Hp), jnp.float32),
        ),
        grid=(num_w,),
        in_specs=[
            pl.BlockSpec((Bp, S, E), lambda j: (0, 0, 0)),        # x
            pl.BlockSpec((E, 4 * Hp), lambda j: (0, 0)),          # wih0
            pl.BlockSpec((Hp, 4 * Hp), lambda j: (0, 0)),         # whh0
            pl.BlockSpec((1, 4 * Hp), lambda j: (0, 0)),          # b0
            pl.BlockSpec((2 * Hp, 4 * Hp), lambda j: (0, 0)),     # w1 = [Wih1;Whh1]
            pl.BlockSpec((1, 4 * Hp), lambda j: (0, 0)),          # b1
            pl.BlockSpec((2, Bp, Hp), lambda j: (0, 0, 0)),       # h0
            pl.BlockSpec((2, Bp, Hp), lambda j: (0, 0, 0)),       # c0
            pl.BlockSpec((Hp, TW), lambda j: (0, j)),             # wlin tile
            pl.BlockSpec((1, TW), lambda j: (0, j)),              # blin tile
        ],
        out_specs=(
            pl.BlockSpec((Bp * S, TW), lambda j: (0, j)),         # pre tile
            pl.BlockSpec((2, Bp, Hp), lambda j: (0, 0, 0)),       # h_n
            pl.BlockSpec((2, Bp, Hp), lambda j: (0, 0, 0)),       # c_n
        ),
        scratch_shapes=[pltpu.VMEM((Bp, S, Hp), jnp.float32)],    # hidden trace
        compiler_params=pltpu.CompilerParams(
            dimension_semantics=("arbitrary",)),  # scratch/hn/cn carry across W tiles
    )(x_p, wih0, whh0, b0, w1, b1, h0_p, c0_p, wlin, blin)

    # TODO(synk): nn.Dropout(0.3) applied as inference-mode identity; training-mode
    #             stochastic masking (pltpu.prng_*) not implemented.

    # Strip padding; pre rows are already in PyTorch Flatten(0,1) (B-major) order.
    pre = pre_p.reshape(Bp, S, Wp)[:B, :, :W].reshape(B * S, W)
    h_n = hn_p[:, :B, :H]
    c_n = cn_p[:, :B, :H]
    return pre, (h_n, c_n)


# ----------------------------------------------------------------------------
# Pure-JAX reference for sanity checking
# ----------------------------------------------------------------------------
def reference_forward(params, xs_embedding, h_0, c_0, hidden_num):
    H = hidden_num

    def cell(x_t, h, c, wih, whh, bih, bhh):
        g = x_t @ wih.T + bih + h @ whh.T + bhh
        i = jax.nn.sigmoid(g[:, :H])
        f = jax.nn.sigmoid(g[:, H:2 * H])
        gg = jnp.tanh(g[:, 2 * H:3 * H])
        o = jax.nn.sigmoid(g[:, 3 * H:])
        c = f * c + i * gg
        h = o * jnp.tanh(c)
        return h, c

    B, S, E = xs_embedding.shape
    h1, c1, h2, c2 = h_0[0], c_0[0], h_0[1], c_0[1]
    outs = []
    for t in range(S):
        x_t = xs_embedding[:, t, :]
        h1, c1 = cell(x_t, h1, c1, params["weight_ih_l0"], params["weight_hh_l0"],
                      params["bias_ih_l0"], params["bias_hh_l0"])
        h2, c2 = cell(h1, h2, c2, params["weight_ih_l1"], params["weight_hh_l1"],
                      params["bias_ih_l1"], params["bias_hh_l1"])
        outs.append(h2)
    hidden = jnp.stack(outs, axis=1)                               # (B, S, H)
    pre = hidden.reshape(B * S, H) @ params["linear_w"].T + params["linear_b"]
    return pre, (jnp.stack([h1, h2]), jnp.stack([c1, c2]))


if __name__ == "__main__":
    B, S = 2, 8
    embedding_num, hidden_num, word_size = 32, 32, 128

    key = jax.random.PRNGKey(0)
    k_param, k_x = jax.random.split(key)
    params = init_params(k_param, embedding_num, hidden_num, word_size)
    xs_embedding = jax.random.normal(k_x, (B, S, embedding_num), jnp.float32)

    pre, (h_n, c_n) = poetry_forward(params, xs_embedding)
    jax.block_until_ready((pre, h_n, c_n))

    # sanity check vs pure-JAX reference
    h0 = jnp.zeros((2, B, hidden_num), jnp.float32)
    c0 = jnp.zeros((2, B, hidden_num), jnp.float32)
    pre_ref, (hn_ref, cn_ref) = reference_forward(params, xs_embedding, h0, c0,
                                                  hidden_num)
    assert pre.shape == (B * S, word_size)
    assert h_n.shape == (2, B, hidden_num) and c_n.shape == (2, B, hidden_num)
    assert jnp.allclose(pre, pre_ref, atol=1e-4, rtol=1e-4)
    assert jnp.allclose(h_n, hn_ref, atol=1e-5, rtol=1e-5)
    assert jnp.allclose(c_n, cn_ref, atol=1e-5, rtol=1e-5)

    print("KERNEL_OK")
</pallas_src>

<mosaic_0001>
module attributes {stable_mosaic.version = 11 : i64} {
  func.func @lstm_linear_kernel(%arg0: i32, %arg1: memref<8x8x32xf32, #tpu.memory_space<vmem>>, %arg2: memref<32x512xf32, #tpu.memory_space<vmem>>, %arg3: memref<128x512xf32, #tpu.memory_space<vmem>>, %arg4: memref<1x512xf32, #tpu.memory_space<vmem>>, %arg5: memref<256x512xf32, #tpu.memory_space<vmem>>, %arg6: memref<1x512xf32, #tpu.memory_space<vmem>>, %arg7: memref<2x8x128xf32, #tpu.memory_space<vmem>>, %arg8: memref<2x8x128xf32, #tpu.memory_space<vmem>>, %arg9: memref<128x128xf32, #tpu.memory_space<vmem>>, %arg10: memref<1x128xf32, #tpu.memory_space<vmem>>, %arg11: memref<64x128xf32, #tpu.memory_space<vmem>>, %arg12: memref<2x8x128xf32, #tpu.memory_space<vmem>>, %arg13: memref<2x8x128xf32, #tpu.memory_space<vmem>>, %arg14: memref<8x8x128xf32, #tpu.memory_space<vmem>>) attributes {dimension_semantics = [#tpu.dimension_semantics<arbitrary>], iteration_bounds = array<i64: 1>, scalar_prefetch = 0 : i64, scratch_operands = 1 : i64, tpu.core_type = #tpu.core_type<tc>, window_params = [{pipeline_mode = #tpu.pipeline_mode<synchronous>, transform_indices = @transform_0, window_bounds = array<i64: 8, 8, 32>}, {pipeline_mode = #tpu.pipeline_mode<synchronous>, transform_indices = @transform_1, window_bounds = array<i64: 32, 512>}, {pipeline_mode = #tpu.pipeline_mode<synchronous>, transform_indices = @transform_2, window_bounds = array<i64: 128, 512>}, {pipeline_mode = #tpu.pipeline_mode<synchronous>, transform_indices = @transform_3, window_bounds = array<i64: 1, 512>}, {pipeline_mode = #tpu.pipeline_mode<synchronous>, transform_indices = @transform_4, window_bounds = array<i64: 256, 512>}, {pipeline_mode = #tpu.pipeline_mode<synchronous>, transform_indices = @transform_5, window_bounds = array<i64: 1, 512>}, {pipeline_mode = #tpu.pipeline_mode<synchronous>, transform_indices = @transform_6, window_bounds = array<i64: 2, 8, 128>}, {pipeline_mode = #tpu.pipeline_mode<synchronous>, transform_indices = @transform_7, window_bounds = array<i64: 2, 8, 128>}, {transform_indices = @transform_8, window_bounds = array<i64: 128, 128>}, {transform_indices = @transform_9, window_bounds = array<i64: 1, 128>}, {transform_indices = @transform_10, window_bounds = array<i64: 64, 128>}, {pipeline_mode = #tpu.pipeline_mode<synchronous>, transform_indices = @transform_11, window_bounds = array<i64: 2, 8, 128>}, {pipeline_mode = #tpu.pipeline_mode<synchronous>, transform_indices = @transform_12, window_bounds = array<i64: 2, 8, 128>}]} {
    %c0_i32 = arith.constant 0 : i32
    %0 = arith.cmpi eq, %arg0, %c0_i32 : i32
    %1 = arith.extui %0 : i1 to i32
    %c0_i32_0 = arith.constant 0 : i32
    %2 = arith.cmpi ne, %1, %c0_i32_0 : i32
    scf.if %2 {
      %c0_9 = arith.constant 0 : index
      %c0_10 = arith.constant 0 : index
      %11 = vector.load %arg3[%c0_9, %c0_10] : memref<128x512xf32, #tpu.memory_space<vmem>>, vector<128x512xf32>
      %c0_11 = arith.constant 0 : index
      %c0_12 = arith.constant 0 : index
      %12 = vector.load %arg5[%c0_11, %c0_12] : memref<256x512xf32, #tpu.memory_space<vmem>>, vector<256x512xf32>
      %c0_13 = arith.constant 0 : index
      %c0_14 = arith.constant 0 : index
      %13 = vector.load %arg6[%c0_13, %c0_14] : memref<1x512xf32, #tpu.memory_space<vmem>>, vector<1x512xf32>
      %c0_15 = arith.constant 0 : index
      %c0_16 = arith.constant 0 : index
      %c0_17 = arith.constant 0 : index
      %14 = vector.load %arg1[%c0_15, %c0_16, %c0_17] : memref<8x8x32xf32, #tpu.memory_space<vmem>>, vector<8x8x32xf32>
      %15 = vector.shape_cast %14 : vector<8x8x32xf32> to vector<64x32xf32>
      %c0_18 = arith.constant 0 : index
      %c0_19 = arith.constant 0 : index
      %16 = vector.load %arg2[%c0_18, %c0_19] : memref<32x512xf32, #tpu.memory_space<vmem>>, vector<32x512xf32>
      %cst_20 = arith.constant dense<0.000000e+00> : vector<64x512xf32>
      %17 = tpu.matmul %15, %16, %cst_20 {dimension_numbers = #tpu.dot_dimension_numbers<[1], [0], [0], [1], [0, 0, 1, 1], [], []>} : vector<64x32xf32>, vector<32x512xf32>, vector<64x512xf32> -> vector<64x512xf32>
      %c0_21 = arith.constant 0 : index
      %c0_22 = arith.constant 0 : index
      %18 = vector.load %arg4[%c0_21, %c0_22] : memref<1x512xf32, #tpu.memory_space<vmem>>, vector<1x512xf32>
      %19 = vector.broadcast %18 : vector<1x512xf32> to vector<64x512xf32>
      %20 = arith.addf %17, %19 : vector<64x512xf32>
      %21 = vector.shape_cast %20 : vector<64x512xf32> to vector<8x8x512xf32>
      %c0_23 = arith.constant 0 : index
      %c0_24 = arith.constant 0 : index
      %c0_25 = arith.constant 0 : index
      %22 = vector.load %arg7[%c0_23, %c0_24, %c0_25] : memref<2x8x128xf32, #tpu.memory_space<vmem>>, vector<1x8x128xf32>
      %23 = vector.shape_cast %22 : vector<1x8x128xf32> to vector<8x128xf32>
      %c0_26 = arith.constant 0 : index
      %c0_27 = arith.constant 0 : index
      %c0_28 = arith.constant 0 : index
      %24 = vector.load %arg8[%c0_26, %c0_27, %c0_28] : memref<2x8x128xf32, #tpu.memory_space<vmem>>, vector<1x8x128xf32>
      %25 = vector.shape_cast %24 : vector<1x8x128xf32> to vector<8x128xf32>
      %c1 = arith.constant 1 : index
      %c0_29 = arith.constant 0 : index
      %c0_30 = arith.constant 0 : index
      %26 = vector.load %arg7[%c1, %c0_29, %c0_30] : memref<2x8x128xf32, #tpu.memory_space<vmem>>, vector<1x8x128xf32>
      %27 = vector.shape_cast %26 : vector<1x8x128xf32> to vector<8x128xf32>
      %c1_31 = arith.constant 1 : index
      %c0_32 = arith.constant 0 : index
      %c0_33 = arith.constant 0 : index
      %28 = vector.load %arg8[%c1_31, %c0_32, %c0_33] : memref<2x8x128xf32, #tpu.memory_space<vmem>>, vector<1x8x128xf32>
      %29 = vector.shape_cast %28 : vector<1x8x128xf32> to vector<8x128xf32>
      %30 = vector.extract_strided_slice %21 {offsets = [0, 0, 0], sizes = [8, 1, 512], strides = [1, 1, 1]} : vector<8x8x512xf32> to vector<8x1x512xf32>
      %31 = vector.shape_cast %30 : vector<8x1x512xf32> to vector<8x512xf32>
      %cst_34 = arith.constant dense<0.000000e+00> : vector<8x512xf32>
      %32 = tpu.matmul %23, %11, %cst_34 {dimension_numbers = #tpu.dot_dimension_numbers<[1], [0], [0], [1], [0, 0, 1, 1], [], []>} : vector<8x128xf32>, vector<128x512xf32>, vector<8x512xf32> -> vector<8x512xf32>
      %33 = arith.addf %31, %32 : vector<8x512xf32>
      %34 = vector.extract_strided_slice %33 {offsets = [0, 0], sizes = [8, 128], strides = [1, 1]} : vector<8x512xf32> to vector<8x128xf32>
      %35 = arith.negf %34 : vector<8x128xf32>
      %36 = math.exp %35 : vector<8x128xf32>
      %cst_35 = arith.constant 1.000000e+00 : f32
      %37 = vector.broadcast %cst_35 : f32 to vector<8x128xf32>
      %38 = arith.addf %37, %36 : vector<8x128xf32>
      %39 = arith.divf %37, %38 : vector<8x128xf32>
      %40 = vector.extract_strided_slice %33 {offsets = [0, 128], sizes = [8, 128], strides = [1, 1]} : vector<8x512xf32> to vector<8x128xf32>
      %41 = arith.negf %40 : vector<8x128xf32>
      %42 = math.exp %41 : vector<8x128xf32>
      %cst_36 = arith.constant 1.000000e+00 : f32
      %43 = vector.broadcast %cst_36 : f32 to vector<8x128xf32>
      %44 = arith.addf %43, %42 : vector<8x128xf32>
      %45 = arith.divf %43, %44 : vector<8x128xf32>
      %46 = vector.extract_strided_slice %33 {offsets = [0, 256], sizes = [8, 128], strides = [1, 1]} : vector<8x512xf32> to vector<8x128xf32>
      %47 = math.tanh %46 : vector<8x128xf32>
      %48 = vector.extract_strided_slice %33 {offsets = [0, 384], sizes = [8, 128], strides = [1, 1]} : vector<8x512xf32> to vector<8x128xf32>
      %49 = arith.negf %48 : vector<8x128xf32>
      %50 = math.exp %49 : vector<8x128xf32>
      %cst_37 = arith.constant 1.000000e+00 : f32
      %51 = vector.broadcast %cst_37 : f32 to vector<8x128xf32>
      %52 = arith.addf %51, %50 : vector<8x128xf32>
      %53 = arith.divf %51, %52 : vector<8x128xf32>
      %54 = arith.mulf %45, %25 : vector<8x128xf32>
      %55 = arith.mulf %39, %47 : vector<8x128xf32>
      %56 = arith.addf %54, %55 : vector<8x128xf32>
      %57 = math.tanh %56 : vector<8x128xf32>
      %58 = arith.mulf %53, %57 : vector<8x128xf32>
      %59 = tpu.concatenate %58, %27 in 1 : vector<8x128xf32>, vector<8x128xf32> -> vector<8x256xf32>
      %cst_38 = arith.constant dense<0.000000e+00> : vector<8x512xf32>
      %60 = tpu.matmul %59, %12, %cst_38 {dimension_numbers = #tpu.dot_dimension_numbers<[1], [0], [0], [1], [0, 0, 1, 1], [], []>} : vector<8x256xf32>, vector<256x512xf32>, vector<8x512xf32> -> vector<8x512xf32>
      %61 = vector.broadcast %13 : vector<1x512xf32> to vector<8x512xf32>
      %62 = arith.addf %60, %61 : vector<8x512xf32>
      %63 = vector.extract_strided_slice %62 {offsets = [0, 0], sizes = [8, 128], strides = [1, 1]} : vector<8x512xf32> to vector<8x128xf32>
      %64 = arith.negf %63 : vector<8x128xf32>
      %65 = math.exp %64 : vector<8x128xf32>
      %cst_39 = arith.constant 1.000000e+00 : f32
      %66 = vector.broadcast %cst_39 : f32 to vector<8x128xf32>
      %67 = arith.addf %66, %65 : vector<8x128xf32>
      %68 = arith.divf %66, %67 : vector<8x128xf32>
      %69 = vector.extract_strided_slice %62 {offsets = [0, 128], sizes = [8, 128], strides = [1, 1]} : vector<8x512xf32> to vector<8x128xf32>
      %70 = arith.negf %69 : vector<8x128xf32>
      %71 = math.exp %70 : vector<8x128xf32>
      %cst_40 = arith.constant 1.000000e+00 : f32
      %72 = vector.broadcast %cst_40 : f32 to vector<8x128xf32>
      %73 = arith.addf %72, %71 : vector<8x128xf32>
      %74 = arith.divf %72, %73 : vector<8x128xf32>
      %75 = vector.extract_strided_slice %62 {offsets = [0, 256], sizes = [8, 128], strides = [1, 1]} : vector<8x512xf32> to vector<8x128xf32>
      %76 = math.tanh %75 : vector<8x128xf32>
      %77 = vector.extract_strided_slice %62 {offsets = [0, 384], sizes = [8, 128], strides = [1, 1]} : vector<8x512xf32> to vector<8x128xf32>
      %78 = arith.negf %77 : vector<8x128xf32>
      %79 = math.exp %78 : vector<8x128xf32>
      %cst_41 = arith.constant 1.000000e+00 : f32
      %80 = vector.broadcast %cst_41 : f32 to vector<8x128xf32>
      %81 = arith.addf %80, %79 : vector<8x128xf32>
      %82 = arith.divf %80, %81 : vector<8x128xf32>
      %83 = arith.mulf %74, %29 : vector<8x128xf32>
      %84 = arith.mulf %68, %76 : vector<8x128xf32>
      %85 = arith.addf %83, %84 : vector<8x128xf32>
      %86 = math.tanh %85 : vector<8x128xf32>
      %87 = arith.mulf %82, %86 : vector<8x128xf32>
      %88 = vector.extract_strided_slice %21 {offsets = [0, 1, 0], sizes = [8, 1, 512], strides = [1, 1, 1]} : vector<8x8x512xf32> to vector<8x1x512xf32>
      %89 = vector.shape_cast %88 : vector<8x1x512xf32> to vector<8x512xf32>
      %cst_42 = arith.constant dense<0.000000e+00> : vector<8x512xf32>
      %90 = tpu.matmul %58, %11, %cst_42 {dimension_numbers = #tpu.dot_dimension_numbers<[1], [0], [0], [1], [0, 0, 1, 1], [], []>} : vector<8x128xf32>, vector<128x512xf32>, vector<8x512xf32> -> vector<8x512xf32>
      %91 = arith.addf %89, %90 : vector<8x512xf32>
      %92 = vector.extract_strided_slice %91 {offsets = [0, 0], sizes = [8, 128], strides = [1, 1]} : vector<8x512xf32> to vector<8x128xf32>
      %93 = arith.negf %92 : vector<8x128xf32>
      %94 = math.exp %93 : vector<8x128xf32>
      %cst_43 = arith.constant 1.000000e+00 : f32
      %95 = vector.broadcast %cst_43 : f32 to vector<8x128xf32>
      %96 = arith.addf %95, %94 : vector<8x128xf32>
      %97 = arith.divf %95, %96 : vector<8x128xf32>
      %98 = vector.extract_strided_slice %91 {offsets = [0, 128], sizes = [8, 128], strides = [1, 1]} : vector<8x512xf32> to vector<8x128xf32>
      %99 = arith.negf %98 : vector<8x128xf32>
      %100 = math.exp %99 : vector<8x128xf32>
      %cst_44 = arith.constant 1.000000e+00 : f32
      %101 = vector.broadcast %cst_44 : f32 to vector<8x128xf32>
      %102 = arith.addf %101, %100 : vector<8x128xf32>
      %103 = arith.divf %101, %102 : vector<8x128xf32>
      %104 = vector.extract_strided_slice %91 {offsets = [0, 256], sizes = [8, 128], strides = [1, 1]} : vector<8x512xf32> to vector<8x128xf32>
      %105 = math.tanh %104 : vector<8x128xf32>
      %106 = vector.extract_strided_slice %91 {offsets = [0, 384], sizes = [8, 128], strides = [1, 1]} : vector<8x512xf32> to vector<8x128xf32>
      %107 = arith.negf %106 : vector<8x128xf32>
      %108 = math.exp %107 : vector<8x128xf32>
      %cst_45 = arith.constant 1.000000e+00 : f32
      %109 = vector.broadcast %cst_45 : f32 to vector<8x128xf32>
      %110 = arith.addf %109, %108 : vector<8x128xf32>
      %111 = arith.divf %109, %110 : vector<8x128xf32>
      %112 = arith.mulf %103, %56 : vector<8x128xf32>
      %113 = arith.mulf %97, %105 : vector<8x128xf32>
      %114 = arith.addf %112, %113 : vector<8x128xf32>
      %115 = math.tanh %114 : vector<8x128xf32>
      %116 = arith.mulf %111, %115 : vector<8x128xf32>
      %117 = tpu.concatenate %116, %87 in 1 : vector<8x128xf32>, vector<8x128xf32> -> vector<8x256xf32>
      %cst_46 = arith.constant dense<0.000000e+00> : vector<8x512xf32>
      %118 = tpu.matmul %117, %12, %cst_46 {dimension_numbers = #tpu.dot_dimension_numbers<[1], [0], [0], [1], [0, 0, 1, 1], [], []>} : vector<8x256xf32>, vector<256x512xf32>, vector<8x512xf32> -> vector<8x512xf32>
      %119 = vector.broadcast %13 : vector<1x512xf32> to vector<8x512xf32>
      %120 = arith.addf %118, %119 : vector<8x512xf32>
      %121 = vector.extract_strided_slice %120 {offsets = [0, 0], sizes = [8, 128], strides = [1, 1]} : vector<8x512xf32> to vector<8x128xf32>
      %122 = arith.negf %121 : vector<8x128xf32>
      %123 = math.exp %122 : vector<8x128xf32>
      %cst_47 = arith.constant 1.000000e+00 : f32
      %124 = vector.broadcast %cst_47 : f32 to vector<8x128xf32>
      %125 = arith.addf %124, %123 : vector<8x128xf32>
      %126 = arith.divf %124, %125 : vector<8x128xf32>
      %127 = vector.extract_strided_slice %120 {offsets = [0, 128], sizes = [8, 128], strides = [1, 1]} : vector<8x512xf32> to vector<8x128xf32>
      %128 = arith.negf %127 : vector<8x128xf32>
      %129 = math.exp %128 : vector<8x128xf32>
      %cst_48 = arith.constant 1.000000e+00 : f32
      %130 = vector.broadcast %cst_48 : f32 to vector<8x128xf32>
      %131 = arith.addf %130, %129 : vector<8x128xf32>
      %132 = arith.divf %130, %131 : vector<8x128xf32>
      %133 = vector.extract_strided_slice %120 {offsets = [0, 256], sizes = [8, 128], strides = [1, 1]} : vector<8x512xf32> to vector<8x128xf32>
      %134 = math.tanh %133 : vector<8x128xf32>
      %135 = vector.extract_strided_slice %120 {offsets = [0, 384], sizes = [8, 128], strides = [1, 1]} : vector<8x512xf32> to vector<8x128xf32>
      %136 = arith.negf %135 : vector<8x128xf32>
      %137 = math.exp %136 : vector<8x128xf32>
      %cst_49 = arith.constant 1.000000e+00 : f32
      %138 = vector.broadcast %cst_49 : f32 to vector<8x128xf32>
      %139 = arith.addf %138, %137 : vector<8x128xf32>
      %140 = arith.divf %138, %139 : vector<8x128xf32>
      %141 = arith.mulf %132, %85 : vector<8x128xf32>
      %142 = arith.mulf %126, %134 : vector<8x128xf32>
      %143 = arith.addf %141, %142 : vector<8x128xf32>
      %144 = math.tanh %143 : vector<8x128xf32>
      %145 = arith.mulf %140, %144 : vector<8x128xf32>
      %146 = vector.extract_strided_slice %21 {offsets = [0, 2, 0], sizes = [8, 1, 512], strides = [1, 1, 1]} : vector<8x8x512xf32> to vector<8x1x512xf32>
      %147 = vector.shape_cast %146 : vector<8x1x512xf32> to vector<8x512xf32>
      %cst_50 = arith.constant dense<0.000000e+00> : vector<8x512xf32>
      %148 = tpu.matmul %116, %11, %cst_50 {dimension_numbers = #tpu.dot_dimension_numbers<[1], [0], [0], [1], [0, 0, 1, 1], [], []>} : vector<8x128xf32>, vector<128x512xf32>, vector<8x512xf32> -> vector<8x512xf32>
      %149 = arith.addf %147, %148 : vector<8x512xf32>
      %150 = vector.extract_strided_slice %149 {offsets = [0, 0], sizes = [8, 128], strides = [1, 1]} : vector<8x512xf32> to vector<8x128xf32>
      %151 = arith.negf %150 : vector<8x128xf32>
      %152 = math.exp %151 : vector<8x128xf32>
      %cst_51 = arith.constant 1.000000e+00 : f32
      %153 = vector.broadcast %cst_51 : f32 to vector<8x128xf32>
      %154 = arith.addf %153, %152 : vector<8x128xf32>
      %155 = arith.divf %153, %154 : vector<8x128xf32>
      %156 = vector.extract_strided_slice %149 {offsets = [0, 128], sizes = [8, 128], strides = [1, 1]} : vector<8x512xf32> to vector<8x128xf32>
      %157 = arith.negf %156 : vector<8x128xf32>
      %158 = math.exp %157 : vector<8x128xf32>
      %cst_52 = arith.constant 1.000000e+00 : f32
      %159 = vector.broadcast %cst_52 : f32 to vector<8x128xf32>
      %160 = arith.addf %159, %158 : vector<8x128xf32>
      %161 = arith.divf %159, %160 : vector<8x128xf32>
      %162 = vector.extract_strided_slice %149 {offsets = [0, 256], sizes = [8, 128], strides = [1, 1]} : vector<8x512xf32> to vector<8x128xf32>
      %163 = math.tanh %162 : vector<8x128xf32>
      %164 = vector.extract_strided_slice %149 {offsets = [0, 384], sizes = [8, 128], strides = [1, 1]} : vector<8x512xf32> to vector<8x128xf32>
      %165 = arith.negf %164 : vector<8x128xf32>
      %166 = math.exp %165 : vector<8x128xf32>
      %cst_53 = arith.constant 1.000000e+00 : f32
      %167 = vector.broadcast %cst_53 : f32 to vector<8x128xf32>
      %168 = arith.addf %167, %166 : vector<8x128xf32>
      %169 = arith.divf %167, %168 : vector<8x128xf32>
      %170 = arith.mulf %161, %114 : vector<8x128xf32>
      %171 = arith.mulf %155, %163 : vector<8x128xf32>
      %172 = arith.addf %170, %171 : vector<8x128xf32>
      %173 = math.tanh %172 : vector<8x128xf32>
      %174 = arith.mulf %169, %173 : vector<8x128xf32>
      %175 = tpu.concatenate %174, %145 in 1 : vector<8x128xf32>, vector<8x128xf32> -> vector<8x256xf32>
      %cst_54 = arith.constant dense<0.000000e+00> : vector<8x512xf32>
      %176 = tpu.matmul %175, %12, %cst_54 {dimension_numbers = #tpu.dot_dimension_numbers<[1], [0], [0], [1], [0, 0, 1, 1], [], []>} : vector<8x256xf32>, vector<256x512xf32>, vector<8x512xf32> -> vector<8x512xf32>
      %177 = vector.broadcast %13 : vector<1x512xf32> to vector<8x512xf32>
      %178 = arith.addf %176, %177 : vector<8x512xf32>
      %179 = vector.extract_strided_slice %178 {offsets = [0, 0], sizes = [8, 128], strides = [1, 1]} : vector<8x512xf32> to vector<8x128xf32>
      %180 = arith.negf %179 : vector<8x128xf32>
      %181 = math.exp %180 : vector<8x128xf32>
      %cst_55 = arith.constant 1.000000e+00 : f32
      %182 = vector.broadcast %cst_55 : f32 to vector<8x128xf32>
      %183 = arith.addf %182, %181 : vector<8x128xf32>
      %184 = arith.divf %182, %183 : vector<8x128xf32>
      %185 = vector.extract_strided_slice %178 {offsets = [0, 128], sizes = [8, 128], strides = [1, 1]} : vector<8x512xf32> to vector<8x128xf32>
      %186 = arith.negf %185 : vector<8x128xf32>
      %187 = math.exp %186 : vector<8x128xf32>
      %cst_56 = arith.constant 1.000000e+00 : f32
      %188 = vector.broadcast %cst_56 : f32 to vector<8x128xf32>
      %189 = arith.addf %188, %187 : vector<8x128xf32>
      %190 = arith.divf %188, %189 : vector<8x128xf32>
      %191 = vector.extract_strided_slice %178 {offsets = [0, 256], sizes = [8, 128], strides = [1, 1]} : vector<8x512xf32> to vector<8x128xf32>
      %192 = math.tanh %191 : vector<8x128xf32>
      %193 = vector.extract_strided_slice %178 {offsets = [0, 384], sizes = [8, 128], strides = [1, 1]} : vector<8x512xf32> to vector<8x128xf32>
      %194 = arith.negf %193 : vector<8x128xf32>
      %195 = math.exp %194 : vector<8x128xf32>
      %cst_57 = arith.constant 1.000000e+00 : f32
      %196 = vector.broadcast %cst_57 : f32 to vector<8x128xf32>
      %197 = arith.addf %196, %195 : vector<8x128xf32>
      %198 = arith.divf %196, %197 : vector<8x128xf32>
      %199 = arith.mulf %190, %143 : vector<8x128xf32>
      %200 = arith.mulf %184, %192 : vector<8x128xf32>
      %201 = arith.addf %199, %200 : vector<8x128xf32>
      %202 = math.tanh %201 : vector<8x128xf32>
      %203 = arith.mulf %198, %202 : vector<8x128xf32>
      %204 = vector.extract_strided_slice %21 {offsets = [0, 3, 0], sizes = [8, 1, 512], strides = [1, 1, 1]} : vector<8x8x512xf32> to vector<8x1x512xf32>
      %205 = vector.shape_cast %204 : vector<8x1x512xf32> to vector<8x512xf32>
      %cst_58 = arith.constant dense<0.000000e+00> : vector<8x512xf32>
      %206 = tpu.matmul %174, %11, %cst_58 {dimension_numbers = #tpu.dot_dimension_numbers<[1], [0], [0], [1], [0, 0, 1, 1], [], []>} : vector<8x128xf32>, vector<128x512xf32>, vector<8x512xf32> -> vector<8x512xf32>
      %207 = arith.addf %205, %206 : vector<8x512xf32>
      %208 = vector.extract_strided_slice %207 {offsets = [0, 0], sizes = [8, 128], strides = [1, 1]} : vector<8x512xf32> to vector<8x128xf32>
      %209 = arith.negf %208 : vector<8x128xf32>
      %210 = math.exp %209 : vector<8x128xf32>
      %cst_59 = arith.constant 1.000000e+00 : f32
      %211 = vector.broadcast %cst_59 : f32 to vector<8x128xf32>
      %212 = arith.addf %211, %210 : vector<8x128xf32>
      %213 = arith.divf %211, %212 : vector<8x128xf32>
      %214 = vector.extract_strided_slice %207 {offsets = [0, 128], sizes = [8, 128], strides = [1, 1]} : vector<8x512xf32> to vector<8x128xf32>
      %215 = arith.negf %214 : vector<8x128xf32>
      %216 = math.exp %215 : vector<8x128xf32>
      %cst_60 = arith.constant 1.000000e+00 : f32
      %217 = vector.broadcast %cst_60 : f32 to vector<8x128xf32>
      %218 = arith.addf %217, %216 : vector<8x128xf32>
      %219 = arith.divf %217, %218 : vector<8x128xf32>
      %220 = vector.extract_strided_slice %207 {offsets = [0, 256], sizes = [8, 128], strides = [1, 1]} : vector<8x512xf32> to vector<8x128xf32>
      %221 = math.tanh %220 : vector<8x128xf32>
      %222 = vector.extract_strided_slice %207 {offsets = [0, 384], sizes = [8, 128], strides = [1, 1]} : vector<8x512xf32> to vector<8x128xf32>
      %223 = arith.negf %222 : vector<8x128xf32>
      %224 = math.exp %223 : vector<8x128xf32>
      %cst_61 = arith.constant 1.000000e+00 : f32
      %225 = vector.broadcast %cst_61 : f32 to vector<8x128xf32>
      %226 = arith.addf %225, %224 : vector<8x128xf32>
      %227 = arith.divf %225, %226 : vector<8x128xf32>
      %228 = arith.mulf %219, %172 : vector<8x128xf32>
      %229 = arith.mulf %213, %221 : vector<8x128xf32>
      %230 = arith.addf %228, %229 : vector<8x128xf32>
      %231 = math.tanh %230 : vector<8x128xf32>
      %232 = arith.mulf %227, %231 : vector<8x128xf32>
      %233 = tpu.concatenate %232, %203 in 1 : vector<8x128xf32>, vector<8x128xf32> -> vector<8x256xf32>
      %cst_62 = arith.constant dense<0.000000e+00> : vector<8x512xf32>
      %234 = tpu.matmul %233, %12, %cst_62 {dimension_numbers = #tpu.dot_dimension_numbers<[1], [0], [0], [1], [0, 0, 1, 1], [], []>} : vector<8x256xf32>, vector<256x512xf32>, vector<8x512xf32> -> vector<8x512xf32>
      %235 = vector.broadcast %13 : vector<1x512xf32> to vector<8x512xf32>
      %236 = arith.addf %234, %235 : vector<8x512xf32>
      %237 = vector.extract_strided_slice %236 {offsets = [0, 0], sizes = [8, 128], strides = [1, 1]} : vector<8x512xf32> to vector<8x128xf32>
      %238 = arith.negf %237 : vector<8x128xf32>
      %239 = math.exp %238 : vector<8x128xf32>
      %cst_63 = arith.constant 1.000000e+00 : f32
      %240 = vector.broadcast %cst_63 : f32 to vector<8x128xf32>
      %241 = arith.addf %240, %239 : vector<8x128xf32>
      %242 = arith.divf %240, %241 : vector<8x128xf32>
      %243 = vector.extract_strided_slice %236 {offsets = [0, 128], sizes = [8, 128], strides = [1, 1]} : vector<8x512xf32> to vector<8x128xf32>
      %244 = arith.negf %243 : vector<8x128xf32>
      %245 = math.exp %244 : vector<8x128xf32>
      %cst_64 = arith.constant 1.000000e+00 : f32
      %246 = vector.broadcast %cst_64 : f32 to vector<8x128xf32>
      %247 = arith.addf %246, %245 : vector<8x128xf32>
      %248 = arith.divf %246, %247 : vector<8x128xf32>
      %249 = vector.extract_strided_slice %236 {offsets = [0, 256], sizes = [8, 128], strides = [1, 1]} : vector<8x512xf32> to vector<8x128xf32>
      %250 = math.tanh %249 : vector<8x128xf32>
      %251 = vector.extract_strided_slice %236 {offsets = [0, 384], sizes = [8, 128], strides = [1, 1]} : vector<8x512xf32> to vector<8x128xf32>
      %252 = arith.negf %251 : vector<8x128xf32>
      %253 = math.exp %252 : vector<8x128xf32>
      %cst_65 = arith.constant 1.000000e+00 : f32
      %254 = vector.broadcast %cst_65 : f32 to vector<8x128xf32>
      %255 = arith.addf %254, %253 : vector<8x128xf32>
      %256 = arith.divf %254, %255 : vector<8x128xf32>
      %257 = arith.mulf %248, %201 : vector<8x128xf32>
      %258 = arith.mulf %242, %250 : vector<8x128xf32>
      %259 = arith.addf %257, %258 : vector<8x128xf32>
      %260 = math.tanh %259 : vector<8x128xf32>
      %261 = arith.mulf %256, %260 : vector<8x128xf32>
      %262 = vector.extract_strided_slice %21 {offsets = [0, 4, 0], sizes = [8, 1, 512], strides = [1, 1, 1]} : vector<8x8x512xf32> to vector<8x1x512xf32>
      %263 = vector.shape_cast %262 : vector<8x1x512xf32> to vector<8x512xf32>
      %cst_66 = arith.constant dense<0.000000e+00> : vector<8x512xf32>
      %264 = tpu.matmul %232, %11, %cst_66 {dimension_numbers = #tpu.dot_dimension_numbers<[1], [0], [0], [1], [0, 0, 1, 1], [], []>} : vector<8x128xf32>, vector<128x512xf32>, vector<8x512xf32> -> vector<8x512xf32>
      %265 = arith.addf %263, %264 : vector<8x512xf32>
      %266 = vector.extract_strided_slice %265 {offsets = [0, 0], sizes = [8, 128], strides = [1, 1]} : vector<8x512xf32> to vector<8x128xf32>
      %267 = arith.negf %266 : vector<8x128xf32>
      %268 = math.exp %267 : vector<8x128xf32>
      %cst_67 = arith.constant 1.000000e+00 : f32
      %269 = vector.broadcast %cst_67 : f32 to vector<8x128xf32>
      %270 = arith.addf %269, %268 : vector<8x128xf32>
      %271 = arith.divf %269, %270 : vector<8x128xf32>
      %272 = vector.extract_strided_slice %265 {offsets = [0, 128], sizes = [8, 128], strides = [1, 1]} : vector<8x512xf32> to vector<8x128xf32>
      %273 = arith.negf %272 : vector<8x128xf32>
      %274 = math.exp %273 : vector<8x128xf32>
      %cst_68 = arith.constant 1.000000e+00 : f32
      %275 = vector.broadcast %cst_68 : f32 to vector<8x128xf32>
      %276 = arith.addf %275, %274 : vector<8x128xf32>
      %277 = arith.divf %275, %276 : vector<8x128xf32>
      %278 = vector.extract_strided_slice %265 {offsets = [0, 256], sizes = [8, 128], strides = [1, 1]} : vector<8x512xf32> to vector<8x128xf32>
      %279 = math.tanh %278 : vector<8x128xf32>
      %280 = vector.extract_strided_slice %265 {offsets = [0, 384], sizes = [8, 128], strides = [1, 1]} : vector<8x512xf32> to vector<8x128xf32>
      %281 = arith.negf %280 : vector<8x128xf32>
      %282 = math.exp %281 : vector<8x128xf32>
      %cst_69 = arith.constant 1.000000e+00 : f32
      %283 = vector.broadcast %cst_69 : f32 to vector<8x128xf32>
      %284 = arith.addf %283, %282 : vector<8x128xf32>
      %285 = arith.divf %283, %284 : vector<8x128xf32>
      %286 = arith.mulf %277, %230 : vector<8x128xf32>
      %287 = arith.mulf %271, %279 : vector<8x128xf32>
      %288 = arith.addf %286, %287 : vector<8x128xf32>
      %289 = math.tanh %288 : vector<8x128xf32>
      %290 = arith.mulf %285, %289 : vector<8x128xf32>
      %291 = tpu.concatenate %290, %261 in 1 : vector<8x128xf32>, vector<8x128xf32> -> vector<8x256xf32>
      %cst_70 = arith.constant dense<0.000000e+00> : vector<8x512xf32>
      %292 = tpu.matmul %291, %12, %cst_70 {dimension_numbers = #tpu.dot_dimension_numbers<[1], [0], [0], [1], [0, 0, 1, 1], [], []>} : vector<8x256xf32>, vector<256x512xf32>, vector<8x512xf32> -> vector<8x512xf32>
      %293 = vector.broadcast %13 : vector<1x512xf32> to vector<8x512xf32>
      %294 = arith.addf %292, %293 : vector<8x512xf32>
      %295 = vector.extract_strided_slice %294 {offsets = [0, 0], sizes = [8, 128], strides = [1, 1]} : vector<8x512xf32> to vector<8x128xf32>
      %296 = arith.negf %295 : vector<8x128xf32>
      %297 = math.exp %296 : vector<8x128xf32>
      %cst_71 = arith.constant 1.000000e+00 : f32
      %298 = vector.broadcast %cst_71 : f32 to vector<8x128xf32>
      %299 = arith.addf %298, %297 : vector<8x128xf32>
      %300 = arith.divf %298, %299 : vector<8x128xf32>
      %301 = vector.extract_strided_slice %294 {offsets = [0, 128], sizes = [8, 128], strides = [1, 1]} : vector<8x512xf32> to vector<8x128xf32>
      %302 = arith.negf %301 : vector<8x128xf32>
      %303 = math.exp %302 : vector<8x128xf32>
      %cst_72 = arith.constant 1.000000e+00 : f32
      %304 = vector.broadcast %cst_72 : f32 to vector<8x128xf32>
      %305 = arith.addf %304, %303 : vector<8x128xf32>
      %306 = arith.divf %304, %305 : vector<8x128xf32>
      %307 = vector.extract_strided_slice %294 {offsets = [0, 256], sizes = [8, 128], strides = [1, 1]} : vector<8x512xf32> to vector<8x128xf32>
      %308 = math.tanh %307 : vector<8x128xf32>
      %309 = vector.extract_strided_slice %294 {offsets = [0, 384], sizes = [8, 128], strides = [1, 1]} : vector<8x512xf32> to vector<8x128xf32>
      %310 = arith.negf %309 : vector<8x128xf32>
      %311 = math.exp %310 : vector<8x128xf32>
      %cst_73 = arith.constant 1.000000e+00 : f32
      %312 = vector.broadcast %cst_73 : f32 to vector<8x128xf32>
      %313 = arith.addf %312, %311 : vector<8x128xf32>
      %314 = arith.divf %312, %313 : vector<8x128xf32>
      %315 = arith.mulf %306, %259 : vector<8x128xf32>
      %316 = arith.mulf %300, %308 : vector<8x128xf32>
      %317 = arith.addf %315, %316 : vector<8x128xf32>
      %318 = math.tanh %317 : vector<8x128xf32>
      %319 = arith.mulf %314, %318 : vector<8x128xf32>
      %320 = vector.extract_strided_slice %21 {offsets = [0, 5, 0], sizes = [8, 1, 512], strides = [1, 1, 1]} : vector<8x8x512xf32> to vector<8x1x512xf32>
      %321 = vector.shape_cast %320 : vector<8x1x512xf32> to vector<8x512xf32>
      %cst_74 = arith.constant dense<0.000000e+00> : vector<8x512xf32>
      %322 = tpu.matmul %290, %11, %cst_74 {dimension_numbers = #tpu.dot_dimension_numbers<[1], [0], [0], [1], [0, 0, 1, 1], [], []>} : vector<8x128xf32>, vector<128x512xf32>, vector<8x512xf32> -> vector<8x512xf32>
      %323 = arith.addf %321, %322 : vector<8x512xf32>
      %324 = vector.extract_strided_slice %323 {offsets = [0, 0], sizes = [8, 128], strides = [1, 1]} : vector<8x512xf32> to vector<8x128xf32>
      %325 = arith.negf %324 : vector<8x128xf32>
      %326 = math.exp %325 : vector<8x128xf32>
      %cst_75 = arith.constant 1.000000e+00 : f32
      %327 = vector.broadcast %cst_75 : f32 to vector<8x128xf32>
      %328 = arith.addf %327, %326 : vector<8x128xf32>
      %329 = arith.divf %327, %328 : vector<8x128xf32>
      %330 = vector.extract_strided_slice %323 {offsets = [0, 128], sizes = [8, 128], strides = [1, 1]} : vector<8x512xf32> to vector<8x128xf32>
      %331 = arith.negf %330 : vector<8x128xf32>
      %332 = math.exp %331 : vector<8x128xf32>
      %cst_76 = arith.constant 1.000000e+00 : f32
      %333 = vector.broadcast %cst_76 : f32 to vector<8x128xf32>
      %334 = arith.addf %333, %332 : vector<8x128xf32>
      %335 = arith.divf %333, %334 : vector<8x128xf32>
      %336 = vector.extract_strided_slice %323 {offsets = [0, 256], sizes = [8, 128], strides = [1, 1]} : vector<8x512xf32> to vector<8x128xf32>
      %337 = math.tanh %336 : vector<8x128xf32>
      %338 = vector.extract_strided_slice %323 {offsets = [0, 384], sizes = [8, 128], strides = [1, 1]} : vector<8x512xf32> to vector<8x128xf32>
      %339 = arith.negf %338 : vector<8x128xf32>
      %340 = math.exp %339 : vector<8x128xf32>
      %cst_77 = arith.constant 1.000000e+00 : f32
      %341 = vector.broadcast %cst_77 : f32 to vector<8x128xf32>
      %342 = arith.addf %341, %340 : vector<8x128xf32>
      %343 = arith.divf %341, %342 : vector<8x128xf32>
      %344 = arith.mulf %335, %288 : vector<8x128xf32>
      %345 = arith.mulf %329, %337 : vector<8x128xf32>
      %346 = arith.addf %344, %345 : vector<8x128xf32>
      %347 = math.tanh %346 : vector<8x128xf32>
      %348 = arith.mulf %343, %347 : vector<8x128xf32>
      %349 = tpu.concatenate %348, %319 in 1 : vector<8x128xf32>, vector<8x128xf32> -> vector<8x256xf32>
      %cst_78 = arith.constant dense<0.000000e+00> : vector<8x512xf32>
      %350 = tpu.matmul %349, %12, %cst_78 {dimension_numbers = #tpu.dot_dimension_numbers<[1], [0], [0], [1], [0, 0, 1, 1], [], []>} : vector<8x256xf32>, vector<256x512xf32>, vector<8x512xf32> -> vector<8x512xf32>
      %351 = vector.broadcast %13 : vector<1x512xf32> to vector<8x512xf32>
      %352 = arith.addf %350, %351 : vector<8x512xf32>
      %353 = vector.extract_strided_slice %352 {offsets = [0, 0], sizes = [8, 128], strides = [1, 1]} : vector<8x512xf32> to vector<8x128xf32>
      %354 = arith.negf %353 : vector<8x128xf32>
      %355 = math.exp %354 : vector<8x128xf32>
      %cst_79 = arith.constant 1.000000e+00 : f32
      %356 = vector.broadcast %cst_79 : f32 to vector<8x128xf32>
      %357 = arith.addf %356, %355 : vector<8x128xf32>
      %358 = arith.divf %356, %357 : vector<8x128xf32>
      %359 = vector.extract_strided_slice %352 {offsets = [0, 128], sizes = [8, 128], strides = [1, 1]} : vector<8x512xf32> to vector<8x128xf32>
      %360 = arith.negf %359 : vector<8x128xf32>
      %361 = math.exp %360 : vector<8x128xf32>
      %cst_80 = arith.constant 1.000000e+00 : f32
      %362 = vector.broadcast %cst_80 : f32 to vector<8x128xf32>
      %363 = arith.addf %362, %361 : vector<8x128xf32>
      %364 = arith.divf %362, %363 : vector<8x128xf32>
      %365 = vector.extract_strided_slice %352 {offsets = [0, 256], sizes = [8, 128], strides = [1, 1]} : vector<8x512xf32> to vector<8x128xf32>
      %366 = math.tanh %365 : vector<8x128xf32>
      %367 = vector.extract_strided_slice %352 {offsets = [0, 384], sizes = [8, 128], strides = [1, 1]} : vector<8x512xf32> to vector<8x128xf32>
      %368 = arith.negf %367 : vector<8x128xf32>
      %369 = math.exp %368 : vector<8x128xf32>
      %cst_81 = arith.constant 1.000000e+00 : f32
      %370 = vector.broadcast %cst_81 : f32 to vector<8x128xf32>
      %371 = arith.addf %370, %369 : vector<8x128xf32>
      %372 = arith.divf %370, %371 : vector<8x128xf32>
      %373 = arith.mulf %364, %317 : vector<8x128xf32>
      %374 = arith.mulf %358, %366 : vector<8x128xf32>
      %375 = arith.addf %373, %374 : vector<8x128xf32>
      %376 = math.tanh %375 : vector<8x128xf32>
      %377 = arith.mulf %372, %376 : vector<8x128xf32>
      %378 = vector.extract_strided_slice %21 {offsets = [0, 6, 0], sizes = [8, 1, 512], strides = [1, 1, 1]} : vector<8x8x512xf32> to vector<8x1x512xf32>
      %379 = vector.shape_cast %378 : vector<8x1x512xf32> to vector<8x512xf32>
      %cst_82 = arith.constant dense<0.000000e+00> : vector<8x512xf32>
      %380 = tpu.matmul %348, %11, %cst_82 {dimension_numbers = #tpu.dot_dimension_numbers<[1], [0], [0], [1], [0, 0, 1, 1], [], []>} : vector<8x128xf32>, vector<128x512xf32>, vector<8x512xf32> -> vector<8x512xf32>
      %381 = arith.addf %379, %380 : vector<8x512xf32>
      %382 = vector.extract_strided_slice %381 {offsets = [0, 0], sizes = [8, 128], strides = [1, 1]} : vector<8x512xf32> to vector<8x128xf32>
      %383 = arith.negf %382 : vector<8x128xf32>
      %384 = math.exp %383 : vector<8x128xf32>
      %cst_83 = arith.constant 1.000000e+00 : f32
      %385 = vector.broadcast %cst_83 : f32 to vector<8x128xf32>
      %386 = arith.addf %385, %384 : vector<8x128xf32>
      %387 = arith.divf %385, %386 : vector<8x128xf32>
      %388 = vector.extract_strided_slice %381 {offsets = [0, 128], sizes = [8, 128], strides = [1, 1]} : vector<8x512xf32> to vector<8x128xf32>
      %389 = arith.negf %388 : vector<8x128xf32>
      %390 = math.exp %389 : vector<8x128xf32>
      %cst_84 = arith.constant 1.000000e+00 : f32
      %391 = vector.broadcast %cst_84 : f32 to vector<8x128xf32>
      %392 = arith.addf %391, %390 : vector<8x128xf32>
      %393 = arith.divf %391, %392 : vector<8x128xf32>
      %394 = vector.extract_strided_slice %381 {offsets = [0, 256], sizes = [8, 128], strides = [1, 1]} : vector<8x512xf32> to vector<8x128xf32>
      %395 = math.tanh %394 : vector<8x128xf32>
      %396 = vector.extract_strided_slice %381 {offsets = [0, 384], sizes = [8, 128], strides = [1, 1]} : vector<8x512xf32> to vector<8x128xf32>
      %397 = arith.negf %396 : vector<8x128xf32>
      %398 = math.exp %397 : vector<8x128xf32>
      %cst_85 = arith.constant 1.000000e+00 : f32
      %399 = vector.broadcast %cst_85 : f32 to vector<8x128xf32>
      %400 = arith.addf %399, %398 : vector<8x128xf32>
      %401 = arith.divf %399, %400 : vector<8x128xf32>
      %402 = arith.mulf %393, %346 : vector<8x128xf32>
      %403 = arith.mulf %387, %395 : vector<8x128xf32>
      %404 = arith.addf %402, %403 : vector<8x128xf32>
      %405 = math.tanh %404 : vector<8x128xf32>
      %406 = arith.mulf %401, %405 : vector<8x128xf32>
      %407 = tpu.concatenate %406, %377 in 1 : vector<8x128xf32>, vector<8x128xf32> -> vector<8x256xf32>
      %cst_86 = arith.constant dense<0.000000e+00> : vector<8x512xf32>
      %408 = tpu.matmul %407, %12, %cst_86 {dimension_numbers = #tpu.dot_dimension_numbers<[1], [0], [0], [1], [0, 0, 1, 1], [], []>} : vector<8x256xf32>, vector<256x512xf32>, vector<8x512xf32> -> vector<8x512xf32>
      %409 = vector.broadcast %13 : vector<1x512xf32> to vector<8x512xf32>
      %410 = arith.addf %408, %409 : vector<8x512xf32>
      %411 = vector.extract_strided_slice %410 {offsets = [0, 0], sizes = [8, 128], strides = [1, 1]} : vector<8x512xf32> to vector<8x128xf32>
      %412 = arith.negf %411 : vector<8x128xf32>
      %413 = math.exp %412 : vector<8x128xf32>
      %cst_87 = arith.constant 1.000000e+00 : f32
      %414 = vector.broadcast %cst_87 : f32 to vector<8x128xf32>
      %415 = arith.addf %414, %413 : vector<8x128xf32>
      %416 = arith.divf %414, %415 : vector<8x128xf32>
      %417 = vector.extract_strided_slice %410 {offsets = [0, 128], sizes = [8, 128], strides = [1, 1]} : vector<8x512xf32> to vector<8x128xf32>
      %418 = arith.negf %417 : vector<8x128xf32>
      %419 = math.exp %418 : vector<8x128xf32>
      %cst_88 = arith.constant 1.000000e+00 : f32
      %420 = vector.broadcast %cst_88 : f32 to vector<8x128xf32>
      %421 = arith.addf %420, %419 : vector<8x128xf32>
      %422 = arith.divf %420, %421 : vector<8x128xf32>
      %423 = vector.extract_strided_slice %410 {offsets = [0, 256], sizes = [8, 128], strides = [1, 1]} : vector<8x512xf32> to vector<8x128xf32>
      %424 = math.tanh %423 : vector<8x128xf32>
      %425 = vector.extract_strided_slice %410 {offsets = [0, 384], sizes = [8, 128], strides = [1, 1]} : vector<8x512xf32> to vector<8x128xf32>
      %426 = arith.negf %425 : vector<8x128xf32>
      %427 = math.exp %426 : vector<8x128xf32>
      %cst_89 = arith.constant 1.000000e+00 : f32
      %428 = vector.broadcast %cst_89 : f32 to vector<8x128xf32>
      %429 = arith.addf %428, %427 : vector<8x128xf32>
      %430 = arith.divf %428, %429 : vector<8x128xf32>
      %431 = arith.mulf %422, %375 : vector<8x128xf32>
      %432 = arith.mulf %416, %424 : vector<8x128xf32>
      %433 = arith.addf %431, %432 : vector<8x128xf32>
      %434 = math.tanh %433 : vector<8x128xf32>
      %435 = arith.mulf %430, %434 : vector<8x128xf32>
      %436 = vector.extract_strided_slice %21 {offsets = [0, 7, 0], sizes = [8, 1, 512], strides = [1, 1, 1]} : vector<8x8x512xf32> to vector<8x1x512xf32>
      %437 = vector.shape_cast %436 : vector<8x1x512xf32> to vector<8x512xf32>
      %cst_90 = arith.constant dense<0.000000e+00> : vector<8x512xf32>
      %438 = tpu.matmul %406, %11, %cst_90 {dimension_numbers = #tpu.dot_dimension_numbers<[1], [0], [0], [1], [0, 0, 1, 1], [], []>} : vector<8x128xf32>, vector<128x512xf32>, vector<8x512xf32> -> vector<8x512xf32>
      %439 = arith.addf %437, %438 : vector<8x512xf32>
      %440 = vector.extract_strided_slice %439 {offsets = [0, 0], sizes = [8, 128], strides = [1, 1]} : vector<8x512xf32> to vector<8x128xf32>
      %441 = arith.negf %440 : vector<8x128xf32>
      %442 = math.exp %441 : vector<8x128xf32>
      %cst_91 = arith.constant 1.000000e+00 : f32
      %443 = vector.broadcast %cst_91 : f32 to vector<8x128xf32>
      %444 = arith.addf %443, %442 : vector<8x128xf32>
      %445 = arith.divf %443, %444 : vector<8x128xf32>
      %446 = vector.extract_strided_slice %439 {offsets = [0, 128], sizes = [8, 128], strides = [1, 1]} : vector<8x512xf32> to vector<8x128xf32>
      %447 = arith.negf %446 : vector<8x128xf32>
      %448 = math.exp %447 : vector<8x128xf32>
      %cst_92 = arith.constant 1.000000e+00 : f32
      %449 = vector.broadcast %cst_92 : f32 to vector<8x128xf32>
      %450 = arith.addf %449, %448 : vector<8x128xf32>
      %451 = arith.divf %449, %450 : vector<8x128xf32>
      %452 = vector.extract_strided_slice %439 {offsets = [0, 256], sizes = [8, 128], strides = [1, 1]} : vector<8x512xf32> to vector<8x128xf32>
      %453 = math.tanh %452 : vector<8x128xf32>
      %454 = vector.extract_strided_slice %439 {offsets = [0, 384], sizes = [8, 128], strides = [1, 1]} : vector<8x512xf32> to vector<8x128xf32>
      %455 = arith.negf %454 : vector<8x128xf32>
      %456 = math.exp %455 : vector<8x128xf32>
      %cst_93 = arith.constant 1.000000e+00 : f32
      %457 = vector.broadcast %cst_93 : f32 to vector<8x128xf32>
      %458 = arith.addf %457, %456 : vector<8x128xf32>
      %459 = arith.divf %457, %458 : vector<8x128xf32>
      %460 = arith.mulf %451, %404 : vector<8x128xf32>
      %461 = arith.mulf %445, %453 : vector<8x128xf32>
      %462 = arith.addf %460, %461 : vector<8x128xf32>
      %463 = math.tanh %462 : vector<8x128xf32>
      %464 = arith.mulf %459, %463 : vector<8x128xf32>
      %465 = tpu.concatenate %464, %435 in 1 : vector<8x128xf32>, vector<8x128xf32> -> vector<8x256xf32>
      %cst_94 = arith.constant dense<0.000000e+00> : vector<8x512xf32>
      %466 = tpu.matmul %465, %12, %cst_94 {dimension_numbers = #tpu.dot_dimension_numbers<[1], [0], [0], [1], [0, 0, 1, 1], [], []>} : vector<8x256xf32>, vector<256x512xf32>, vector<8x512xf32> -> vector<8x512xf32>
      %467 = vector.broadcast %13 : vector<1x512xf32> to vector<8x512xf32>
      %468 = arith.addf %466, %467 : vector<8x512xf32>
      %469 = vector.extract_strided_slice %468 {offsets = [0, 0], sizes = [8, 128], strides = [1, 1]} : vector<8x512xf32> to vector<8x128xf32>
      %470 = arith.negf %469 : vector<8x128xf32>
      %471 = math.exp %470 : vector<8x128xf32>
      %cst_95 = arith.constant 1.000000e+00 : f32
      %472 = vector.broadcast %cst_95 : f32 to vector<8x128xf32>
      %473 = arith.addf %472, %471 : vector<8x128xf32>
      %474 = arith.divf %472, %473 : vector<8x128xf32>
      %475 = vector.extract_strided_slice %468 {offsets = [0, 128], sizes = [8, 128], strides = [1, 1]} : vector<8x512xf32> to vector<8x128xf32>
      %476 = arith.negf %475 : vector<8x128xf32>
      %477 = math.exp %476 : vector<8x128xf32>
      %cst_96 = arith.constant 1.000000e+00 : f32
      %478 = vector.broadcast %cst_96 : f32 to vector<8x128xf32>
      %479 = arith.addf %478, %477 : vector<8x128xf32>
      %480 = arith.divf %478, %479 : vector<8x128xf32>
      %481 = vector.extract_strided_slice %468 {offsets = [0, 256], sizes = [8, 128], strides = [1, 1]} : vector<8x512xf32> to vector<8x128xf32>
      %482 = math.tanh %481 : vector<8x128xf32>
      %483 = vector.extract_strided_slice %468 {offsets = [0, 384], sizes = [8, 128], strides = [1, 1]} : vector<8x512xf32> to vector<8x128xf32>
      %484 = arith.negf %483 : vector<8x128xf32>
      %485 = math.exp %484 : vector<8x128xf32>
      %cst_97 = arith.constant 1.000000e+00 : f32
      %486 = vector.broadcast %cst_97 : f32 to vector<8x128xf32>
      %487 = arith.addf %486, %485 : vector<8x128xf32>
      %488 = arith.divf %486, %487 : vector<8x128xf32>
      %489 = arith.mulf %480, %433 : vector<8x128xf32>
      %490 = arith.mulf %474, %482 : vector<8x128xf32>
      %491 = arith.addf %489, %490 : vector<8x128xf32>
      %492 = math.tanh %491 : vector<8x128xf32>
      %493 = arith.mulf %488, %492 : vector<8x128xf32>
      %494 = vector.shape_cast %87 : vector<8x128xf32> to vector<8x1x128xf32>
      %495 = vector.shape_cast %145 : vector<8x128xf32> to vector<8x1x128xf32>
      %496 = vector.shape_cast %203 : vector<8x128xf32> to vector<8x1x128xf32>
      %497 = vector.shape_cast %261 : vector<8x128xf32> to vector<8x1x128xf32>
      %498 = vector.shape_cast %319 : vector<8x128xf32> to vector<8x1x128xf32>
      %499 = vector.shape_cast %377 : vector<8x128xf32> to vector<8x1x128xf32>
      %500 = vector.shape_cast %435 : vector<8x128xf32> to vector<8x1x128xf32>
      %501 = vector.shape_cast %493 : vector<8x128xf32> to vector<8x1x128xf32>
      %502 = tpu.concatenate %494, %495, %496, %497, %498, %499, %500, %501 in 1 : vector<8x1x128xf32>, vector<8x1x128xf32>, vector<8x1x128xf32>, vector<8x1x128xf32>, vector<8x1x128xf32>, vector<8x1x128xf32>, vector<8x1x128xf32>, vector<8x1x128xf32> -> vector<8x8x128xf32>
      %c0_98 = arith.constant 0 : index
      %c0_99 = arith.constant 0 : index
      %c0_100 = arith.constant 0 : index
      %503 = vector.load %arg14[%c0_98, %c0_99, %c0_100] : memref<8x8x128xf32, #tpu.memory_space<vmem>>, vector<8x8x128xf32>
      tpu.vector_store %arg14[%c0_98, %c0_99, %c0_100], %502 {strides = array<i32>} : memref<8x8x128xf32, #tpu.memory_space<vmem>>, vector<8x8x128xf32>,
      %c0_101 = arith.constant 0 : index
      %c0_102 = arith.constant 0 : index
      %c0_103 = arith.constant 0 : index
      %504 = vector.load %arg12[%c0_101, %c0_102, %c0_103] : memref<2x8x128xf32, #tpu.memory_space<vmem>>, vector<1x8x128xf32>
      %505 = vector.shape_cast %504 : vector<1x8x128xf32> to vector<8x128xf32>
      %506 = vector.shape_cast %464 : vector<8x128xf32> to vector<1x8x128xf32>
      tpu.vector_store %arg12[%c0_101, %c0_102, %c0_103], %506 {strides = array<i32>} : memref<2x8x128xf32, #tpu.memory_space<vmem>>, vector<1x8x128xf32>,
      %c1_104 = arith.constant 1 : index
      %c0_105 = arith.constant 0 : index
      %c0_106 = arith.constant 0 : index
      %507 = vector.load %arg12[%c1_104, %c0_105, %c0_106] : memref<2x8x128xf32, #tpu.memory_space<vmem>>, vector<1x8x128xf32>
      %508 = vector.shape_cast %507 : vector<1x8x128xf32> to vector<8x128xf32>
      %509 = vector.shape_cast %493 : vector<8x128xf32> to vector<1x8x128xf32>
      tpu.vector_store %arg12[%c1_104, %c0_105, %c0_106], %509 {strides = array<i32>} : memref<2x8x128xf32, #tpu.memory_space<vmem>>, vector<1x8x128xf32>,
      %c0_107 = arith.constant 0 : index
      %c0_108 = arith.constant 0 : index
      %c0_109 = arith.constant 0 : index
      %510 = vector.load %arg13[%c0_107, %c0_108, %c0_109] : memref<2x8x128xf32, #tpu.memory_space<vmem>>, vector<1x8x128xf32>
      %511 = vector.shape_cast %510 : vector<1x8x128xf32> to vector<8x128xf32>
      %512 = vector.shape_cast %462 : vector<8x128xf32> to vector<1x8x128xf32>
      tpu.vector_store %arg13[%c0_107, %c0_108, %c0_109], %512 {strides = array<i32>} : memref<2x8x128xf32, #tpu.memory_space<vmem>>, vector<1x8x128xf32>,
      %c1_110 = arith.constant 1 : index
      %c0_111 = arith.constant 0 : index
      %c0_112 = arith.constant 0 : index
      %513 = vector.load %arg13[%c1_110, %c0_111, %c0_112] : memref<2x8x128xf32, #tpu.memory_space<vmem>>, vector<1x8x128xf32>
      %514 = vector.shape_cast %513 : vector<1x8x128xf32> to vector<8x128xf32>
      %515 = vector.shape_cast %491 : vector<8x128xf32> to vector<1x8x128xf32>
      tpu.vector_store %arg13[%c1_110, %c0_111, %c0_112], %515 {strides = array<i32>} : memref<2x8x128xf32, #tpu.memory_space<vmem>>, vector<1x8x128xf32>,
    } else {
    }
    %c0 = arith.constant 0 : index
    %c0_1 = arith.constant 0 : index
    %c0_2 = arith.constant 0 : index
    %3 = vector.load %arg14[%c0, %c0_1, %c0_2] : memref<8x8x128xf32, #tpu.memory_space<vmem>>, vector<8x8x128xf32>
    %4 = vector.shape_cast %3 : vector<8x8x128xf32> to vector<64x128xf32>
    %c0_3 = arith.constant 0 : index
    %c0_4 = arith.constant 0 : index
    %5 = vector.load %arg9[%c0_3, %c0_4] : memref<128x128xf32, #tpu.memory_space<vmem>>, vector<128x128xf32>
    %cst = arith.constant dense<0.000000e+00> : vector<64x128xf32>
    %6 = tpu.matmul %4, %5, %cst {dimension_numbers = #tpu.dot_dimension_numbers<[1], [0], [0], [1], [0, 0, 1, 1], [], []>} : vector<64x128xf32>, vector<128x128xf32>, vector<64x128xf32> -> vector<64x128xf32>
    %c0_5 = arith.constant 0 : index
    %c0_6 = arith.constant 0 : index
    %7 = vector.load %arg10[%c0_5, %c0_6] : memref<1x128xf32, #tpu.memory_space<vmem>>, vector<1x128xf32>
    %8 = vector.broadcast %7 : vector<1x128xf32> to vector<64x128xf32>
    %9 = arith.addf %6, %8 : vector<64x128xf32>
    %c0_7 = arith.constant 0 : index
    %c0_8 = arith.constant 0 : index
    %10 = vector.load %arg11[%c0_7, %c0_8] : memref<64x128xf32, #tpu.memory_space<vmem>>, vector<64x128xf32>
    tpu.vector_store %arg11[%c0_7, %c0_8], %9 {strides = array<i32>} : memref<64x128xf32, #tpu.memory_space<vmem>>, vector<64x128xf32>,
    return
  }
  func.func @transform_0(%arg0: i32) -> (i32, i32, i32) {
    %c0_i32 = arith.constant 0 : i32
    %c0_i32_0 = arith.constant 0 : i32
    %c0_i32_1 = arith.constant 0 : i32
    %c0_i32_2 = arith.constant 0 : i32
    return %c0_i32, %c0_i32_0, %c0_i32_1 : i32, i32, i32
  }
  func.func @transform_1(%arg0: i32) -> (i32, i32) {
    %c0_i32 = arith.constant 0 : i32
    %c0_i32_0 = arith.constant 0 : i32
    %c0_i32_1 = arith.constant 0 : i32
    return %c0_i32, %c0_i32_0 : i32, i32
  }
  func.func @transform_2(%arg0: i32) -> (i32, i32) {
    %c0_i32 = arith.constant 0 : i32
    %c0_i32_0 = arith.constant 0 : i32
    %c0_i32_1 = arith.constant 0 : i32
    return %c0_i32, %c0_i32_0 : i32, i32
  }
  func.func @transform_3(%arg0: i32) -> (i32, i32) {
    %c0_i32 = arith.constant 0 : i32
    %c0_i32_0 = arith.constant 0 : i32
    %c0_i32_1 = arith.constant 0 : i32
    return %c0_i32, %c0_i32_0 : i32, i32
  }
  func.func @transform_4(%arg0: i32) -> (i32, i32) {
    %c0_i32 = arith.constant 0 : i32
    %c0_i32_0 = arith.constant 0 : i32
    %c0_i32_1 = arith.constant 0 : i32
    return %c0_i32, %c0_i32_0 : i32, i32
  }
  func.func @transform_5(%arg0: i32) -> (i32, i32) {
    %c0_i32 = arith.constant 0 : i32
    %c0_i32_0 = arith.constant 0 : i32
    %c0_i32_1 = arith.constant 0 : i32
    return %c0_i32, %c0_i32_0 : i32, i32
  }
  func.func @transform_6(%arg0: i32) -> (i32, i32, i32) {
    %c0_i32 = arith.constant 0 : i32
    %c0_i32_0 = arith.constant 0 : i32
    %c0_i32_1 = arith.constant 0 : i32
    %c0_i32_2 = arith.constant 0 : i32
    return %c0_i32, %c0_i32_0, %c0_i32_1 : i32, i32, i32
  }
  func.func @transform_7(%arg0: i32) -> (i32, i32, i32) {
    %c0_i32 = arith.constant 0 : i32
    %c0_i32_0 = arith.constant 0 : i32
    %c0_i32_1 = arith.constant 0 : i32
    %c0_i32_2 = arith.constant 0 : i32
    return %c0_i32, %c0_i32_0, %c0_i32_1 : i32, i32, i32
  }
  func.func @transform_8(%arg0: i32) -> (i32, i32) {
    %c0_i32 = arith.constant 0 : i32
    %c0_i32_0 = arith.constant 0 : i32
    return %c0_i32, %arg0 : i32, i32
  }
  func.func @transform_9(%arg0: i32) -> (i32, i32) {
    %c0_i32 = arith.constant 0 : i32
    %c0_i32_0 = arith.constant 0 : i32
    return %c0_i32, %arg0 : i32, i32
  }
  func.func @transform_10(%arg0: i32) -> (i32, i32) {
    %c0_i32 = arith.constant 0 : i32
    %c0_i32_0 = arith.constant 0 : i32
    return %c0_i32, %arg0 : i32, i32
  }
  func.func @transform_11(%arg0: i32) -> (i32, i32, i32) {
    %c0_i32 = arith.constant 0 : i32
    %c0_i32_0 = arith.constant 0 : i32
    %c0_i32_1 = arith.constant 0 : i32
    %c0_i32_2 = arith.constant 0 : i32
    return %c0_i32, %c0_i32_0, %c0_i32_1 : i32, i32, i32
  }
  func.func @transform_12(%arg0: i32) -> (i32, i32, i32) {
    %c0_i32 = arith.constant 0 : i32
    %c0_i32_0 = arith.constant 0 : i32
    %c0_i32_1 = arith.constant 0 : i32
    %c0_i32_2 = arith.constant 0 : i32
    return %c0_i32, %c0_i32_0, %c0_i32_1 : i32, i32, i32
  }
}

</mosaic_0001>

<llo_original>
// kernel: poetry_forward.1
$region0: #{poetry_forward.1}
  #allocation0 [shape = 'u32[]', space=smem, size = 0x4, offset = 0x4, fixed_abs, tag = 'smem constant byte address 0x4 - core index']
  #allocation1 [shape = 'u32[72,128]{1,0:T(1,128)}', space=vmem, size = 0x9000, scoped, tag = 'internal scratch']
  #allocation2 [shape = 'f32[8,8,128]{2,1,0:T(8,128)}', space=vmem, size = 0x8000, scoped, tag = 'scratch operand']
  %s0 = inlined_call_operand.vmem [shape: f32[8,8,32], index: 0, kind: input, shape index: {}]
  %s1 = inlined_call_operand.vmem [shape: f32[32,512], index: 1, kind: input, shape index: {}]
  %s2 = inlined_call_operand.vmem [shape: f32[128,512], index: 2, kind: input, shape index: {}]
  %s3 = inlined_call_operand.vmem [shape: f32[1,512], index: 3, kind: input, shape index: {}]
  %s4 = inlined_call_operand.vmem [shape: f32[256,512], index: 4, kind: input, shape index: {}]
  %s5 = inlined_call_operand.vmem [shape: f32[1,512], index: 5, kind: input, shape index: {}]
  %s6 = inlined_call_operand.vmem [shape: f32[2,8,128], index: 6, kind: input, shape index: {}, may-alias: {6,7}]
  %s7 = inlined_call_operand.vmem [shape: f32[2,8,128], index: 7, kind: input, shape index: {}, may-alias: {6,7}]
  %s8 = inlined_call_operand.vmem [shape: f32[128,128], index: 8, kind: input, shape index: {}]
  %s9 = inlined_call_operand.vmem [shape: f32[1,128], index: 9, kind: input, shape index: {}]
  %s10 = inlined_call_operand.vmem [shape: f32[64,128], index: 10, kind: output, shape index: {0}]
  %s11 = inlined_call_operand.vmem [shape: f32[2,8,128], index: 11, kind: output, shape index: {1}]
  %s12 = inlined_call_operand.vmem [shape: f32[2,8,128], index: 12, kind: output, shape index: {2}]
  %13 = xla_tuple %s10, %s11, %s12
  %s14 = sld [smem:[#allocation0]]
  $region70: #{poetry_forward.1} parent=0
    _
  %s16 = ssub.s32 1, %s14
  %s17 = scalar_select 0, %s16, %s14
  // Predicated region
  $region2: #{poetry_forward.1} parent=0 // pred_check
    _
  $region3: #{poetry_forward.1} parent=0 // pred_check_branch
    %19 = sbr.rel (0) target = $region5
  $region4: #{poetry_forward.1} parent=0 // pred_region
    _
  $region5: #{poetry_forward.1} parent=0 // pred_fallthru
    _
  // Predicated region
  $region6: #{poetry_forward.1} parent=0 // pred_check
    _
  $region7: #{poetry_forward.1} parent=0 // pred_check_branch
    %21 = sbr.rel (0) target = $region9
  $region8: #{poetry_forward.1} parent=0 // pred_region
    _
  $region9: #{poetry_forward.1} parent=0 // pred_fallthru
    _
  // Predicated region
  $region10: #{poetry_forward.1} parent=0 // pred_check
    _
  $region11: #{poetry_forward.1} parent=0 // pred_check_branch
    %23 = sbr.rel (0) target = $region13
  $region12: #{poetry_forward.1} parent=0 // pred_region
    _
  $region13: #{poetry_forward.1} parent=0 // pred_fallthru
    _
  // Predicated region
  $region14: #{poetry_forward.1} parent=0 // pred_check
    _
  $region15: #{poetry_forward.1} parent=0 // pred_check_branch
    %25 = sbr.rel (0) target = $region17
  $region16: #{poetry_forward.1} parent=0 // pred_region
    _
  $region17: #{poetry_forward.1} parent=0 // pred_fallthru
    _
  // Predicated region
  $region18: #{poetry_forward.1} parent=0 // pred_check
    _
  $region19: #{poetry_forward.1} parent=0 // pred_check_branch
    %27 = sbr.rel (0) target = $region21
  $region20: #{poetry_forward.1} parent=0 // pred_region
    _
  $region21: #{poetry_forward.1} parent=0 // pred_fallthru
    _
  // Predicated region
  $region22: #{poetry_forward.1} parent=0 // pred_check
    _
  $region23: #{poetry_forward.1} parent=0 // pred_check_branch
    %29 = sbr.rel (0) target = $region25
  $region24: #{poetry_forward.1} parent=0 // pred_region
    _
  $region25: #{poetry_forward.1} parent=0 // pred_fallthru
    _
  // Predicated region
  $region26: #{poetry_forward.1} parent=0 // pred_check
    _
  $region27: #{poetry_forward.1} parent=0 // pred_check_branch
    %31 = sbr.rel (0) target = $region29
  $region28: #{poetry_forward.1} parent=0 // pred_region
    _
  $region29: #{poetry_forward.1} parent=0 // pred_fallthru
    _
  // Predicated region
  $region30: #{poetry_forward.1} parent=0 // pred_check
    _
  $region31: #{poetry_forward.1} parent=0 // pred_check_branch
    %33 = sbr.rel (0) target = $region33
  $region32: #{poetry_forward.1} parent=0 // pred_region
    _
  $region33: #{poetry_forward.1} parent=0 // pred_fallthru
    _
  // Predicated region
  $region34: #{poetry_forward.1} parent=0 // pred_check
    _
  $region35: #{poetry_forward.1} parent=0 // pred_check_branch
    %35 = sbr.rel (0) target = $region37
  $region36: #{poetry_forward.1} parent=0 // pred_region
    _
  $region37: #{poetry_forward.1} parent=0 // pred_fallthru
    _
  // Predicated region
  $region38: #{poetry_forward.1} parent=0 // pred_check
    _
  $region39: #{poetry_forward.1} parent=0 // pred_check_branch
    %37 = sbr.rel (0) target = $region41
  $region40: #{poetry_forward.1} parent=0 // pred_region
    _
  $region41: #{poetry_forward.1} parent=0 // pred_fallthru
    _
  %p38 = scmp.eq.s32.totalorder 0, 0
  // Predicated region
  $region42: #{poetry_forward.1} parent=0 // pred_check
    %p39 = pneg %p38
  $region43: #{poetry_forward.1} parent=0 // pred_check_branch
    %41 = sbr.rel (%p39) target = $region45
  $region44: #{poetry_forward.1} parent=0 // pred_region
    %v42 = vld [vmem:[%s2] sm:$0xff]
    %v43 = vld [vmem:[%s2 + $0x8] sm:$0xff]
    %v44 = vld [vmem:[%s2 + $0x10] sm:$0xff]
    %v45 = vld [vmem:[%s2 + $0x18] sm:$0xff]
    %v46 = vld [vmem:[%s2 + $0x20] sm:$0xff]
    %v47 = vld [vmem:[%s2 + $0x28] sm:$0xff]
    %v48 = vld [vmem:[%s2 + $0x30] sm:$0xff]
    %v49 = vld [vmem:[%s2 + $0x38] sm:$0xff]
    %v50 = vld [vmem:[%s2 + $0x40] sm:$0xff]
    %v51 = vld [vmem:[%s2 + $0x48] sm:$0xff]
    %v52 = vld [vmem:[%s2 + $0x50] sm:$0xff]
    %v53 = vld [vmem:[%s2 + $0x58] sm:$0xff]
    %v54 = vld [vmem:[%s2 + $0x60] sm:$0xff]
    %v55 = vld [vmem:[%s2 + $0x68] sm:$0xff]
    %v56 = vld [vmem:[%s2 + $0x70] sm:$0xff]
    %v57 = vld [vmem:[%s2 + $0x78] sm:$0xff]
    %v58 = vld [vmem:[%s2 + $0x80] sm:$0xff]
    %v59 = vld [vmem:[%s2 + $0x88] sm:$0xff]
    %v60 = vld [vmem:[%s2 + $0x90] sm:$0xff]
    %v61 = vld [vmem:[%s2 + $0x98] sm:$0xff]
    %v62 = vld [vmem:[%s2 + $0xa0] sm:$0xff]
    %v63 = vld [vmem:[%s2 + $0xa8] sm:$0xff]
    %v64 = vld [vmem:[%s2 + $0xb0] sm:$0xff]
    %v65 = vld [vmem:[%s2 + $0xb8] sm:$0xff]
    %v66 = vld [vmem:[%s2 + $0xc0] sm:$0xff]
    %v67 = vld [vmem:[%s2 + $0xc8] sm:$0xff]
    %v68 = vld [vmem:[%s2 + $0xd0] sm:$0xff]
    %v69 = vld [vmem:[%s2 + $0xd8] sm:$0xff]
    %v70 = vld [vmem:[%s2 + $0xe0] sm:$0xff]
    %v71 = vld [vmem:[%s2 + $0xe8] sm:$0xff]
    %v72 = vld [vmem:[%s2 + $0xf0] sm:$0xff]
    %v73 = vld [vmem:[%s2 + $0xf8] sm:$0xff]
    %v74 = vld [vmem:[%s2 + $0x100] sm:$0xff]
    %v75 = vld [vmem:[%s2 + $0x108] sm:$0xff]
    %v76 = vld [vmem:[%s2 + $0x110] sm:$0xff]
    %v77 = vld [vmem:[%s2 + $0x118] sm:$0xff]
    %v78 = vld [vmem:[%s2 + $0x120] sm:$0xff]
    %v79 = vld [vmem:[%s2 + $0x128] sm:$0xff]
    %v80 = vld [vmem:[%s2 + $0x130] sm:$0xff]
    %v81 = vld [vmem:[%s2 + $0x138] sm:$0xff]
    %v82 = vld [vmem:[%s2 + $0x140] sm:$0xff]
    %v83 = vld [vmem:[%s2 + $0x148] sm:$0xff]
    %v84 = vld [vmem:[%s2 + $0x150] sm:$0xff]
    %v85 = vld [vmem:[%s2 + $0x158] sm:$0xff]
    %v86 = vld [vmem:[%s2 + $0x160] sm:$0xff]
    %v87 = vld [vmem:[%s2 + $0x168] sm:$0xff]
    %v88 = vld [vmem:[%s2 + $0x170] sm:$0xff]
    %v89 = vld [vmem:[%s2 + $0x178] sm:$0xff]
    %v90 = vld [vmem:[%s2 + $0x180] sm:$0xff]
    %v91 = vld [vmem:[%s2 + $0x188] sm:$0xff]
    %v92 = vld [vmem:[%s2 + $0x190] sm:$0xff]
    %v93 = vld [vmem:[%s2 + $0x198] sm:$0xff]
    %v94 = vld [vmem:[%s2 + $0x1a0] sm:$0xff]
    %v95 = vld [vmem:[%s2 + $0x1a8] sm:$0xff]
    %v96 = vld [vmem:[%s2 + $0x1b0] sm:$0xff]
    %v97 = vld [vmem:[%s2 + $0x1b8] sm:$0xff]
    %v98 = vld [vmem:[%s2 + $0x1c0] sm:$0xff]
    %v99 = vld [vmem:[%s2 + $0x1c8] sm:$0xff]
    %v100 = vld [vmem:[%s2 + $0x1d0] sm:$0xff]
    %v101 = vld [vmem:[%s2 + $0x1d8] sm:$0xff]
    %v102 = vld [vmem:[%s2 + $0x1e0] sm:$0xff]
    %v103 = vld [vmem:[%s2 + $0x1e8] sm:$0xff]
    %v104 = vld [vmem:[%s2 + $0x1f0] sm:$0xff]
    %v105 = vld [vmem:[%s2 + $0x1f8] sm:$0xff]
    %v106 = vld [vmem:[%s4] sm:$0xff]
    %v107 = vld [vmem:[%s4 + $0x8] sm:$0xff]
    %v108 = vld [vmem:[%s4 + $0x10] sm:$0xff]
    %v109 = vld [vmem:[%s4 + $0x18] sm:$0xff]
    %v110 = vld [vmem:[%s4 + $0x20] sm:$0xff]
    %v111 = vld [vmem:[%s4 + $0x28] sm:$0xff]
    %v112 = vld [vmem:[%s4 + $0x30] sm:$0xff]
    %v113 = vld [vmem:[%s4 + $0x38] sm:$0xff]
    %v114 = vld [vmem:[%s4 + $0x40] sm:$0xff]
    %v115 = vld [vmem:[%s4 + $0x48] sm:$0xff]
    %v116 = vld [vmem:[%s4 + $0x50] sm:$0xff]
    %v117 = vld [vmem:[%s4 + $0x58] sm:$0xff]
    %v118 = vld [vmem:[%s4 + $0x60] sm:$0xff]
    %v119 = vld [vmem:[%s4 + $0x68] sm:$0xff]
    %v120 = vld [vmem:[%s4 + $0x70] sm:$0xff]
    %v121 = vld [vmem:[%s4 + $0x78] sm:$0xff]
    %v122 = vld [vmem:[%s4 + $0x80] sm:$0xff]
    %v123 = vld [vmem:[%s4 + $0x88] sm:$0xff]
    %v124 = vld [vmem:[%s4 + $0x90] sm:$0xff]
    %v125 = vld [vmem:[%s4 + $0x98] sm:$0xff]
    %v126 = vld [vmem:[%s4 + $0xa0] sm:$0xff]
    %v127 = vld [vmem:[%s4 + $0xa8] sm:$0xff]
    %v128 = vld [vmem:[%s4 + $0xb0] sm:$0xff]
    %v129 = vld [vmem:[%s4 + $0xb8] sm:$0xff]
    %v130 = vld [vmem:[%s4 + $0xc0] sm:$0xff]
    %v131 = vld [vmem:[%s4 + $0xc8] sm:$0xff]
    %v132 = vld [vmem:[%s4 + $0xd0] sm:$0xff]
    %v133 = vld [vmem:[%s4 + $0xd8] sm:$0xff]
    %v134 = vld [vmem:[%s4 + $0xe0] sm:$0xff]
    %v135 = vld [vmem:[%s4 + $0xe8] sm:$0xff]
    %v136 = vld [vmem:[%s4 + $0xf0] sm:$0xff]
    %v137 = vld [vmem:[%s4 + $0xf8] sm:$0xff]
    %v138 = vld [vmem:[%s4 + $0x100] sm:$0xff]
    %v139 = vld [vmem:[%s4 + $0x108] sm:$0xff]
    %v140 = vld [vmem:[%s4 + $0x110] sm:$0xff]
    %v141 = vld [vmem:[%s4 + $0x118] sm:$0xff]
    %v142 = vld [vmem:[%s4 + $0x120] sm:$0xff]
    %v143 = vld [vmem:[%s4 + $0x128] sm:$0xff]
    %v144 = vld [vmem:[%s4 + $0x130] sm:$0xff]
    %v145 = vld [vmem:[%s4 + $0x138] sm:$0xff]
    %v146 = vld [vmem:[%s4 + $0x140] sm:$0xff]
    %v147 = vld [vmem:[%s4 + $0x148] sm:$0xff]
    %v148 = vld [vmem:[%s4 + $0x150] sm:$0xff]
    %v149 = vld [vmem:[%s4 + $0x158] sm:$0xff]
    %v150 = vld [vmem:[%s4 + $0x160] sm:$0xff]
    %v151 = vld [vmem:[%s4 + $0x168] sm:$0xff]
    %v152 = vld [vmem:[%s4 + $0x170] sm:$0xff]
    %v153 = vld [vmem:[%s4 + $0x178] sm:$0xff]
    %v154 = vld [vmem:[%s4 + $0x180] sm:$0xff]
    %v155 = vld [vmem:[%s4 + $0x188] sm:$0xff]
    %v156 = vld [vmem:[%s4 + $0x190] sm:$0xff]
    %v157 = vld [vmem:[%s4 + $0x198] sm:$0xff]
    %v158 = vld [vmem:[%s4 + $0x1a0] sm:$0xff]
    %v159 = vld [vmem:[%s4 + $0x1a8] sm:$0xff]
    %v160 = vld [vmem:[%s4 + $0x1b0] sm:$0xff]
    %v161 = vld [vmem:[%s4 + $0x1b8] sm:$0xff]
    %v162 = vld [vmem:[%s4 + $0x1c0] sm:$0xff]
    %v163 = vld [vmem:[%s4 + $0x1c8] sm:$0xff]
    %v164 = vld [vmem:[%s4 + $0x1d0] sm:$0xff]
    %v165 = vld [vmem:[%s4 + $0x1d8] sm:$0xff]
    %v166 = vld [vmem:[%s4 + $0x1e0] sm:$0xff]
    %v167 = vld [vmem:[%s4 + $0x1e8] sm:$0xff]
    %v168 = vld [vmem:[%s4 + $0x1f0] sm:$0xff]
    %v169 = vld [vmem:[%s4 + $0x1f8] sm:$0xff]
    %v170 = vld [vmem:[%s4 + $0x200] sm:$0xff]
    %v171 = vld [vmem:[%s4 + $0x208] sm:$0xff]
    %v172 = vld [vmem:[%s4 + $0x210] sm:$0xff]
    %v173 = vld [vmem:[%s4 + $0x218] sm:$0xff]
    %v174 = vld [vmem:[%s4 + $0x220] sm:$0xff]
    %v175 = vld [vmem:[%s4 + $0x228] sm:$0xff]
    %v176 = vld [vmem:[%s4 + $0x230] sm:$0xff]
    %v177 = vld [vmem:[%s4 + $0x238] sm:$0xff]
    %v178 = vld [vmem:[%s4 + $0x240] sm:$0xff]
    %v179 = vld [vmem:[%s4 + $0x248] sm:$0xff]
    %v180 = vld [vmem:[%s4 + $0x250] sm:$0xff]
    %v181 = vld [vmem:[%s4 + $0x258] sm:$0xff]
    %v182 = vld [vmem:[%s4 + $0x260] sm:$0xff]
    %v183 = vld [vmem:[%s4 + $0x268] sm:$0xff]
    %v184 = vld [vmem:[%s4 + $0x270] sm:$0xff]
    %v185 = vld [vmem:[%s4 + $0x278] sm:$0xff]
    %v186 = vld [vmem:[%s4 + $0x280] sm:$0xff]
    %v187 = vld [vmem:[%s4 + $0x288] sm:$0xff]
    %v188 = vld [vmem:[%s4 + $0x290] sm:$0xff]
    %v189 = vld [vmem:[%s4 + $0x298] sm:$0xff]
    %v190 = vld [vmem:[%s4 + $0x2a0] sm:$0xff]
    %v191 = vld [vmem:[%s4 + $0x2a8] sm:$0xff]
    %v192 = vld [vmem:[%s4 + $0x2b0] sm:$0xff]
    %v193 = vld [vmem:[%s4 + $0x2b8] sm:$0xff]
    %v194 = vld [vmem:[%s4 + $0x2c0] sm:$0xff]
    %v195 = vld [vmem:[%s4 + $0x2c8] sm:$0xff]
    %v196 = vld [vmem:[%s4 + $0x2d0] sm:$0xff]
    %v197 = vld [vmem:[%s4 + $0x2d8] sm:$0xff]
    %v198 = vld [vmem:[%s4 + $0x2e0] sm:$0xff]
    %v199 = vld [vmem:[%s4 + $0x2e8] sm:$0xff]
    %v200 = vld [vmem:[%s4 + $0x2f0] sm:$0xff]
    %v201 = vld [vmem:[%s4 + $0x2f8] sm:$0xff]
    %v202 = vld [vmem:[%s4 + $0x300] sm:$0xff]
    %v203 = vld [vmem:[%s4 + $0x308] sm:$0xff]
    %v204 = vld [vmem:[%s4 + $0x310] sm:$0xff]
    %v205 = vld [vmem:[%s4 + $0x318] sm:$0xff]
    %v206 = vld [vmem:[%s4 + $0x320] sm:$0xff]
    %v207 = vld [vmem:[%s4 + $0x328] sm:$0xff]
    %v208 = vld [vmem:[%s4 + $0x330] sm:$0xff]
    %v209 = vld [vmem:[%s4 + $0x338] sm:$0xff]
    %v210 = vld [vmem:[%s4 + $0x340] sm:$0xff]
    %v211 = vld [vmem:[%s4 + $0x348] sm:$0xff]
    %v212 = vld [vmem:[%s4 + $0x350] sm:$0xff]
    %v213 = vld [vmem:[%s4 + $0x358] sm:$0xff]
    %v214 = vld [vmem:[%s4 + $0x360] sm:$0xff]
    %v215 = vld [vmem:[%s4 + $0x368] sm:$0xff]
    %v216 = vld [vmem:[%s4 + $0x370] sm:$0xff]
    %v217 = vld [vmem:[%s4 + $0x378] sm:$0xff]
    %v218 = vld [vmem:[%s4 + $0x380] sm:$0xff]
    %v219 = vld [vmem:[%s4 + $0x388] sm:$0xff]
    %v220 = vld [vmem:[%s4 + $0x390] sm:$0xff]
    %v221 = vld [vmem:[%s4 + $0x398] sm:$0xff]
    %v222 = vld [vmem:[%s4 + $0x3a0] sm:$0xff]
    %v223 = vld [vmem:[%s4 + $0x3a8] sm:$0xff]
    %v224 = vld [vmem:[%s4 + $0x3b0] sm:$0xff]
    %v225 = vld [vmem:[%s4 + $0x3b8] sm:$0xff]
    %v226 = vld [vmem:[%s4 + $0x3c0] sm:$0xff]
    %v227 = vld [vmem:[%s4 + $0x3c8] sm:$0xff]
    %v228 = vld [vmem:[%s4 + $0x3d0] sm:$0xff]
    %v229 = vld [vmem:[%s4 + $0x3d8] sm:$0xff]
    %v230 = vld [vmem:[%s4 + $0x3e0] sm:$0xff]
    %v231 = vld [vmem:[%s4 + $0x3e8] sm:$0xff]
    %v232 = vld [vmem:[%s4 + $0x3f0] sm:$0xff]
    %v233 = vld [vmem:[%s4 + $0x3f8] sm:$0xff]
    %v234 = vld [vmem:[%s5] sm:$0xf]
    %v235 = vld [vmem:[%s0] sm:$0xff]
    %v236 = vld [vmem:[%s0 + $0x8] sm:$0xff]
    %v237 = vld [vmem:[%s0 + $0x10] sm:$0xff]
    %v238 = vld [vmem:[%s0 + $0x18] sm:$0xff]
    %v239 = vld [vmem:[%s0 + $0x20] sm:$0xff]
    %v240 = vld [vmem:[%s0 + $0x28] sm:$0xff]
    %v241 = vld [vmem:[%s0 + $0x30] sm:$0xff]
    %v242 = vld [vmem:[%s0 + $0x38] sm:$0xff]
    %v243 = vld [vmem:[%s1] sm:$0xff]
    %v244 = vld [vmem:[%s1 + $0x8] sm:$0xff]
    %v245 = vld [vmem:[%s1 + $0x10] sm:$0xff]
    %v246 = vld [vmem:[%s1 + $0x18] sm:$0xff]
    %v247 = vld [vmem:[%s1 + $0x20] sm:$0xff]
    %v248 = vld [vmem:[%s1 + $0x28] sm:$0xff]
    %v249 = vld [vmem:[%s1 + $0x30] sm:$0xff]
    %v250 = vld [vmem:[%s1 + $0x38] sm:$0xff]
    %v251 = vld [vmem:[%s1 + $0x40] sm:$0xff]
    %v252 = vld [vmem:[%s1 + $0x48] sm:$0xff]
    %v253 = vld [vmem:[%s1 + $0x50] sm:$0xff]
    %v254 = vld [vmem:[%s1 + $0x58] sm:$0xff]
    %v255 = vld [vmem:[%s1 + $0x60] sm:$0xff]
    %v256 = vld [vmem:[%s1 + $0x68] sm:$0xff]
    %v257 = vld [vmem:[%s1 + $0x70] sm:$0xff]
    %v258 = vld [vmem:[%s1 + $0x78] sm:$0xff]
    %v259 = vld [vmem:[%s3] sm:$0xf]
    %v261 = vperm.slane %v259, 0
    %v262 = vperm.slane %v259, 1
    %v263 = vperm.slane %v259, 2
    %v264 = vperm.slane %v259, 3
    %vm269 = vcmask 261120
    %v271 = vsel %vm269, %v235, 0
    %v274 = vsel %vm269, %v236, 0
    %v277 = vsel %vm269, %v237, 0
    %v280 = vsel %vm269, %v238, 0
    %v283 = vsel %vm269, %v239, 0
    %v286 = vsel %vm269, %v240, 0
    %v289 = vsel %vm269, %v241, 0
    %v292 = vsel %vm269, %v242, 0
    %294 = vmatpush.msra.mxu0 0.0
    %295 = vmatpush.msra.mxu0 0.0
    %296 = vmatpush.msra.mxu0 0.0
    %297 = vmatpush.msra.mxu0 0.0
    %298 = vmatpush.msra.mxu0 0.0
    %299 = vmatpush.msra.mxu0 0.0
    %300 = vmatpush.msra.mxu0 0.0
    %301 = vmatpush.msra.mxu0 0.0
    %302 = vmatpush.msra.mxu0 0.0
    %303 = vmatpush.msra.mxu0 0.0
    %304 = vmatpush.msra.mxu0 0.0
    %305 = vmatpush.msra.mxu0 0.0
    %306 = vmatpush.msra.mxu0 %v255
    %307 = vmatpush.msra.mxu0 %v251
    %308 = vmatpush.msra.mxu0 %v247
    %309 = vmatpush.msra.mxu0 %v243
    %310 = vmatmul.f32.gmra.mxu0 %v271
    %v311 = vpop.f32.mrf.mxu0
    %v312 = vadd.f32 %v261, %v311
    %313 = vmatmul.f32.gmra.mxu0 %v274
    %v314 = vpop.f32.mrf.mxu0
    %v315 = vadd.f32 %v261, %v314
    %316 = vmatmul.f32.gmra.mxu0 %v277
    %v317 = vpop.f32.mrf.mxu0
    %v318 = vadd.f32 %v261, %v317
    %319 = vmatmul.f32.gmra.mxu0 %v280
    %v320 = vpop.f32.mrf.mxu0
    %v321 = vadd.f32 %v261, %v320
    %322 = vmatmul.f32.gmra.mxu0 %v283
    %v323 = vpop.f32.mrf.mxu0
    %v324 = vadd.f32 %v261, %v323
    %325 = vmatmul.f32.gmra.mxu0 %v286
    %v326 = vpop.f32.mrf.mxu0
    %v327 = vadd.f32 %v261, %v326
    %328 = vmatmul.f32.gmra.mxu0 %v289
    %v329 = vpop.f32.mrf.mxu0
    %v330 = vadd.f32 %v261, %v329
    %331 = vmatmul.f32.gmra.mxu0 %v292
    %v332 = vpop.f32.mrf.mxu0
    %v333 = vadd.f32 %v261, %v332
    %334 = vdwg.mxu0
    %335 = vmatpush.msra.mxu0 0.0
    %336 = vmatpush.msra.mxu0 0.0
    %337 = vmatpush.msra.mxu0 0.0
    %338 = vmatpush.msra.mxu0 0.0
    %339 = vmatpush.msra.mxu0 0.0
    %340 = vmatpush.msra.mxu0 0.0
    %341 = vmatpush.msra.mxu0 0.0
    %342 = vmatpush.msra.mxu0 0.0
    %343 = vmatpush.msra.mxu0 0.0
    %344 = vmatpush.msra.mxu0 0.0
    %345 = vmatpush.msra.mxu0 0.0
    %346 = vmatpush.msra.mxu0 0.0
    %347 = vmatpush.msra.mxu0 %v256
    %348 = vmatpush.msra.mxu0 %v252
    %349 = vmatpush.msra.mxu0 %v248
    %350 = vmatpush.msra.mxu0 %v244
    %351 = vmatmul.f32.gmra.mxu0 %v271
    %v352 = vpop.f32.mrf.mxu0
    %v353 = vadd.f32 %v262, %v352
    %354 = vmatmul.f32.gmra.mxu0 %v274
    %v355 = vpop.f32.mrf.mxu0
    %v356 = vadd.f32 %v262, %v355
    %357 = vmatmul.f32.gmra.mxu0 %v277
    %v358 = vpop.f32.mrf.mxu0
    %v359 = vadd.f32 %v262, %v358
    %360 = vmatmul.f32.gmra.mxu0 %v280
    %v361 = vpop.f32.mrf.mxu0
    %v362 = vadd.f32 %v262, %v361
    %363 = vmatmul.f32.gmra.mxu0 %v283
    %v364 = vpop.f32.mrf.mxu0
    %v365 = vadd.f32 %v262, %v364
    %366 = vmatmul.f32.gmra.mxu0 %v286
    %v367 = vpop.f32.mrf.mxu0
    %v368 = vadd.f32 %v262, %v367
    %369 = vmatmul.f32.gmra.mxu0 %v289
    %v370 = vpop.f32.mrf.mxu0
    %v371 = vadd.f32 %v262, %v370
    %372 = vmatmul.f32.gmra.mxu0 %v292
    %v373 = vpop.f32.mrf.mxu0
    %v374 = vadd.f32 %v262, %v373
    %375 = vdwg.mxu0
    %376 = vmatpush.msra.mxu0 0.0
    %377 = vmatpush.msra.mxu0 0.0
    %378 = vmatpush.msra.mxu0 0.0
    %379 = vmatpush.msra.mxu0 0.0
    %380 = vmatpush.msra.mxu0 0.0
    %381 = vmatpush.msra.mxu0 0.0
    %382 = vmatpush.msra.mxu0 0.0
    %383 = vmatpush.msra.mxu0 0.0
    %384 = vmatpush.msra.mxu0 0.0
    %385 = vmatpush.msra.mxu0 0.0
    %386 = vmatpush.msra.mxu0 0.0
    %387 = vmatpush.msra.mxu0 0.0
    %388 = vmatpush.msra.mxu0 %v257
    %389 = vmatpush.msra.mxu0 %v253
    %390 = vmatpush.msra.mxu0 %v249
    %391 = vmatpush.msra.mxu0 %v245
    %392 = vmatmul.f32.gmra.mxu0 %v271
    %v393 = vpop.f32.mrf.mxu0
    %v394 = vadd.f32 %v263, %v393
    %395 = vmatmul.f32.gmra.mxu0 %v274
    %v396 = vpop.f32.mrf.mxu0
    %v397 = vadd.f32 %v263, %v396
    %398 = vmatmul.f32.gmra.mxu0 %v277
    %v399 = vpop.f32.mrf.mxu0
    %v400 = vadd.f32 %v263, %v399
    %401 = vmatmul.f32.gmra.mxu0 %v280
    %v402 = vpop.f32.mrf.mxu0
    %v403 = vadd.f32 %v263, %v402
    %404 = vmatmul.f32.gmra.mxu0 %v283
    %v405 = vpop.f32.mrf.mxu0
    %v406 = vadd.f32 %v263, %v405
    %407 = vmatmul.f32.gmra.mxu0 %v286
    %v408 = vpop.f32.mrf.mxu0
    %v409 = vadd.f32 %v263, %v408
    %410 = vmatmul.f32.gmra.mxu0 %v289
    %v411 = vpop.f32.mrf.mxu0
    %v412 = vadd.f32 %v263, %v411
    %413 = vmatmul.f32.gmra.mxu0 %v292
    %v414 = vpop.f32.mrf.mxu0
    %v415 = vadd.f32 %v263, %v414
    %416 = vdwg.mxu0
    %417 = vmatpush.msra.mxu0 0.0
    %418 = vmatpush.msra.mxu0 0.0
    %419 = vmatpush.msra.mxu0 0.0
    %420 = vmatpush.msra.mxu0 0.0
    %421 = vmatpush.msra.mxu0 0.0
    %422 = vmatpush.msra.mxu0 0.0
    %423 = vmatpush.msra.mxu0 0.0
    %424 = vmatpush.msra.mxu0 0.0
    %425 = vmatpush.msra.mxu0 0.0
    %426 = vmatpush.msra.mxu0 0.0
    %427 = vmatpush.msra.mxu0 0.0
    %428 = vmatpush.msra.mxu0 0.0
    %429 = vmatpush.msra.mxu0 %v258
    %430 = vmatpush.msra.mxu0 %v254
    %431 = vmatpush.msra.mxu0 %v250
    %432 = vmatpush.msra.mxu0 %v246
    %433 = vmatmul.f32.gmra.mxu0 %v271
    %v434 = vpop.f32.mrf.mxu0
    %v435 = vadd.f32 %v264, %v434
    %436 = vmatmul.f32.gmra.mxu0 %v274
    %v437 = vpop.f32.mrf.mxu0
    %v438 = vadd.f32 %v264, %v437
    %439 = vmatmul.f32.gmra.mxu0 %v277
    %v440 = vpop.f32.mrf.mxu0
    %v441 = vadd.f32 %v264, %v440
    %442 = vmatmul.f32.gmra.mxu0 %v280
    %v443 = vpop.f32.mrf.mxu0
    %v444 = vadd.f32 %v264, %v443
    %445 = vmatmul.f32.gmra.mxu0 %v283
    %v446 = vpop.f32.mrf.mxu0
    %v447 = vadd.f32 %v264, %v446
    %448 = vmatmul.f32.gmra.mxu0 %v286
    %v449 = vpop.f32.mrf.mxu0
    %v450 = vadd.f32 %v264, %v449
    %451 = vmatmul.f32.gmra.mxu0 %v289
    %v452 = vpop.f32.mrf.mxu0
    %v453 = vadd.f32 %v264, %v452
    %454 = vmatmul.f32.gmra.mxu0 %v292
    %v455 = vpop.f32.mrf.mxu0
    %v456 = vadd.f32 %v264, %v455
    %457 = vdwg.mxu0
    %v458 = vld [vmem:[%s6] sm:$0xff]
    %v459 = vld [vmem:[%s7] sm:$0xff]
    %s460 = scalar_lea.vmem %s6, 8
    %v461 = vld [vmem:[%s460] sm:$0xff]
    %s462 = scalar_lea.vmem %s7, 8
    %v463 = vld [vmem:[%s462] sm:$0xff]
    %464 = vmatpush.msra.mxu0 %v102
    %465 = vmatpush.msra.mxu0 %v98
    %466 = vmatpush.msra.mxu0 %v94
    %467 = vmatpush.msra.mxu0 %v90
    %468 = vmatpush.msra.mxu0 %v86
    %469 = vmatpush.msra.mxu0 %v82
    %470 = vmatpush.msra.mxu0 %v78
    %471 = vmatpush.msra.mxu0 %v74
    %472 = vmatpush.msra.mxu0 %v70
    %473 = vmatpush.msra.mxu0 %v66
    %474 = vmatpush.msra.mxu0 %v62
    %475 = vmatpush.msra.mxu0 %v58
    %476 = vmatpush.msra.mxu0 %v54
    %477 = vmatpush.msra.mxu0 %v50
    %478 = vmatpush.msra.mxu0 %v46
    %479 = vmatpush.msra.mxu0 %v42
    %480 = vmatmul.f32.gmra.mxu0 %v458
    %v481 = vpop.f32.mrf.mxu0
    %v482 = vadd.f32 0.0, %v481
    %483 = vdwg.mxu0
    %484 = vmatpush.msra.mxu0 %v103
    %485 = vmatpush.msra.mxu0 %v99
    %486 = vmatpush.msra.mxu0 %v95
    %487 = vmatpush.msra.mxu0 %v91
    %488 = vmatpush.msra.mxu0 %v87
    %489 = vmatpush.msra.mxu0 %v83
    %490 = vmatpush.msra.mxu0 %v79
    %491 = vmatpush.msra.mxu0 %v75
    %492 = vmatpush.msra.mxu0 %v71
    %493 = vmatpush.msra.mxu0 %v67
    %494 = vmatpush.msra.mxu0 %v63
    %495 = vmatpush.msra.mxu0 %v59
    %496 = vmatpush.msra.mxu0 %v55
    %497 = vmatpush.msra.mxu0 %v51
    %498 = vmatpush.msra.mxu0 %v47
    %499 = vmatpush.msra.mxu0 %v43
    %500 = vmatmul.f32.gmra.mxu0 %v458
    %v501 = vpop.f32.mrf.mxu0
    %v502 = vadd.f32 0.0, %v501
    %503 = vdwg.mxu0
    %504 = vmatpush.msra.mxu0 %v104
    %505 = vmatpush.msra.mxu0 %v100
    %506 = vmatpush.msra.mxu0 %v96
    %507 = vmatpush.msra.mxu0 %v92
    %508 = vmatpush.msra.mxu0 %v88
    %509 = vmatpush.msra.mxu0 %v84
    %510 = vmatpush.msra.mxu0 %v80
    %511 = vmatpush.msra.mxu0 %v76
    %512 = vmatpush.msra.mxu0 %v72
    %513 = vmatpush.msra.mxu0 %v68
    %514 = vmatpush.msra.mxu0 %v64
    %515 = vmatpush.msra.mxu0 %v60
    %516 = vmatpush.msra.mxu0 %v56
    %517 = vmatpush.msra.mxu0 %v52
    %518 = vmatpush.msra.mxu0 %v48
    %519 = vmatpush.msra.mxu0 %v44
    %520 = vmatmul.f32.gmra.mxu0 %v458
    %v521 = vpop.f32.mrf.mxu0
    %v522 = vadd.f32 0.0, %v521
    %523 = vdwg.mxu0
    %524 = vmatpush.msra.mxu0 %v105
    %525 = vmatpush.msra.mxu0 %v101
    %526 = vmatpush.msra.mxu0 %v97
    %527 = vmatpush.msra.mxu0 %v93
    %528 = vmatpush.msra.mxu0 %v89
    %529 = vmatpush.msra.mxu0 %v85
    %530 = vmatpush.msra.mxu0 %v81
    %531 = vmatpush.msra.mxu0 %v77
    %532 = vmatpush.msra.mxu0 %v73
    %533 = vmatpush.msra.mxu0 %v69
    %534 = vmatpush.msra.mxu0 %v65
    %535 = vmatpush.msra.mxu0 %v61
    %536 = vmatpush.msra.mxu0 %v57
    %537 = vmatpush.msra.mxu0 %v53
    %538 = vmatpush.msra.mxu0 %v49
    %539 = vmatpush.msra.mxu0 %v45
    %540 = vmatmul.f32.gmra.mxu0 %v458
    %v541 = vpop.f32.mrf.mxu0
    %v542 = vadd.f32 0.0, %v541
    %543 = vdwg.mxu0
    %v548 = vrot.slane %v482, 1
    %v549 = vrot.slane %v502, 1
    %v550 = vrot.slane %v522, 1
    %v551 = vrot.slane %v542, 1
    %v552 = vrot.slane %v482, 2
    %v553 = vrot.slane %v502, 2
    %v554 = vrot.slane %v522, 2
    %v555 = vrot.slane %v542, 2
    %v556 = vrot.slane %v482, 3
    %v557 = vrot.slane %v502, 3
    %v558 = vrot.slane %v522, 3
    %v559 = vrot.slane %v542, 3
    %v560 = vrot.slane %v482, 4
    %v561 = vrot.slane %v502, 4
    %v562 = vrot.slane %v522, 4
    %v563 = vrot.slane %v542, 4
    %v564 = vrot.slane %v482, 5
    %v565 = vrot.slane %v502, 5
    %v566 = vrot.slane %v522, 5
    %v567 = vrot.slane %v542, 5
    %v568 = vrot.slane %v482, 6
    %v569 = vrot.slane %v502, 6
    %v570 = vrot.slane %v522, 6
    %v571 = vrot.slane %v542, 6
    %v572 = vrot.slane %v482, 7
    %v573 = vrot.slane %v502, 7
    %v574 = vrot.slane %v522, 7
    %v575 = vrot.slane %v542, 7
    %v608 = vadd.f32 %v312, %v482
    %v609 = vadd.f32 %v353, %v502
    %v610 = vadd.f32 %v394, %v522
    %v611 = vadd.f32 %v435, %v542
    %v612 = vadd.f32 %v315, %v548
    %v613 = vadd.f32 %v356, %v549
    %v614 = vadd.f32 %v397, %v550
    %v615 = vadd.f32 %v438, %v551
    %v616 = vadd.f32 %v318, %v552
    %v617 = vadd.f32 %v359, %v553
    %v618 = vadd.f32 %v400, %v554
    %v619 = vadd.f32 %v441, %v555
    %v620 = vadd.f32 %v321, %v556
    %v621 = vadd.f32 %v362, %v557
    %v622 = vadd.f32 %v403, %v558
    %v623 = vadd.f32 %v444, %v559
    %v624 = vadd.f32 %v324, %v560
    %v625 = vadd.f32 %v365, %v561
    %v626 = vadd.f32 %v406, %v562
    %v627 = vadd.f32 %v447, %v563
    %v628 = vadd.f32 %v327, %v564
    %v629 = vadd.f32 %v368, %v565
    %v630 = vadd.f32 %v409, %v566
    %v631 = vadd.f32 %v450, %v567
    %v632 = vadd.f32 %v330, %v568
    %v633 = vadd.f32 %v371, %v569
    %v634 = vadd.f32 %v412, %v570
    %v635 = vadd.f32 %v453, %v571
    %v636 = vadd.f32 %v333, %v572
    %v637 = vadd.f32 %v374, %v573
    %v638 = vadd.f32 %v415, %v574
    %v639 = vadd.f32 %v456, %v575
    %v640 = vxor.u32 %v608, 2147483648
    %v641 = vxor.u32 %v612, 2147483648
    %v642 = vxor.u32 %v616, 2147483648
    %v643 = vxor.u32 %v620, 2147483648
    %v644 = vxor.u32 %v624, 2147483648
    %v645 = vxor.u32 %v628, 2147483648
    %v646 = vxor.u32 %v632, 2147483648
    %v647 = vxor.u32 %v636, 2147483648
    %v648 = vmul.f32 %v640, 1.442695
    %v649 = vpow.pop %v648
    %v650 = vmul.f32 %v641, 1.442695
    %v651 = vpow.pop %v650
    %v652 = vmul.f32 %v642, 1.442695
    %v653 = vpow.pop %v652
    %v654 = vmul.f32 %v643, 1.442695
    %v655 = vpow.pop %v654
    %v656 = vmul.f32 %v644, 1.442695
    %v657 = vpow.pop %v656
    %v658 = vmul.f32 %v645, 1.442695
    %v659 = vpow.pop %v658
    %v660 = vmul.f32 %v646, 1.442695
    %v661 = vpow.pop %v660
    %v662 = vmul.f32 %v647, 1.442695
    %v663 = vpow.pop %v662
    %v664 = vadd.f32 %v649, 1.0
    %v665 = vadd.f32 %v651, 1.0
    %v666 = vadd.f32 %v653, 1.0
    %v667 = vadd.f32 %v655, 1.0
    %v668 = vadd.f32 %v657, 1.0
    %v669 = vadd.f32 %v659, 1.0
    %v670 = vadd.f32 %v661, 1.0
    %v671 = vadd.f32 %v663, 1.0
    %v672 = vrcp.pop %v664
    %v673 = vmul.f32 %v664, %v672
    %v674 = vsub.f32 1.0, %v673
    %v675 = vmul.f32 %v672, %v674
    %v676 = vadd.f32 %v672, %v675
    %vm677 = vweird.f32 %v664
    %vm678 = vweird.f32 %v672
    %vm679 = vmor %vm677, %vm678
    %v680 = vsel %vm679, %v672, %v676
    %v681 = vand.u32 2147483647, %v664
    %vm682 = vcmp.eq.f32.partialorder %v681, 8.507059e+37
    %v683 = vand.u32 %v664, 2147483648
    %v684 = vor.u32 1.1754944e-38, %v683
    %v685 = vsel %vm682, %v684, %v680
    %v686 = vmul.f32 1.0, %v685
    %v687 = vrcp.pop %v665
    %v688 = vmul.f32 %v665, %v687
    %v689 = vsub.f32 1.0, %v688
    %v690 = vmul.f32 %v687, %v689
    %v691 = vadd.f32 %v687, %v690
    %vm692 = vweird.f32 %v665
    %vm693 = vweird.f32 %v687
    %vm694 = vmor %vm692, %vm693
    %v695 = vsel %vm694, %v687, %v691
    %v696 = vand.u32 2147483647, %v665
    %vm697 = vcmp.eq.f32.partialorder %v696, 8.507059e+37
    %v698 = vand.u32 %v665, 2147483648
    %v699 = vor.u32 1.1754944e-38, %v698
    %v700 = vsel %vm697, %v699, %v695
    %v701 = vmul.f32 1.0, %v700
    %v702 = vrcp.pop %v666
    %v703 = vmul.f32 %v666, %v702
    %v704 = vsub.f32 1.0, %v703
    %v705 = vmul.f32 %v702, %v704
    %v706 = vadd.f32 %v702, %v705
    %vm707 = vweird.f32 %v666
    %vm708 = vweird.f32 %v702
    %vm709 = vmor %vm707, %vm708
    %v710 = vsel %vm709, %v702, %v706
    %v711 = vand.u32 2147483647, %v666
    %vm712 = vcmp.eq.f32.partialorder %v711, 8.507059e+37
    %v713 = vand.u32 %v666, 2147483648
    %v714 = vor.u32 1.1754944e-38, %v713
    %v715 = vsel %vm712, %v714, %v710
    %v716 = vmul.f32 1.0, %v715
    %v717 = vrcp.pop %v667
    %v718 = vmul.f32 %v667, %v717
    %v719 = vsub.f32 1.0, %v718
    %v720 = vmul.f32 %v717, %v719
    %v721 = vadd.f32 %v717, %v720
    %vm722 = vweird.f32 %v667
    %vm723 = vweird.f32 %v717
    %vm724 = vmor %vm722, %vm723
    %v725 = vsel %vm724, %v717, %v721
    %v726 = vand.u32 2147483647, %v667
    %vm727 = vcmp.eq.f32.partialorder %v726, 8.507059e+37
    %v728 = vand.u32 %v667, 2147483648
    %v729 = vor.u32 1.1754944e-38, %v728
    %v730 = vsel %vm727, %v729, %v725
    %v731 = vmul.f32 1.0, %v730
    %v732 = vrcp.pop %v668
    %v733 = vmul.f32 %v668, %v732
    %v734 = vsub.f32 1.0, %v733
    %v735 = vmul.f32 %v732, %v734
    %v736 = vadd.f32 %v732, %v735
    %vm737 = vweird.f32 %v668
    %vm738 = vweird.f32 %v732
    %vm739 = vmor %vm737, %vm738
    %v740 = vsel %vm739, %v732, %v736
    %v741 = vand.u32 2147483647, %v668
    %vm742 = vcmp.eq.f32.partialorder %v741, 8.507059e+37
    %v743 = vand.u32 %v668, 2147483648
    %v744 = vor.u32 1.1754944e-38, %v743
    %v745 = vsel %vm742, %v744, %v740
    %v746 = vmul.f32 1.0, %v745
    %v747 = vrcp.pop %v669
    %v748 = vmul.f32 %v669, %v747
    %v749 = vsub.f32 1.0, %v748
    %v750 = vmul.f32 %v747, %v749
    %v751 = vadd.f32 %v747, %v750
    %vm752 = vweird.f32 %v669
    %vm753 = vweird.f32 %v747
    %vm754 = vmor %vm752, %vm753
    %v755 = vsel %vm754, %v747, %v751
    %v756 = vand.u32 2147483647, %v669
    %vm757 = vcmp.eq.f32.partialorder %v756, 8.507059e+37
    %v758 = vand.u32 %v669, 2147483648
    %v759 = vor.u32 1.1754944e-38, %v758
    %v760 = vsel %vm757, %v759, %v755
    %v761 = vmul.f32 1.0, %v760
    %v762 = vrcp.pop %v670
    %v763 = vmul.f32 %v670, %v762
    %v764 = vsub.f32 1.0, %v763
    %v765 = vmul.f32 %v762, %v764
    %v766 = vadd.f32 %v762, %v765
    %vm767 = vweird.f32 %v670
    %vm768 = vweird.f32 %v762
    %vm769 = vmor %vm767, %vm768
    %v770 = vsel %vm769, %v762, %v766
    %v771 = vand.u32 2147483647, %v670
    %vm772 = vcmp.eq.f32.partialorder %v771, 8.507059e+37
    %v773 = vand.u32 %v670, 2147483648
    %v774 = vor.u32 1.1754944e-38, %v773
    %v775 = vsel %vm772, %v774, %v770
    %v776 = vmul.f32 1.0, %v775
    %v777 = vrcp.pop %v671
    %v778 = vmul.f32 %v671, %v777
    %v779 = vsub.f32 1.0, %v778
    %v780 = vmul.f32 %v777, %v779
    %v781 = vadd.f32 %v777, %v780
    %vm782 = vweird.f32 %v671
    %vm783 = vweird.f32 %v777
    %vm784 = vmor %vm782, %vm783
    %v785 = vsel %vm784, %v777, %v781
    %v786 = vand.u32 2147483647, %v671
    %vm787 = vcmp.eq.f32.partialorder %v786, 8.507059e+37
    %v788 = vand.u32 %v671, 2147483648
    %v789 = vor.u32 1.1754944e-38, %v788
    %v790 = vsel %vm787, %v789, %v785
    %v791 = vmul.f32 1.0, %v790
    %v792 = vxor.u32 %v609, 2147483648
    %v793 = vxor.u32 %v613, 2147483648
    %v794 = vxor.u32 %v617, 2147483648
    %v795 = vxor.u32 %v621, 2147483648
    %v796 = vxor.u32 %v625, 2147483648
    %v797 = vxor.u32 %v629, 2147483648
    %v798 = vxor.u32 %v633, 2147483648
    %v799 = vxor.u32 %v637, 2147483648
    %v800 = vmul.f32 %v792, 1.442695
    %v801 = vpow.pop %v800
    %v802 = vmul.f32 %v793, 1.442695
    %v803 = vpow.pop %v802
    %v804 = vmul.f32 %v794, 1.442695
    %v805 = vpow.pop %v804
    %v806 = vmul.f32 %v795, 1.442695
    %v807 = vpow.pop %v806
    %v808 = vmul.f32 %v796, 1.442695
    %v809 = vpow.pop %v808
    %v810 = vmul.f32 %v797, 1.442695
    %v811 = vpow.pop %v810
    %v812 = vmul.f32 %v798, 1.442695
    %v813 = vpow.pop %v812
    %v814 = vmul.f32 %v799, 1.442695
    %v815 = vpow.pop %v814
    %v816 = vadd.f32 %v801, 1.0
    %v817 = vadd.f32 %v803, 1.0
    %v818 = vadd.f32 %v805, 1.0
    %v819 = vadd.f32 %v807, 1.0
    %v820 = vadd.f32 %v809, 1.0
    %v821 = vadd.f32 %v811, 1.0
    %v822 = vadd.f32 %v813, 1.0
    %v823 = vadd.f32 %v815, 1.0
    %v824 = vrcp.pop %v816
    %v825 = vmul.f32 %v816, %v824
    %v826 = vsub.f32 1.0, %v825
    %v827 = vmul.f32 %v824, %v826
    %v828 = vadd.f32 %v824, %v827
    %vm829 = vweird.f32 %v816
    %vm830 = vweird.f32 %v824
    %vm831 = vmor %vm829, %vm830
    %v832 = vsel %vm831, %v824, %v828
    %v833 = vand.u32 2147483647, %v816
    %vm834 = vcmp.eq.f32.partialorder %v833, 8.507059e+37
    %v835 = vand.u32 %v816, 2147483648
    %v836 = vor.u32 1.1754944e-38, %v835
    %v837 = vsel %vm834, %v836, %v832
    %v838 = vmul.f32 1.0, %v837
    %v839 = vrcp.pop %v817
    %v840 = vmul.f32 %v817, %v839
    %v841 = vsub.f32 1.0, %v840
    %v842 = vmul.f32 %v839, %v841
    %v843 = vadd.f32 %v839, %v842
    %vm844 = vweird.f32 %v817
    %vm845 = vweird.f32 %v839
    %vm846 = vmor %vm844, %vm845
    %v847 = vsel %vm846, %v839, %v843
    %v848 = vand.u32 2147483647, %v817
    %vm849 = vcmp.eq.f32.partialorder %v848, 8.507059e+37
    %v850 = vand.u32 %v817, 2147483648
    %v851 = vor.u32 1.1754944e-38, %v850
    %v852 = vsel %vm849, %v851, %v847
    %v853 = vmul.f32 1.0, %v852
    %v854 = vrcp.pop %v818
    %v855 = vmul.f32 %v818, %v854
    %v856 = vsub.f32 1.0, %v855
    %v857 = vmul.f32 %v854, %v856
    %v858 = vadd.f32 %v854, %v857
    %vm859 = vweird.f32 %v818
    %vm860 = vweird.f32 %v854
    %vm861 = vmor %vm859, %vm860
    %v862 = vsel %vm861, %v854, %v858
    %v863 = vand.u32 2147483647, %v818
    %vm864 = vcmp.eq.f32.partialorder %v863, 8.507059e+37
    %v865 = vand.u32 %v818, 2147483648
    %v866 = vor.u32 1.1754944e-38, %v865
    %v867 = vsel %vm864, %v866, %v862
    %v868 = vmul.f32 1.0, %v867
    %v869 = vrcp.pop %v819
    %v870 = vmul.f32 %v819, %v869
    %v871 = vsub.f32 1.0, %v870
    %v872 = vmul.f32 %v869, %v871
    %v873 = vadd.f32 %v869, %v872
    %vm874 = vweird.f32 %v819
    %vm875 = vweird.f32 %v869
    %vm876 = vmor %vm874, %vm875
    %v877 = vsel %vm876, %v869, %v873
    %v878 = vand.u32 2147483647, %v819
    %vm879 = vcmp.eq.f32.partialorder %v878, 8.507059e+37
    %v880 = vand.u32 %v819, 2147483648
    %v881 = vor.u32 1.1754944e-38, %v880
    %v882 = vsel %vm879, %v881, %v877
    %v883 = vmul.f32 1.0, %v882
    %v884 = vrcp.pop %v820
    %v885 = vmul.f32 %v820, %v884
    %v886 = vsub.f32 1.0, %v885
    %v887 = vmul.f32 %v884, %v886
    %v888 = vadd.f32 %v884, %v887
    %vm889 = vweird.f32 %v820
    %vm890 = vweird.f32 %v884
    %vm891 = vmor %vm889, %vm890
    %v892 = vsel %vm891, %v884, %v888
    %v893 = vand.u32 2147483647, %v820
    %vm894 = vcmp.eq.f32.partialorder %v893, 8.507059e+37
    %v895 = vand.u32 %v820, 2147483648
    %v896 = vor.u32 1.1754944e-38, %v895
    %v897 = vsel %vm894, %v896, %v892
    %v898 = vmul.f32 1.0, %v897
    %v899 = vrcp.pop %v821
    %v900 = vmul.f32 %v821, %v899
    %v901 = vsub.f32 1.0, %v900
    %v902 = vmul.f32 %v899, %v901
    %v903 = vadd.f32 %v899, %v902
    %vm904 = vweird.f32 %v821
    %vm905 = vweird.f32 %v899
    %vm906 = vmor %vm904, %vm905
    %v907 = vsel %vm906, %v899, %v903
    %v908 = vand.u32 2147483647, %v821
    %vm909 = vcmp.eq.f32.partialorder %v908, 8.507059e+37
    %v910 = vand.u32 %v821, 2147483648
    %v911 = vor.u32 1.1754944e-38, %v910
    %v912 = vsel %vm909, %v911, %v907
    %v913 = vmul.f32 1.0, %v912
    %v914 = vrcp.pop %v822
    %v915 = vmul.f32 %v822, %v914
    %v916 = vsub.f32 1.0, %v915
    %v917 = vmul.f32 %v914, %v916
    %v918 = vadd.f32 %v914, %v917
    %vm919 = vweird.f32 %v822
    %vm920 = vweird.f32 %v914
    %vm921 = vmor %vm919, %vm920
    %v922 = vsel %vm921, %v914, %v918
    %v923 = vand.u32 2147483647, %v822
    %vm924 = vcmp.eq.f32.partialorder %v923, 8.507059e+37
    %v925 = vand.u32 %v822, 2147483648
    %v926 = vor.u32 1.1754944e-38, %v925
    %v927 = vsel %vm924, %v926, %v922
    %v928 = vmul.f32 1.0, %v927
    %v929 = vrcp.pop %v823
    %v930 = vmul.f32 %v823, %v929
    %v931 = vsub.f32 1.0, %v930
    %v932 = vmul.f32 %v929, %v931
    %v933 = vadd.f32 %v929, %v932
    %vm934 = vweird.f32 %v823
    %vm935 = vweird.f32 %v929
    %vm936 = vmor %vm934, %vm935
    %v937 = vsel %vm936, %v929, %v933
    %v938 = vand.u32 2147483647, %v823
    %vm939 = vcmp.eq.f32.partialorder %v938, 8.507059e+37
    %v940 = vand.u32 %v823, 2147483648
    %v941 = vor.u32 1.1754944e-38, %v940
    %v942 = vsel %vm939, %v941, %v937
    %v943 = vmul.f32 1.0, %v942
    %v944 = vtanh.pop %v610
    %v945 = vtanh.pop %v614
    %v946 = vtanh.pop %v618
    %v947 = vtanh.pop %v622
    %v948 = vtanh.pop %v626
    %v949 = vtanh.pop %v630
    %v950 = vtanh.pop %v634
    %v951 = vtanh.pop %v638
    %v952 = vxor.u32 %v611, 2147483648
    %v953 = vxor.u32 %v615, 2147483648
    %v954 = vxor.u32 %v619, 2147483648
    %v955 = vxor.u32 %v623, 2147483648
    %v956 = vxor.u32 %v627, 2147483648
    %v957 = vxor.u32 %v631, 2147483648
    %v958 = vxor.u32 %v635, 2147483648
    %v959 = vxor.u32 %v639, 2147483648
    %v960 = vmul.f32 %v952, 1.442695
    %v961 = vpow.pop %v960
    %v962 = vmul.f32 %v953, 1.442695
    %v963 = vpow.pop %v962
    %v964 = vmul.f32 %v954, 1.442695
    %v965 = vpow.pop %v964
    %v966 = vmul.f32 %v955, 1.442695
    %v967 = vpow.pop %v966
    %v968 = vmul.f32 %v956, 1.442695
    %v969 = vpow.pop %v968
    %v970 = vmul.f32 %v957, 1.442695
    %v971 = vpow.pop %v970
    %v972 = vmul.f32 %v958, 1.442695
    %v973 = vpow.pop %v972
    %v974 = vmul.f32 %v959, 1.442695
    %v975 = vpow.pop %v974
    %v976 = vadd.f32 %v961, 1.0
    %v977 = vadd.f32 %v963, 1.0
    %v978 = vadd.f32 %v965, 1.0
    %v979 = vadd.f32 %v967, 1.0
    %v980 = vadd.f32 %v969, 1.0
    %v981 = vadd.f32 %v971, 1.0
    %v982 = vadd.f32 %v973, 1.0
    %v983 = vadd.f32 %v975, 1.0
    %v984 = vrcp.pop %v976
    %v985 = vmul.f32 %v976, %v984
    %v986 = vsub.f32 1.0, %v985
    %v987 = vmul.f32 %v984, %v986
    %v988 = vadd.f32 %v984, %v987
    %vm989 = vweird.f32 %v976
    %vm990 = vweird.f32 %v984
    %vm991 = vmor %vm989, %vm990
    %v992 = vsel %vm991, %v984, %v988
    %v993 = vand.u32 2147483647, %v976
    %vm994 = vcmp.eq.f32.partialorder %v993, 8.507059e+37
    %v995 = vand.u32 %v976, 2147483648
    %v996 = vor.u32 1.1754944e-38, %v995
    %v997 = vsel %vm994, %v996, %v992
    %v998 = vmul.f32 1.0, %v997
    %v999 = vrcp.pop %v977
    %v1000 = vmul.f32 %v977, %v999
    %v1001 = vsub.f32 1.0, %v1000
    %v1002 = vmul.f32 %v999, %v1001
    %v1003 = vadd.f32 %v999, %v1002
    %vm1004 = vweird.f32 %v977
    %vm1005 = vweird.f32 %v999
    %vm1006 = vmor %vm1004, %vm1005
    %v1007 = vsel %vm1006, %v999, %v1003
    %v1008 = vand.u32 2147483647, %v977
    %vm1009 = vcmp.eq.f32.partialorder %v1008, 8.507059e+37
    %v1010 = vand.u32 %v977, 2147483648
    %v1011 = vor.u32 1.1754944e-38, %v1010
    %v1012 = vsel %vm1009, %v1011, %v1007
    %v1013 = vmul.f32 1.0, %v1012
    %v1014 = vrcp.pop %v978
    %v1015 = vmul.f32 %v978, %v1014
    %v1016 = vsub.f32 1.0, %v1015
    %v1017 = vmul.f32 %v1014, %v1016
    %v1018 = vadd.f32 %v1014, %v1017
    %vm1019 = vweird.f32 %v978
    %vm1020 = vweird.f32 %v1014
    %vm1021 = vmor %vm1019, %vm1020
    %v1022 = vsel %vm1021, %v1014, %v1018
    %v1023 = vand.u32 2147483647, %v978
    %vm1024 = vcmp.eq.f32.partialorder %v1023, 8.507059e+37
    %v1025 = vand.u32 %v978, 2147483648
    %v1026 = vor.u32 1.1754944e-38, %v1025
    %v1027 = vsel %vm1024, %v1026, %v1022
    %v1028 = vmul.f32 1.0, %v1027
    %v1029 = vrcp.pop %v979
    %v1030 = vmul.f32 %v979, %v1029
    %v1031 = vsub.f32 1.0, %v1030
    %v1032 = vmul.f32 %v1029, %v1031
    %v1033 = vadd.f32 %v1029, %v1032
    %vm1034 = vweird.f32 %v979
    %vm1035 = vweird.f32 %v1029
    %vm1036 = vmor %vm1034, %vm1035
    %v1037 = vsel %vm1036, %v1029, %v1033
    %v1038 = vand.u32 2147483647, %v979
    %vm1039 = vcmp.eq.f32.partialorder %v1038, 8.507059e+37
    %v1040 = vand.u32 %v979, 2147483648
    %v1041 = vor.u32 1.1754944e-38, %v1040
    %v1042 = vsel %vm1039, %v1041, %v1037
    %v1043 = vmul.f32 1.0, %v1042
    %v1044 = vrcp.pop %v980
    %v1045 = vmul.f32 %v980, %v1044
    %v1046 = vsub.f32 1.0, %v1045
    %v1047 = vmul.f32 %v1044, %v1046
    %v1048 = vadd.f32 %v1044, %v1047
    %vm1049 = vweird.f32 %v980
    %vm1050 = vweird.f32 %v1044
    %vm1051 = vmor %vm1049, %vm1050
    %v1052 = vsel %vm1051, %v1044, %v1048
    %v1053 = vand.u32 2147483647, %v980
    %vm1054 = vcmp.eq.f32.partialorder %v1053, 8.507059e+37
    %v1055 = vand.u32 %v980, 2147483648
    %v1056 = vor.u32 1.1754944e-38, %v1055
    %v1057 = vsel %vm1054, %v1056, %v1052
    %v1058 = vmul.f32 1.0, %v1057
    %v1059 = vrcp.pop %v981
    %v1060 = vmul.f32 %v981, %v1059
    %v1061 = vsub.f32 1.0, %v1060
    %v1062 = vmul.f32 %v1059, %v1061
    %v1063 = vadd.f32 %v1059, %v1062
    %vm1064 = vweird.f32 %v981
    %vm1065 = vweird.f32 %v1059
    %vm1066 = vmor %vm1064, %vm1065
    %v1067 = vsel %vm1066, %v1059, %v1063
    %v1068 = vand.u32 2147483647, %v981
    %vm1069 = vcmp.eq.f32.partialorder %v1068, 8.507059e+37
    %v1070 = vand.u32 %v981, 2147483648
    %v1071 = vor.u32 1.1754944e-38, %v1070
    %v1072 = vsel %vm1069, %v1071, %v1067
    %v1073 = vmul.f32 1.0, %v1072
    %v1074 = vrcp.pop %v982
    %v1075 = vmul.f32 %v982, %v1074
    %v1076 = vsub.f32 1.0, %v1075
    %v1077 = vmul.f32 %v1074, %v1076
    %v1078 = vadd.f32 %v1074, %v1077
    %vm1079 = vweird.f32 %v982
    %vm1080 = vweird.f32 %v1074
    %vm1081 = vmor %vm1079, %vm1080
    %v1082 = vsel %vm1081, %v1074, %v1078
    %v1083 = vand.u32 2147483647, %v982
    %vm1084 = vcmp.eq.f32.partialorder %v1083, 8.507059e+37
    %v1085 = vand.u32 %v982, 2147483648
    %v1086 = vor.u32 1.1754944e-38, %v1085
    %v1087 = vsel %vm1084, %v1086, %v1082
    %v1088 = vmul.f32 1.0, %v1087
    %v1089 = vrcp.pop %v983
    %v1090 = vmul.f32 %v983, %v1089
    %v1091 = vsub.f32 1.0, %v1090
    %v1092 = vmul.f32 %v1089, %v1091
    %v1093 = vadd.f32 %v1089, %v1092
    %vm1094 = vweird.f32 %v983
    %vm1095 = vweird.f32 %v1089
    %vm1096 = vmor %vm1094, %vm1095
    %v1097 = vsel %vm1096, %v1089, %v1093
    %v1098 = vand.u32 2147483647, %v983
    %vm1099 = vcmp.eq.f32.partialorder %v1098, 8.507059e+37
    %v1100 = vand.u32 %v983, 2147483648
    %v1101 = vor.u32 1.1754944e-38, %v1100
    %v1102 = vsel %vm1099, %v1101, %v1097
    %v1103 = vmul.f32 1.0, %v1102
    %v1105 = vrot.slane %v459, 1
    %v1106 = vrot.slane %v459, 2
    %v1107 = vrot.slane %v459, 3
    %v1108 = vrot.slane %v459, 4
    %v1109 = vrot.slane %v459, 5
    %v1110 = vrot.slane %v459, 6
    %v1111 = vrot.slane %v459, 7
    %v1120 = vmul.f32 %v838, %v459
    %v1121 = vmul.f32 %v853, %v1105
    %v1122 = vmul.f32 %v868, %v1106
    %v1123 = vmul.f32 %v883, %v1107
    %v1124 = vmul.f32 %v898, %v1108
    %v1125 = vmul.f32 %v913, %v1109
    %v1126 = vmul.f32 %v928, %v1110
    %v1127 = vmul.f32 %v943, %v1111
    %v1128 = vmul.f32 %v686, %v944
    %v1129 = vmul.f32 %v701, %v945
    %v1130 = vmul.f32 %v716, %v946
    %v1131 = vmul.f32 %v731, %v947
    %v1132 = vmul.f32 %v746, %v948
    %v1133 = vmul.f32 %v761, %v949
    %v1134 = vmul.f32 %v776, %v950
    %v1135 = vmul.f32 %v791, %v951
    %v1136 = vadd.f32 %v1120, %v1128
    %v1137 = vadd.f32 %v1121, %v1129
    %v1138 = vadd.f32 %v1122, %v1130
    %v1139 = vadd.f32 %v1123, %v1131
    %v1140 = vadd.f32 %v1124, %v1132
    %v1141 = vadd.f32 %v1125, %v1133
    %v1142 = vadd.f32 %v1126, %v1134
    %v1143 = vadd.f32 %v1127, %v1135
    %v1144 = vtanh.pop %v1136
    %v1145 = vtanh.pop %v1137
    %v1146 = vtanh.pop %v1138
    %v1147 = vtanh.pop %v1139
    %v1148 = vtanh.pop %v1140
    %v1149 = vtanh.pop %v1141
    %v1150 = vtanh.pop %v1142
    %v1151 = vtanh.pop %v1143
    %v1152 = vmul.f32 %v998, %v1144
    %v1153 = vmul.f32 %v1013, %v1145
    %v1154 = vmul.f32 %v1028, %v1146
    %v1155 = vmul.f32 %v1043, %v1147
    %v1156 = vmul.f32 %v1058, %v1148
    %v1157 = vmul.f32 %v1073, %v1149
    %v1158 = vmul.f32 %v1088, %v1150
    %v1159 = vmul.f32 %v1103, %v1151
    %v1168 = vrot.slane %v1153, 7
    %vm1169 = vcmask 1041409
    %v1170 = vsel %vm1169, %v1168, %v1152
    %v1171 = vrot.slane %v1154, 6
    %vm1172 = vcmask 1042434
    %v1173 = vsel %vm1172, %v1171, %v1170
    %v1174 = vrot.slane %v1155, 5
    %vm1175 = vcmask 1043459
    %v1176 = vsel %vm1175, %v1174, %v1173
    %v1177 = vrot.slane %v1156, 4
    %vm1178 = vcmask 1044484
    %v1179 = vsel %vm1178, %v1177, %v1176
    %v1180 = vrot.slane %v1157, 3
    %vm1181 = vcmask 1045509
    %v1182 = vsel %vm1181, %v1180, %v1179
    %v1183 = vrot.slane %v1158, 2
    %vm1184 = vcmask 1046534
    %v1185 = vsel %vm1184, %v1183, %v1182
    %v1186 = vrot.slane %v1159, 1
    %vm1187 = vcmask 1047559
    %v1188 = vsel %vm1187, %v1186, %v1185
    %v1191 = vperm.slane %v234, 0
    %v1192 = vperm.slane %v234, 1
    %v1193 = vperm.slane %v234, 2
    %v1194 = vperm.slane %v234, 3
    %1199 = vmatpush.msra.mxu0 %v166
    %1200 = vmatpush.msra.mxu0 %v162
    %1201 = vmatpush.msra.mxu0 %v158
    %1202 = vmatpush.msra.mxu0 %v154
    %1203 = vmatpush.msra.mxu0 %v150
    %1204 = vmatpush.msra.mxu0 %v146
    %1205 = vmatpush.msra.mxu0 %v142
    %1206 = vmatpush.msra.mxu0 %v138
    %1207 = vmatpush.msra.mxu0 %v134
    %1208 = vmatpush.msra.mxu0 %v130
    %1209 = vmatpush.msra.mxu0 %v126
    %1210 = vmatpush.msra.mxu0 %v122
    %1211 = vmatpush.msra.mxu0 %v118
    %1212 = vmatpush.msra.mxu0 %v114
    %1213 = vmatpush.msra.mxu0 %v110
    %1214 = vmatpush.msra.mxu0 %v106
    %1215 = vmatmul.f32.gmra.mxu0 %v1188
    %v1216 = vpop.f32.mrf.mxu0
    %v1217 = vadd.f32 %v1191, %v1216
    %1218 = vdwg.mxu0
    %1219 = vmatpush.msra.mxu0 %v230
    %1220 = vmatpush.msra.mxu0 %v226
    %1221 = vmatpush.msra.mxu0 %v222
    %1222 = vmatpush.msra.mxu0 %v218
    %1223 = vmatpush.msra.mxu0 %v214
    %1224 = vmatpush.msra.mxu0 %v210
    %1225 = vmatpush.msra.mxu0 %v206
    %1226 = vmatpush.msra.mxu0 %v202
    %1227 = vmatpush.msra.mxu0 %v198
    %1228 = vmatpush.msra.mxu0 %v194
    %1229 = vmatpush.msra.mxu0 %v190
    %1230 = vmatpush.msra.mxu0 %v186
    %1231 = vmatpush.msra.mxu0 %v182
    %1232 = vmatpush.msra.mxu0 %v178
    %1233 = vmatpush.msra.mxu0 %v174
    %1234 = vmatpush.msra.mxu0 %v170
    %1235 = vmatmul.f32.gmra.mxu0 %v461
    %v1236 = vpop.f32.mrf.mxu0
    %v1237 = vadd.f32 %v1217, %v1236
    %1238 = vdwg.mxu0
    %1239 = vmatpush.msra.mxu0 %v167
    %1240 = vmatpush.msra.mxu0 %v163
    %1241 = vmatpush.msra.mxu0 %v159
    %1242 = vmatpush.msra.mxu0 %v155
    %1243 = vmatpush.msra.mxu0 %v151
    %1244 = vmatpush.msra.mxu0 %v147
    %1245 = vmatpush.msra.mxu0 %v143
    %1246 = vmatpush.msra.mxu0 %v139
    %1247 = vmatpush.msra.mxu0 %v135
    %1248 = vmatpush.msra.mxu0 %v131
    %1249 = vmatpush.msra.mxu0 %v127
    %1250 = vmatpush.msra.mxu0 %v123
    %1251 = vmatpush.msra.mxu0 %v119
    %1252 = vmatpush.msra.mxu0 %v115
    %1253 = vmatpush.msra.mxu0 %v111
    %1254 = vmatpush.msra.mxu0 %v107
    %1255 = vmatmul.f32.gmra.mxu0 %v1188
    %v1256 = vpop.f32.mrf.mxu0
    %v1257 = vadd.f32 %v1192, %v1256
    %1258 = vdwg.mxu0
    %1259 = vmatpush.msra.mxu0 %v231
    %1260 = vmatpush.msra.mxu0 %v227
    %1261 = vmatpush.msra.mxu0 %v223
    %1262 = vmatpush.msra.mxu0 %v219
    %1263 = vmatpush.msra.mxu0 %v215
    %1264 = vmatpush.msra.mxu0 %v211
    %1265 = vmatpush.msra.mxu0 %v207
    %1266 = vmatpush.msra.mxu0 %v203
    %1267 = vmatpush.msra.mxu0 %v199
    %1268 = vmatpush.msra.mxu0 %v195
    %1269 = vmatpush.msra.mxu0 %v191
    %1270 = vmatpush.msra.mxu0 %v187
    %1271 = vmatpush.msra.mxu0 %v183
    %1272 = vmatpush.msra.mxu0 %v179
    %1273 = vmatpush.msra.mxu0 %v175
    %1274 = vmatpush.msra.mxu0 %v171
    %1275 = vmatmul.f32.gmra.mxu0 %v461
    %v1276 = vpop.f32.mrf.mxu0
    %v1277 = vadd.f32 %v1257, %v1276
    %1278 = vdwg.mxu0
    %1279 = vmatpush.msra.mxu0 %v168
    %1280 = vmatpush.msra.mxu0 %v164
    %1281 = vmatpush.msra.mxu0 %v160
    %1282 = vmatpush.msra.mxu0 %v156
    %1283 = vmatpush.msra.mxu0 %v152
    %1284 = vmatpush.msra.mxu0 %v148
    %1285 = vmatpush.msra.mxu0 %v144
    %1286 = vmatpush.msra.mxu0 %v140
    %1287 = vmatpush.msra.mxu0 %v136
    %1288 = vmatpush.msra.mxu0 %v132
    %1289 = vmatpush.msra.mxu0 %v128
    %1290 = vmatpush.msra.mxu0 %v124
    %1291 = vmatpush.msra.mxu0 %v120
    %1292 = vmatpush.msra.mxu0 %v116
    %1293 = vmatpush.msra.mxu0 %v112
    %1294 = vmatpush.msra.mxu0 %v108
    %1295 = vmatmul.f32.gmra.mxu0 %v1188
    %v1296 = vpop.f32.mrf.mxu0
    %v1297 = vadd.f32 %v1193, %v1296
    %1298 = vdwg.mxu0
    %1299 = vmatpush.msra.mxu0 %v232
    %1300 = vmatpush.msra.mxu0 %v228
    %1301 = vmatpush.msra.mxu0 %v224
    %1302 = vmatpush.msra.mxu0 %v220
    %1303 = vmatpush.msra.mxu0 %v216
    %1304 = vmatpush.msra.mxu0 %v212
    %1305 = vmatpush.msra.mxu0 %v208
    %1306 = vmatpush.msra.mxu0 %v204
    %1307 = vmatpush.msra.mxu0 %v200
    %1308 = vmatpush.msra.mxu0 %v196
    %1309 = vmatpush.msra.mxu0 %v192
    %1310 = vmatpush.msra.mxu0 %v188
    %1311 = vmatpush.msra.mxu0 %v184
    %1312 = vmatpush.msra.mxu0 %v180
    %1313 = vmatpush.msra.mxu0 %v176
    %1314 = vmatpush.msra.mxu0 %v172
    %1315 = vmatmul.f32.gmra.mxu0 %v461
    %v1316 = vpop.f32.mrf.mxu0
    %v1317 = vadd.f32 %v1297, %v1316
    %1318 = vdwg.mxu0
    %1319 = vmatpush.msra.mxu0 %v169
    %1320 = vmatpush.msra.mxu0 %v165
    %1321 = vmatpush.msra.mxu0 %v161
    %1322 = vmatpush.msra.mxu0 %v157
    %1323 = vmatpush.msra.mxu0 %v153
    %1324 = vmatpush.msra.mxu0 %v149
    %1325 = vmatpush.msra.mxu0 %v145
    %1326 = vmatpush.msra.mxu0 %v141
    %1327 = vmatpush.msra.mxu0 %v137
    %1328 = vmatpush.msra.mxu0 %v133
    %1329 = vmatpush.msra.mxu0 %v129
    %1330 = vmatpush.msra.mxu0 %v125
    %1331 = vmatpush.msra.mxu0 %v121
    %1332 = vmatpush.msra.mxu0 %v117
    %1333 = vmatpush.msra.mxu0 %v113
    %1334 = vmatpush.msra.mxu0 %v109
    %1335 = vmatmul.f32.gmra.mxu0 %v1188
    %v1336 = vpop.f32.mrf.mxu0
    %v1337 = vadd.f32 %v1194, %v1336
    %1338 = vdwg.mxu0
    %1339 = vmatpush.msra.mxu0 %v233
    %1340 = vmatpush.msra.mxu0 %v229
    %1341 = vmatpush.msra.mxu0 %v225
    %1342 = vmatpush.msra.mxu0 %v221
    %1343 = vmatpush.msra.mxu0 %v217
    %1344 = vmatpush.msra.mxu0 %v213
    %1345 = vmatpush.msra.mxu0 %v209
    %1346 = vmatpush.msra.mxu0 %v205
    %1347 = vmatpush.msra.mxu0 %v201
    %1348 = vmatpush.msra.mxu0 %v197
    %1349 = vmatpush.msra.mxu0 %v193
    %1350 = vmatpush.msra.mxu0 %v189
    %1351 = vmatpush.msra.mxu0 %v185
    %1352 = vmatpush.msra.mxu0 %v181
    %1353 = vmatpush.msra.mxu0 %v177
    %1354 = vmatpush.msra.mxu0 %v173
    %1355 = vmatmul.f32.gmra.mxu0 %v461
    %v1356 = vpop.f32.mrf.mxu0
    %v1357 = vadd.f32 %v1337, %v1356
    %1358 = vdwg.mxu0
    %v1359 = vxor.u32 %v1237, 2147483648
    %v1360 = vmul.f32 %v1359, 1.442695
    %v1361 = vpow.pop %v1360
    %v1362 = vadd.f32 %v1361, 1.0
    %v1363 = vrcp.pop %v1362
    %v1364 = vmul.f32 %v1362, %v1363
    %v1365 = vsub.f32 1.0, %v1364
    %v1366 = vmul.f32 %v1363, %v1365
    %v1367 = vadd.f32 %v1363, %v1366
    %vm1368 = vweird.f32 %v1362
    %vm1369 = vweird.f32 %v1363
    %vm1370 = vmor %vm1368, %vm1369
    %v1371 = vsel %vm1370, %v1363, %v1367
    %v1372 = vand.u32 2147483647, %v1362
    %vm1373 = vcmp.eq.f32.partialorder %v1372, 8.507059e+37
    %v1374 = vand.u32 %v1362, 2147483648
    %v1375 = vor.u32 1.1754944e-38, %v1374
    %v1376 = vsel %vm1373, %v1375, %v1371
    %v1377 = vmul.f32 1.0, %v1376
    %v1378 = vxor.u32 %v1277, 2147483648
    %v1379 = vmul.f32 %v1378, 1.442695
    %v1380 = vpow.pop %v1379
    %v1381 = vadd.f32 %v1380, 1.0
    %v1382 = vrcp.pop %v1381
    %v1383 = vmul.f32 %v1381, %v1382
    %v1384 = vsub.f32 1.0, %v1383
    %v1385 = vmul.f32 %v1382, %v1384
    %v1386 = vadd.f32 %v1382, %v1385
    %vm1387 = vweird.f32 %v1381
    %vm1388 = vweird.f32 %v1382
    %vm1389 = vmor %vm1387, %vm1388
    %v1390 = vsel %vm1389, %v1382, %v1386
    %v1391 = vand.u32 2147483647, %v1381
    %vm1392 = vcmp.eq.f32.partialorder %v1391, 8.507059e+37
    %v1393 = vand.u32 %v1381, 2147483648
    %v1394 = vor.u32 1.1754944e-38, %v1393
    %v1395 = vsel %vm1392, %v1394, %v1390
    %v1396 = vmul.f32 1.0, %v1395
    %v1397 = vtanh.pop %v1317
    %v1398 = vxor.u32 %v1357, 2147483648
    %v1399 = vmul.f32 %v1398, 1.442695
    %v1400 = vpow.pop %v1399
    %v1401 = vadd.f32 %v1400, 1.0
    %v1402 = vrcp.pop %v1401
    %v1403 = vmul.f32 %v1401, %v1402
    %v1404 = vsub.f32 1.0, %v1403
    %v1405 = vmul.f32 %v1402, %v1404
    %v1406 = vadd.f32 %v1402, %v1405
    %vm1407 = vweird.f32 %v1401
    %vm1408 = vweird.f32 %v1402
    %vm1409 = vmor %vm1407, %vm1408
    %v1410 = vsel %vm1409, %v1402, %v1406
    %v1411 = vand.u32 2147483647, %v1401
    %vm1412 = vcmp.eq.f32.partialorder %v1411, 8.507059e+37
    %v1413 = vand.u32 %v1401, 2147483648
    %v1414 = vor.u32 1.1754944e-38, %v1413
    %v1415 = vsel %vm1412, %v1414, %v1410
    %v1416 = vmul.f32 1.0, %v1415
    %v1417 = vmul.f32 %v1396, %v463
    %v1418 = vmul.f32 %v1377, %v1397
    %v1419 = vadd.f32 %v1417, %v1418
    %v1420 = vtanh.pop %v1419
    %v1421 = vmul.f32 %v1416, %v1420
    %1422 = vmatpush.msra.mxu0 %v102
    %1423 = vmatpush.msra.mxu0 %v98
    %1424 = vmatpush.msra.mxu0 %v94
    %1425 = vmatpush.msra.mxu0 %v90
    %1426 = vmatpush.msra.mxu0 %v86
    %1427 = vmatpush.msra.mxu0 %v82
    %1428 = vmatpush.msra.mxu0 %v78
    %1429 = vmatpush.msra.mxu0 %v74
    %1430 = vmatpush.msra.mxu0 %v70
    %1431 = vmatpush.msra.mxu0 %v66
    %1432 = vmatpush.msra.mxu0 %v62
    %1433 = vmatpush.msra.mxu0 %v58
    %1434 = vmatpush.msra.mxu0 %v54
    %1435 = vmatpush.msra.mxu0 %v50
    %1436 = vmatpush.msra.mxu0 %v46
    %1437 = vmatpush.msra.mxu0 %v42
    %1438 = vmatmul.f32.gmra.mxu0 %v1188
    %v1439 = vpop.f32.mrf.mxu0
    %v1440 = vadd.f32 0.0, %v1439
    %1441 = vdwg.mxu0
    %1442 = vmatpush.msra.mxu0 %v103
    %1443 = vmatpush.msra.mxu0 %v99
    %1444 = vmatpush.msra.mxu0 %v95
    %1445 = vmatpush.msra.mxu0 %v91
    %1446 = vmatpush.msra.mxu0 %v87
    %1447 = vmatpush.msra.mxu0 %v83
    %1448 = vmatpush.msra.mxu0 %v79
    %1449 = vmatpush.msra.mxu0 %v75
    %1450 = vmatpush.msra.mxu0 %v71
    %1451 = vmatpush.msra.mxu0 %v67
    %1452 = vmatpush.msra.mxu0 %v63
    %1453 = vmatpush.msra.mxu0 %v59
    %1454 = vmatpush.msra.mxu0 %v55
    %1455 = vmatpush.msra.mxu0 %v51
    %1456 = vmatpush.msra.mxu0 %v47
    %1457 = vmatpush.msra.mxu0 %v43
    %1458 = vmatmul.f32.gmra.mxu0 %v1188
    %v1459 = vpop.f32.mrf.mxu0
    %v1460 = vadd.f32 0.0, %v1459
    %1461 = vdwg.mxu0
    %1462 = vmatpush.msra.mxu0 %v104
    %1463 = vmatpush.msra.mxu0 %v100
    %1464 = vmatpush.msra.mxu0 %v96
    %1465 = vmatpush.msra.mxu0 %v92
    %1466 = vmatpush.msra.mxu0 %v88
    %1467 = vmatpush.msra.mxu0 %v84
    %1468 = vmatpush.msra.mxu0 %v80
    %1469 = vmatpush.msra.mxu0 %v76
    %1470 = vmatpush.msra.mxu0 %v72
    %1471 = vmatpush.msra.mxu0 %v68
    %1472 = vmatpush.msra.mxu0 %v64
    %1473 = vmatpush.msra.mxu0 %v60
    %1474 = vmatpush.msra.mxu0 %v56
    %1475 = vmatpush.msra.mxu0 %v52
    %1476 = vmatpush.msra.mxu0 %v48
    %1477 = vmatpush.msra.mxu0 %v44
    %1478 = vmatmul.f32.gmra.mxu0 %v1188
    %v1479 = vpop.f32.mrf.mxu0
    %v1480 = vadd.f32 0.0, %v1479
    %1481 = vdwg.mxu0
    %1482 = vmatpush.msra.mxu0 %v105
    %1483 = vmatpush.msra.mxu0 %v101
    %1484 = vmatpush.msra.mxu0 %v97
    %1485 = vmatpush.msra.mxu0 %v93
    %1486 = vmatpush.msra.mxu0 %v89
    %1487 = vmatpush.msra.mxu0 %v85
    %1488 = vmatpush.msra.mxu0 %v81
    %1489 = vmatpush.msra.mxu0 %v77
    %1490 = vmatpush.msra.mxu0 %v73
    %1491 = vmatpush.msra.mxu0 %v69
    %1492 = vmatpush.msra.mxu0 %v65
    %1493 = vmatpush.msra.mxu0 %v61
    %1494 = vmatpush.msra.mxu0 %v57
    %1495 = vmatpush.msra.mxu0 %v53
    %1496 = vmatpush.msra.mxu0 %v49
    %1497 = vmatpush.msra.mxu0 %v45
    %1498 = vmatmul.f32.gmra.mxu0 %v1188
    %v1499 = vpop.f32.mrf.mxu0
    %v1500 = vadd.f32 0.0, %v1499
    %1501 = vdwg.mxu0
    %v1506 = vrot.slane %v1440, 7
    %v1507 = vrot.slane %v1460, 7
    %v1508 = vrot.slane %v1480, 7
    %v1509 = vrot.slane %v1500, 7
    %v1510 = vrot.slane %v1440, 1
    %v1511 = vrot.slane %v1460, 1
    %v1512 = vrot.slane %v1480, 1
    %v1513 = vrot.slane %v1500, 1
    %v1514 = vrot.slane %v1440, 2
    %v1515 = vrot.slane %v1460, 2
    %v1516 = vrot.slane %v1480, 2
    %v1517 = vrot.slane %v1500, 2
    %v1518 = vrot.slane %v1440, 3
    %v1519 = vrot.slane %v1460, 3
    %v1520 = vrot.slane %v1480, 3
    %v1521 = vrot.slane %v1500, 3
    %v1522 = vrot.slane %v1440, 4
    %v1523 = vrot.slane %v1460, 4
    %v1524 = vrot.slane %v1480, 4
    %v1525 = vrot.slane %v1500, 4
    %v1526 = vrot.slane %v1440, 5
    %v1527 = vrot.slane %v1460, 5
    %v1528 = vrot.slane %v1480, 5
    %v1529 = vrot.slane %v1500, 5
    %v1530 = vrot.slane %v1440, 6
    %v1531 = vrot.slane %v1460, 6
    %v1532 = vrot.slane %v1480, 6
    %v1533 = vrot.slane %v1500, 6
    %v1566 = vadd.f32 %v312, %v1506
    %v1567 = vadd.f32 %v353, %v1507
    %v1568 = vadd.f32 %v394, %v1508
    %v1569 = vadd.f32 %v435, %v1509
    %v1570 = vadd.f32 %v315, %v1440
    %v1571 = vadd.f32 %v356, %v1460
    %v1572 = vadd.f32 %v397, %v1480
    %v1573 = vadd.f32 %v438, %v1500
    %v1574 = vadd.f32 %v318, %v1510
    %v1575 = vadd.f32 %v359, %v1511
    %v1576 = vadd.f32 %v400, %v1512
    %v1577 = vadd.f32 %v441, %v1513
    %v1578 = vadd.f32 %v321, %v1514
    %v1579 = vadd.f32 %v362, %v1515
    %v1580 = vadd.f32 %v403, %v1516
    %v1581 = vadd.f32 %v444, %v1517
    %v1582 = vadd.f32 %v324, %v1518
    %v1583 = vadd.f32 %v365, %v1519
    %v1584 = vadd.f32 %v406, %v1520
    %v1585 = vadd.f32 %v447, %v1521
    %v1586 = vadd.f32 %v327, %v1522
    %v1587 = vadd.f32 %v368, %v1523
    %v1588 = vadd.f32 %v409, %v1524
    %v1589 = vadd.f32 %v450, %v1525
    %v1590 = vadd.f32 %v330, %v1526
    %v1591 = vadd.f32 %v371, %v1527
    %v1592 = vadd.f32 %v412, %v1528
    %v1593 = vadd.f32 %v453, %v1529
    %v1594 = vadd.f32 %v333, %v1530
    %v1595 = vadd.f32 %v374, %v1531
    %v1596 = vadd.f32 %v415, %v1532
    %v1597 = vadd.f32 %v456, %v1533
    %v1598 = vxor.u32 %v1566, 2147483648
    %v1599 = vxor.u32 %v1570, 2147483648
    %v1600 = vxor.u32 %v1574, 2147483648
    %v1601 = vxor.u32 %v1578, 2147483648
    %v1602 = vxor.u32 %v1582, 2147483648
    %v1603 = vxor.u32 %v1586, 2147483648
    %v1604 = vxor.u32 %v1590, 2147483648
    %v1605 = vxor.u32 %v1594, 2147483648
    %v1606 = vmul.f32 %v1598, 1.442695
    %v1607 = vpow.pop %v1606
    %v1608 = vmul.f32 %v1599, 1.442695
    %v1609 = vpow.pop %v1608
    %v1610 = vmul.f32 %v1600, 1.442695
    %v1611 = vpow.pop %v1610
    %v1612 = vmul.f32 %v1601, 1.442695
    %v1613 = vpow.pop %v1612
    %v1614 = vmul.f32 %v1602, 1.442695
    %v1615 = vpow.pop %v1614
    %v1616 = vmul.f32 %v1603, 1.442695
    %v1617 = vpow.pop %v1616
    %v1618 = vmul.f32 %v1604, 1.442695
    %v1619 = vpow.pop %v1618
    %v1620 = vmul.f32 %v1605, 1.442695
    %v1621 = vpow.pop %v1620
    %v1622 = vadd.f32 %v1607, 1.0
    %v1623 = vadd.f32 %v1609, 1.0
    %v1624 = vadd.f32 %v1611, 1.0
    %v1625 = vadd.f32 %v1613, 1.0
    %v1626 = vadd.f32 %v1615, 1.0
    %v1627 = vadd.f32 %v1617, 1.0
    %v1628 = vadd.f32 %v1619, 1.0
    %v1629 = vadd.f32 %v1621, 1.0
    %v1630 = vrcp.pop %v1622
    %v1631 = vmul.f32 %v1622, %v1630
    %v1632 = vsub.f32 1.0, %v1631
    %v1633 = vmul.f32 %v1630, %v1632
    %v1634 = vadd.f32 %v1630, %v1633
    %vm1635 = vweird.f32 %v1622
    %vm1636 = vweird.f32 %v1630
    %vm1637 = vmor %vm1635, %vm1636
    %v1638 = vsel %vm1637, %v1630, %v1634
    %v1639 = vand.u32 2147483647, %v1622
    %vm1640 = vcmp.eq.f32.partialorder %v1639, 8.507059e+37
    %v1641 = vand.u32 %v1622, 2147483648
    %v1642 = vor.u32 1.1754944e-38, %v1641
    %v1643 = vsel %vm1640, %v1642, %v1638
    %v1644 = vmul.f32 1.0, %v1643
    %v1645 = vrcp.pop %v1623
    %v1646 = vmul.f32 %v1623, %v1645
    %v1647 = vsub.f32 1.0, %v1646
    %v1648 = vmul.f32 %v1645, %v1647
    %v1649 = vadd.f32 %v1645, %v1648
    %vm1650 = vweird.f32 %v1623
    %vm1651 = vweird.f32 %v1645
    %vm1652 = vmor %vm1650, %vm1651
    %v1653 = vsel %vm1652, %v1645, %v1649
    %v1654 = vand.u32 2147483647, %v1623
    %vm1655 = vcmp.eq.f32.partialorder %v1654, 8.507059e+37
    %v1656 = vand.u32 %v1623, 2147483648
    %v1657 = vor.u32 1.1754944e-38, %v1656
    %v1658 = vsel %vm1655, %v1657, %v1653
    %v1659 = vmul.f32 1.0, %v1658
    %v1660 = vrcp.pop %v1624
    %v1661 = vmul.f32 %v1624, %v1660
    %v1662 = vsub.f32 1.0, %v1661
    %v1663 = vmul.f32 %v1660, %v1662
    %v1664 = vadd.f32 %v1660, %v1663
    %vm1665 = vweird.f32 %v1624
    %vm1666 = vweird.f32 %v1660
    %vm1667 = vmor %vm1665, %vm1666
    %v1668 = vsel %vm1667, %v1660, %v1664
    %v1669 = vand.u32 2147483647, %v1624
    %vm1670 = vcmp.eq.f32.partialorder %v1669, 8.507059e+37
    %v1671 = vand.u32 %v1624, 2147483648
    %v1672 = vor.u32 1.1754944e-38, %v1671
    %v1673 = vsel %vm1670, %v1672, %v1668
    %v1674 = vmul.f32 1.0, %v1673
    %v1675 = vrcp.pop %v1625
    %v1676 = vmul.f32 %v1625, %v1675
    %v1677 = vsub.f32 1.0, %v1676
    %v1678 = vmul.f32 %v1675, %v1677
    %v1679 = vadd.f32 %v1675, %v1678
    %vm1680 = vweird.f32 %v1625
    %vm1681 = vweird.f32 %v1675
    %vm1682 = vmor %vm1680, %vm1681
    %v1683 = vsel %vm1682, %v1675, %v1679
    %v1684 = vand.u32 2147483647, %v1625
    %vm1685 = vcmp.eq.f32.partialorder %v1684, 8.507059e+37
    %v1686 = vand.u32 %v1625, 2147483648
    %v1687 = vor.u32 1.1754944e-38, %v1686
    %v1688 = vsel %vm1685, %v1687, %v1683
    %v1689 = vmul.f32 1.0, %v1688
    %v1690 = vrcp.pop %v1626
    %v1691 = vmul.f32 %v1626, %v1690
    %v1692 = vsub.f32 1.0, %v1691
    %v1693 = vmul.f32 %v1690, %v1692
    %v1694 = vadd.f32 %v1690, %v1693
    %vm1695 = vweird.f32 %v1626
    %vm1696 = vweird.f32 %v1690
    %vm1697 = vmor %vm1695, %vm1696
    %v1698 = vsel %vm1697, %v1690, %v1694
    %v1699 = vand.u32 2147483647, %v1626
    %vm1700 = vcmp.eq.f32.partialorder %v1699, 8.507059e+37
    %v1701 = vand.u32 %v1626, 2147483648
    %v1702 = vor.u32 1.1754944e-38, %v1701
    %v1703 = vsel %vm1700, %v1702, %v1698
    %v1704 = vmul.f32 1.0, %v1703
    %v1705 = vrcp.pop %v1627
    %v1706 = vmul.f32 %v1627, %v1705
    %v1707 = vsub.f32 1.0, %v1706
    %v1708 = vmul.f32 %v1705, %v1707
    %v1709 = vadd.f32 %v1705, %v1708
    %vm1710 = vweird.f32 %v1627
    %vm1711 = vweird.f32 %v1705
    %vm1712 = vmor %vm1710, %vm1711
    %v1713 = vsel %vm1712, %v1705, %v1709
    %v1714 = vand.u32 2147483647, %v1627
    %vm1715 = vcmp.eq.f32.partialorder %v1714, 8.507059e+37
    %v1716 = vand.u32 %v1627, 2147483648
    %v1717 = vor.u32 1.1754944e-38, %v1716
    %v1718 = vsel %vm1715, %v1717, %v1713
    %v1719 = vmul.f32 1.0, %v1718
    %v1720 = vrcp.pop %v1628
    %v1721 = vmul.f32 %v1628, %v1720
    %v1722 = vsub.f32 1.0, %v1721
    %v1723 = vmul.f32 %v1720, %v1722
    %v1724 = vadd.f32 %v1720, %v1723
    %vm1725 = vweird.f32 %v1628
    %vm1726 = vweird.f32 %v1720
    %vm1727 = vmor %vm1725, %vm1726
    %v1728 = vsel %vm1727, %v1720, %v1724
    %v1729 = vand.u32 2147483647, %v1628
    %vm1730 = vcmp.eq.f32.partialorder %v1729, 8.507059e+37
    %v1731 = vand.u32 %v1628, 2147483648
    %v1732 = vor.u32 1.1754944e-38, %v1731
    %v1733 = vsel %vm1730, %v1732, %v1728
    %v1734 = vmul.f32 1.0, %v1733
    %v1735 = vrcp.pop %v1629
    %v1736 = vmul.f32 %v1629, %v1735
    %v1737 = vsub.f32 1.0, %v1736
    %v1738 = vmul.f32 %v1735, %v1737
    %v1739 = vadd.f32 %v1735, %v1738
    %vm1740 = vweird.f32 %v1629
    %vm1741 = vweird.f32 %v1735
    %vm1742 = vmor %vm1740, %vm1741
    %v1743 = vsel %vm1742, %v1735, %v1739
    %v1744 = vand.u32 2147483647, %v1629
    %vm1745 = vcmp.eq.f32.partialorder %v1744, 8.507059e+37
    %v1746 = vand.u32 %v1629, 2147483648
    %v1747 = vor.u32 1.1754944e-38, %v1746
    %v1748 = vsel %vm1745, %v1747, %v1743
    %v1749 = vmul.f32 1.0, %v1748
    %v1750 = vxor.u32 %v1567, 2147483648
    %v1751 = vxor.u32 %v1571, 2147483648
    %v1752 = vxor.u32 %v1575, 2147483648
    %v1753 = vxor.u32 %v1579, 2147483648
    %v1754 = vxor.u32 %v1583, 2147483648
    %v1755 = vxor.u32 %v1587, 2147483648
    %v1756 = vxor.u32 %v1591, 2147483648
    %v1757 = vxor.u32 %v1595, 2147483648
    %v1758 = vmul.f32 %v1750, 1.442695
    %v1759 = vpow.pop %v1758
    %v1760 = vmul.f32 %v1751, 1.442695
    %v1761 = vpow.pop %v1760
    %v1762 = vmul.f32 %v1752, 1.442695
    %v1763 = vpow.pop %v1762
    %v1764 = vmul.f32 %v1753, 1.442695
    %v1765 = vpow.pop %v1764
    %v1766 = vmul.f32 %v1754, 1.442695
    %v1767 = vpow.pop %v1766
    %v1768 = vmul.f32 %v1755, 1.442695
    %v1769 = vpow.pop %v1768
    %v1770 = vmul.f32 %v1756, 1.442695
    %v1771 = vpow.pop %v1770
    %v1772 = vmul.f32 %v1757, 1.442695
    %v1773 = vpow.pop %v1772
    %v1774 = vadd.f32 %v1759, 1.0
    %v1775 = vadd.f32 %v1761, 1.0
    %v1776 = vadd.f32 %v1763, 1.0
    %v1777 = vadd.f32 %v1765, 1.0
    %v1778 = vadd.f32 %v1767, 1.0
    %v1779 = vadd.f32 %v1769, 1.0
    %v1780 = vadd.f32 %v1771, 1.0
    %v1781 = vadd.f32 %v1773, 1.0
    %v1782 = vrcp.pop %v1774
    %v1783 = vmul.f32 %v1774, %v1782
    %v1784 = vsub.f32 1.0, %v1783
    %v1785 = vmul.f32 %v1782, %v1784
    %v1786 = vadd.f32 %v1782, %v1785
    %vm1787 = vweird.f32 %v1774
    %vm1788 = vweird.f32 %v1782
    %vm1789 = vmor %vm1787, %vm1788
    %v1790 = vsel %vm1789, %v1782, %v1786
    %v1791 = vand.u32 2147483647, %v1774
    %vm1792 = vcmp.eq.f32.partialorder %v1791, 8.507059e+37
    %v1793 = vand.u32 %v1774, 2147483648
    %v1794 = vor.u32 1.1754944e-38, %v1793
    %v1795 = vsel %vm1792, %v1794, %v1790
    %v1796 = vmul.f32 1.0, %v1795
    %v1797 = vrcp.pop %v1775
    %v1798 = vmul.f32 %v1775, %v1797
    %v1799 = vsub.f32 1.0, %v1798
    %v1800 = vmul.f32 %v1797, %v1799
    %v1801 = vadd.f32 %v1797, %v1800
    %vm1802 = vweird.f32 %v1775
    %vm1803 = vweird.f32 %v1797
    %vm1804 = vmor %vm1802, %vm1803
    %v1805 = vsel %vm1804, %v1797, %v1801
    %v1806 = vand.u32 2147483647, %v1775
    %vm1807 = vcmp.eq.f32.partialorder %v1806, 8.507059e+37
    %v1808 = vand.u32 %v1775, 2147483648
    %v1809 = vor.u32 1.1754944e-38, %v1808
    %v1810 = vsel %vm1807, %v1809, %v1805
    %v1811 = vmul.f32 1.0, %v1810
    %v1812 = vrcp.pop %v1776
    %v1813 = vmul.f32 %v1776, %v1812
    %v1814 = vsub.f32 1.0, %v1813
    %v1815 = vmul.f32 %v1812, %v1814
    %v1816 = vadd.f32 %v1812, %v1815
    %vm1817 = vweird.f32 %v1776
    %vm1818 = vweird.f32 %v1812
    %vm1819 = vmor %vm1817, %vm1818
    %v1820 = vsel %vm1819, %v1812, %v1816
    %v1821 = vand.u32 2147483647, %v1776
    %vm1822 = vcmp.eq.f32.partialorder %v1821, 8.507059e+37
    %v1823 = vand.u32 %v1776, 2147483648
    %v1824 = vor.u32 1.1754944e-38, %v1823
    %v1825 = vsel %vm1822, %v1824, %v1820
    %v1826 = vmul.f32 1.0, %v1825
    %v1827 = vrcp.pop %v1777
    %v1828 = vmul.f32 %v1777, %v1827
    %v1829 = vsub.f32 1.0, %v1828
    %v1830 = vmul.f32 %v1827, %v1829
    %v1831 = vadd.f32 %v1827, %v1830
    %vm1832 = vweird.f32 %v1777
    %vm1833 = vweird.f32 %v1827
    %vm1834 = vmor %vm1832, %vm1833
    %v1835 = vsel %vm1834, %v1827, %v1831
    %v1836 = vand.u32 2147483647, %v1777
    %vm1837 = vcmp.eq.f32.partialorder %v1836, 8.507059e+37
    %v1838 = vand.u32 %v1777, 2147483648
    %v1839 = vor.u32 1.1754944e-38, %v1838
    %v1840 = vsel %vm1837, %v1839, %v1835
    %v1841 = vmul.f32 1.0, %v1840
    %v1842 = vrcp.pop %v1778
    %v1843 = vmul.f32 %v1778, %v1842
    %v1844 = vsub.f32 1.0, %v1843
    %v1845 = vmul.f32 %v1842, %v1844
    %v1846 = vadd.f32 %v1842, %v1845
    %vm1847 = vweird.f32 %v1778
    %vm1848 = vweird.f32 %v1842
    %vm1849 = vmor %vm1847, %vm1848
    %v1850 = vsel %vm1849, %v1842, %v1846
    %v1851 = vand.u32 2147483647, %v1778
    %vm1852 = vcmp.eq.f32.partialorder %v1851, 8.507059e+37
    %v1853 = vand.u32 %v1778, 2147483648
    %v1854 = vor.u32 1.1754944e-38, %v1853
    %v1855 = vsel %vm1852, %v1854, %v1850
    %v1856 = vmul.f32 1.0, %v1855
    %v1857 = vrcp.pop %v1779
    %v1858 = vmul.f32 %v1779, %v1857
    %v1859 = vsub.f32 1.0, %v1858
    %v1860 = vmul.f32 %v1857, %v1859
    %v1861 = vadd.f32 %v1857, %v1860
    %vm1862 = vweird.f32 %v1779
    %vm1863 = vweird.f32 %v1857
    %vm1864 = vmor %vm1862, %vm1863
    %v1865 = vsel %vm1864, %v1857, %v1861
    %v1866 = vand.u32 2147483647, %v1779
    %vm1867 = vcmp.eq.f32.partialorder %v1866, 8.507059e+37
    %v1868 = vand.u32 %v1779, 2147483648
    %v1869 = vor.u32 1.1754944e-38, %v1868
    %v1870 = vsel %vm1867, %v1869, %v1865
    %v1871 = vmul.f32 1.0, %v1870
    %v1872 = vrcp.pop %v1780
    %v1873 = vmul.f32 %v1780, %v1872
    %v1874 = vsub.f32 1.0, %v1873
    %v1875 = vmul.f32 %v1872, %v1874
    %v1876 = vadd.f32 %v1872, %v1875
    %vm1877 = vweird.f32 %v1780
    %vm1878 = vweird.f32 %v1872
    %vm1879 = vmor %vm1877, %vm1878
    %v1880 = vsel %vm1879, %v1872, %v1876
    %v1881 = vand.u32 2147483647, %v1780
    %vm1882 = vcmp.eq.f32.partialorder %v1881, 8.507059e+37
    %v1883 = vand.u32 %v1780, 2147483648
    %v1884 = vor.u32 1.1754944e-38, %v1883
    %v1885 = vsel %vm1882, %v1884, %v1880
    %v1886 = vmul.f32 1.0, %v1885
    %v1887 = vrcp.pop %v1781
    %v1888 = vmul.f32 %v1781, %v1887
    %v1889 = vsub.f32 1.0, %v1888
    %v1890 = vmul.f32 %v1887, %v1889
    %v1891 = vadd.f32 %v1887, %v1890
    %vm1892 = vweird.f32 %v1781
    %vm1893 = vweird.f32 %v1887
    %vm1894 = vmor %vm1892, %vm1893
    %v1895 = vsel %vm1894, %v1887, %v1891
    %v1896 = vand.u32 2147483647, %v1781
    %vm1897 = vcmp.eq.f32.partialorder %v1896, 8.507059e+37
    %v1898 = vand.u32 %v1781, 2147483648
    %v1899 = vor.u32 1.1754944e-38, %v1898
    %v1900 = vsel %vm1897, %v1899, %v1895
    %v1901 = vmul.f32 1.0, %v1900
    %v1902 = vtanh.pop %v1568
    %v1903 = vtanh.pop %v1572
    %v1904 = vtanh.pop %v1576
    %v1905 = vtanh.pop %v1580
    %v1906 = vtanh.pop %v1584
    %v1907 = vtanh.pop %v1588
    %v1908 = vtanh.pop %v1592
    %v1909 = vtanh.pop %v1596
    %v1910 = vxor.u32 %v1569, 2147483648
    %v1911 = vxor.u32 %v1573, 2147483648
    %v1912 = vxor.u32 %v1577, 2147483648
    %v1913 = vxor.u32 %v1581, 2147483648
    %v1914 = vxor.u32 %v1585, 2147483648
    %v1915 = vxor.u32 %v1589, 2147483648
    %v1916 = vxor.u32 %v1593, 2147483648
    %v1917 = vxor.u32 %v1597, 2147483648
    %v1918 = vmul.f32 %v1910, 1.442695
    %v1919 = vpow.pop %v1918
    %v1920 = vmul.f32 %v1911, 1.442695
    %v1921 = vpow.pop %v1920
    %v1922 = vmul.f32 %v1912, 1.442695
    %v1923 = vpow.pop %v1922
    %v1924 = vmul.f32 %v1913, 1.442695
    %v1925 = vpow.pop %v1924
    %v1926 = vmul.f32 %v1914, 1.442695
    %v1927 = vpow.pop %v1926
    %v1928 = vmul.f32 %v1915, 1.442695
    %v1929 = vpow.pop %v1928
    %v1930 = vmul.f32 %v1916, 1.442695
    %v1931 = vpow.pop %v1930
    %v1932 = vmul.f32 %v1917, 1.442695
    %v1933 = vpow.pop %v1932
    %v1934 = vadd.f32 %v1919, 1.0
    %v1935 = vadd.f32 %v1921, 1.0
    %v1936 = vadd.f32 %v1923, 1.0
    %v1937 = vadd.f32 %v1925, 1.0
    %v1938 = vadd.f32 %v1927, 1.0
    %v1939 = vadd.f32 %v1929, 1.0
    %v1940 = vadd.f32 %v1931, 1.0
    %v1941 = vadd.f32 %v1933, 1.0
    %v1942 = vrcp.pop %v1934
    %v1943 = vmul.f32 %v1934, %v1942
    %v1944 = vsub.f32 1.0, %v1943
    %v1945 = vmul.f32 %v1942, %v1944
    %v1946 = vadd.f32 %v1942, %v1945
    %vm1947 = vweird.f32 %v1934
    %vm1948 = vweird.f32 %v1942
    %vm1949 = vmor %vm1947, %vm1948
    %v1950 = vsel %vm1949, %v1942, %v1946
    %v1951 = vand.u32 2147483647, %v1934
    %vm1952 = vcmp.eq.f32.partialorder %v1951, 8.507059e+37
    %v1953 = vand.u32 %v1934, 2147483648
    %v1954 = vor.u32 1.1754944e-38, %v1953
    %v1955 = vsel %vm1952, %v1954, %v1950
    %v1956 = vmul.f32 1.0, %v1955
    %v1957 = vrcp.pop %v1935
    %v1958 = vmul.f32 %v1935, %v1957
    %v1959 = vsub.f32 1.0, %v1958
    %v1960 = vmul.f32 %v1957, %v1959
    %v1961 = vadd.f32 %v1957, %v1960
    %vm1962 = vweird.f32 %v1935
    %vm1963 = vweird.f32 %v1957
    %vm1964 = vmor %vm1962, %vm1963
    %v1965 = vsel %vm1964, %v1957, %v1961
    %v1966 = vand.u32 2147483647, %v1935
    %vm1967 = vcmp.eq.f32.partialorder %v1966, 8.507059e+37
    %v1968 = vand.u32 %v1935, 2147483648
    %v1969 = vor.u32 1.1754944e-38, %v1968
    %v1970 = vsel %vm1967, %v1969, %v1965
    %v1971 = vmul.f32 1.0, %v1970
    %v1972 = vrcp.pop %v1936
    %v1973 = vmul.f32 %v1936, %v1972
    %v1974 = vsub.f32 1.0, %v1973
    %v1975 = vmul.f32 %v1972, %v1974
    %v1976 = vadd.f32 %v1972, %v1975
    %vm1977 = vweird.f32 %v1936
    %vm1978 = vweird.f32 %v1972
    %vm1979 = vmor %vm1977, %vm1978
    %v1980 = vsel %vm1979, %v1972, %v1976
    %v1981 = vand.u32 2147483647, %v1936
    %vm1982 = vcmp.eq.f32.partialorder %v1981, 8.507059e+37
    %v1983 = vand.u32 %v1936, 2147483648
    %v1984 = vor.u32 1.1754944e-38, %v1983
    %v1985 = vsel %vm1982, %v1984, %v1980
    %v1986 = vmul.f32 1.0, %v1985
    %v1987 = vrcp.pop %v1937
    %v1988 = vmul.f32 %v1937, %v1987
    %v1989 = vsub.f32 1.0, %v1988
    %v1990 = vmul.f32 %v1987, %v1989
    %v1991 = vadd.f32 %v1987, %v1990
    %vm1992 = vweird.f32 %v1937
    %vm1993 = vweird.f32 %v1987
    %vm1994 = vmor %vm1992, %vm1993
    %v1995 = vsel %vm1994, %v1987, %v1991
    %v1996 = vand.u32 2147483647, %v1937
    %vm1997 = vcmp.eq.f32.partialorder %v1996, 8.507059e+37
    %v1998 = vand.u32 %v1937, 2147483648
    %v1999 = vor.u32 1.1754944e-38, %v1998
    %v2000 = vsel %vm1997, %v1999, %v1995
    %v2001 = vmul.f32 1.0, %v2000
    %v2002 = vrcp.pop %v1938
    %v2003 = vmul.f32 %v1938, %v2002
    %v2004 = vsub.f32 1.0, %v2003
    %v2005 = vmul.f32 %v2002, %v2004
    %v2006 = vadd.f32 %v2002, %v2005
    %vm2007 = vweird.f32 %v1938
    %vm2008 = vweird.f32 %v2002
    %vm2009 = vmor %vm2007, %vm2008
    %v2010 = vsel %vm2009, %v2002, %v2006
    %v2011 = vand.u32 2147483647, %v1938
    %vm2012 = vcmp.eq.f32.partialorder %v2011, 8.507059e+37
    %v2013 = vand.u32 %v1938, 2147483648
    %v2014 = vor.u32 1.1754944e-38, %v2013
    %v2015 = vsel %vm2012, %v2014, %v2010
    %v2016 = vmul.f32 1.0, %v2015
    %v2017 = vrcp.pop %v1939
    %v2018 = vmul.f32 %v1939, %v2017
    %v2019 = vsub.f32 1.0, %v2018
    %v2020 = vmul.f32 %v2017, %v2019
    %v2021 = vadd.f32 %v2017, %v2020
    %vm2022 = vweird.f32 %v1939
    %vm2023 = vweird.f32 %v2017
    %vm2024 = vmor %vm2022, %vm2023
    %v2025 = vsel %vm2024, %v2017, %v2021
    %v2026 = vand.u32 2147483647, %v1939
    %vm2027 = vcmp.eq.f32.partialorder %v2026, 8.507059e+37
    %v2028 = vand.u32 %v1939, 2147483648
    %v2029 = vor.u32 1.1754944e-38, %v2028
    %v2030 = vsel %vm2027, %v2029, %v2025
    %v2031 = vmul.f32 1.0, %v2030
    %v2032 = vrcp.pop %v1940
    %v2033 = vmul.f32 %v1940, %v2032
    %v2034 = vsub.f32 1.0, %v2033
    %v2035 = vmul.f32 %v2032, %v2034
    %v2036 = vadd.f32 %v2032, %v2035
    %vm2037 = vweird.f32 %v1940
    %vm2038 = vweird.f32 %v2032
    %vm2039 = vmor %vm2037, %vm2038
    %v2040 = vsel %vm2039, %v2032, %v2036
    %v2041 = vand.u32 2147483647, %v1940
    %vm2042 = vcmp.eq.f32.partialorder %v2041, 8.507059e+37
    %v2043 = vand.u32 %v1940, 2147483648
    %v2044 = vor.u32 1.1754944e-38, %v2043
    %v2045 = vsel %vm2042, %v2044, %v2040
    %v2046 = vmul.f32 1.0, %v2045
    %v2047 = vrcp.pop %v1941
    %v2048 = vmul.f32 %v1941, %v2047
    %v2049 = vsub.f32 1.0, %v2048
    %v2050 = vmul.f32 %v2047, %v2049
    %v2051 = vadd.f32 %v2047, %v2050
    %vm2052 = vweird.f32 %v1941
    %vm2053 = vweird.f32 %v2047
    %vm2054 = vmor %vm2052, %vm2053
    %v2055 = vsel %vm2054, %v2047, %v2051
    %v2056 = vand.u32 2147483647, %v1941
    %vm2057 = vcmp.eq.f32.partialorder %v2056, 8.507059e+37
    %v2058 = vand.u32 %v1941, 2147483648
    %v2059 = vor.u32 1.1754944e-38, %v2058
    %v2060 = vsel %vm2057, %v2059, %v2055
    %v2061 = vmul.f32 1.0, %v2060
    %v2070 = vrot.slane %v1136, 7
    %v2071 = vrot.slane %v1137, 7
    %v2072 = vrot.slane %v1138, 7
    %v2073 = vrot.slane %v1139, 7
    %v2074 = vrot.slane %v1140, 7
    %v2075 = vrot.slane %v1141, 7
    %v2076 = vrot.slane %v1142, 7
    %v2077 = vrot.slane %v1143, 7
    %v2086 = vmul.f32 %v1796, %v2070
    %v2087 = vmul.f32 %v1811, %v2071
    %v2088 = vmul.f32 %v1826, %v2072
    %v2089 = vmul.f32 %v1841, %v2073
    %v2090 = vmul.f32 %v1856, %v2074
    %v2091 = vmul.f32 %v1871, %v2075
    %v2092 = vmul.f32 %v1886, %v2076
    %v2093 = vmul.f32 %v1901, %v2077
    %v2094 = vmul.f32 %v1644, %v1902
    %v2095 = vmul.f32 %v1659, %v1903
    %v2096 = vmul.f32 %v1674, %v1904
    %v2097 = vmul.f32 %v1689, %v1905
    %v2098 = vmul.f32 %v1704, %v1906
    %v2099 = vmul.f32 %v1719, %v1907
    %v2100 = vmul.f32 %v1734, %v1908
    %v2101 = vmul.f32 %v1749, %v1909
    %v2102 = vadd.f32 %v2086, %v2094
    %v2103 = vadd.f32 %v2087, %v2095
    %v2104 = vadd.f32 %v2088, %v2096
    %v2105 = vadd.f32 %v2089, %v2097
    %v2106 = vadd.f32 %v2090, %v2098
    %v2107 = vadd.f32 %v2091, %v2099
    %v2108 = vadd.f32 %v2092, %v2100
    %v2109 = vadd.f32 %v2093, %v2101
    %v2110 = vtanh.pop %v2102
    %v2111 = vtanh.pop %v2103
    %v2112 = vtanh.pop %v2104
    %v2113 = vtanh.pop %v2105
    %v2114 = vtanh.pop %v2106
    %v2115 = vtanh.pop %v2107
    %v2116 = vtanh.pop %v2108
    %v2117 = vtanh.pop %v2109
    %v2118 = vmul.f32 %v1956, %v2110
    %v2119 = vmul.f32 %v1971, %v2111
    %v2120 = vmul.f32 %v1986, %v2112
    %v2121 = vmul.f32 %v2001, %v2113
    %v2122 = vmul.f32 %v2016, %v2114
    %v2123 = vmul.f32 %v2031, %v2115
    %v2124 = vmul.f32 %v2046, %v2116
    %v2125 = vmul.f32 %v2061, %v2117
    %v2134 = vrot.slane %v2119, 7
    %v2135 = vsel %vm1172, %v2134, %v2118
    %v2136 = vrot.slane %v2120, 6
    %v2137 = vsel %vm1175, %v2136, %v2135
    %v2138 = vrot.slane %v2121, 5
    %v2139 = vsel %vm1178, %v2138, %v2137
    %v2140 = vrot.slane %v2122, 4
    %v2141 = vsel %vm1181, %v2140, %v2139
    %v2142 = vrot.slane %v2123, 3
    %v2143 = vsel %vm1184, %v2142, %v2141
    %v2144 = vrot.slane %v2124, 2
    %v2145 = vsel %vm1187, %v2144, %v2143
    %v2146 = vrot.slane %v2125, 1
    %v2148 = vrot.slane %v1421, 7
    %vm2149 = vcmask 1046528
    %v2150 = vrot.slane %v2145, 1
    %v2151 = vrot.slane %v2146, 1
    %v2152 = vsel %vm2149, %v2150, %v2151
    %v2153 = vrot.slane %v2148, 1
    %v2154 = vsel %vm2149, %v2153, %v2153
    %2157 = vmatpush.msra.mxu0 %v166
    %2158 = vmatpush.msra.mxu0 %v162
    %2159 = vmatpush.msra.mxu0 %v158
    %2160 = vmatpush.msra.mxu0 %v154
    %2161 = vmatpush.msra.mxu0 %v150
    %2162 = vmatpush.msra.mxu0 %v146
    %2163 = vmatpush.msra.mxu0 %v142
    %2164 = vmatpush.msra.mxu0 %v138
    %2165 = vmatpush.msra.mxu0 %v134
    %2166 = vmatpush.msra.mxu0 %v130
    %2167 = vmatpush.msra.mxu0 %v126
    %2168 = vmatpush.msra.mxu0 %v122
    %2169 = vmatpush.msra.mxu0 %v118
    %2170 = vmatpush.msra.mxu0 %v114
    %2171 = vmatpush.msra.mxu0 %v110
    %2172 = vmatpush.msra.mxu0 %v106
    %2173 = vmatmul.f32.gmra.mxu0 %v2152
    %v2174 = vpop.f32.mrf.mxu0
    %v2175 = vadd.f32 %v1191, %v2174
    %2176 = vdwg.mxu0
    %2177 = vmatpush.msra.mxu0 %v230
    %2178 = vmatpush.msra.mxu0 %v226
    %2179 = vmatpush.msra.mxu0 %v222
    %2180 = vmatpush.msra.mxu0 %v218
    %2181 = vmatpush.msra.mxu0 %v214
    %2182 = vmatpush.msra.mxu0 %v210
    %2183 = vmatpush.msra.mxu0 %v206
    %2184 = vmatpush.msra.mxu0 %v202
    %2185 = vmatpush.msra.mxu0 %v198
    %2186 = vmatpush.msra.mxu0 %v194
    %2187 = vmatpush.msra.mxu0 %v190
    %2188 = vmatpush.msra.mxu0 %v186
    %2189 = vmatpush.msra.mxu0 %v182
    %2190 = vmatpush.msra.mxu0 %v178
    %2191 = vmatpush.msra.mxu0 %v174
    %2192 = vmatpush.msra.mxu0 %v170
    %2193 = vmatmul.f32.gmra.mxu0 %v2154
    %v2194 = vpop.f32.mrf.mxu0
    %v2195 = vadd.f32 %v2175, %v2194
    %2196 = vdwg.mxu0
    %2197 = vmatpush.msra.mxu0 %v167
    %2198 = vmatpush.msra.mxu0 %v163
    %2199 = vmatpush.msra.mxu0 %v159
    %2200 = vmatpush.msra.mxu0 %v155
    %2201 = vmatpush.msra.mxu0 %v151
    %2202 = vmatpush.msra.mxu0 %v147
    %2203 = vmatpush.msra.mxu0 %v143
    %2204 = vmatpush.msra.mxu0 %v139
    %2205 = vmatpush.msra.mxu0 %v135
    %2206 = vmatpush.msra.mxu0 %v131
    %2207 = vmatpush.msra.mxu0 %v127
    %2208 = vmatpush.msra.mxu0 %v123
    %2209 = vmatpush.msra.mxu0 %v119
    %2210 = vmatpush.msra.mxu0 %v115
    %2211 = vmatpush.msra.mxu0 %v111
    %2212 = vmatpush.msra.mxu0 %v107
    %2213 = vmatmul.f32.gmra.mxu0 %v2152
    %v2214 = vpop.f32.mrf.mxu0
    %v2215 = vadd.f32 %v1192, %v2214
    %2216 = vdwg.mxu0
    %2217 = vmatpush.msra.mxu0 %v231
    %2218 = vmatpush.msra.mxu0 %v227
    %2219 = vmatpush.msra.mxu0 %v223
    %2220 = vmatpush.msra.mxu0 %v219
    %2221 = vmatpush.msra.mxu0 %v215
    %2222 = vmatpush.msra.mxu0 %v211
    %2223 = vmatpush.msra.mxu0 %v207
    %2224 = vmatpush.msra.mxu0 %v203
    %2225 = vmatpush.msra.mxu0 %v199
    %2226 = vmatpush.msra.mxu0 %v195
    %2227 = vmatpush.msra.mxu0 %v191
    %2228 = vmatpush.msra.mxu0 %v187
    %2229 = vmatpush.msra.mxu0 %v183
    %2230 = vmatpush.msra.mxu0 %v179
    %2231 = vmatpush.msra.mxu0 %v175
    %2232 = vmatpush.msra.mxu0 %v171
    %2233 = vmatmul.f32.gmra.mxu0 %v2154
    %v2234 = vpop.f32.mrf.mxu0
    %v2235 = vadd.f32 %v2215, %v2234
    %2236 = vdwg.mxu0
    %2237 = vmatpush.msra.mxu0 %v168
    %2238 = vmatpush.msra.mxu0 %v164
    %2239 = vmatpush.msra.mxu0 %v160
    %2240 = vmatpush.msra.mxu0 %v156
    %2241 = vmatpush.msra.mxu0 %v152
    %2242 = vmatpush.msra.mxu0 %v148
    %2243 = vmatpush.msra.mxu0 %v144
    %2244 = vmatpush.msra.mxu0 %v140
    %2245 = vmatpush.msra.mxu0 %v136
    %2246 = vmatpush.msra.mxu0 %v132
    %2247 = vmatpush.msra.mxu0 %v128
    %2248 = vmatpush.msra.mxu0 %v124
    %2249 = vmatpush.msra.mxu0 %v120
    %2250 = vmatpush.msra.mxu0 %v116
    %2251 = vmatpush.msra.mxu0 %v112
    %2252 = vmatpush.msra.mxu0 %v108
    %2253 = vmatmul.f32.gmra.mxu0 %v2152
    %v2254 = vpop.f32.mrf.mxu0
    %v2255 = vadd.f32 %v1193, %v2254
    %2256 = vdwg.mxu0
    %2257 = vmatpush.msra.mxu0 %v232
    %2258 = vmatpush.msra.mxu0 %v228
    %2259 = vmatpush.msra.mxu0 %v224
    %2260 = vmatpush.msra.mxu0 %v220
    %2261 = vmatpush.msra.mxu0 %v216
    %2262 = vmatpush.msra.mxu0 %v212
    %2263 = vmatpush.msra.mxu0 %v208
    %2264 = vmatpush.msra.mxu0 %v204
    %2265 = vmatpush.msra.mxu0 %v200
    %2266 = vmatpush.msra.mxu0 %v196
    %2267 = vmatpush.msra.mxu0 %v192
    %2268 = vmatpush.msra.mxu0 %v188
    %2269 = vmatpush.msra.mxu0 %v184
    %2270 = vmatpush.msra.mxu0 %v180
    %2271 = vmatpush.msra.mxu0 %v176
    %2272 = vmatpush.msra.mxu0 %v172
    %2273 = vmatmul.f32.gmra.mxu0 %v2154
    %v2274 = vpop.f32.mrf.mxu0
    %v2275 = vadd.f32 %v2255, %v2274
    %2276 = vdwg.mxu0
    %2277 = vmatpush.msra.mxu0 %v169
    %2278 = vmatpush.msra.mxu0 %v165
    %2279 = vmatpush.msra.mxu0 %v161
    %2280 = vmatpush.msra.mxu0 %v157
    %2281 = vmatpush.msra.mxu0 %v153
    %2282 = vmatpush.msra.mxu0 %v149
    %2283 = vmatpush.msra.mxu0 %v145
    %2284 = vmatpush.msra.mxu0 %v141
    %2285 = vmatpush.msra.mxu0 %v137
    %2286 = vmatpush.msra.mxu0 %v133
    %2287 = vmatpush.msra.mxu0 %v129
    %2288 = vmatpush.msra.mxu0 %v125
    %2289 = vmatpush.msra.mxu0 %v121
    %2290 = vmatpush.msra.mxu0 %v117
    %2291 = vmatpush.msra.mxu0 %v113
    %2292 = vmatpush.msra.mxu0 %v109
    %2293 = vmatmul.f32.gmra.mxu0 %v2152
    %v2294 = vpop.f32.mrf.mxu0
    %v2295 = vadd.f32 %v1194, %v2294
    %2296 = vdwg.mxu0
    %2297 = vmatpush.msra.mxu0 %v233
    %2298 = vmatpush.msra.mxu0 %v229
    %2299 = vmatpush.msra.mxu0 %v225
    %2300 = vmatpush.msra.mxu0 %v221
    %2301 = vmatpush.msra.mxu0 %v217
    %2302 = vmatpush.msra.mxu0 %v213
    %2303 = vmatpush.msra.mxu0 %v209
    %2304 = vmatpush.msra.mxu0 %v205
    %2305 = vmatpush.msra.mxu0 %v201
    %2306 = vmatpush.msra.mxu0 %v197
    %2307 = vmatpush.msra.mxu0 %v193
    %2308 = vmatpush.msra.mxu0 %v189
    %2309 = vmatpush.msra.mxu0 %v185
    %2310 = vmatpush.msra.mxu0 %v181
    %2311 = vmatpush.msra.mxu0 %v177
    %2312 = vmatpush.msra.mxu0 %v173
    %2313 = vmatmul.f32.gmra.mxu0 %v2154
    %v2314 = vpop.f32.mrf.mxu0
    %v2315 = vadd.f32 %v2295, %v2314
    %2316 = vdwg.mxu0
    %v2317 = vxor.u32 %v2195, 2147483648
    %v2318 = vmul.f32 %v2317, 1.442695
    %v2319 = vpow.pop %v2318
    %v2320 = vadd.f32 %v2319, 1.0
    %v2321 = vrcp.pop %v2320
    %v2322 = vmul.f32 %v2320, %v2321
    %v2323 = vsub.f32 1.0, %v2322
    %v2324 = vmul.f32 %v2321, %v2323
    %v2325 = vadd.f32 %v2321, %v2324
    %vm2326 = vweird.f32 %v2320
    %vm2327 = vweird.f32 %v2321
    %vm2328 = vmor %vm2326, %vm2327
    %v2329 = vsel %vm2328, %v2321, %v2325
    %v2330 = vand.u32 2147483647, %v2320
    %vm2331 = vcmp.eq.f32.partialorder %v2330, 8.507059e+37
    %v2332 = vand.u32 %v2320, 2147483648
    %v2333 = vor.u32 1.1754944e-38, %v2332
    %v2334 = vsel %vm2331, %v2333, %v2329
    %v2335 = vmul.f32 1.0, %v2334
    %v2336 = vxor.u32 %v2235, 2147483648
    %v2337 = vmul.f32 %v2336, 1.442695
    %v2338 = vpow.pop %v2337
    %v2339 = vadd.f32 %v2338, 1.0
    %v2340 = vrcp.pop %v2339
    %v2341 = vmul.f32 %v2339, %v2340
    %v2342 = vsub.f32 1.0, %v2341
    %v2343 = vmul.f32 %v2340, %v2342
    %v2344 = vadd.f32 %v2340, %v2343
    %vm2345 = vweird.f32 %v2339
    %vm2346 = vweird.f32 %v2340
    %vm2347 = vmor %vm2345, %vm2346
    %v2348 = vsel %vm2347, %v2340, %v2344
    %v2349 = vand.u32 2147483647, %v2339
    %vm2350 = vcmp.eq.f32.partialorder %v2349, 8.507059e+37
    %v2351 = vand.u32 %v2339, 2147483648
    %v2352 = vor.u32 1.1754944e-38, %v2351
    %v2353 = vsel %vm2350, %v2352, %v2348
    %v2354 = vmul.f32 1.0, %v2353
    %v2355 = vtanh.pop %v2275
    %v2356 = vxor.u32 %v2315, 2147483648
    %v2357 = vmul.f32 %v2356, 1.442695
    %v2358 = vpow.pop %v2357
    %v2359 = vadd.f32 %v2358, 1.0
    %v2360 = vrcp.pop %v2359
    %v2361 = vmul.f32 %v2359, %v2360
    %v2362 = vsub.f32 1.0, %v2361
    %v2363 = vmul.f32 %v2360, %v2362
    %v2364 = vadd.f32 %v2360, %v2363
    %vm2365 = vweird.f32 %v2359
    %vm2366 = vweird.f32 %v2360
    %vm2367 = vmor %vm2365, %vm2366
    %v2368 = vsel %vm2367, %v2360, %v2364
    %v2369 = vand.u32 2147483647, %v2359
    %vm2370 = vcmp.eq.f32.partialorder %v2369, 8.507059e+37
    %v2371 = vand.u32 %v2359, 2147483648
    %v2372 = vor.u32 1.1754944e-38, %v2371
    %v2373 = vsel %vm2370, %v2372, %v2368
    %v2374 = vmul.f32 1.0, %v2373
    %v2375 = vmul.f32 %v2354, %v1419
    %v2376 = vmul.f32 %v2335, %v2355
    %v2377 = vadd.f32 %v2375, %v2376
    %v2378 = vtanh.pop %v2377
    %v2379 = vmul.f32 %v2374, %v2378
    %v2380 = vrot.slane %v2118, 1
    %v2381 = vsel %vm1169, %v2119, %v2380
    %v2382 = vrot.slane %v2120, 7
    %v2383 = vsel %vm1172, %v2382, %v2381
    %v2384 = vrot.slane %v2121, 6
    %v2385 = vsel %vm1175, %v2384, %v2383
    %v2386 = vrot.slane %v2122, 5
    %v2387 = vsel %vm1178, %v2386, %v2385
    %v2388 = vrot.slane %v2123, 4
    %v2389 = vsel %vm1181, %v2388, %v2387
    %v2390 = vrot.slane %v2124, 3
    %v2391 = vsel %vm1184, %v2390, %v2389
    %v2392 = vrot.slane %v2125, 2
    %v2393 = vsel %vm1187, %v2392, %v2391
    %2395 = vmatpush.msra.mxu0 %v102
    %2396 = vmatpush.msra.mxu0 %v98
    %2397 = vmatpush.msra.mxu0 %v94
    %2398 = vmatpush.msra.mxu0 %v90
    %2399 = vmatpush.msra.mxu0 %v86
    %2400 = vmatpush.msra.mxu0 %v82
    %2401 = vmatpush.msra.mxu0 %v78
    %2402 = vmatpush.msra.mxu0 %v74
    %2403 = vmatpush.msra.mxu0 %v70
    %2404 = vmatpush.msra.mxu0 %v66
    %2405 = vmatpush.msra.mxu0 %v62
    %2406 = vmatpush.msra.mxu0 %v58
    %2407 = vmatpush.msra.mxu0 %v54
    %2408 = vmatpush.msra.mxu0 %v50
    %2409 = vmatpush.msra.mxu0 %v46
    %2410 = vmatpush.msra.mxu0 %v42
    %2411 = vmatmul.f32.gmra.mxu0 %v2393
    %v2412 = vpop.f32.mrf.mxu0
    %v2413 = vadd.f32 0.0, %v2412
    %2414 = vdwg.mxu0
    %2415 = vmatpush.msra.mxu0 %v103
    %2416 = vmatpush.msra.mxu0 %v99
    %2417 = vmatpush.msra.mxu0 %v95
    %2418 = vmatpush.msra.mxu0 %v91
    %2419 = vmatpush.msra.mxu0 %v87
    %2420 = vmatpush.msra.mxu0 %v83
    %2421 = vmatpush.msra.mxu0 %v79
    %2422 = vmatpush.msra.mxu0 %v75
    %2423 = vmatpush.msra.mxu0 %v71
    %2424 = vmatpush.msra.mxu0 %v67
    %2425 = vmatpush.msra.mxu0 %v63
    %2426 = vmatpush.msra.mxu0 %v59
    %2427 = vmatpush.msra.mxu0 %v55
    %2428 = vmatpush.msra.mxu0 %v51
    %2429 = vmatpush.msra.mxu0 %v47
    %2430 = vmatpush.msra.mxu0 %v43
    %2431 = vmatmul.f32.gmra.mxu0 %v2393
    %v2432 = vpop.f32.mrf.mxu0
    %v2433 = vadd.f32 0.0, %v2432
    %2434 = vdwg.mxu0
    %2435 = vmatpush.msra.mxu0 %v104
    %2436 = vmatpush.msra.mxu0 %v100
    %2437 = vmatpush.msra.mxu0 %v96
    %2438 = vmatpush.msra.mxu0 %v92
    %2439 = vmatpush.msra.mxu0 %v88
    %2440 = vmatpush.msra.mxu0 %v84
    %2441 = vmatpush.msra.mxu0 %v80
    %2442 = vmatpush.msra.mxu0 %v76
    %2443 = vmatpush.msra.mxu0 %v72
    %2444 = vmatpush.msra.mxu0 %v68
    %2445 = vmatpush.msra.mxu0 %v64
    %2446 = vmatpush.msra.mxu0 %v60
    %2447 = vmatpush.msra.mxu0 %v56
    %2448 = vmatpush.msra.mxu0 %v52
    %2449 = vmatpush.msra.mxu0 %v48
    %2450 = vmatpush.msra.mxu0 %v44
    %2451 = vmatmul.f32.gmra.mxu0 %v2393
    %v2452 = vpop.f32.mrf.mxu0
    %v2453 = vadd.f32 0.0, %v2452
    %2454 = vdwg.mxu0
    %2455 = vmatpush.msra.mxu0 %v105
    %2456 = vmatpush.msra.mxu0 %v101
    %2457 = vmatpush.msra.mxu0 %v97
    %2458 = vmatpush.msra.mxu0 %v93
    %2459 = vmatpush.msra.mxu0 %v89
    %2460 = vmatpush.msra.mxu0 %v85
    %2461 = vmatpush.msra.mxu0 %v81
    %2462 = vmatpush.msra.mxu0 %v77
    %2463 = vmatpush.msra.mxu0 %v73
    %2464 = vmatpush.msra.mxu0 %v69
    %2465 = vmatpush.msra.mxu0 %v65
    %2466 = vmatpush.msra.mxu0 %v61
    %2467 = vmatpush.msra.mxu0 %v57
    %2468 = vmatpush.msra.mxu0 %v53
    %2469 = vmatpush.msra.mxu0 %v49
    %2470 = vmatpush.msra.mxu0 %v45
    %2471 = vmatmul.f32.gmra.mxu0 %v2393
    %v2472 = vpop.f32.mrf.mxu0
    %v2473 = vadd.f32 0.0, %v2472
    %2474 = vdwg.mxu0
    %v2479 = vrot.slane %v2413, 6
    %v2480 = vrot.slane %v2433, 6
    %v2481 = vrot.slane %v2453, 6
    %v2482 = vrot.slane %v2473, 6
    %v2483 = vrot.slane %v2413, 7
    %v2484 = vrot.slane %v2433, 7
    %v2485 = vrot.slane %v2453, 7
    %v2486 = vrot.slane %v2473, 7
    %v2487 = vrot.slane %v2413, 1
    %v2488 = vrot.slane %v2433, 1
    %v2489 = vrot.slane %v2453, 1
    %v2490 = vrot.slane %v2473, 1
    %v2491 = vrot.slane %v2413, 2
    %v2492 = vrot.slane %v2433, 2
    %v2493 = vrot.slane %v2453, 2
    %v2494 = vrot.slane %v2473, 2
    %v2495 = vrot.slane %v2413, 3
    %v2496 = vrot.slane %v2433, 3
    %v2497 = vrot.slane %v2453, 3
    %v2498 = vrot.slane %v2473, 3
    %v2499 = vrot.slane %v2413, 4
    %v2500 = vrot.slane %v2433, 4
    %v2501 = vrot.slane %v2453, 4
    %v2502 = vrot.slane %v2473, 4
    %v2503 = vrot.slane %v2413, 5
    %v2504 = vrot.slane %v2433, 5
    %v2505 = vrot.slane %v2453, 5
    %v2506 = vrot.slane %v2473, 5
    %v2539 = vadd.f32 %v312, %v2479
    %v2540 = vadd.f32 %v353, %v2480
    %v2541 = vadd.f32 %v394, %v2481
    %v2542 = vadd.f32 %v435, %v2482
    %v2543 = vadd.f32 %v315, %v2483
    %v2544 = vadd.f32 %v356, %v2484
    %v2545 = vadd.f32 %v397, %v2485
    %v2546 = vadd.f32 %v438, %v2486
    %v2547 = vadd.f32 %v318, %v2413
    %v2548 = vadd.f32 %v359, %v2433
    %v2549 = vadd.f32 %v400, %v2453
    %v2550 = vadd.f32 %v441, %v2473
    %v2551 = vadd.f32 %v321, %v2487
    %v2552 = vadd.f32 %v362, %v2488
    %v2553 = vadd.f32 %v403, %v2489
    %v2554 = vadd.f32 %v444, %v2490
    %v2555 = vadd.f32 %v324, %v2491
    %v2556 = vadd.f32 %v365, %v2492
    %v2557 = vadd.f32 %v406, %v2493
    %v2558 = vadd.f32 %v447, %v2494
    %v2559 = vadd.f32 %v327, %v2495
    %v2560 = vadd.f32 %v368, %v2496
    %v2561 = vadd.f32 %v409, %v2497
    %v2562 = vadd.f32 %v450, %v2498
    %v2563 = vadd.f32 %v330, %v2499
    %v2564 = vadd.f32 %v371, %v2500
    %v2565 = vadd.f32 %v412, %v2501
    %v2566 = vadd.f32 %v453, %v2502
    %v2567 = vadd.f32 %v333, %v2503
    %v2568 = vadd.f32 %v374, %v2504
    %v2569 = vadd.f32 %v415, %v2505
    %v2570 = vadd.f32 %v456, %v2506
    %v2571 = vxor.u32 %v2539, 2147483648
    %v2572 = vxor.u32 %v2543, 2147483648
    %v2573 = vxor.u32 %v2547, 2147483648
    %v2574 = vxor.u32 %v2551, 2147483648
    %v2575 = vxor.u32 %v2555, 2147483648
    %v2576 = vxor.u32 %v2559, 2147483648
    %v2577 = vxor.u32 %v2563, 2147483648
    %v2578 = vxor.u32 %v2567, 2147483648
    %v2579 = vmul.f32 %v2571, 1.442695
    %v2580 = vpow.pop %v2579
    %v2581 = vmul.f32 %v2572, 1.442695
    %v2582 = vpow.pop %v2581
    %v2583 = vmul.f32 %v2573, 1.442695
    %v2584 = vpow.pop %v2583
    %v2585 = vmul.f32 %v2574, 1.442695
    %v2586 = vpow.pop %v2585
    %v2587 = vmul.f32 %v2575, 1.442695
    %v2588 = vpow.pop %v2587
    %v2589 = vmul.f32 %v2576, 1.442695
    %v2590 = vpow.pop %v2589
    %v2591 = vmul.f32 %v2577, 1.442695
    %v2592 = vpow.pop %v2591
    %v2593 = vmul.f32 %v2578, 1.442695
    %v2594 = vpow.pop %v2593
    %v2595 = vadd.f32 %v2580, 1.0
    %v2596 = vadd.f32 %v2582, 1.0
    %v2597 = vadd.f32 %v2584, 1.0
    %v2598 = vadd.f32 %v2586, 1.0
    %v2599 = vadd.f32 %v2588, 1.0
    %v2600 = vadd.f32 %v2590, 1.0
    %v2601 = vadd.f32 %v2592, 1.0
    %v2602 = vadd.f32 %v2594, 1.0
    %v2603 = vrcp.pop %v2595
    %v2604 = vmul.f32 %v2595, %v2603
    %v2605 = vsub.f32 1.0, %v2604
    %v2606 = vmul.f32 %v2603, %v2605
    %v2607 = vadd.f32 %v2603, %v2606
    %vm2608 = vweird.f32 %v2595
    %vm2609 = vweird.f32 %v2603
    %vm2610 = vmor %vm2608, %vm2609
    %v2611 = vsel %vm2610, %v2603, %v2607
    %v2612 = vand.u32 2147483647, %v2595
    %vm2613 = vcmp.eq.f32.partialorder %v2612, 8.507059e+37
    %v2614 = vand.u32 %v2595, 2147483648
    %v2615 = vor.u32 1.1754944e-38, %v2614
    %v2616 = vsel %vm2613, %v2615, %v2611
    %v2617 = vmul.f32 1.0, %v2616
    %v2618 = vrcp.pop %v2596
    %v2619 = vmul.f32 %v2596, %v2618
    %v2620 = vsub.f32 1.0, %v2619
    %v2621 = vmul.f32 %v2618, %v2620
    %v2622 = vadd.f32 %v2618, %v2621
    %vm2623 = vweird.f32 %v2596
    %vm2624 = vweird.f32 %v2618
    %vm2625 = vmor %vm2623, %vm2624
    %v2626 = vsel %vm2625, %v2618, %v2622
    %v2627 = vand.u32 2147483647, %v2596
    %vm2628 = vcmp.eq.f32.partialorder %v2627, 8.507059e+37
    %v2629 = vand.u32 %v2596, 2147483648
    %v2630 = vor.u32 1.1754944e-38, %v2629
    %v2631 = vsel %vm2628, %v2630, %v2626
    %v2632 = vmul.f32 1.0, %v2631
    %v2633 = vrcp.pop %v2597
    %v2634 = vmul.f32 %v2597, %v2633
    %v2635 = vsub.f32 1.0, %v2634
    %v2636 = vmul.f32 %v2633, %v2635
    %v2637 = vadd.f32 %v2633, %v2636
    %vm2638 = vweird.f32 %v2597
    %vm2639 = vweird.f32 %v2633
    %vm2640 = vmor %vm2638, %vm2639
    %v2641 = vsel %vm2640, %v2633, %v2637
    %v2642 = vand.u32 2147483647, %v2597
    %vm2643 = vcmp.eq.f32.partialorder %v2642, 8.507059e+37
    %v2644 = vand.u32 %v2597, 2147483648
    %v2645 = vor.u32 1.1754944e-38, %v2644
    %v2646 = vsel %vm2643, %v2645, %v2641
    %v2647 = vmul.f32 1.0, %v2646
    %v2648 = vrcp.pop %v2598
    %v2649 = vmul.f32 %v2598, %v2648
    %v2650 = vsub.f32 1.0, %v2649
    %v2651 = vmul.f32 %v2648, %v2650
    %v2652 = vadd.f32 %v2648, %v2651
    %vm2653 = vweird.f32 %v2598
    %vm2654 = vweird.f32 %v2648
    %vm2655 = vmor %vm2653, %vm2654
    %v2656 = vsel %vm2655, %v2648, %v2652
    %v2657 = vand.u32 2147483647, %v2598
    %vm2658 = vcmp.eq.f32.partialorder %v2657, 8.507059e+37
    %v2659 = vand.u32 %v2598, 2147483648
    %v2660 = vor.u32 1.1754944e-38, %v2659
    %v2661 = vsel %vm2658, %v2660, %v2656
    %v2662 = vmul.f32 1.0, %v2661
    %v2663 = vrcp.pop %v2599
    %v2664 = vmul.f32 %v2599, %v2663
    %v2665 = vsub.f32 1.0, %v2664
    %v2666 = vmul.f32 %v2663, %v2665
    %v2667 = vadd.f32 %v2663, %v2666
    %vm2668 = vweird.f32 %v2599
    %vm2669 = vweird.f32 %v2663
    %vm2670 = vmor %vm2668, %vm2669
    %v2671 = vsel %vm2670, %v2663, %v2667
    %v2672 = vand.u32 2147483647, %v2599
    %vm2673 = vcmp.eq.f32.partialorder %v2672, 8.507059e+37
    %v2674 = vand.u32 %v2599, 2147483648
    %v2675 = vor.u32 1.1754944e-38, %v2674
    %v2676 = vsel %vm2673, %v2675, %v2671
    %v2677 = vmul.f32 1.0, %v2676
    %v2678 = vrcp.pop %v2600
    %v2679 = vmul.f32 %v2600, %v2678
    %v2680 = vsub.f32 1.0, %v2679
    %v2681 = vmul.f32 %v2678, %v2680
    %v2682 = vadd.f32 %v2678, %v2681
    %vm2683 = vweird.f32 %v2600
    %vm2684 = vweird.f32 %v2678
    %vm2685 = vmor %vm2683, %vm2684
    %v2686 = vsel %vm2685, %v2678, %v2682
    %v2687 = vand.u32 2147483647, %v2600
    %vm2688 = vcmp.eq.f32.partialorder %v2687, 8.507059e+37
    %v2689 = vand.u32 %v2600, 2147483648
    %v2690 = vor.u32 1.1754944e-38, %v2689
    %v2691 = vsel %vm2688, %v2690, %v2686
    %v2692 = vmul.f32 1.0, %v2691
    %v2693 = vrcp.pop %v2601
    %v2694 = vmul.f32 %v2601, %v2693
    %v2695 = vsub.f32 1.0, %v2694
    %v2696 = vmul.f32 %v2693, %v2695
    %v2697 = vadd.f32 %v2693, %v2696
    %vm2698 = vweird.f32 %v2601
    %vm2699 = vweird.f32 %v2693
    %vm2700 = vmor %vm2698, %vm2699
    %v2701 = vsel %vm2700, %v2693, %v2697
    %v2702 = vand.u32 2147483647, %v2601
    %vm2703 = vcmp.eq.f32.partialorder %v2702, 8.507059e+37
    %v2704 = vand.u32 %v2601, 2147483648
    %v2705 = vor.u32 1.1754944e-38, %v2704
    %v2706 = vsel %vm2703, %v2705, %v2701
    %v2707 = vmul.f32 1.0, %v2706
    %v2708 = vrcp.pop %v2602
    %v2709 = vmul.f32 %v2602, %v2708
    %v2710 = vsub.f32 1.0, %v2709
    %v2711 = vmul.f32 %v2708, %v2710
    %v2712 = vadd.f32 %v2708, %v2711
    %vm2713 = vweird.f32 %v2602
    %vm2714 = vweird.f32 %v2708
    %vm2715 = vmor %vm2713, %vm2714
    %v2716 = vsel %vm2715, %v2708, %v2712
    %v2717 = vand.u32 2147483647, %v2602
    %vm2718 = vcmp.eq.f32.partialorder %v2717, 8.507059e+37
    %v2719 = vand.u32 %v2602, 2147483648
    %v2720 = vor.u32 1.1754944e-38, %v2719
    %v2721 = vsel %vm2718, %v2720, %v2716
    %v2722 = vmul.f32 1.0, %v2721
    %v2723 = vxor.u32 %v2540, 2147483648
    %v2724 = vxor.u32 %v2544, 2147483648
    %v2725 = vxor.u32 %v2548, 2147483648
    %v2726 = vxor.u32 %v2552, 2147483648
    %v2727 = vxor.u32 %v2556, 2147483648
    %v2728 = vxor.u32 %v2560, 2147483648
    %v2729 = vxor.u32 %v2564, 2147483648
    %v2730 = vxor.u32 %v2568, 2147483648
    %v2731 = vmul.f32 %v2723, 1.442695
    %v2732 = vpow.pop %v2731
    %v2733 = vmul.f32 %v2724, 1.442695
    %v2734 = vpow.pop %v2733
    %v2735 = vmul.f32 %v2725, 1.442695
    %v2736 = vpow.pop %v2735
    %v2737 = vmul.f32 %v2726, 1.442695
    %v2738 = vpow.pop %v2737
    %v2739 = vmul.f32 %v2727, 1.442695
    %v2740 = vpow.pop %v2739
    %v2741 = vmul.f32 %v2728, 1.442695
    %v2742 = vpow.pop %v2741
    %v2743 = vmul.f32 %v2729, 1.442695
    %v2744 = vpow.pop %v2743
    %v2745 = vmul.f32 %v2730, 1.442695
    %v2746 = vpow.pop %v2745
    %v2747 = vadd.f32 %v2732, 1.0
    %v2748 = vadd.f32 %v2734, 1.0
    %v2749 = vadd.f32 %v2736, 1.0
    %v2750 = vadd.f32 %v2738, 1.0
    %v2751 = vadd.f32 %v2740, 1.0
    %v2752 = vadd.f32 %v2742, 1.0
    %v2753 = vadd.f32 %v2744, 1.0
    %v2754 = vadd.f32 %v2746, 1.0
    %v2755 = vrcp.pop %v2747
    %v2756 = vmul.f32 %v2747, %v2755
    %v2757 = vsub.f32 1.0, %v2756
    %v2758 = vmul.f32 %v2755, %v2757
    %v2759 = vadd.f32 %v2755, %v2758
    %vm2760 = vweird.f32 %v2747
    %vm2761 = vweird.f32 %v2755
    %vm2762 = vmor %vm2760, %vm2761
    %v2763 = vsel %vm2762, %v2755, %v2759
    %v2764 = vand.u32 2147483647, %v2747
    %vm2765 = vcmp.eq.f32.partialorder %v2764, 8.507059e+37
    %v2766 = vand.u32 %v2747, 2147483648
    %v2767 = vor.u32 1.1754944e-38, %v2766
    %v2768 = vsel %vm2765, %v2767, %v2763
    %v2769 = vmul.f32 1.0, %v2768
    %v2770 = vrcp.pop %v2748
    %v2771 = vmul.f32 %v2748, %v2770
    %v2772 = vsub.f32 1.0, %v2771
    %v2773 = vmul.f32 %v2770, %v2772
    %v2774 = vadd.f32 %v2770, %v2773
    %vm2775 = vweird.f32 %v2748
    %vm2776 = vweird.f32 %v2770
    %vm2777 = vmor %vm2775, %vm2776
    %v2778 = vsel %vm2777, %v2770, %v2774
    %v2779 = vand.u32 2147483647, %v2748
    %vm2780 = vcmp.eq.f32.partialorder %v2779, 8.507059e+37
    %v2781 = vand.u32 %v2748, 2147483648
    %v2782 = vor.u32 1.1754944e-38, %v2781
    %v2783 = vsel %vm2780, %v2782, %v2778
    %v2784 = vmul.f32 1.0, %v2783
    %v2785 = vrcp.pop %v2749
    %v2786 = vmul.f32 %v2749, %v2785
    %v2787 = vsub.f32 1.0, %v2786
    %v2788 = vmul.f32 %v2785, %v2787
    %v2789 = vadd.f32 %v2785, %v2788
    %vm2790 = vweird.f32 %v2749
    %vm2791 = vweird.f32 %v2785
    %vm2792 = vmor %vm2790, %vm2791
    %v2793 = vsel %vm2792, %v2785, %v2789
    %v2794 = vand.u32 2147483647, %v2749
    %vm2795 = vcmp.eq.f32.partialorder %v2794, 8.507059e+37
    %v2796 = vand.u32 %v2749, 2147483648
    %v2797 = vor.u32 1.1754944e-38, %v2796
    %v2798 = vsel %vm2795, %v2797, %v2793
    %v2799 = vmul.f32 1.0, %v2798
    %v2800 = vrcp.pop %v2750
    %v2801 = vmul.f32 %v2750, %v2800
    %v2802 = vsub.f32 1.0, %v2801
    %v2803 = vmul.f32 %v2800, %v2802
    %v2804 = vadd.f32 %v2800, %v2803
    %vm2805 = vweird.f32 %v2750
    %vm2806 = vweird.f32 %v2800
    %vm2807 = vmor %vm2805, %vm2806
    %v2808 = vsel %vm2807, %v2800, %v2804
    %v2809 = vand.u32 2147483647, %v2750
    %vm2810 = vcmp.eq.f32.partialorder %v2809, 8.507059e+37
    %v2811 = vand.u32 %v2750, 2147483648
    %v2812 = vor.u32 1.1754944e-38, %v2811
    %v2813 = vsel %vm2810, %v2812, %v2808
    %v2814 = vmul.f32 1.0, %v2813
    %v2815 = vrcp.pop %v2751
    %v2816 = vmul.f32 %v2751, %v2815
    %v2817 = vsub.f32 1.0, %v2816
    %v2818 = vmul.f32 %v2815, %v2817
    %v2819 = vadd.f32 %v2815, %v2818
    %vm2820 = vweird.f32 %v2751
    %vm2821 = vweird.f32 %v2815
    %vm2822 = vmor %vm2820, %vm2821
    %v2823 = vsel %vm2822, %v2815, %v2819
    %v2824 = vand.u32 2147483647, %v2751
    %vm2825 = vcmp.eq.f32.partialorder %v2824, 8.507059e+37
    %v2826 = vand.u32 %v2751, 2147483648
    %v2827 = vor.u32 1.1754944e-38, %v2826
    %v2828 = vsel %vm2825, %v2827, %v2823
    %v2829 = vmul.f32 1.0, %v2828
    %v2830 = vrcp.pop %v2752
    %v2831 = vmul.f32 %v2752, %v2830
    %v2832 = vsub.f32 1.0, %v2831
    %v2833 = vmul.f32 %v2830, %v2832
    %v2834 = vadd.f32 %v2830, %v2833
    %vm2835 = vweird.f32 %v2752
    %vm2836 = vweird.f32 %v2830
    %vm2837 = vmor %vm2835, %vm2836
    %v2838 = vsel %vm2837, %v2830, %v2834
    %v2839 = vand.u32 2147483647, %v2752
    %vm2840 = vcmp.eq.f32.partialorder %v2839, 8.507059e+37
    %v2841 = vand.u32 %v2752, 2147483648
    %v2842 = vor.u32 1.1754944e-38, %v2841
    %v2843 = vsel %vm2840, %v2842, %v2838
    %v2844 = vmul.f32 1.0, %v2843
    %v2845 = vrcp.pop %v2753
    %v2846 = vmul.f32 %v2753, %v2845
    %v2847 = vsub.f32 1.0, %v2846
    %v2848 = vmul.f32 %v2845, %v2847
    %v2849 = vadd.f32 %v2845, %v2848
    %vm2850 = vweird.f32 %v2753
    %vm2851 = vweird.f32 %v2845
    %vm2852 = vmor %vm2850, %vm2851
    %v2853 = vsel %vm2852, %v2845, %v2849
    %v2854 = vand.u32 2147483647, %v2753
    %vm2855 = vcmp.eq.f32.partialorder %v2854, 8.507059e+37
    %v2856 = vand.u32 %v2753, 2147483648
    %v2857 = vor.u32 1.1754944e-38, %v2856
    %v2858 = vsel %vm2855, %v2857, %v2853
    %v2859 = vmul.f32 1.0, %v2858
    %v2860 = vrcp.pop %v2754
    %v2861 = vmul.f32 %v2754, %v2860
    %v2862 = vsub.f32 1.0, %v2861
    %v2863 = vmul.f32 %v2860, %v2862
    %v2864 = vadd.f32 %v2860, %v2863
    %vm2865 = vweird.f32 %v2754
    %vm2866 = vweird.f32 %v2860
    %vm2867 = vmor %vm2865, %vm2866
    %v2868 = vsel %vm2867, %v2860, %v2864
    %v2869 = vand.u32 2147483647, %v2754
    %vm2870 = vcmp.eq.f32.partialorder %v2869, 8.507059e+37
    %v2871 = vand.u32 %v2754, 2147483648
    %v2872 = vor.u32 1.1754944e-38, %v2871
    %v2873 = vsel %vm2870, %v2872, %v2868
    %v2874 = vmul.f32 1.0, %v2873
    %v2875 = vtanh.pop %v2541
    %v2876 = vtanh.pop %v2545
    %v2877 = vtanh.pop %v2549
    %v2878 = vtanh.pop %v2553
    %v2879 = vtanh.pop %v2557
    %v2880 = vtanh.pop %v2561
    %v2881 = vtanh.pop %v2565
    %v2882 = vtanh.pop %v2569
    %v2883 = vxor.u32 %v2542, 2147483648
    %v2884 = vxor.u32 %v2546, 2147483648
    %v2885 = vxor.u32 %v2550, 2147483648
    %v2886 = vxor.u32 %v2554, 2147483648
    %v2887 = vxor.u32 %v2558, 2147483648
    %v2888 = vxor.u32 %v2562, 2147483648
    %v2889 = vxor.u32 %v2566, 2147483648
    %v2890 = vxor.u32 %v2570, 2147483648
    %v2891 = vmul.f32 %v2883, 1.442695
    %v2892 = vpow.pop %v2891
    %v2893 = vmul.f32 %v2884, 1.442695
    %v2894 = vpow.pop %v2893
    %v2895 = vmul.f32 %v2885, 1.442695
    %v2896 = vpow.pop %v2895
    %v2897 = vmul.f32 %v2886, 1.442695
    %v2898 = vpow.pop %v2897
    %v2899 = vmul.f32 %v2887, 1.442695
    %v2900 = vpow.pop %v2899
    %v2901 = vmul.f32 %v2888, 1.442695
    %v2902 = vpow.pop %v2901
    %v2903 = vmul.f32 %v2889, 1.442695
    %v2904 = vpow.pop %v2903
    %v2905 = vmul.f32 %v2890, 1.442695
    %v2906 = vpow.pop %v2905
    %v2907 = vadd.f32 %v2892, 1.0
    %v2908 = vadd.f32 %v2894, 1.0
    %v2909 = vadd.f32 %v2896, 1.0
    %v2910 = vadd.f32 %v2898, 1.0
    %v2911 = vadd.f32 %v2900, 1.0
    %v2912 = vadd.f32 %v2902, 1.0
    %v2913 = vadd.f32 %v2904, 1.0
    %v2914 = vadd.f32 %v2906, 1.0
    %v2915 = vrcp.pop %v2907
    %v2916 = vmul.f32 %v2907, %v2915
    %v2917 = vsub.f32 1.0, %v2916
    %v2918 = vmul.f32 %v2915, %v2917
    %v2919 = vadd.f32 %v2915, %v2918
    %vm2920 = vweird.f32 %v2907
    %vm2921 = vweird.f32 %v2915
    %vm2922 = vmor %vm2920, %vm2921
    %v2923 = vsel %vm2922, %v2915, %v2919
    %v2924 = vand.u32 2147483647, %v2907
    %vm2925 = vcmp.eq.f32.partialorder %v2924, 8.507059e+37
    %v2926 = vand.u32 %v2907, 2147483648
    %v2927 = vor.u32 1.1754944e-38, %v2926
    %v2928 = vsel %vm2925, %v2927, %v2923
    %v2929 = vmul.f32 1.0, %v2928
    %v2930 = vrcp.pop %v2908
    %v2931 = vmul.f32 %v2908, %v2930
    %v2932 = vsub.f32 1.0, %v2931
    %v2933 = vmul.f32 %v2930, %v2932
    %v2934 = vadd.f32 %v2930, %v2933
    %vm2935 = vweird.f32 %v2908
    %vm2936 = vweird.f32 %v2930
    %vm2937 = vmor %vm2935, %vm2936
    %v2938 = vsel %vm2937, %v2930, %v2934
    %v2939 = vand.u32 2147483647, %v2908
    %vm2940 = vcmp.eq.f32.partialorder %v2939, 8.507059e+37
    %v2941 = vand.u32 %v2908, 2147483648
    %v2942 = vor.u32 1.1754944e-38, %v2941
    %v2943 = vsel %vm2940, %v2942, %v2938
    %v2944 = vmul.f32 1.0, %v2943
    %v2945 = vrcp.pop %v2909
    %v2946 = vmul.f32 %v2909, %v2945
    %v2947 = vsub.f32 1.0, %v2946
    %v2948 = vmul.f32 %v2945, %v2947
    %v2949 = vadd.f32 %v2945, %v2948
    %vm2950 = vweird.f32 %v2909
    %vm2951 = vweird.f32 %v2945
    %vm2952 = vmor %vm2950, %vm2951
    %v2953 = vsel %vm2952, %v2945, %v2949
    %v2954 = vand.u32 2147483647, %v2909
    %vm2955 = vcmp.eq.f32.partialorder %v2954, 8.507059e+37
    %v2956 = vand.u32 %v2909, 2147483648
    %v2957 = vor.u32 1.1754944e-38, %v2956
    %v2958 = vsel %vm2955, %v2957, %v2953
    %v2959 = vmul.f32 1.0, %v2958
    %v2960 = vrcp.pop %v2910
    %v2961 = vmul.f32 %v2910, %v2960
    %v2962 = vsub.f32 1.0, %v2961
    %v2963 = vmul.f32 %v2960, %v2962
    %v2964 = vadd.f32 %v2960, %v2963
    %vm2965 = vweird.f32 %v2910
    %vm2966 = vweird.f32 %v2960
    %vm2967 = vmor %vm2965, %vm2966
    %v2968 = vsel %vm2967, %v2960, %v2964
    %v2969 = vand.u32 2147483647, %v2910
    %vm2970 = vcmp.eq.f32.partialorder %v2969, 8.507059e+37
    %v2971 = vand.u32 %v2910, 2147483648
    %v2972 = vor.u32 1.1754944e-38, %v2971
    %v2973 = vsel %vm2970, %v2972, %v2968
    %v2974 = vmul.f32 1.0, %v2973
    %v2975 = vrcp.pop %v2911
    %v2976 = vmul.f32 %v2911, %v2975
    %v2977 = vsub.f32 1.0, %v2976
    %v2978 = vmul.f32 %v2975, %v2977
    %v2979 = vadd.f32 %v2975, %v2978
    %vm2980 = vweird.f32 %v2911
    %vm2981 = vweird.f32 %v2975
    %vm2982 = vmor %vm2980, %vm2981
    %v2983 = vsel %vm2982, %v2975, %v2979
    %v2984 = vand.u32 2147483647, %v2911
    %vm2985 = vcmp.eq.f32.partialorder %v2984, 8.507059e+37
    %v2986 = vand.u32 %v2911, 2147483648
    %v2987 = vor.u32 1.1754944e-38, %v2986
    %v2988 = vsel %vm2985, %v2987, %v2983
    %v2989 = vmul.f32 1.0, %v2988
    %v2990 = vrcp.pop %v2912
    %v2991 = vmul.f32 %v2912, %v2990
    %v2992 = vsub.f32 1.0, %v2991
    %v2993 = vmul.f32 %v2990, %v2992
    %v2994 = vadd.f32 %v2990, %v2993
    %vm2995 = vweird.f32 %v2912
    %vm2996 = vweird.f32 %v2990
    %vm2997 = vmor %vm2995, %vm2996
    %v2998 = vsel %vm2997, %v2990, %v2994
    %v2999 = vand.u32 2147483647, %v2912
    %vm3000 = vcmp.eq.f32.partialorder %v2999, 8.507059e+37
    %v3001 = vand.u32 %v2912, 2147483648
    %v3002 = vor.u32 1.1754944e-38, %v3001
    %v3003 = vsel %vm3000, %v3002, %v2998
    %v3004 = vmul.f32 1.0, %v3003
    %v3005 = vrcp.pop %v2913
    %v3006 = vmul.f32 %v2913, %v3005
    %v3007 = vsub.f32 1.0, %v3006
    %v3008 = vmul.f32 %v3005, %v3007
    %v3009 = vadd.f32 %v3005, %v3008
    %vm3010 = vweird.f32 %v2913
    %vm3011 = vweird.f32 %v3005
    %vm3012 = vmor %vm3010, %vm3011
    %v3013 = vsel %vm3012, %v3005, %v3009
    %v3014 = vand.u32 2147483647, %v2913
    %vm3015 = vcmp.eq.f32.partialorder %v3014, 8.507059e+37
    %v3016 = vand.u32 %v2913, 2147483648
    %v3017 = vor.u32 1.1754944e-38, %v3016
    %v3018 = vsel %vm3015, %v3017, %v3013
    %v3019 = vmul.f32 1.0, %v3018
    %v3020 = vrcp.pop %v2914
    %v3021 = vmul.f32 %v2914, %v3020
    %v3022 = vsub.f32 1.0, %v3021
    %v3023 = vmul.f32 %v3020, %v3022
    %v3024 = vadd.f32 %v3020, %v3023
    %vm3025 = vweird.f32 %v2914
    %vm3026 = vweird.f32 %v3020
    %vm3027 = vmor %vm3025, %vm3026
    %v3028 = vsel %vm3027, %v3020, %v3024
    %v3029 = vand.u32 2147483647, %v2914
    %vm3030 = vcmp.eq.f32.partialorder %v3029, 8.507059e+37
    %v3031 = vand.u32 %v2914, 2147483648
    %v3032 = vor.u32 1.1754944e-38, %v3031
    %v3033 = vsel %vm3030, %v3032, %v3028
    %v3034 = vmul.f32 1.0, %v3033
    %v3043 = vrot.slane %v2102, 7
    %v3044 = vrot.slane %v2103, 7
    %v3045 = vrot.slane %v2104, 7
    %v3046 = vrot.slane %v2105, 7
    %v3047 = vrot.slane %v2106, 7
    %v3048 = vrot.slane %v2107, 7
    %v3049 = vrot.slane %v2108, 7
    %v3050 = vrot.slane %v2109, 7
    %v3059 = vmul.f32 %v2769, %v3043
    %v3060 = vmul.f32 %v2784, %v3044
    %v3061 = vmul.f32 %v2799, %v3045
    %v3062 = vmul.f32 %v2814, %v3046
    %v3063 = vmul.f32 %v2829, %v3047
    %v3064 = vmul.f32 %v2844, %v3048
    %v3065 = vmul.f32 %v2859, %v3049
    %v3066 = vmul.f32 %v2874, %v3050
    %v3067 = vmul.f32 %v2617, %v2875
    %v3068 = vmul.f32 %v2632, %v2876
    %v3069 = vmul.f32 %v2647, %v2877
    %v3070 = vmul.f32 %v2662, %v2878
    %v3071 = vmul.f32 %v2677, %v2879
    %v3072 = vmul.f32 %v2692, %v2880
    %v3073 = vmul.f32 %v2707, %v2881
    %v3074 = vmul.f32 %v2722, %v2882
    %v3075 = vadd.f32 %v3059, %v3067
    %v3076 = vadd.f32 %v3060, %v3068
    %v3077 = vadd.f32 %v3061, %v3069
    %v3078 = vadd.f32 %v3062, %v3070
    %v3079 = vadd.f32 %v3063, %v3071
    %v3080 = vadd.f32 %v3064, %v3072
    %v3081 = vadd.f32 %v3065, %v3073
    %v3082 = vadd.f32 %v3066, %v3074
    %v3083 = vtanh.pop %v3075
    %v3084 = vtanh.pop %v3076
    %v3085 = vtanh.pop %v3077
    %v3086 = vtanh.pop %v3078
    %v3087 = vtanh.pop %v3079
    %v3088 = vtanh.pop %v3080
    %v3089 = vtanh.pop %v3081
    %v3090 = vtanh.pop %v3082
    %v3091 = vmul.f32 %v2929, %v3083
    %v3092 = vmul.f32 %v2944, %v3084
    %v3093 = vmul.f32 %v2959, %v3085
    %v3094 = vmul.f32 %v2974, %v3086
    %v3095 = vmul.f32 %v2989, %v3087
    %v3096 = vmul.f32 %v3004, %v3088
    %v3097 = vmul.f32 %v3019, %v3089
    %v3098 = vmul.f32 %v3034, %v3090
    %v3107 = vrot.slane %v3092, 7
    %v3108 = vsel %vm1175, %v3107, %v3091
    %v3109 = vrot.slane %v3093, 6
    %v3110 = vsel %vm1178, %v3109, %v3108
    %v3111 = vrot.slane %v3094, 5
    %v3112 = vsel %vm1181, %v3111, %v3110
    %v3113 = vrot.slane %v3095, 4
    %v3114 = vsel %vm1184, %v3113, %v3112
    %v3115 = vrot.slane %v3096, 3
    %v3116 = vsel %vm1187, %v3115, %v3114
    %v3117 = vrot.slane %v3097, 2
    %v3118 = vrot.slane %v3098, 1
    %v3119 = vsel %vm1169, %v3118, %v3117
    %v3121 = vrot.slane %v2379, 6
    %vm3122 = vcmask 1045504
    %v3123 = vrot.slane %v3116, 2
    %v3124 = vrot.slane %v3119, 2
    %v3125 = vsel %vm3122, %v3123, %v3124
    %v3126 = vrot.slane %v3121, 2
    %v3127 = vsel %vm3122, %v3126, %v3126
    %3130 = vmatpush.msra.mxu0 %v166
    %3131 = vmatpush.msra.mxu0 %v162
    %3132 = vmatpush.msra.mxu0 %v158
    %3133 = vmatpush.msra.mxu0 %v154
    %3134 = vmatpush.msra.mxu0 %v150
    %3135 = vmatpush.msra.mxu0 %v146
    %3136 = vmatpush.msra.mxu0 %v142
    %3137 = vmatpush.msra.mxu0 %v138
    %3138 = vmatpush.msra.mxu0 %v134
    %3139 = vmatpush.msra.mxu0 %v130
    %3140 = vmatpush.msra.mxu0 %v126
    %3141 = vmatpush.msra.mxu0 %v122
    %3142 = vmatpush.msra.mxu0 %v118
    %3143 = vmatpush.msra.mxu0 %v114
    %3144 = vmatpush.msra.mxu0 %v110
    %3145 = vmatpush.msra.mxu0 %v106
    %3146 = vmatmul.f32.gmra.mxu0 %v3125
    %v3147 = vpop.f32.mrf.mxu0
    %v3148 = vadd.f32 %v1191, %v3147
    %3149 = vdwg.mxu0
    %3150 = vmatpush.msra.mxu0 %v230
    %3151 = vmatpush.msra.mxu0 %v226
    %3152 = vmatpush.msra.mxu0 %v222
    %3153 = vmatpush.msra.mxu0 %v218
    %3154 = vmatpush.msra.mxu0 %v214
    %3155 = vmatpush.msra.mxu0 %v210
    %3156 = vmatpush.msra.mxu0 %v206
    %3157 = vmatpush.msra.mxu0 %v202
    %3158 = vmatpush.msra.mxu0 %v198
    %3159 = vmatpush.msra.mxu0 %v194
    %3160 = vmatpush.msra.mxu0 %v190
    %3161 = vmatpush.msra.mxu0 %v186
    %3162 = vmatpush.msra.mxu0 %v182
    %3163 = vmatpush.msra.mxu0 %v178
    %3164 = vmatpush.msra.mxu0 %v174
    %3165 = vmatpush.msra.mxu0 %v170
    %3166 = vmatmul.f32.gmra.mxu0 %v3127
    %v3167 = vpop.f32.mrf.mxu0
    %v3168 = vadd.f32 %v3148, %v3167
    %3169 = vdwg.mxu0
    %3170 = vmatpush.msra.mxu0 %v167
    %3171 = vmatpush.msra.mxu0 %v163
    %3172 = vmatpush.msra.mxu0 %v159
    %3173 = vmatpush.msra.mxu0 %v155
    %3174 = vmatpush.msra.mxu0 %v151
    %3175 = vmatpush.msra.mxu0 %v147
    %3176 = vmatpush.msra.mxu0 %v143
    %3177 = vmatpush.msra.mxu0 %v139
    %3178 = vmatpush.msra.mxu0 %v135
    %3179 = vmatpush.msra.mxu0 %v131
    %3180 = vmatpush.msra.mxu0 %v127
    %3181 = vmatpush.msra.mxu0 %v123
    %3182 = vmatpush.msra.mxu0 %v119
    %3183 = vmatpush.msra.mxu0 %v115
    %3184 = vmatpush.msra.mxu0 %v111
    %3185 = vmatpush.msra.mxu0 %v107
    %3186 = vmatmul.f32.gmra.mxu0 %v3125
    %v3187 = vpop.f32.mrf.mxu0
    %v3188 = vadd.f32 %v1192, %v3187
    %3189 = vdwg.mxu0
    %3190 = vmatpush.msra.mxu0 %v231
    %3191 = vmatpush.msra.mxu0 %v227
    %3192 = vmatpush.msra.mxu0 %v223
    %3193 = vmatpush.msra.mxu0 %v219
    %3194 = vmatpush.msra.mxu0 %v215
    %3195 = vmatpush.msra.mxu0 %v211
    %3196 = vmatpush.msra.mxu0 %v207
    %3197 = vmatpush.msra.mxu0 %v203
    %3198 = vmatpush.msra.mxu0 %v199
    %3199 = vmatpush.msra.mxu0 %v195
    %3200 = vmatpush.msra.mxu0 %v191
    %3201 = vmatpush.msra.mxu0 %v187
    %3202 = vmatpush.msra.mxu0 %v183
    %3203 = vmatpush.msra.mxu0 %v179
    %3204 = vmatpush.msra.mxu0 %v175
    %3205 = vmatpush.msra.mxu0 %v171
    %3206 = vmatmul.f32.gmra.mxu0 %v3127
    %v3207 = vpop.f32.mrf.mxu0
    %v3208 = vadd.f32 %v3188, %v3207
    %3209 = vdwg.mxu0
    %3210 = vmatpush.msra.mxu0 %v168
    %3211 = vmatpush.msra.mxu0 %v164
    %3212 = vmatpush.msra.mxu0 %v160
    %3213 = vmatpush.msra.mxu0 %v156
    %3214 = vmatpush.msra.mxu0 %v152
    %3215 = vmatpush.msra.mxu0 %v148
    %3216 = vmatpush.msra.mxu0 %v144
    %3217 = vmatpush.msra.mxu0 %v140
    %3218 = vmatpush.msra.mxu0 %v136
    %3219 = vmatpush.msra.mxu0 %v132
    %3220 = vmatpush.msra.mxu0 %v128
    %3221 = vmatpush.msra.mxu0 %v124
    %3222 = vmatpush.msra.mxu0 %v120
    %3223 = vmatpush.msra.mxu0 %v116
    %3224 = vmatpush.msra.mxu0 %v112
    %3225 = vmatpush.msra.mxu0 %v108
    %3226 = vmatmul.f32.gmra.mxu0 %v3125
    %v3227 = vpop.f32.mrf.mxu0
    %v3228 = vadd.f32 %v1193, %v3227
    %3229 = vdwg.mxu0
    %3230 = vmatpush.msra.mxu0 %v232
    %3231 = vmatpush.msra.mxu0 %v228
    %3232 = vmatpush.msra.mxu0 %v224
    %3233 = vmatpush.msra.mxu0 %v220
    %3234 = vmatpush.msra.mxu0 %v216
    %3235 = vmatpush.msra.mxu0 %v212
    %3236 = vmatpush.msra.mxu0 %v208
    %3237 = vmatpush.msra.mxu0 %v204
    %3238 = vmatpush.msra.mxu0 %v200
    %3239 = vmatpush.msra.mxu0 %v196
    %3240 = vmatpush.msra.mxu0 %v192
    %3241 = vmatpush.msra.mxu0 %v188
    %3242 = vmatpush.msra.mxu0 %v184
    %3243 = vmatpush.msra.mxu0 %v180
    %3244 = vmatpush.msra.mxu0 %v176
    %3245 = vmatpush.msra.mxu0 %v172
    %3246 = vmatmul.f32.gmra.mxu0 %v3127
    %v3247 = vpop.f32.mrf.mxu0
    %v3248 = vadd.f32 %v3228, %v3247
    %3249 = vdwg.mxu0
    %3250 = vmatpush.msra.mxu0 %v169
    %3251 = vmatpush.msra.mxu0 %v165
    %3252 = vmatpush.msra.mxu0 %v161
    %3253 = vmatpush.msra.mxu0 %v157
    %3254 = vmatpush.msra.mxu0 %v153
    %3255 = vmatpush.msra.mxu0 %v149
    %3256 = vmatpush.msra.mxu0 %v145
    %3257 = vmatpush.msra.mxu0 %v141
    %3258 = vmatpush.msra.mxu0 %v137
    %3259 = vmatpush.msra.mxu0 %v133
    %3260 = vmatpush.msra.mxu0 %v129
    %3261 = vmatpush.msra.mxu0 %v125
    %3262 = vmatpush.msra.mxu0 %v121
    %3263 = vmatpush.msra.mxu0 %v117
    %3264 = vmatpush.msra.mxu0 %v113
    %3265 = vmatpush.msra.mxu0 %v109
    %3266 = vmatmul.f32.gmra.mxu0 %v3125
    %v3267 = vpop.f32.mrf.mxu0
    %v3268 = vadd.f32 %v1194, %v3267
    %3269 = vdwg.mxu0
    %3270 = vmatpush.msra.mxu0 %v233
    %3271 = vmatpush.msra.mxu0 %v229
    %3272 = vmatpush.msra.mxu0 %v225
    %3273 = vmatpush.msra.mxu0 %v221
    %3274 = vmatpush.msra.mxu0 %v217
    %3275 = vmatpush.msra.mxu0 %v213
    %3276 = vmatpush.msra.mxu0 %v209
    %3277 = vmatpush.msra.mxu0 %v205
    %3278 = vmatpush.msra.mxu0 %v201
    %3279 = vmatpush.msra.mxu0 %v197
    %3280 = vmatpush.msra.mxu0 %v193
    %3281 = vmatpush.msra.mxu0 %v189
    %3282 = vmatpush.msra.mxu0 %v185
    %3283 = vmatpush.msra.mxu0 %v181
    %3284 = vmatpush.msra.mxu0 %v177
    %3285 = vmatpush.msra.mxu0 %v173
    %3286 = vmatmul.f32.gmra.mxu0 %v3127
    %v3287 = vpop.f32.mrf.mxu0
    %v3288 = vadd.f32 %v3268, %v3287
    %3289 = vdwg.mxu0
    %v3290 = vxor.u32 %v3168, 2147483648
    %v3291 = vmul.f32 %v3290, 1.442695
    %v3292 = vpow.pop %v3291
    %v3293 = vadd.f32 %v3292, 1.0
    %v3294 = vrcp.pop %v3293
    %v3295 = vmul.f32 %v3293, %v3294
    %v3296 = vsub.f32 1.0, %v3295
    %v3297 = vmul.f32 %v3294, %v3296
    %v3298 = vadd.f32 %v3294, %v3297
    %vm3299 = vweird.f32 %v3293
    %vm3300 = vweird.f32 %v3294
    %vm3301 = vmor %vm3299, %vm3300
    %v3302 = vsel %vm3301, %v3294, %v3298
    %v3303 = vand.u32 2147483647, %v3293
    %vm3304 = vcmp.eq.f32.partialorder %v3303, 8.507059e+37
    %v3305 = vand.u32 %v3293, 2147483648
    %v3306 = vor.u32 1.1754944e-38, %v3305
    %v3307 = vsel %vm3304, %v3306, %v3302
    %v3308 = vmul.f32 1.0, %v3307
    %v3309 = vxor.u32 %v3208, 2147483648
    %v3310 = vmul.f32 %v3309, 1.442695
    %v3311 = vpow.pop %v3310
    %v3312 = vadd.f32 %v3311, 1.0
    %v3313 = vrcp.pop %v3312
    %v3314 = vmul.f32 %v3312, %v3313
    %v3315 = vsub.f32 1.0, %v3314
    %v3316 = vmul.f32 %v3313, %v3315
    %v3317 = vadd.f32 %v3313, %v3316
    %vm3318 = vweird.f32 %v3312
    %vm3319 = vweird.f32 %v3313
    %vm3320 = vmor %vm3318, %vm3319
    %v3321 = vsel %vm3320, %v3313, %v3317
    %v3322 = vand.u32 2147483647, %v3312
    %vm3323 = vcmp.eq.f32.partialorder %v3322, 8.507059e+37
    %v3324 = vand.u32 %v3312, 2147483648
    %v3325 = vor.u32 1.1754944e-38, %v3324
    %v3326 = vsel %vm3323, %v3325, %v3321
    %v3327 = vmul.f32 1.0, %v3326
    %v3328 = vtanh.pop %v3248
    %v3329 = vxor.u32 %v3288, 2147483648
    %v3330 = vmul.f32 %v3329, 1.442695
    %v3331 = vpow.pop %v3330
    %v3332 = vadd.f32 %v3331, 1.0
    %v3333 = vrcp.pop %v3332
    %v3334 = vmul.f32 %v3332, %v3333
    %v3335 = vsub.f32 1.0, %v3334
    %v3336 = vmul.f32 %v3333, %v3335
    %v3337 = vadd.f32 %v3333, %v3336
    %vm3338 = vweird.f32 %v3332
    %vm3339 = vweird.f32 %v3333
    %vm3340 = vmor %vm3338, %vm3339
    %v3341 = vsel %vm3340, %v3333, %v3337
    %v3342 = vand.u32 2147483647, %v3332
    %vm3343 = vcmp.eq.f32.partialorder %v3342, 8.507059e+37
    %v3344 = vand.u32 %v3332, 2147483648
    %v3345 = vor.u32 1.1754944e-38, %v3344
    %v3346 = vsel %vm3343, %v3345, %v3341
    %v3347 = vmul.f32 1.0, %v3346
    %v3348 = vmul.f32 %v3327, %v2377
    %v3349 = vmul.f32 %v3308, %v3328
    %v3350 = vadd.f32 %v3348, %v3349
    %v3351 = vtanh.pop %v3350
    %v3352 = vmul.f32 %v3347, %v3351
    %v3353 = vrot.slane %v3091, 2
    %v3354 = vrot.slane %v3092, 1
    %v3355 = vsel %vm1169, %v3354, %v3353
    %v3356 = vsel %vm1172, %v3093, %v3355
    %v3357 = vrot.slane %v3094, 7
    %v3358 = vsel %vm1175, %v3357, %v3356
    %v3359 = vrot.slane %v3095, 6
    %v3360 = vsel %vm1178, %v3359, %v3358
    %v3361 = vrot.slane %v3096, 5
    %v3362 = vsel %vm1181, %v3361, %v3360
    %v3363 = vrot.slane %v3097, 4
    %v3364 = vsel %vm1184, %v3363, %v3362
    %v3365 = vrot.slane %v3098, 3
    %v3366 = vsel %vm1187, %v3365, %v3364
    %3368 = vmatpush.msra.mxu0 %v102
    %3369 = vmatpush.msra.mxu0 %v98
    %3370 = vmatpush.msra.mxu0 %v94
    %3371 = vmatpush.msra.mxu0 %v90
    %3372 = vmatpush.msra.mxu0 %v86
    %3373 = vmatpush.msra.mxu0 %v82
    %3374 = vmatpush.msra.mxu0 %v78
    %3375 = vmatpush.msra.mxu0 %v74
    %3376 = vmatpush.msra.mxu0 %v70
    %3377 = vmatpush.msra.mxu0 %v66
    %3378 = vmatpush.msra.mxu0 %v62
    %3379 = vmatpush.msra.mxu0 %v58
    %3380 = vmatpush.msra.mxu0 %v54
    %3381 = vmatpush.msra.mxu0 %v50
    %3382 = vmatpush.msra.mxu0 %v46
    %3383 = vmatpush.msra.mxu0 %v42
    %3384 = vmatmul.f32.gmra.mxu0 %v3366
    %v3385 = vpop.f32.mrf.mxu0
    %v3386 = vadd.f32 0.0, %v3385
    %3387 = vdwg.mxu0
    %3388 = vmatpush.msra.mxu0 %v103
    %3389 = vmatpush.msra.mxu0 %v99
    %3390 = vmatpush.msra.mxu0 %v95
    %3391 = vmatpush.msra.mxu0 %v91
    %3392 = vmatpush.msra.mxu0 %v87
    %3393 = vmatpush.msra.mxu0 %v83
    %3394 = vmatpush.msra.mxu0 %v79
    %3395 = vmatpush.msra.mxu0 %v75
    %3396 = vmatpush.msra.mxu0 %v71
    %3397 = vmatpush.msra.mxu0 %v67
    %3398 = vmatpush.msra.mxu0 %v63
    %3399 = vmatpush.msra.mxu0 %v59
    %3400 = vmatpush.msra.mxu0 %v55
    %3401 = vmatpush.msra.mxu0 %v51
    %3402 = vmatpush.msra.mxu0 %v47
    %3403 = vmatpush.msra.mxu0 %v43
    %3404 = vmatmul.f32.gmra.mxu0 %v3366
    %v3405 = vpop.f32.mrf.mxu0
    %v3406 = vadd.f32 0.0, %v3405
    %3407 = vdwg.mxu0
    %3408 = vmatpush.msra.mxu0 %v104
    %3409 = vmatpush.msra.mxu0 %v100
    %3410 = vmatpush.msra.mxu0 %v96
    %3411 = vmatpush.msra.mxu0 %v92
    %3412 = vmatpush.msra.mxu0 %v88
    %3413 = vmatpush.msra.mxu0 %v84
    %3414 = vmatpush.msra.mxu0 %v80
    %3415 = vmatpush.msra.mxu0 %v76
    %3416 = vmatpush.msra.mxu0 %v72
    %3417 = vmatpush.msra.mxu0 %v68
    %3418 = vmatpush.msra.mxu0 %v64
    %3419 = vmatpush.msra.mxu0 %v60
    %3420 = vmatpush.msra.mxu0 %v56
    %3421 = vmatpush.msra.mxu0 %v52
    %3422 = vmatpush.msra.mxu0 %v48
    %3423 = vmatpush.msra.mxu0 %v44
    %3424 = vmatmul.f32.gmra.mxu0 %v3366
    %v3425 = vpop.f32.mrf.mxu0
    %v3426 = vadd.f32 0.0, %v3425
    %3427 = vdwg.mxu0
    %3428 = vmatpush.msra.mxu0 %v105
    %3429 = vmatpush.msra.mxu0 %v101
    %3430 = vmatpush.msra.mxu0 %v97
    %3431 = vmatpush.msra.mxu0 %v93
    %3432 = vmatpush.msra.mxu0 %v89
    %3433 = vmatpush.msra.mxu0 %v85
    %3434 = vmatpush.msra.mxu0 %v81
    %3435 = vmatpush.msra.mxu0 %v77
    %3436 = vmatpush.msra.mxu0 %v73
    %3437 = vmatpush.msra.mxu0 %v69
    %3438 = vmatpush.msra.mxu0 %v65
    %3439 = vmatpush.msra.mxu0 %v61
    %3440 = vmatpush.msra.mxu0 %v57
    %3441 = vmatpush.msra.mxu0 %v53
    %3442 = vmatpush.msra.mxu0 %v49
    %3443 = vmatpush.msra.mxu0 %v45
    %3444 = vmatmul.f32.gmra.mxu0 %v3366
    %v3445 = vpop.f32.mrf.mxu0
    %v3446 = vadd.f32 0.0, %v3445
    %3447 = vdwg.mxu0
    %v3452 = vrot.slane %v3386, 5
    %v3453 = vrot.slane %v3406, 5
    %v3454 = vrot.slane %v3426, 5
    %v3455 = vrot.slane %v3446, 5
    %v3456 = vrot.slane %v3386, 6
    %v3457 = vrot.slane %v3406, 6
    %v3458 = vrot.slane %v3426, 6
    %v3459 = vrot.slane %v3446, 6
    %v3460 = vrot.slane %v3386, 7
    %v3461 = vrot.slane %v3406, 7
    %v3462 = vrot.slane %v3426, 7
    %v3463 = vrot.slane %v3446, 7
    %v3464 = vrot.slane %v3386, 1
    %v3465 = vrot.slane %v3406, 1
    %v3466 = vrot.slane %v3426, 1
    %v3467 = vrot.slane %v3446, 1
    %v3468 = vrot.slane %v3386, 2
    %v3469 = vrot.slane %v3406, 2
    %v3470 = vrot.slane %v3426, 2
    %v3471 = vrot.slane %v3446, 2
    %v3472 = vrot.slane %v3386, 3
    %v3473 = vrot.slane %v3406, 3
    %v3474 = vrot.slane %v3426, 3
    %v3475 = vrot.slane %v3446, 3
    %v3476 = vrot.slane %v3386, 4
    %v3477 = vrot.slane %v3406, 4
    %v3478 = vrot.slane %v3426, 4
    %v3479 = vrot.slane %v3446, 4
    %v3512 = vadd.f32 %v312, %v3452
    %v3513 = vadd.f32 %v353, %v3453
    %v3514 = vadd.f32 %v394, %v3454
    %v3515 = vadd.f32 %v435, %v3455
    %v3516 = vadd.f32 %v315, %v3456
    %v3517 = vadd.f32 %v356, %v3457
    %v3518 = vadd.f32 %v397, %v3458
    %v3519 = vadd.f32 %v438, %v3459
    %v3520 = vadd.f32 %v318, %v3460
    %v3521 = vadd.f32 %v359, %v3461
    %v3522 = vadd.f32 %v400, %v3462
    %v3523 = vadd.f32 %v441, %v3463
    %v3524 = vadd.f32 %v321, %v3386
    %v3525 = vadd.f32 %v362, %v3406
    %v3526 = vadd.f32 %v403, %v3426
    %v3527 = vadd.f32 %v444, %v3446
    %v3528 = vadd.f32 %v324, %v3464
    %v3529 = vadd.f32 %v365, %v3465
    %v3530 = vadd.f32 %v406, %v3466
    %v3531 = vadd.f32 %v447, %v3467
    %v3532 = vadd.f32 %v327, %v3468
    %v3533 = vadd.f32 %v368, %v3469
    %v3534 = vadd.f32 %v409, %v3470
    %v3535 = vadd.f32 %v450, %v3471
    %v3536 = vadd.f32 %v330, %v3472
    %v3537 = vadd.f32 %v371, %v3473
    %v3538 = vadd.f32 %v412, %v3474
    %v3539 = vadd.f32 %v453, %v3475
    %v3540 = vadd.f32 %v333, %v3476
    %v3541 = vadd.f32 %v374, %v3477
    %v3542 = vadd.f32 %v415, %v3478
    %v3543 = vadd.f32 %v456, %v3479
    %v3544 = vxor.u32 %v3512, 2147483648
    %v3545 = vxor.u32 %v3516, 2147483648
    %v3546 = vxor.u32 %v3520, 2147483648
    %v3547 = vxor.u32 %v3524, 2147483648
    %v3548 = vxor.u32 %v3528, 2147483648
    %v3549 = vxor.u32 %v3532, 2147483648
    %v3550 = vxor.u32 %v3536, 2147483648
    %v3551 = vxor.u32 %v3540, 2147483648
    %v3552 = vmul.f32 %v3544, 1.442695
    %v3553 = vpow.pop %v3552
    %v3554 = vmul.f32 %v3545, 1.442695
    %v3555 = vpow.pop %v3554
    %v3556 = vmul.f32 %v3546, 1.442695
    %v3557 = vpow.pop %v3556
    %v3558 = vmul.f32 %v3547, 1.442695
    %v3559 = vpow.pop %v3558
    %v3560 = vmul.f32 %v3548, 1.442695
    %v3561 = vpow.pop %v3560
    %v3562 = vmul.f32 %v3549, 1.442695
    %v3563 = vpow.pop %v3562
    %v3564 = vmul.f32 %v3550, 1.442695
    %v3565 = vpow.pop %v3564
    %v3566 = vmul.f32 %v3551, 1.442695
    %v3567 = vpow.pop %v3566
    %v3568 = vadd.f32 %v3553, 1.0
    %v3569 = vadd.f32 %v3555, 1.0
    %v3570 = vadd.f32 %v3557, 1.0
    %v3571 = vadd.f32 %v3559, 1.0
    %v3572 = vadd.f32 %v3561, 1.0
    %v3573 = vadd.f32 %v3563, 1.0
    %v3574 = vadd.f32 %v3565, 1.0
    %v3575 = vadd.f32 %v3567, 1.0
    %v3576 = vrcp.pop %v3568
    %v3577 = vmul.f32 %v3568, %v3576
    %v3578 = vsub.f32 1.0, %v3577
    %v3579 = vmul.f32 %v3576, %v3578
    %v3580 = vadd.f32 %v3576, %v3579
    %vm3581 = vweird.f32 %v3568
    %vm3582 = vweird.f32 %v3576
    %vm3583 = vmor %vm3581, %vm3582
    %v3584 = vsel %vm3583, %v3576, %v3580
    %v3585 = vand.u32 2147483647, %v3568
    %vm3586 = vcmp.eq.f32.partialorder %v3585, 8.507059e+37
    %v3587 = vand.u32 %v3568, 2147483648
    %v3588 = vor.u32 1.1754944e-38, %v3587
    %v3589 = vsel %vm3586, %v3588, %v3584
    %v3590 = vmul.f32 1.0, %v3589
    %v3591 = vrcp.pop %v3569
    %v3592 = vmul.f32 %v3569, %v3591
    %v3593 = vsub.f32 1.0, %v3592
    %v3594 = vmul.f32 %v3591, %v3593
    %v3595 = vadd.f32 %v3591, %v3594
    %vm3596 = vweird.f32 %v3569
    %vm3597 = vweird.f32 %v3591
    %vm3598 = vmor %vm3596, %vm3597
    %v3599 = vsel %vm3598, %v3591, %v3595
    %v3600 = vand.u32 2147483647, %v3569
    %vm3601 = vcmp.eq.f32.partialorder %v3600, 8.507059e+37
    %v3602 = vand.u32 %v3569, 2147483648
    %v3603 = vor.u32 1.1754944e-38, %v3602
    %v3604 = vsel %vm3601, %v3603, %v3599
    %v3605 = vmul.f32 1.0, %v3604
    %v3606 = vrcp.pop %v3570
    %v3607 = vmul.f32 %v3570, %v3606
    %v3608 = vsub.f32 1.0, %v3607
    %v3609 = vmul.f32 %v3606, %v3608
    %v3610 = vadd.f32 %v3606, %v3609
    %vm3611 = vweird.f32 %v3570
    %vm3612 = vweird.f32 %v3606
    %vm3613 = vmor %vm3611, %vm3612
    %v3614 = vsel %vm3613, %v3606, %v3610
    %v3615 = vand.u32 2147483647, %v3570
    %vm3616 = vcmp.eq.f32.partialorder %v3615, 8.507059e+37
    %v3617 = vand.u32 %v3570, 2147483648
    %v3618 = vor.u32 1.1754944e-38, %v3617
    %v3619 = vsel %vm3616, %v3618, %v3614
    %v3620 = vmul.f32 1.0, %v3619
    %v3621 = vrcp.pop %v3571
    %v3622 = vmul.f32 %v3571, %v3621
    %v3623 = vsub.f32 1.0, %v3622
    %v3624 = vmul.f32 %v3621, %v3623
    %v3625 = vadd.f32 %v3621, %v3624
    %vm3626 = vweird.f32 %v3571
    %vm3627 = vweird.f32 %v3621
    %vm3628 = vmor %vm3626, %vm3627
    %v3629 = vsel %vm3628, %v3621, %v3625
    %v3630 = vand.u32 2147483647, %v3571
    %vm3631 = vcmp.eq.f32.partialorder %v3630, 8.507059e+37
    %v3632 = vand.u32 %v3571, 2147483648
    %v3633 = vor.u32 1.1754944e-38, %v3632
    %v3634 = vsel %vm3631, %v3633, %v3629
    %v3635 = vmul.f32 1.0, %v3634
    %v3636 = vrcp.pop %v3572
    %v3637 = vmul.f32 %v3572, %v3636
    %v3638 = vsub.f32 1.0, %v3637
    %v3639 = vmul.f32 %v3636, %v3638
    %v3640 = vadd.f32 %v3636, %v3639
    %vm3641 = vweird.f32 %v3572
    %vm3642 = vweird.f32 %v3636
    %vm3643 = vmor %vm3641, %vm3642
    %v3644 = vsel %vm3643, %v3636, %v3640
    %v3645 = vand.u32 2147483647, %v3572
    %vm3646 = vcmp.eq.f32.partialorder %v3645, 8.507059e+37
    %v3647 = vand.u32 %v3572, 2147483648
    %v3648 = vor.u32 1.1754944e-38, %v3647
    %v3649 = vsel %vm3646, %v3648, %v3644
    %v3650 = vmul.f32 1.0, %v3649
    %v3651 = vrcp.pop %v3573
    %v3652 = vmul.f32 %v3573, %v3651
    %v3653 = vsub.f32 1.0, %v3652
    %v3654 = vmul.f32 %v3651, %v3653
    %v3655 = vadd.f32 %v3651, %v3654
    %vm3656 = vweird.f32 %v3573
    %vm3657 = vweird.f32 %v3651
    %vm3658 = vmor %vm3656, %vm3657
    %v3659 = vsel %vm3658, %v3651, %v3655
    %v3660 = vand.u32 2147483647, %v3573
    %vm3661 = vcmp.eq.f32.partialorder %v3660, 8.507059e+37
    %v3662 = vand.u32 %v3573, 2147483648
    %v3663 = vor.u32 1.1754944e-38, %v3662
    %v3664 = vsel %vm3661, %v3663, %v3659
    %v3665 = vmul.f32 1.0, %v3664
    %v3666 = vrcp.pop %v3574
    %v3667 = vmul.f32 %v3574, %v3666
    %v3668 = vsub.f32 1.0, %v3667
    %v3669 = vmul.f32 %v3666, %v3668
    %v3670 = vadd.f32 %v3666, %v3669
    %vm3671 = vweird.f32 %v3574
    %vm3672 = vweird.f32 %v3666
    %vm3673 = vmor %vm3671, %vm3672
    %v3674 = vsel %vm3673, %v3666, %v3670
    %v3675 = vand.u32 2147483647, %v3574
    %vm3676 = vcmp.eq.f32.partialorder %v3675, 8.507059e+37
    %v3677 = vand.u32 %v3574, 2147483648
    %v3678 = vor.u32 1.1754944e-38, %v3677
    %v3679 = vsel %vm3676, %v3678, %v3674
    %v3680 = vmul.f32 1.0, %v3679
    %v3681 = vrcp.pop %v3575
    %v3682 = vmul.f32 %v3575, %v3681
    %v3683 = vsub.f32 1.0, %v3682
    %v3684 = vmul.f32 %v3681, %v3683
    %v3685 = vadd.f32 %v3681, %v3684
    %vm3686 = vweird.f32 %v3575
    %vm3687 = vweird.f32 %v3681
    %vm3688 = vmor %vm3686, %vm3687
    %v3689 = vsel %vm3688, %v3681, %v3685
    %v3690 = vand.u32 2147483647, %v3575
    %vm3691 = vcmp.eq.f32.partialorder %v3690, 8.507059e+37
    %v3692 = vand.u32 %v3575, 2147483648
    %v3693 = vor.u32 1.1754944e-38, %v3692
    %v3694 = vsel %vm3691, %v3693, %v3689
    %v3695 = vmul.f32 1.0, %v3694
    %v3696 = vxor.u32 %v3513, 2147483648
    %v3697 = vxor.u32 %v3517, 2147483648
    %v3698 = vxor.u32 %v3521, 2147483648
    %v3699 = vxor.u32 %v3525, 2147483648
    %v3700 = vxor.u32 %v3529, 2147483648
    %v3701 = vxor.u32 %v3533, 2147483648
    %v3702 = vxor.u32 %v3537, 2147483648
    %v3703 = vxor.u32 %v3541, 2147483648
    %v3704 = vmul.f32 %v3696, 1.442695
    %v3705 = vpow.pop %v3704
    %v3706 = vmul.f32 %v3697, 1.442695
    %v3707 = vpow.pop %v3706
    %v3708 = vmul.f32 %v3698, 1.442695
    %v3709 = vpow.pop %v3708
    %v3710 = vmul.f32 %v3699, 1.442695
    %v3711 = vpow.pop %v3710
    %v3712 = vmul.f32 %v3700, 1.442695
    %v3713 = vpow.pop %v3712
    %v3714 = vmul.f32 %v3701, 1.442695
    %v3715 = vpow.pop %v3714
    %v3716 = vmul.f32 %v3702, 1.442695
    %v3717 = vpow.pop %v3716
    %v3718 = vmul.f32 %v3703, 1.442695
    %v3719 = vpow.pop %v3718
    %v3720 = vadd.f32 %v3705, 1.0
    %v3721 = vadd.f32 %v3707, 1.0
    %v3722 = vadd.f32 %v3709, 1.0
    %v3723 = vadd.f32 %v3711, 1.0
    %v3724 = vadd.f32 %v3713, 1.0
    %v3725 = vadd.f32 %v3715, 1.0
    %v3726 = vadd.f32 %v3717, 1.0
    %v3727 = vadd.f32 %v3719, 1.0
    %v3728 = vrcp.pop %v3720
    %v3729 = vmul.f32 %v3720, %v3728
    %v3730 = vsub.f32 1.0, %v3729
    %v3731 = vmul.f32 %v3728, %v3730
    %v3732 = vadd.f32 %v3728, %v3731
    %vm3733 = vweird.f32 %v3720
    %vm3734 = vweird.f32 %v3728
    %vm3735 = vmor %vm3733, %vm3734
    %v3736 = vsel %vm3735, %v3728, %v3732
    %v3737 = vand.u32 2147483647, %v3720
    %vm3738 = vcmp.eq.f32.partialorder %v3737, 8.507059e+37
    %v3739 = vand.u32 %v3720, 2147483648
    %v3740 = vor.u32 1.1754944e-38, %v3739
    %v3741 = vsel %vm3738, %v3740, %v3736
    %v3742 = vmul.f32 1.0, %v3741
    %v3743 = vrcp.pop %v3721
    %v3744 = vmul.f32 %v3721, %v3743
    %v3745 = vsub.f32 1.0, %v3744
    %v3746 = vmul.f32 %v3743, %v3745
    %v3747 = vadd.f32 %v3743, %v3746
    %vm3748 = vweird.f32 %v3721
    %vm3749 = vweird.f32 %v3743
    %vm3750 = vmor %vm3748, %vm3749
    %v3751 = vsel %vm3750, %v3743, %v3747
    %v3752 = vand.u32 2147483647, %v3721
    %vm3753 = vcmp.eq.f32.partialorder %v3752, 8.507059e+37
    %v3754 = vand.u32 %v3721, 2147483648
    %v3755 = vor.u32 1.1754944e-38, %v3754
    %v3756 = vsel %vm3753, %v3755, %v3751
    %v3757 = vmul.f32 1.0, %v3756
    %v3758 = vrcp.pop %v3722
    %v3759 = vmul.f32 %v3722, %v3758
    %v3760 = vsub.f32 1.0, %v3759
    %v3761 = vmul.f32 %v3758, %v3760
    %v3762 = vadd.f32 %v3758, %v3761
    %vm3763 = vweird.f32 %v3722
    %vm3764 = vweird.f32 %v3758
    %vm3765 = vmor %vm3763, %vm3764
    %v3766 = vsel %vm3765, %v3758, %v3762
    %v3767 = vand.u32 2147483647, %v3722
    %vm3768 = vcmp.eq.f32.partialorder %v3767, 8.507059e+37
    %v3769 = vand.u32 %v3722, 2147483648
    %v3770 = vor.u32 1.1754944e-38, %v3769
    %v3771 = vsel %vm3768, %v3770, %v3766
    %v3772 = vmul.f32 1.0, %v3771
    %v3773 = vrcp.pop %v3723
    %v3774 = vmul.f32 %v3723, %v3773
    %v3775 = vsub.f32 1.0, %v3774
    %v3776 = vmul.f32 %v3773, %v3775
    %v3777 = vadd.f32 %v3773, %v3776
    %vm3778 = vweird.f32 %v3723
    %vm3779 = vweird.f32 %v3773
    %vm3780 = vmor %vm3778, %vm3779
    %v3781 = vsel %vm3780, %v3773, %v3777
    %v3782 = vand.u32 2147483647, %v3723
    %vm3783 = vcmp.eq.f32.partialorder %v3782, 8.507059e+37
    %v3784 = vand.u32 %v3723, 2147483648
    %v3785 = vor.u32 1.1754944e-38, %v3784
    %v3786 = vsel %vm3783, %v3785, %v3781
    %v3787 = vmul.f32 1.0, %v3786
    %v3788 = vrcp.pop %v3724
    %v3789 = vmul.f32 %v3724, %v3788
    %v3790 = vsub.f32 1.0, %v3789
    %v3791 = vmul.f32 %v3788, %v3790
    %v3792 = vadd.f32 %v3788, %v3791
    %vm3793 = vweird.f32 %v3724
    %vm3794 = vweird.f32 %v3788
    %vm3795 = vmor %vm3793, %vm3794
    %v3796 = vsel %vm3795, %v3788, %v3792
    %v3797 = vand.u32 2147483647, %v3724
    %vm3798 = vcmp.eq.f32.partialorder %v3797, 8.507059e+37
    %v3799 = vand.u32 %v3724, 2147483648
    %v3800 = vor.u32 1.1754944e-38, %v3799
    %v3801 = vsel %vm3798, %v3800, %v3796
    %v3802 = vmul.f32 1.0, %v3801
    %v3803 = vrcp.pop %v3725
    %v3804 = vmul.f32 %v3725, %v3803
    %v3805 = vsub.f32 1.0, %v3804
    %v3806 = vmul.f32 %v3803, %v3805
    %v3807 = vadd.f32 %v3803, %v3806
    %vm3808 = vweird.f32 %v3725
    %vm3809 = vweird.f32 %v3803
    %vm3810 = vmor %vm3808, %vm3809
    %v3811 = vsel %vm3810, %v3803, %v3807
    %v3812 = vand.u32 2147483647, %v3725
    %vm3813 = vcmp.eq.f32.partialorder %v3812, 8.507059e+37
    %v3814 = vand.u32 %v3725, 2147483648
    %v3815 = vor.u32 1.1754944e-38, %v3814
    %v3816 = vsel %vm3813, %v3815, %v3811
    %v3817 = vmul.f32 1.0, %v3816
    %v3818 = vrcp.pop %v3726
    %v3819 = vmul.f32 %v3726, %v3818
    %v3820 = vsub.f32 1.0, %v3819
    %v3821 = vmul.f32 %v3818, %v3820
    %v3822 = vadd.f32 %v3818, %v3821
    %vm3823 = vweird.f32 %v3726
    %vm3824 = vweird.f32 %v3818
    %vm3825 = vmor %vm3823, %vm3824
    %v3826 = vsel %vm3825, %v3818, %v3822
    %v3827 = vand.u32 2147483647, %v3726
    %vm3828 = vcmp.eq.f32.partialorder %v3827, 8.507059e+37
    %v3829 = vand.u32 %v3726, 2147483648
    %v3830 = vor.u32 1.1754944e-38, %v3829
    %v3831 = vsel %vm3828, %v3830, %v3826
    %v3832 = vmul.f32 1.0, %v3831
    %v3833 = vrcp.pop %v3727
    %v3834 = vmul.f32 %v3727, %v3833
    %v3835 = vsub.f32 1.0, %v3834
    %v3836 = vmul.f32 %v3833, %v3835
    %v3837 = vadd.f32 %v3833, %v3836
    %vm3838 = vweird.f32 %v3727
    %vm3839 = vweird.f32 %v3833
    %vm3840 = vmor %vm3838, %vm3839
    %v3841 = vsel %vm3840, %v3833, %v3837
    %v3842 = vand.u32 2147483647, %v3727
    %vm3843 = vcmp.eq.f32.partialorder %v3842, 8.507059e+37
    %v3844 = vand.u32 %v3727, 2147483648
    %v3845 = vor.u32 1.1754944e-38, %v3844
    %v3846 = vsel %vm3843, %v3845, %v3841
    %v3847 = vmul.f32 1.0, %v3846
    %v3848 = vtanh.pop %v3514
    %v3849 = vtanh.pop %v3518
    %v3850 = vtanh.pop %v3522
    %v3851 = vtanh.pop %v3526
    %v3852 = vtanh.pop %v3530
    %v3853 = vtanh.pop %v3534
    %v3854 = vtanh.pop %v3538
    %v3855 = vtanh.pop %v3542
    %v3856 = vxor.u32 %v3515, 2147483648
    %v3857 = vxor.u32 %v3519, 2147483648
    %v3858 = vxor.u32 %v3523, 2147483648
    %v3859 = vxor.u32 %v3527, 2147483648
    %v3860 = vxor.u32 %v3531, 2147483648
    %v3861 = vxor.u32 %v3535, 2147483648
    %v3862 = vxor.u32 %v3539, 2147483648
    %v3863 = vxor.u32 %v3543, 2147483648
    %v3864 = vmul.f32 %v3856, 1.442695
    %v3865 = vpow.pop %v3864
    %v3866 = vmul.f32 %v3857, 1.442695
    %v3867 = vpow.pop %v3866
    %v3868 = vmul.f32 %v3858, 1.442695
    %v3869 = vpow.pop %v3868
    %v3870 = vmul.f32 %v3859, 1.442695
    %v3871 = vpow.pop %v3870
    %v3872 = vmul.f32 %v3860, 1.442695
    %v3873 = vpow.pop %v3872
    %v3874 = vmul.f32 %v3861, 1.442695
    %v3875 = vpow.pop %v3874
    %v3876 = vmul.f32 %v3862, 1.442695
    %v3877 = vpow.pop %v3876
    %v3878 = vmul.f32 %v3863, 1.442695
    %v3879 = vpow.pop %v3878
    %v3880 = vadd.f32 %v3865, 1.0
    %v3881 = vadd.f32 %v3867, 1.0
    %v3882 = vadd.f32 %v3869, 1.0
    %v3883 = vadd.f32 %v3871, 1.0
    %v3884 = vadd.f32 %v3873, 1.0
    %v3885 = vadd.f32 %v3875, 1.0
    %v3886 = vadd.f32 %v3877, 1.0
    %v3887 = vadd.f32 %v3879, 1.0
    %v3888 = vrcp.pop %v3880
    %v3889 = vmul.f32 %v3880, %v3888
    %v3890 = vsub.f32 1.0, %v3889
    %v3891 = vmul.f32 %v3888, %v3890
    %v3892 = vadd.f32 %v3888, %v3891
    %vm3893 = vweird.f32 %v3880
    %vm3894 = vweird.f32 %v3888
    %vm3895 = vmor %vm3893, %vm3894
    %v3896 = vsel %vm3895, %v3888, %v3892
    %v3897 = vand.u32 2147483647, %v3880
    %vm3898 = vcmp.eq.f32.partialorder %v3897, 8.507059e+37
    %v3899 = vand.u32 %v3880, 2147483648
    %v3900 = vor.u32 1.1754944e-38, %v3899
    %v3901 = vsel %vm3898, %v3900, %v3896
    %v3902 = vmul.f32 1.0, %v3901
    %v3903 = vrcp.pop %v3881
    %v3904 = vmul.f32 %v3881, %v3903
    %v3905 = vsub.f32 1.0, %v3904
    %v3906 = vmul.f32 %v3903, %v3905
    %v3907 = vadd.f32 %v3903, %v3906
    %vm3908 = vweird.f32 %v3881
    %vm3909 = vweird.f32 %v3903
    %vm3910 = vmor %vm3908, %vm3909
    %v3911 = vsel %vm3910, %v3903, %v3907
    %v3912 = vand.u32 2147483647, %v3881
    %vm3913 = vcmp.eq.f32.partialorder %v3912, 8.507059e+37
    %v3914 = vand.u32 %v3881, 2147483648
    %v3915 = vor.u32 1.1754944e-38, %v3914
    %v3916 = vsel %vm3913, %v3915, %v3911
    %v3917 = vmul.f32 1.0, %v3916
    %v3918 = vrcp.pop %v3882
    %v3919 = vmul.f32 %v3882, %v3918
    %v3920 = vsub.f32 1.0, %v3919
    %v3921 = vmul.f32 %v3918, %v3920
    %v3922 = vadd.f32 %v3918, %v3921
    %vm3923 = vweird.f32 %v3882
    %vm3924 = vweird.f32 %v3918
    %vm3925 = vmor %vm3923, %vm3924
    %v3926 = vsel %vm3925, %v3918, %v3922
    %v3927 = vand.u32 2147483647, %v3882
    %vm3928 = vcmp.eq.f32.partialorder %v3927, 8.507059e+37
    %v3929 = vand.u32 %v3882, 2147483648
    %v3930 = vor.u32 1.1754944e-38, %v3929
    %v3931 = vsel %vm3928, %v3930, %v3926
    %v3932 = vmul.f32 1.0, %v3931
    %v3933 = vrcp.pop %v3883
    %v3934 = vmul.f32 %v3883, %v3933
    %v3935 = vsub.f32 1.0, %v3934
    %v3936 = vmul.f32 %v3933, %v3935
    %v3937 = vadd.f32 %v3933, %v3936
    %vm3938 = vweird.f32 %v3883
    %vm3939 = vweird.f32 %v3933
    %vm3940 = vmor %vm3938, %vm3939
    %v3941 = vsel %vm3940, %v3933, %v3937
    %v3942 = vand.u32 2147483647, %v3883
    %vm3943 = vcmp.eq.f32.partialorder %v3942, 8.507059e+37
    %v3944 = vand.u32 %v3883, 2147483648
    %v3945 = vor.u32 1.1754944e-38, %v3944
    %v3946 = vsel %vm3943, %v3945, %v3941
    %v3947 = vmul.f32 1.0, %v3946
    %v3948 = vrcp.pop %v3884
    %v3949 = vmul.f32 %v3884, %v3948
    %v3950 = vsub.f32 1.0, %v3949
    %v3951 = vmul.f32 %v3948, %v3950
    %v3952 = vadd.f32 %v3948, %v3951
    %vm3953 = vweird.f32 %v3884
    %vm3954 = vweird.f32 %v3948
    %vm3955 = vmor %vm3953, %vm3954
    %v3956 = vsel %vm3955, %v3948, %v3952
    %v3957 = vand.u32 2147483647, %v3884
    %vm3958 = vcmp.eq.f32.partialorder %v3957, 8.507059e+37
    %v3959 = vand.u32 %v3884, 2147483648
    %v3960 = vor.u32 1.1754944e-38, %v3959
    %v3961 = vsel %vm3958, %v3960, %v3956
    %v3962 = vmul.f32 1.0, %v3961
    %v3963 = vrcp.pop %v3885
    %v3964 = vmul.f32 %v3885, %v3963
    %v3965 = vsub.f32 1.0, %v3964
    %v3966 = vmul.f32 %v3963, %v3965
    %v3967 = vadd.f32 %v3963, %v3966
    %vm3968 = vweird.f32 %v3885
    %vm3969 = vweird.f32 %v3963
    %vm3970 = vmor %vm3968, %vm3969
    %v3971 = vsel %vm3970, %v3963, %v3967
    %v3972 = vand.u32 2147483647, %v3885
    %vm3973 = vcmp.eq.f32.partialorder %v3972, 8.507059e+37
    %v3974 = vand.u32 %v3885, 2147483648
    %v3975 = vor.u32 1.1754944e-38, %v3974
    %v3976 = vsel %vm3973, %v3975, %v3971
    %v3977 = vmul.f32 1.0, %v3976
    %v3978 = vrcp.pop %v3886
    %v3979 = vmul.f32 %v3886, %v3978
    %v3980 = vsub.f32 1.0, %v3979
    %v3981 = vmul.f32 %v3978, %v3980
    %v3982 = vadd.f32 %v3978, %v3981
    %vm3983 = vweird.f32 %v3886
    %vm3984 = vweird.f32 %v3978
    %vm3985 = vmor %vm3983, %vm3984
    %v3986 = vsel %vm3985, %v3978, %v3982
    %v3987 = vand.u32 2147483647, %v3886
    %vm3988 = vcmp.eq.f32.partialorder %v3987, 8.507059e+37
    %v3989 = vand.u32 %v3886, 2147483648
    %v3990 = vor.u32 1.1754944e-38, %v3989
    %v3991 = vsel %vm3988, %v3990, %v3986
    %v3992 = vmul.f32 1.0, %v3991
    %v3993 = vrcp.pop %v3887
    %v3994 = vmul.f32 %v3887, %v3993
    %v3995 = vsub.f32 1.0, %v3994
    %v3996 = vmul.f32 %v3993, %v3995
    %v3997 = vadd.f32 %v3993, %v3996
    %vm3998 = vweird.f32 %v3887
    %vm3999 = vweird.f32 %v3993
    %vm4000 = vmor %vm3998, %vm3999
    %v4001 = vsel %vm4000, %v3993, %v3997
    %v4002 = vand.u32 2147483647, %v3887
    %vm4003 = vcmp.eq.f32.partialorder %v4002, 8.507059e+37
    %v4004 = vand.u32 %v3887, 2147483648
    %v4005 = vor.u32 1.1754944e-38, %v4004
    %v4006 = vsel %vm4003, %v4005, %v4001
    %v4007 = vmul.f32 1.0, %v4006
    %v4016 = vrot.slane %v3075, 7
    %v4017 = vrot.slane %v3076, 7
    %v4018 = vrot.slane %v3077, 7
    %v4019 = vrot.slane %v3078, 7
    %v4020 = vrot.slane %v3079, 7
    %v4021 = vrot.slane %v3080, 7
    %v4022 = vrot.slane %v3081, 7
    %v4023 = vrot.slane %v3082, 7
    %v4032 = vmul.f32 %v3742, %v4016
    %v4033 = vmul.f32 %v3757, %v4017
    %v4034 = vmul.f32 %v3772, %v4018
    %v4035 = vmul.f32 %v3787, %v4019
    %v4036 = vmul.f32 %v3802, %v4020
    %v4037 = vmul.f32 %v3817, %v4021
    %v4038 = vmul.f32 %v3832, %v4022
    %v4039 = vmul.f32 %v3847, %v4023
    %v4040 = vmul.f32 %v3590, %v3848
    %v4041 = vmul.f32 %v3605, %v3849
    %v4042 = vmul.f32 %v3620, %v3850
    %v4043 = vmul.f32 %v3635, %v3851
    %v4044 = vmul.f32 %v3650, %v3852
    %v4045 = vmul.f32 %v3665, %v3853
    %v4046 = vmul.f32 %v3680, %v3854
    %v4047 = vmul.f32 %v3695, %v3855
    %v4048 = vadd.f32 %v4032, %v4040
    %v4049 = vadd.f32 %v4033, %v4041
    %v4050 = vadd.f32 %v4034, %v4042
    %v4051 = vadd.f32 %v4035, %v4043
    %v4052 = vadd.f32 %v4036, %v4044
    %v4053 = vadd.f32 %v4037, %v4045
    %v4054 = vadd.f32 %v4038, %v4046
    %v4055 = vadd.f32 %v4039, %v4047
    %v4056 = vtanh.pop %v4048
    %v4057 = vtanh.pop %v4049
    %v4058 = vtanh.pop %v4050
    %v4059 = vtanh.pop %v4051
    %v4060 = vtanh.pop %v4052
    %v4061 = vtanh.pop %v4053
    %v4062 = vtanh.pop %v4054
    %v4063 = vtanh.pop %v4055
    %v4064 = vmul.f32 %v3902, %v4056
    %v4065 = vmul.f32 %v3917, %v4057
    %v4066 = vmul.f32 %v3932, %v4058
    %v4067 = vmul.f32 %v3947, %v4059
    %v4068 = vmul.f32 %v3962, %v4060
    %v4069 = vmul.f32 %v3977, %v4061
    %v4070 = vmul.f32 %v3992, %v4062
    %v4071 = vmul.f32 %v4007, %v4063
    %v4080 = vrot.slane %v4065, 7
    %v4081 = vsel %vm1178, %v4080, %v4064
    %v4082 = vrot.slane %v4066, 6
    %v4083 = vsel %vm1181, %v4082, %v4081
    %v4084 = vrot.slane %v4067, 5
    %v4085 = vsel %vm1184, %v4084, %v4083
    %v4086 = vrot.slane %v4068, 4
    %v4087 = vsel %vm1187, %v4086, %v4085
    %v4088 = vrot.slane %v4069, 3
    %v4089 = vrot.slane %v4070, 2
    %v4090 = vsel %vm1169, %v4089, %v4088
    %v4091 = vrot.slane %v4071, 1
    %v4092 = vsel %vm1172, %v4091, %v4090
    %v4094 = vrot.slane %v3352, 5
    %vm4095 = vcmask 1044480
    %v4096 = vrot.slane %v4087, 3
    %v4097 = vrot.slane %v4092, 3
    %v4098 = vsel %vm4095, %v4096, %v4097
    %v4099 = vrot.slane %v4094, 3
    %v4100 = vsel %vm4095, %v4099, %v4099
    %4103 = vmatpush.msra.mxu0 %v166
    %4104 = vmatpush.msra.mxu0 %v162
    %4105 = vmatpush.msra.mxu0 %v158
    %4106 = vmatpush.msra.mxu0 %v154
    %4107 = vmatpush.msra.mxu0 %v150
    %4108 = vmatpush.msra.mxu0 %v146
    %4109 = vmatpush.msra.mxu0 %v142
    %4110 = vmatpush.msra.mxu0 %v138
    %4111 = vmatpush.msra.mxu0 %v134
    %4112 = vmatpush.msra.mxu0 %v130
    %4113 = vmatpush.msra.mxu0 %v126
    %4114 = vmatpush.msra.mxu0 %v122
    %4115 = vmatpush.msra.mxu0 %v118
    %4116 = vmatpush.msra.mxu0 %v114
    %4117 = vmatpush.msra.mxu0 %v110
    %4118 = vmatpush.msra.mxu0 %v106
    %4119 = vmatmul.f32.gmra.mxu0 %v4098
    %v4120 = vpop.f32.mrf.mxu0
    %v4121 = vadd.f32 %v1191, %v4120
    %4122 = vdwg.mxu0
    %4123 = vmatpush.msra.mxu0 %v230
    %4124 = vmatpush.msra.mxu0 %v226
    %4125 = vmatpush.msra.mxu0 %v222
    %4126 = vmatpush.msra.mxu0 %v218
    %4127 = vmatpush.msra.mxu0 %v214
    %4128 = vmatpush.msra.mxu0 %v210
    %4129 = vmatpush.msra.mxu0 %v206
    %4130 = vmatpush.msra.mxu0 %v202
    %4131 = vmatpush.msra.mxu0 %v198
    %4132 = vmatpush.msra.mxu0 %v194
    %4133 = vmatpush.msra.mxu0 %v190
    %4134 = vmatpush.msra.mxu0 %v186
    %4135 = vmatpush.msra.mxu0 %v182
    %4136 = vmatpush.msra.mxu0 %v178
    %4137 = vmatpush.msra.mxu0 %v174
    %4138 = vmatpush.msra.mxu0 %v170
    %4139 = vmatmul.f32.gmra.mxu0 %v4100
    %v4140 = vpop.f32.mrf.mxu0
    %v4141 = vadd.f32 %v4121, %v4140
    %4142 = vdwg.mxu0
    %4143 = vmatpush.msra.mxu0 %v167
    %4144 = vmatpush.msra.mxu0 %v163
    %4145 = vmatpush.msra.mxu0 %v159
    %4146 = vmatpush.msra.mxu0 %v155
    %4147 = vmatpush.msra.mxu0 %v151
    %4148 = vmatpush.msra.mxu0 %v147
    %4149 = vmatpush.msra.mxu0 %v143
    %4150 = vmatpush.msra.mxu0 %v139
    %4151 = vmatpush.msra.mxu0 %v135
    %4152 = vmatpush.msra.mxu0 %v131
    %4153 = vmatpush.msra.mxu0 %v127
    %4154 = vmatpush.msra.mxu0 %v123
    %4155 = vmatpush.msra.mxu0 %v119
    %4156 = vmatpush.msra.mxu0 %v115
    %4157 = vmatpush.msra.mxu0 %v111
    %4158 = vmatpush.msra.mxu0 %v107
    %4159 = vmatmul.f32.gmra.mxu0 %v4098
    %v4160 = vpop.f32.mrf.mxu0
    %v4161 = vadd.f32 %v1192, %v4160
    %4162 = vdwg.mxu0
    %4163 = vmatpush.msra.mxu0 %v231
    %4164 = vmatpush.msra.mxu0 %v227
    %4165 = vmatpush.msra.mxu0 %v223
    %4166 = vmatpush.msra.mxu0 %v219
    %4167 = vmatpush.msra.mxu0 %v215
    %4168 = vmatpush.msra.mxu0 %v211
    %4169 = vmatpush.msra.mxu0 %v207
    %4170 = vmatpush.msra.mxu0 %v203
    %4171 = vmatpush.msra.mxu0 %v199
    %4172 = vmatpush.msra.mxu0 %v195
    %4173 = vmatpush.msra.mxu0 %v191
    %4174 = vmatpush.msra.mxu0 %v187
    %4175 = vmatpush.msra.mxu0 %v183
    %4176 = vmatpush.msra.mxu0 %v179
    %4177 = vmatpush.msra.mxu0 %v175
    %4178 = vmatpush.msra.mxu0 %v171
    %4179 = vmatmul.f32.gmra.mxu0 %v4100
    %v4180 = vpop.f32.mrf.mxu0
    %v4181 = vadd.f32 %v4161, %v4180
    %4182 = vdwg.mxu0
    %4183 = vmatpush.msra.mxu0 %v168
    %4184 = vmatpush.msra.mxu0 %v164
    %4185 = vmatpush.msra.mxu0 %v160
    %4186 = vmatpush.msra.mxu0 %v156
    %4187 = vmatpush.msra.mxu0 %v152
    %4188 = vmatpush.msra.mxu0 %v148
    %4189 = vmatpush.msra.mxu0 %v144
    %4190 = vmatpush.msra.mxu0 %v140
    %4191 = vmatpush.msra.mxu0 %v136
    %4192 = vmatpush.msra.mxu0 %v132
    %4193 = vmatpush.msra.mxu0 %v128
    %4194 = vmatpush.msra.mxu0 %v124
    %4195 = vmatpush.msra.mxu0 %v120
    %4196 = vmatpush.msra.mxu0 %v116
    %4197 = vmatpush.msra.mxu0 %v112
    %4198 = vmatpush.msra.mxu0 %v108
    %4199 = vmatmul.f32.gmra.mxu0 %v4098
    %v4200 = vpop.f32.mrf.mxu0
    %v4201 = vadd.f32 %v1193, %v4200
    %4202 = vdwg.mxu0
    %4203 = vmatpush.msra.mxu0 %v232
    %4204 = vmatpush.msra.mxu0 %v228
    %4205 = vmatpush.msra.mxu0 %v224
    %4206 = vmatpush.msra.mxu0 %v220
    %4207 = vmatpush.msra.mxu0 %v216
    %4208 = vmatpush.msra.mxu0 %v212
    %4209 = vmatpush.msra.mxu0 %v208
    %4210 = vmatpush.msra.mxu0 %v204
    %4211 = vmatpush.msra.mxu0 %v200
    %4212 = vmatpush.msra.mxu0 %v196
    %4213 = vmatpush.msra.mxu0 %v192
    %4214 = vmatpush.msra.mxu0 %v188
    %4215 = vmatpush.msra.mxu0 %v184
    %4216 = vmatpush.msra.mxu0 %v180
    %4217 = vmatpush.msra.mxu0 %v176
    %4218 = vmatpush.msra.mxu0 %v172
    %4219 = vmatmul.f32.gmra.mxu0 %v4100
    %v4220 = vpop.f32.mrf.mxu0
    %v4221 = vadd.f32 %v4201, %v4220
    %4222 = vdwg.mxu0
    %4223 = vmatpush.msra.mxu0 %v169
    %4224 = vmatpush.msra.mxu0 %v165
    %4225 = vmatpush.msra.mxu0 %v161
    %4226 = vmatpush.msra.mxu0 %v157
    %4227 = vmatpush.msra.mxu0 %v153
    %4228 = vmatpush.msra.mxu0 %v149
    %4229 = vmatpush.msra.mxu0 %v145
    %4230 = vmatpush.msra.mxu0 %v141
    %4231 = vmatpush.msra.mxu0 %v137
    %4232 = vmatpush.msra.mxu0 %v133
    %4233 = vmatpush.msra.mxu0 %v129
    %4234 = vmatpush.msra.mxu0 %v125
    %4235 = vmatpush.msra.mxu0 %v121
    %4236 = vmatpush.msra.mxu0 %v117
    %4237 = vmatpush.msra.mxu0 %v113
    %4238 = vmatpush.msra.mxu0 %v109
    %4239 = vmatmul.f32.gmra.mxu0 %v4098
    %v4240 = vpop.f32.mrf.mxu0
    %v4241 = vadd.f32 %v1194, %v4240
    %4242 = vdwg.mxu0
    %4243 = vmatpush.msra.mxu0 %v233
    %4244 = vmatpush.msra.mxu0 %v229
    %4245 = vmatpush.msra.mxu0 %v225
    %4246 = vmatpush.msra.mxu0 %v221
    %4247 = vmatpush.msra.mxu0 %v217
    %4248 = vmatpush.msra.mxu0 %v213
    %4249 = vmatpush.msra.mxu0 %v209
    %4250 = vmatpush.msra.mxu0 %v205
    %4251 = vmatpush.msra.mxu0 %v201
    %4252 = vmatpush.msra.mxu0 %v197
    %4253 = vmatpush.msra.mxu0 %v193
    %4254 = vmatpush.msra.mxu0 %v189
    %4255 = vmatpush.msra.mxu0 %v185
    %4256 = vmatpush.msra.mxu0 %v181
    %4257 = vmatpush.msra.mxu0 %v177
    %4258 = vmatpush.msra.mxu0 %v173
    %4259 = vmatmul.f32.gmra.mxu0 %v4100
    %v4260 = vpop.f32.mrf.mxu0
    %v4261 = vadd.f32 %v4241, %v4260
    %4262 = vdwg.mxu0
    %v4263 = vxor.u32 %v4141, 2147483648
    %v4264 = vmul.f32 %v4263, 1.442695
    %v4265 = vpow.pop %v4264
    %v4266 = vadd.f32 %v4265, 1.0
    %v4267 = vrcp.pop %v4266
    %v4268 = vmul.f32 %v4266, %v4267
    %v4269 = vsub.f32 1.0, %v4268
    %v4270 = vmul.f32 %v4267, %v4269
    %v4271 = vadd.f32 %v4267, %v4270
    %vm4272 = vweird.f32 %v4266
    %vm4273 = vweird.f32 %v4267
    %vm4274 = vmor %vm4272, %vm4273
    %v4275 = vsel %vm4274, %v4267, %v4271
    %v4276 = vand.u32 2147483647, %v4266
    %vm4277 = vcmp.eq.f32.partialorder %v4276, 8.507059e+37
    %v4278 = vand.u32 %v4266, 2147483648
    %v4279 = vor.u32 1.1754944e-38, %v4278
    %v4280 = vsel %vm4277, %v4279, %v4275
    %v4281 = vmul.f32 1.0, %v4280
    %v4282 = vxor.u32 %v4181, 2147483648
    %v4283 = vmul.f32 %v4282, 1.442695
    %v4284 = vpow.pop %v4283
    %v4285 = vadd.f32 %v4284, 1.0
    %v4286 = vrcp.pop %v4285
    %v4287 = vmul.f32 %v4285, %v4286
    %v4288 = vsub.f32 1.0, %v4287
    %v4289 = vmul.f32 %v4286, %v4288
    %v4290 = vadd.f32 %v4286, %v4289
    %vm4291 = vweird.f32 %v4285
    %vm4292 = vweird.f32 %v4286
    %vm4293 = vmor %vm4291, %vm4292
    %v4294 = vsel %vm4293, %v4286, %v4290
    %v4295 = vand.u32 2147483647, %v4285
    %vm4296 = vcmp.eq.f32.partialorder %v4295, 8.507059e+37
    %v4297 = vand.u32 %v4285, 2147483648
    %v4298 = vor.u32 1.1754944e-38, %v4297
    %v4299 = vsel %vm4296, %v4298, %v4294
    %v4300 = vmul.f32 1.0, %v4299
    %v4301 = vtanh.pop %v4221
    %v4302 = vxor.u32 %v4261, 2147483648
    %v4303 = vmul.f32 %v4302, 1.442695
    %v4304 = vpow.pop %v4303
    %v4305 = vadd.f32 %v4304, 1.0
    %v4306 = vrcp.pop %v4305
    %v4307 = vmul.f32 %v4305, %v4306
    %v4308 = vsub.f32 1.0, %v4307
    %v4309 = vmul.f32 %v4306, %v4308
    %v4310 = vadd.f32 %v4306, %v4309
    %vm4311 = vweird.f32 %v4305
    %vm4312 = vweird.f32 %v4306
    %vm4313 = vmor %vm4311, %vm4312
    %v4314 = vsel %vm4313, %v4306, %v4310
    %v4315 = vand.u32 2147483647, %v4305
    %vm4316 = vcmp.eq.f32.partialorder %v4315, 8.507059e+37
    %v4317 = vand.u32 %v4305, 2147483648
    %v4318 = vor.u32 1.1754944e-38, %v4317
    %v4319 = vsel %vm4316, %v4318, %v4314
    %v4320 = vmul.f32 1.0, %v4319
    %v4321 = vmul.f32 %v4300, %v3350
    %v4322 = vmul.f32 %v4281, %v4301
    %v4323 = vadd.f32 %v4321, %v4322
    %v4324 = vtanh.pop %v4323
    %v4325 = vmul.f32 %v4320, %v4324
    %v4326 = vrot.slane %v4064, 3
    %v4327 = vrot.slane %v4065, 2
    %v4328 = vsel %vm1169, %v4327, %v4326
    %v4329 = vrot.slane %v4066, 1
    %v4330 = vsel %vm1172, %v4329, %v4328
    %v4331 = vsel %vm1175, %v4067, %v4330
    %v4332 = vrot.slane %v4068, 7
    %v4333 = vsel %vm1178, %v4332, %v4331
    %v4334 = vrot.slane %v4069, 6
    %v4335 = vsel %vm1181, %v4334, %v4333
    %v4336 = vrot.slane %v4070, 5
    %v4337 = vsel %vm1184, %v4336, %v4335
    %v4338 = vrot.slane %v4071, 4
    %v4339 = vsel %vm1187, %v4338, %v4337
    %4341 = vmatpush.msra.mxu0 %v102
    %4342 = vmatpush.msra.mxu0 %v98
    %4343 = vmatpush.msra.mxu0 %v94
    %4344 = vmatpush.msra.mxu0 %v90
    %4345 = vmatpush.msra.mxu0 %v86
    %4346 = vmatpush.msra.mxu0 %v82
    %4347 = vmatpush.msra.mxu0 %v78
    %4348 = vmatpush.msra.mxu0 %v74
    %4349 = vmatpush.msra.mxu0 %v70
    %4350 = vmatpush.msra.mxu0 %v66
    %4351 = vmatpush.msra.mxu0 %v62
    %4352 = vmatpush.msra.mxu0 %v58
    %4353 = vmatpush.msra.mxu0 %v54
    %4354 = vmatpush.msra.mxu0 %v50
    %4355 = vmatpush.msra.mxu0 %v46
    %4356 = vmatpush.msra.mxu0 %v42
    %4357 = vmatmul.f32.gmra.mxu0 %v4339
    %v4358 = vpop.f32.mrf.mxu0
    %v4359 = vadd.f32 0.0, %v4358
    %4360 = vdwg.mxu0
    %4361 = vmatpush.msra.mxu0 %v103
    %4362 = vmatpush.msra.mxu0 %v99
    %4363 = vmatpush.msra.mxu0 %v95
    %4364 = vmatpush.msra.mxu0 %v91
    %4365 = vmatpush.msra.mxu0 %v87
    %4366 = vmatpush.msra.mxu0 %v83
    %4367 = vmatpush.msra.mxu0 %v79
    %4368 = vmatpush.msra.mxu0 %v75
    %4369 = vmatpush.msra.mxu0 %v71
    %4370 = vmatpush.msra.mxu0 %v67
    %4371 = vmatpush.msra.mxu0 %v63
    %4372 = vmatpush.msra.mxu0 %v59
    %4373 = vmatpush.msra.mxu0 %v55
    %4374 = vmatpush.msra.mxu0 %v51
    %4375 = vmatpush.msra.mxu0 %v47
    %4376 = vmatpush.msra.mxu0 %v43
    %4377 = vmatmul.f32.gmra.mxu0 %v4339
    %v4378 = vpop.f32.mrf.mxu0
    %v4379 = vadd.f32 0.0, %v4378
    %4380 = vdwg.mxu0
    %4381 = vmatpush.msra.mxu0 %v104
    %4382 = vmatpush.msra.mxu0 %v100
    %4383 = vmatpush.msra.mxu0 %v96
    %4384 = vmatpush.msra.mxu0 %v92
    %4385 = vmatpush.msra.mxu0 %v88
    %4386 = vmatpush.msra.mxu0 %v84
    %4387 = vmatpush.msra.mxu0 %v80
    %4388 = vmatpush.msra.mxu0 %v76
    %4389 = vmatpush.msra.mxu0 %v72
    %4390 = vmatpush.msra.mxu0 %v68
    %4391 = vmatpush.msra.mxu0 %v64
    %4392 = vmatpush.msra.mxu0 %v60
    %4393 = vmatpush.msra.mxu0 %v56
    %4394 = vmatpush.msra.mxu0 %v52
    %4395 = vmatpush.msra.mxu0 %v48
    %4396 = vmatpush.msra.mxu0 %v44
    %4397 = vmatmul.f32.gmra.mxu0 %v4339
    %v4398 = vpop.f32.mrf.mxu0
    %v4399 = vadd.f32 0.0, %v4398
    %4400 = vdwg.mxu0
    %4401 = vmatpush.msra.mxu0 %v105
    %4402 = vmatpush.msra.mxu0 %v101
    %4403 = vmatpush.msra.mxu0 %v97
    %4404 = vmatpush.msra.mxu0 %v93
    %4405 = vmatpush.msra.mxu0 %v89
    %4406 = vmatpush.msra.mxu0 %v85
    %4407 = vmatpush.msra.mxu0 %v81
    %4408 = vmatpush.msra.mxu0 %v77
    %4409 = vmatpush.msra.mxu0 %v73
    %4410 = vmatpush.msra.mxu0 %v69
    %4411 = vmatpush.msra.mxu0 %v65
    %4412 = vmatpush.msra.mxu0 %v61
    %4413 = vmatpush.msra.mxu0 %v57
    %4414 = vmatpush.msra.mxu0 %v53
    %4415 = vmatpush.msra.mxu0 %v49
    %4416 = vmatpush.msra.mxu0 %v45
    %4417 = vmatmul.f32.gmra.mxu0 %v4339
    %v4418 = vpop.f32.mrf.mxu0
    %v4419 = vadd.f32 0.0, %v4418
    %4420 = vdwg.mxu0
    %v4425 = vrot.slane %v4359, 4
    %v4426 = vrot.slane %v4379, 4
    %v4427 = vrot.slane %v4399, 4
    %v4428 = vrot.slane %v4419, 4
    %v4429 = vrot.slane %v4359, 5
    %v4430 = vrot.slane %v4379, 5
    %v4431 = vrot.slane %v4399, 5
    %v4432 = vrot.slane %v4419, 5
    %v4433 = vrot.slane %v4359, 6
    %v4434 = vrot.slane %v4379, 6
    %v4435 = vrot.slane %v4399, 6
    %v4436 = vrot.slane %v4419, 6
    %v4437 = vrot.slane %v4359, 7
    %v4438 = vrot.slane %v4379, 7
    %v4439 = vrot.slane %v4399, 7
    %v4440 = vrot.slane %v4419, 7
    %v4441 = vrot.slane %v4359, 1
    %v4442 = vrot.slane %v4379, 1
    %v4443 = vrot.slane %v4399, 1
    %v4444 = vrot.slane %v4419, 1
    %v4445 = vrot.slane %v4359, 2
    %v4446 = vrot.slane %v4379, 2
    %v4447 = vrot.slane %v4399, 2
    %v4448 = vrot.slane %v4419, 2
    %v4449 = vrot.slane %v4359, 3
    %v4450 = vrot.slane %v4379, 3
    %v4451 = vrot.slane %v4399, 3
    %v4452 = vrot.slane %v4419, 3
    %v4485 = vadd.f32 %v312, %v4425
    %v4486 = vadd.f32 %v353, %v4426
    %v4487 = vadd.f32 %v394, %v4427
    %v4488 = vadd.f32 %v435, %v4428
    %v4489 = vadd.f32 %v315, %v4429
    %v4490 = vadd.f32 %v356, %v4430
    %v4491 = vadd.f32 %v397, %v4431
    %v4492 = vadd.f32 %v438, %v4432
    %v4493 = vadd.f32 %v318, %v4433
    %v4494 = vadd.f32 %v359, %v4434
    %v4495 = vadd.f32 %v400, %v4435
    %v4496 = vadd.f32 %v441, %v4436
    %v4497 = vadd.f32 %v321, %v4437
    %v4498 = vadd.f32 %v362, %v4438
    %v4499 = vadd.f32 %v403, %v4439
    %v4500 = vadd.f32 %v444, %v4440
    %v4501 = vadd.f32 %v324, %v4359
    %v4502 = vadd.f32 %v365, %v4379
    %v4503 = vadd.f32 %v406, %v4399
    %v4504 = vadd.f32 %v447, %v4419
    %v4505 = vadd.f32 %v327, %v4441
    %v4506 = vadd.f32 %v368, %v4442
    %v4507 = vadd.f32 %v409, %v4443
    %v4508 = vadd.f32 %v450, %v4444
    %v4509 = vadd.f32 %v330, %v4445
    %v4510 = vadd.f32 %v371, %v4446
    %v4511 = vadd.f32 %v412, %v4447
    %v4512 = vadd.f32 %v453, %v4448
    %v4513 = vadd.f32 %v333, %v4449
    %v4514 = vadd.f32 %v374, %v4450
    %v4515 = vadd.f32 %v415, %v4451
    %v4516 = vadd.f32 %v456, %v4452
    %v4517 = vxor.u32 %v4485, 2147483648
    %v4518 = vxor.u32 %v4489, 2147483648
    %v4519 = vxor.u32 %v4493, 2147483648
    %v4520 = vxor.u32 %v4497, 2147483648
    %v4521 = vxor.u32 %v4501, 2147483648
    %v4522 = vxor.u32 %v4505, 2147483648
    %v4523 = vxor.u32 %v4509, 2147483648
    %v4524 = vxor.u32 %v4513, 2147483648
    %v4525 = vmul.f32 %v4517, 1.442695
    %v4526 = vpow.pop %v4525
    %v4527 = vmul.f32 %v4518, 1.442695
    %v4528 = vpow.pop %v4527
    %v4529 = vmul.f32 %v4519, 1.442695
    %v4530 = vpow.pop %v4529
    %v4531 = vmul.f32 %v4520, 1.442695
    %v4532 = vpow.pop %v4531
    %v4533 = vmul.f32 %v4521, 1.442695
    %v4534 = vpow.pop %v4533
    %v4535 = vmul.f32 %v4522, 1.442695
    %v4536 = vpow.pop %v4535
    %v4537 = vmul.f32 %v4523, 1.442695
    %v4538 = vpow.pop %v4537
    %v4539 = vmul.f32 %v4524, 1.442695
    %v4540 = vpow.pop %v4539
    %v4541 = vadd.f32 %v4526, 1.0
    %v4542 = vadd.f32 %v4528, 1.0
    %v4543 = vadd.f32 %v4530, 1.0
    %v4544 = vadd.f32 %v4532, 1.0
    %v4545 = vadd.f32 %v4534, 1.0
    %v4546 = vadd.f32 %v4536, 1.0
    %v4547 = vadd.f32 %v4538, 1.0
    %v4548 = vadd.f32 %v4540, 1.0
    %v4549 = vrcp.pop %v4541
    %v4550 = vmul.f32 %v4541, %v4549
    %v4551 = vsub.f32 1.0, %v4550
    %v4552 = vmul.f32 %v4549, %v4551
    %v4553 = vadd.f32 %v4549, %v4552
    %vm4554 = vweird.f32 %v4541
    %vm4555 = vweird.f32 %v4549
    %vm4556 = vmor %vm4554, %vm4555
    %v4557 = vsel %vm4556, %v4549, %v4553
    %v4558 = vand.u32 2147483647, %v4541
    %vm4559 = vcmp.eq.f32.partialorder %v4558, 8.507059e+37
    %v4560 = vand.u32 %v4541, 2147483648
    %v4561 = vor.u32 1.1754944e-38, %v4560
    %v4562 = vsel %vm4559, %v4561, %v4557
    %v4563 = vmul.f32 1.0, %v4562
    %v4564 = vrcp.pop %v4542
    %v4565 = vmul.f32 %v4542, %v4564
    %v4566 = vsub.f32 1.0, %v4565
    %v4567 = vmul.f32 %v4564, %v4566
    %v4568 = vadd.f32 %v4564, %v4567
    %vm4569 = vweird.f32 %v4542
    %vm4570 = vweird.f32 %v4564
    %vm4571 = vmor %vm4569, %vm4570
    %v4572 = vsel %vm4571, %v4564, %v4568
    %v4573 = vand.u32 2147483647, %v4542
    %vm4574 = vcmp.eq.f32.partialorder %v4573, 8.507059e+37
    %v4575 = vand.u32 %v4542, 2147483648
    %v4576 = vor.u32 1.1754944e-38, %v4575
    %v4577 = vsel %vm4574, %v4576, %v4572
    %v4578 = vmul.f32 1.0, %v4577
    %v4579 = vrcp.pop %v4543
    %v4580 = vmul.f32 %v4543, %v4579
    %v4581 = vsub.f32 1.0, %v4580
    %v4582 = vmul.f32 %v4579, %v4581
    %v4583 = vadd.f32 %v4579, %v4582
    %vm4584 = vweird.f32 %v4543
    %vm4585 = vweird.f32 %v4579
    %vm4586 = vmor %vm4584, %vm4585
    %v4587 = vsel %vm4586, %v4579, %v4583
    %v4588 = vand.u32 2147483647, %v4543
    %vm4589 = vcmp.eq.f32.partialorder %v4588, 8.507059e+37
    %v4590 = vand.u32 %v4543, 2147483648
    %v4591 = vor.u32 1.1754944e-38, %v4590
    %v4592 = vsel %vm4589, %v4591, %v4587
    %v4593 = vmul.f32 1.0, %v4592
    %v4594 = vrcp.pop %v4544
    %v4595 = vmul.f32 %v4544, %v4594
    %v4596 = vsub.f32 1.0, %v4595
    %v4597 = vmul.f32 %v4594, %v4596
    %v4598 = vadd.f32 %v4594, %v4597
    %vm4599 = vweird.f32 %v4544
    %vm4600 = vweird.f32 %v4594
    %vm4601 = vmor %vm4599, %vm4600
    %v4602 = vsel %vm4601, %v4594, %v4598
    %v4603 = vand.u32 2147483647, %v4544
    %vm4604 = vcmp.eq.f32.partialorder %v4603, 8.507059e+37
    %v4605 = vand.u32 %v4544, 2147483648
    %v4606 = vor.u32 1.1754944e-38, %v4605
    %v4607 = vsel %vm4604, %v4606, %v4602
    %v4608 = vmul.f32 1.0, %v4607
    %v4609 = vrcp.pop %v4545
    %v4610 = vmul.f32 %v4545, %v4609
    %v4611 = vsub.f32 1.0, %v4610
    %v4612 = vmul.f32 %v4609, %v4611
    %v4613 = vadd.f32 %v4609, %v4612
    %vm4614 = vweird.f32 %v4545
    %vm4615 = vweird.f32 %v4609
    %vm4616 = vmor %vm4614, %vm4615
    %v4617 = vsel %vm4616, %v4609, %v4613
    %v4618 = vand.u32 2147483647, %v4545
    %vm4619 = vcmp.eq.f32.partialorder %v4618, 8.507059e+37
    %v4620 = vand.u32 %v4545, 2147483648
    %v4621 = vor.u32 1.1754944e-38, %v4620
    %v4622 = vsel %vm4619, %v4621, %v4617
    %v4623 = vmul.f32 1.0, %v4622
    %v4624 = vrcp.pop %v4546
    %v4625 = vmul.f32 %v4546, %v4624
    %v4626 = vsub.f32 1.0, %v4625
    %v4627 = vmul.f32 %v4624, %v4626
    %v4628 = vadd.f32 %v4624, %v4627
    %vm4629 = vweird.f32 %v4546
    %vm4630 = vweird.f32 %v4624
    %vm4631 = vmor %vm4629, %vm4630
    %v4632 = vsel %vm4631, %v4624, %v4628
    %v4633 = vand.u32 2147483647, %v4546
    %vm4634 = vcmp.eq.f32.partialorder %v4633, 8.507059e+37
    %v4635 = vand.u32 %v4546, 2147483648
    %v4636 = vor.u32 1.1754944e-38, %v4635
    %v4637 = vsel %vm4634, %v4636, %v4632
    %v4638 = vmul.f32 1.0, %v4637
    %v4639 = vrcp.pop %v4547
    %v4640 = vmul.f32 %v4547, %v4639
    %v4641 = vsub.f32 1.0, %v4640
    %v4642 = vmul.f32 %v4639, %v4641
    %v4643 = vadd.f32 %v4639, %v4642
    %vm4644 = vweird.f32 %v4547
    %vm4645 = vweird.f32 %v4639
    %vm4646 = vmor %vm4644, %vm4645
    %v4647 = vsel %vm4646, %v4639, %v4643
    %v4648 = vand.u32 2147483647, %v4547
    %vm4649 = vcmp.eq.f32.partialorder %v4648, 8.507059e+37
    %v4650 = vand.u32 %v4547, 2147483648
    %v4651 = vor.u32 1.1754944e-38, %v4650
    %v4652 = vsel %vm4649, %v4651, %v4647
    %v4653 = vmul.f32 1.0, %v4652
    %v4654 = vrcp.pop %v4548
    %v4655 = vmul.f32 %v4548, %v4654
    %v4656 = vsub.f32 1.0, %v4655
    %v4657 = vmul.f32 %v4654, %v4656
    %v4658 = vadd.f32 %v4654, %v4657
    %vm4659 = vweird.f32 %v4548
    %vm4660 = vweird.f32 %v4654
    %vm4661 = vmor %vm4659, %vm4660
    %v4662 = vsel %vm4661, %v4654, %v4658
    %v4663 = vand.u32 2147483647, %v4548
    %vm4664 = vcmp.eq.f32.partialorder %v4663, 8.507059e+37
    %v4665 = vand.u32 %v4548, 2147483648
    %v4666 = vor.u32 1.1754944e-38, %v4665
    %v4667 = vsel %vm4664, %v4666, %v4662
    %v4668 = vmul.f32 1.0, %v4667
    %v4669 = vxor.u32 %v4486, 2147483648
    %v4670 = vxor.u32 %v4490, 2147483648
    %v4671 = vxor.u32 %v4494, 2147483648
    %v4672 = vxor.u32 %v4498, 2147483648
    %v4673 = vxor.u32 %v4502, 2147483648
    %v4674 = vxor.u32 %v4506, 2147483648
    %v4675 = vxor.u32 %v4510, 2147483648
    %v4676 = vxor.u32 %v4514, 2147483648
    %v4677 = vmul.f32 %v4669, 1.442695
    %v4678 = vpow.pop %v4677
    %v4679 = vmul.f32 %v4670, 1.442695
    %v4680 = vpow.pop %v4679
    %v4681 = vmul.f32 %v4671, 1.442695
    %v4682 = vpow.pop %v4681
    %v4683 = vmul.f32 %v4672, 1.442695
    %v4684 = vpow.pop %v4683
    %v4685 = vmul.f32 %v4673, 1.442695
    %v4686 = vpow.pop %v4685
    %v4687 = vmul.f32 %v4674, 1.442695
    %v4688 = vpow.pop %v4687
    %v4689 = vmul.f32 %v4675, 1.442695
    %v4690 = vpow.pop %v4689
    %v4691 = vmul.f32 %v4676, 1.442695
    %v4692 = vpow.pop %v4691
    %v4693 = vadd.f32 %v4678, 1.0
    %v4694 = vadd.f32 %v4680, 1.0
    %v4695 = vadd.f32 %v4682, 1.0
    %v4696 = vadd.f32 %v4684, 1.0
    %v4697 = vadd.f32 %v4686, 1.0
    %v4698 = vadd.f32 %v4688, 1.0
    %v4699 = vadd.f32 %v4690, 1.0
    %v4700 = vadd.f32 %v4692, 1.0
    %v4701 = vrcp.pop %v4693
    %v4702 = vmul.f32 %v4693, %v4701
    %v4703 = vsub.f32 1.0, %v4702
    %v4704 = vmul.f32 %v4701, %v4703
    %v4705 = vadd.f32 %v4701, %v4704
    %vm4706 = vweird.f32 %v4693
    %vm4707 = vweird.f32 %v4701
    %vm4708 = vmor %vm4706, %vm4707
    %v4709 = vsel %vm4708, %v4701, %v4705
    %v4710 = vand.u32 2147483647, %v4693
    %vm4711 = vcmp.eq.f32.partialorder %v4710, 8.507059e+37
    %v4712 = vand.u32 %v4693, 2147483648
    %v4713 = vor.u32 1.1754944e-38, %v4712
    %v4714 = vsel %vm4711, %v4713, %v4709
    %v4715 = vmul.f32 1.0, %v4714
    %v4716 = vrcp.pop %v4694
    %v4717 = vmul.f32 %v4694, %v4716
    %v4718 = vsub.f32 1.0, %v4717
    %v4719 = vmul.f32 %v4716, %v4718
    %v4720 = vadd.f32 %v4716, %v4719
    %vm4721 = vweird.f32 %v4694
    %vm4722 = vweird.f32 %v4716
    %vm4723 = vmor %vm4721, %vm4722
    %v4724 = vsel %vm4723, %v4716, %v4720
    %v4725 = vand.u32 2147483647, %v4694
    %vm4726 = vcmp.eq.f32.partialorder %v4725, 8.507059e+37
    %v4727 = vand.u32 %v4694, 2147483648
    %v4728 = vor.u32 1.1754944e-38, %v4727
    %v4729 = vsel %vm4726, %v4728, %v4724
    %v4730 = vmul.f32 1.0, %v4729
    %v4731 = vrcp.pop %v4695
    %v4732 = vmul.f32 %v4695, %v4731
    %v4733 = vsub.f32 1.0, %v4732
    %v4734 = vmul.f32 %v4731, %v4733
    %v4735 = vadd.f32 %v4731, %v4734
    %vm4736 = vweird.f32 %v4695
    %vm4737 = vweird.f32 %v4731
    %vm4738 = vmor %vm4736, %vm4737
    %v4739 = vsel %vm4738, %v4731, %v4735
    %v4740 = vand.u32 2147483647, %v4695
    %vm4741 = vcmp.eq.f32.partialorder %v4740, 8.507059e+37
    %v4742 = vand.u32 %v4695, 2147483648
    %v4743 = vor.u32 1.1754944e-38, %v4742
    %v4744 = vsel %vm4741, %v4743, %v4739
    %v4745 = vmul.f32 1.0, %v4744
    %v4746 = vrcp.pop %v4696
    %v4747 = vmul.f32 %v4696, %v4746
    %v4748 = vsub.f32 1.0, %v4747
    %v4749 = vmul.f32 %v4746, %v4748
    %v4750 = vadd.f32 %v4746, %v4749
    %vm4751 = vweird.f32 %v4696
    %vm4752 = vweird.f32 %v4746
    %vm4753 = vmor %vm4751, %vm4752
    %v4754 = vsel %vm4753, %v4746, %v4750
    %v4755 = vand.u32 2147483647, %v4696
    %vm4756 = vcmp.eq.f32.partialorder %v4755, 8.507059e+37
    %v4757 = vand.u32 %v4696, 2147483648
    %v4758 = vor.u32 1.1754944e-38, %v4757
    %v4759 = vsel %vm4756, %v4758, %v4754
    %v4760 = vmul.f32 1.0, %v4759
    %v4761 = vrcp.pop %v4697
    %v4762 = vmul.f32 %v4697, %v4761
    %v4763 = vsub.f32 1.0, %v4762
    %v4764 = vmul.f32 %v4761, %v4763
    %v4765 = vadd.f32 %v4761, %v4764
    %vm4766 = vweird.f32 %v4697
    %vm4767 = vweird.f32 %v4761
    %vm4768 = vmor %vm4766, %vm4767
    %v4769 = vsel %vm4768, %v4761, %v4765
    %v4770 = vand.u32 2147483647, %v4697
    %vm4771 = vcmp.eq.f32.partialorder %v4770, 8.507059e+37
    %v4772 = vand.u32 %v4697, 2147483648
    %v4773 = vor.u32 1.1754944e-38, %v4772
    %v4774 = vsel %vm4771, %v4773, %v4769
    %v4775 = vmul.f32 1.0, %v4774
    %v4776 = vrcp.pop %v4698
    %v4777 = vmul.f32 %v4698, %v4776
    %v4778 = vsub.f32 1.0, %v4777
    %v4779 = vmul.f32 %v4776, %v4778
    %v4780 = vadd.f32 %v4776, %v4779
    %vm4781 = vweird.f32 %v4698
    %vm4782 = vweird.f32 %v4776
    %vm4783 = vmor %vm4781, %vm4782
    %v4784 = vsel %vm4783, %v4776, %v4780
    %v4785 = vand.u32 2147483647, %v4698
    %vm4786 = vcmp.eq.f32.partialorder %v4785, 8.507059e+37
    %v4787 = vand.u32 %v4698, 2147483648
    %v4788 = vor.u32 1.1754944e-38, %v4787
    %v4789 = vsel %vm4786, %v4788, %v4784
    %v4790 = vmul.f32 1.0, %v4789
    %v4791 = vrcp.pop %v4699
    %v4792 = vmul.f32 %v4699, %v4791
    %v4793 = vsub.f32 1.0, %v4792
    %v4794 = vmul.f32 %v4791, %v4793
    %v4795 = vadd.f32 %v4791, %v4794
    %vm4796 = vweird.f32 %v4699
    %vm4797 = vweird.f32 %v4791
    %vm4798 = vmor %vm4796, %vm4797
    %v4799 = vsel %vm4798, %v4791, %v4795
    %v4800 = vand.u32 2147483647, %v4699
    %vm4801 = vcmp.eq.f32.partialorder %v4800, 8.507059e+37
    %v4802 = vand.u32 %v4699, 2147483648
    %v4803 = vor.u32 1.1754944e-38, %v4802
    %v4804 = vsel %vm4801, %v4803, %v4799
    %v4805 = vmul.f32 1.0, %v4804
    %v4806 = vrcp.pop %v4700
    %v4807 = vmul.f32 %v4700, %v4806
    %v4808 = vsub.f32 1.0, %v4807
    %v4809 = vmul.f32 %v4806, %v4808
    %v4810 = vadd.f32 %v4806, %v4809
    %vm4811 = vweird.f32 %v4700
    %vm4812 = vweird.f32 %v4806
    %vm4813 = vmor %vm4811, %vm4812
    %v4814 = vsel %vm4813, %v4806, %v4810
    %v4815 = vand.u32 2147483647, %v4700
    %vm4816 = vcmp.eq.f32.partialorder %v4815, 8.507059e+37
    %v4817 = vand.u32 %v4700, 2147483648
    %v4818 = vor.u32 1.1754944e-38, %v4817
    %v4819 = vsel %vm4816, %v4818, %v4814
    %v4820 = vmul.f32 1.0, %v4819
    %v4821 = vtanh.pop %v4487
    %v4822 = vtanh.pop %v4491
    %v4823 = vtanh.pop %v4495
    %v4824 = vtanh.pop %v4499
    %v4825 = vtanh.pop %v4503
    %v4826 = vtanh.pop %v4507
    %v4827 = vtanh.pop %v4511
    %v4828 = vtanh.pop %v4515
    %v4829 = vxor.u32 %v4488, 2147483648
    %v4830 = vxor.u32 %v4492, 2147483648
    %v4831 = vxor.u32 %v4496, 2147483648
    %v4832 = vxor.u32 %v4500, 2147483648
    %v4833 = vxor.u32 %v4504, 2147483648
    %v4834 = vxor.u32 %v4508, 2147483648
    %v4835 = vxor.u32 %v4512, 2147483648
    %v4836 = vxor.u32 %v4516, 2147483648
    %v4837 = vmul.f32 %v4829, 1.442695
    %v4838 = vpow.pop %v4837
    %v4839 = vmul.f32 %v4830, 1.442695
    %v4840 = vpow.pop %v4839
    %v4841 = vmul.f32 %v4831, 1.442695
    %v4842 = vpow.pop %v4841
    %v4843 = vmul.f32 %v4832, 1.442695
    %v4844 = vpow.pop %v4843
    %v4845 = vmul.f32 %v4833, 1.442695
    %v4846 = vpow.pop %v4845
    %v4847 = vmul.f32 %v4834, 1.442695
    %v4848 = vpow.pop %v4847
    %v4849 = vmul.f32 %v4835, 1.442695
    %v4850 = vpow.pop %v4849
    %v4851 = vmul.f32 %v4836, 1.442695
    %v4852 = vpow.pop %v4851
    %v4853 = vadd.f32 %v4838, 1.0
    %v4854 = vadd.f32 %v4840, 1.0
    %v4855 = vadd.f32 %v4842, 1.0
    %v4856 = vadd.f32 %v4844, 1.0
    %v4857 = vadd.f32 %v4846, 1.0
    %v4858 = vadd.f32 %v4848, 1.0
    %v4859 = vadd.f32 %v4850, 1.0
    %v4860 = vadd.f32 %v4852, 1.0
    %v4861 = vrcp.pop %v4853
    %v4862 = vmul.f32 %v4853, %v4861
    %v4863 = vsub.f32 1.0, %v4862
    %v4864 = vmul.f32 %v4861, %v4863
    %v4865 = vadd.f32 %v4861, %v4864
    %vm4866 = vweird.f32 %v4853
    %vm4867 = vweird.f32 %v4861
    %vm4868 = vmor %vm4866, %vm4867
    %v4869 = vsel %vm4868, %v4861, %v4865
    %v4870 = vand.u32 2147483647, %v4853
    %vm4871 = vcmp.eq.f32.partialorder %v4870, 8.507059e+37
    %v4872 = vand.u32 %v4853, 2147483648
    %v4873 = vor.u32 1.1754944e-38, %v4872
    %v4874 = vsel %vm4871, %v4873, %v4869
    %v4875 = vmul.f32 1.0, %v4874
    %v4876 = vrcp.pop %v4854
    %v4877 = vmul.f32 %v4854, %v4876
    %v4878 = vsub.f32 1.0, %v4877
    %v4879 = vmul.f32 %v4876, %v4878
    %v4880 = vadd.f32 %v4876, %v4879
    %vm4881 = vweird.f32 %v4854
    %vm4882 = vweird.f32 %v4876
    %vm4883 = vmor %vm4881, %vm4882
    %v4884 = vsel %vm4883, %v4876, %v4880
    %v4885 = vand.u32 2147483647, %v4854
    %vm4886 = vcmp.eq.f32.partialorder %v4885, 8.507059e+37
    %v4887 = vand.u32 %v4854, 2147483648
    %v4888 = vor.u32 1.1754944e-38, %v4887
    %v4889 = vsel %vm4886, %v4888, %v4884
    %v4890 = vmul.f32 1.0, %v4889
    %v4891 = vrcp.pop %v4855
    %v4892 = vmul.f32 %v4855, %v4891
    %v4893 = vsub.f32 1.0, %v4892
    %v4894 = vmul.f32 %v4891, %v4893
    %v4895 = vadd.f32 %v4891, %v4894
    %vm4896 = vweird.f32 %v4855
    %vm4897 = vweird.f32 %v4891
    %vm4898 = vmor %vm4896, %vm4897
    %v4899 = vsel %vm4898, %v4891, %v4895
    %v4900 = vand.u32 2147483647, %v4855
    %vm4901 = vcmp.eq.f32.partialorder %v4900, 8.507059e+37
    %v4902 = vand.u32 %v4855, 2147483648
    %v4903 = vor.u32 1.1754944e-38, %v4902
    %v4904 = vsel %vm4901, %v4903, %v4899
    %v4905 = vmul.f32 1.0, %v4904
    %v4906 = vrcp.pop %v4856
    %v4907 = vmul.f32 %v4856, %v4906
    %v4908 = vsub.f32 1.0, %v4907
    %v4909 = vmul.f32 %v4906, %v4908
    %v4910 = vadd.f32 %v4906, %v4909
    %vm4911 = vweird.f32 %v4856
    %vm4912 = vweird.f32 %v4906
    %vm4913 = vmor %vm4911, %vm4912
    %v4914 = vsel %vm4913, %v4906, %v4910
    %v4915 = vand.u32 2147483647, %v4856
    %vm4916 = vcmp.eq.f32.partialorder %v4915, 8.507059e+37
    %v4917 = vand.u32 %v4856, 2147483648
    %v4918 = vor.u32 1.1754944e-38, %v4917
    %v4919 = vsel %vm4916, %v4918, %v4914
    %v4920 = vmul.f32 1.0, %v4919
    %v4921 = vrcp.pop %v4857
    %v4922 = vmul.f32 %v4857, %v4921
    %v4923 = vsub.f32 1.0, %v4922
    %v4924 = vmul.f32 %v4921, %v4923
    %v4925 = vadd.f32 %v4921, %v4924
    %vm4926 = vweird.f32 %v4857
    %vm4927 = vweird.f32 %v4921
    %vm4928 = vmor %vm4926, %vm4927
    %v4929 = vsel %vm4928, %v4921, %v4925
    %v4930 = vand.u32 2147483647, %v4857
    %vm4931 = vcmp.eq.f32.partialorder %v4930, 8.507059e+37
    %v4932 = vand.u32 %v4857, 2147483648
    %v4933 = vor.u32 1.1754944e-38, %v4932
    %v4934 = vsel %vm4931, %v4933, %v4929
    %v4935 = vmul.f32 1.0, %v4934
    %v4936 = vrcp.pop %v4858
    %v4937 = vmul.f32 %v4858, %v4936
    %v4938 = vsub.f32 1.0, %v4937
    %v4939 = vmul.f32 %v4936, %v4938
    %v4940 = vadd.f32 %v4936, %v4939
    %vm4941 = vweird.f32 %v4858
    %vm4942 = vweird.f32 %v4936
    %vm4943 = vmor %vm4941, %vm4942
    %v4944 = vsel %vm4943, %v4936, %v4940
    %v4945 = vand.u32 2147483647, %v4858
    %vm4946 = vcmp.eq.f32.partialorder %v4945, 8.507059e+37
    %v4947 = vand.u32 %v4858, 2147483648
    %v4948 = vor.u32 1.1754944e-38, %v4947
    %v4949 = vsel %vm4946, %v4948, %v4944
    %v4950 = vmul.f32 1.0, %v4949
    %v4951 = vrcp.pop %v4859
    %v4952 = vmul.f32 %v4859, %v4951
    %v4953 = vsub.f32 1.0, %v4952
    %v4954 = vmul.f32 %v4951, %v4953
    %v4955 = vadd.f32 %v4951, %v4954
    %vm4956 = vweird.f32 %v4859
    %vm4957 = vweird.f32 %v4951
    %vm4958 = vmor %vm4956, %vm4957
    %v4959 = vsel %vm4958, %v4951, %v4955
    %v4960 = vand.u32 2147483647, %v4859
    %vm4961 = vcmp.eq.f32.partialorder %v4960, 8.507059e+37
    %v4962 = vand.u32 %v4859, 2147483648
    %v4963 = vor.u32 1.1754944e-38, %v4962
    %v4964 = vsel %vm4961, %v4963, %v4959
    %v4965 = vmul.f32 1.0, %v4964
    %v4966 = vrcp.pop %v4860
    %v4967 = vmul.f32 %v4860, %v4966
    %v4968 = vsub.f32 1.0, %v4967
    %v4969 = vmul.f32 %v4966, %v4968
    %v4970 = vadd.f32 %v4966, %v4969
    %vm4971 = vweird.f32 %v4860
    %vm4972 = vweird.f32 %v4966
    %vm4973 = vmor %vm4971, %vm4972
    %v4974 = vsel %vm4973, %v4966, %v4970
    %v4975 = vand.u32 2147483647, %v4860
    %vm4976 = vcmp.eq.f32.partialorder %v4975, 8.507059e+37
    %v4977 = vand.u32 %v4860, 2147483648
    %v4978 = vor.u32 1.1754944e-38, %v4977
    %v4979 = vsel %vm4976, %v4978, %v4974
    %v4980 = vmul.f32 1.0, %v4979
    %v4989 = vrot.slane %v4048, 7
    %v4990 = vrot.slane %v4049, 7
    %v4991 = vrot.slane %v4050, 7
    %v4992 = vrot.slane %v4051, 7
    %v4993 = vrot.slane %v4052, 7
    %v4994 = vrot.slane %v4053, 7
    %v4995 = vrot.slane %v4054, 7
    %v4996 = vrot.slane %v4055, 7
    %v5005 = vmul.f32 %v4715, %v4989
    %v5006 = vmul.f32 %v4730, %v4990
    %v5007 = vmul.f32 %v4745, %v4991
    %v5008 = vmul.f32 %v4760, %v4992
    %v5009 = vmul.f32 %v4775, %v4993
    %v5010 = vmul.f32 %v4790, %v4994
    %v5011 = vmul.f32 %v4805, %v4995
    %v5012 = vmul.f32 %v4820, %v4996
    %v5013 = vmul.f32 %v4563, %v4821
    %v5014 = vmul.f32 %v4578, %v4822
    %v5015 = vmul.f32 %v4593, %v4823
    %v5016 = vmul.f32 %v4608, %v4824
    %v5017 = vmul.f32 %v4623, %v4825
    %v5018 = vmul.f32 %v4638, %v4826
    %v5019 = vmul.f32 %v4653, %v4827
    %v5020 = vmul.f32 %v4668, %v4828
    %v5021 = vadd.f32 %v5005, %v5013
    %v5022 = vadd.f32 %v5006, %v5014
    %v5023 = vadd.f32 %v5007, %v5015
    %v5024 = vadd.f32 %v5008, %v5016
    %v5025 = vadd.f32 %v5009, %v5017
    %v5026 = vadd.f32 %v5010, %v5018
    %v5027 = vadd.f32 %v5011, %v5019
    %v5028 = vadd.f32 %v5012, %v5020
    %v5029 = vtanh.pop %v5021
    %v5030 = vtanh.pop %v5022
    %v5031 = vtanh.pop %v5023
    %v5032 = vtanh.pop %v5024
    %v5033 = vtanh.pop %v5025
    %v5034 = vtanh.pop %v5026
    %v5035 = vtanh.pop %v5027
    %v5036 = vtanh.pop %v5028
    %v5037 = vmul.f32 %v4875, %v5029
    %v5038 = vmul.f32 %v4890, %v5030
    %v5039 = vmul.f32 %v4905, %v5031
    %v5040 = vmul.f32 %v4920, %v5032
    %v5041 = vmul.f32 %v4935, %v5033
    %v5042 = vmul.f32 %v4950, %v5034
    %v5043 = vmul.f32 %v4965, %v5035
    %v5044 = vmul.f32 %v4980, %v5036
    %v5053 = vrot.slane %v5038, 7
    %v5054 = vsel %vm1181, %v5053, %v5037
    %v5055 = vrot.slane %v5039, 6
    %v5056 = vsel %vm1184, %v5055, %v5054
    %v5057 = vrot.slane %v5040, 5
    %v5058 = vsel %vm1187, %v5057, %v5056
    %v5059 = vrot.slane %v5041, 4
    %v5060 = vrot.slane %v5042, 3
    %v5061 = vsel %vm1169, %v5060, %v5059
    %v5062 = vrot.slane %v5043, 2
    %v5063 = vsel %vm1172, %v5062, %v5061
    %v5064 = vrot.slane %v5044, 1
    %v5065 = vsel %vm1175, %v5064, %v5063
    %v5067 = vrot.slane %v4325, 4
    %vm5068 = vcmask 1043456
    %v5069 = vrot.slane %v5058, 4
    %v5070 = vrot.slane %v5065, 4
    %v5071 = vsel %vm5068, %v5069, %v5070
    %v5072 = vrot.slane %v5067, 4
    %v5073 = vsel %vm5068, %v5072, %v5072
    %5076 = vmatpush.msra.mxu0 %v166
    %5077 = vmatpush.msra.mxu0 %v162
    %5078 = vmatpush.msra.mxu0 %v158
    %5079 = vmatpush.msra.mxu0 %v154
    %5080 = vmatpush.msra.mxu0 %v150
    %5081 = vmatpush.msra.mxu0 %v146
    %5082 = vmatpush.msra.mxu0 %v142
    %5083 = vmatpush.msra.mxu0 %v138
    %5084 = vmatpush.msra.mxu0 %v134
    %5085 = vmatpush.msra.mxu0 %v130
    %5086 = vmatpush.msra.mxu0 %v126
    %5087 = vmatpush.msra.mxu0 %v122
    %5088 = vmatpush.msra.mxu0 %v118
    %5089 = vmatpush.msra.mxu0 %v114
    %5090 = vmatpush.msra.mxu0 %v110
    %5091 = vmatpush.msra.mxu0 %v106
    %5092 = vmatmul.f32.gmra.mxu0 %v5071
    %v5093 = vpop.f32.mrf.mxu0
    %v5094 = vadd.f32 %v1191, %v5093
    %5095 = vdwg.mxu0
    %5096 = vmatpush.msra.mxu0 %v230
    %5097 = vmatpush.msra.mxu0 %v226
    %5098 = vmatpush.msra.mxu0 %v222
    %5099 = vmatpush.msra.mxu0 %v218
    %5100 = vmatpush.msra.mxu0 %v214
    %5101 = vmatpush.msra.mxu0 %v210
    %5102 = vmatpush.msra.mxu0 %v206
    %5103 = vmatpush.msra.mxu0 %v202
    %5104 = vmatpush.msra.mxu0 %v198
    %5105 = vmatpush.msra.mxu0 %v194
    %5106 = vmatpush.msra.mxu0 %v190
    %5107 = vmatpush.msra.mxu0 %v186
    %5108 = vmatpush.msra.mxu0 %v182
    %5109 = vmatpush.msra.mxu0 %v178
    %5110 = vmatpush.msra.mxu0 %v174
    %5111 = vmatpush.msra.mxu0 %v170
    %5112 = vmatmul.f32.gmra.mxu0 %v5073
    %v5113 = vpop.f32.mrf.mxu0
    %v5114 = vadd.f32 %v5094, %v5113
    %5115 = vdwg.mxu0
    %5116 = vmatpush.msra.mxu0 %v167
    %5117 = vmatpush.msra.mxu0 %v163
    %5118 = vmatpush.msra.mxu0 %v159
    %5119 = vmatpush.msra.mxu0 %v155
    %5120 = vmatpush.msra.mxu0 %v151
    %5121 = vmatpush.msra.mxu0 %v147
    %5122 = vmatpush.msra.mxu0 %v143
    %5123 = vmatpush.msra.mxu0 %v139
    %5124 = vmatpush.msra.mxu0 %v135
    %5125 = vmatpush.msra.mxu0 %v131
    %5126 = vmatpush.msra.mxu0 %v127
    %5127 = vmatpush.msra.mxu0 %v123
    %5128 = vmatpush.msra.mxu0 %v119
    %5129 = vmatpush.msra.mxu0 %v115
    %5130 = vmatpush.msra.mxu0 %v111
    %5131 = vmatpush.msra.mxu0 %v107
    %5132 = vmatmul.f32.gmra.mxu0 %v5071
    %v5133 = vpop.f32.mrf.mxu0
    %v5134 = vadd.f32 %v1192, %v5133
    %5135 = vdwg.mxu0
    %5136 = vmatpush.msra.mxu0 %v231
    %5137 = vmatpush.msra.mxu0 %v227
    %5138 = vmatpush.msra.mxu0 %v223
    %5139 = vmatpush.msra.mxu0 %v219
    %5140 = vmatpush.msra.mxu0 %v215
    %5141 = vmatpush.msra.mxu0 %v211
    %5142 = vmatpush.msra.mxu0 %v207
    %5143 = vmatpush.msra.mxu0 %v203
    %5144 = vmatpush.msra.mxu0 %v199
    %5145 = vmatpush.msra.mxu0 %v195
    %5146 = vmatpush.msra.mxu0 %v191
    %5147 = vmatpush.msra.mxu0 %v187
    %5148 = vmatpush.msra.mxu0 %v183
    %5149 = vmatpush.msra.mxu0 %v179
    %5150 = vmatpush.msra.mxu0 %v175
    %5151 = vmatpush.msra.mxu0 %v171
    %5152 = vmatmul.f32.gmra.mxu0 %v5073
    %v5153 = vpop.f32.mrf.mxu0
    %v5154 = vadd.f32 %v5134, %v5153
    %5155 = vdwg.mxu0
    %5156 = vmatpush.msra.mxu0 %v168
    %5157 = vmatpush.msra.mxu0 %v164
    %5158 = vmatpush.msra.mxu0 %v160
    %5159 = vmatpush.msra.mxu0 %v156
    %5160 = vmatpush.msra.mxu0 %v152
    %5161 = vmatpush.msra.mxu0 %v148
    %5162 = vmatpush.msra.mxu0 %v144
    %5163 = vmatpush.msra.mxu0 %v140
    %5164 = vmatpush.msra.mxu0 %v136
    %5165 = vmatpush.msra.mxu0 %v132
    %5166 = vmatpush.msra.mxu0 %v128
    %5167 = vmatpush.msra.mxu0 %v124
    %5168 = vmatpush.msra.mxu0 %v120
    %5169 = vmatpush.msra.mxu0 %v116
    %5170 = vmatpush.msra.mxu0 %v112
    %5171 = vmatpush.msra.mxu0 %v108
    %5172 = vmatmul.f32.gmra.mxu0 %v5071
    %v5173 = vpop.f32.mrf.mxu0
    %v5174 = vadd.f32 %v1193, %v5173
    %5175 = vdwg.mxu0
    %5176 = vmatpush.msra.mxu0 %v232
    %5177 = vmatpush.msra.mxu0 %v228
    %5178 = vmatpush.msra.mxu0 %v224
    %5179 = vmatpush.msra.mxu0 %v220
    %5180 = vmatpush.msra.mxu0 %v216
    %5181 = vmatpush.msra.mxu0 %v212
    %5182 = vmatpush.msra.mxu0 %v208
    %5183 = vmatpush.msra.mxu0 %v204
    %5184 = vmatpush.msra.mxu0 %v200
    %5185 = vmatpush.msra.mxu0 %v196
    %5186 = vmatpush.msra.mxu0 %v192
    %5187 = vmatpush.msra.mxu0 %v188
    %5188 = vmatpush.msra.mxu0 %v184
    %5189 = vmatpush.msra.mxu0 %v180
    %5190 = vmatpush.msra.mxu0 %v176
    %5191 = vmatpush.msra.mxu0 %v172
    %5192 = vmatmul.f32.gmra.mxu0 %v5073
    %v5193 = vpop.f32.mrf.mxu0
    %v5194 = vadd.f32 %v5174, %v5193
    %5195 = vdwg.mxu0
    %5196 = vmatpush.msra.mxu0 %v169
    %5197 = vmatpush.msra.mxu0 %v165
    %5198 = vmatpush.msra.mxu0 %v161
    %5199 = vmatpush.msra.mxu0 %v157
    %5200 = vmatpush.msra.mxu0 %v153
    %5201 = vmatpush.msra.mxu0 %v149
    %5202 = vmatpush.msra.mxu0 %v145
    %5203 = vmatpush.msra.mxu0 %v141
    %5204 = vmatpush.msra.mxu0 %v137
    %5205 = vmatpush.msra.mxu0 %v133
    %5206 = vmatpush.msra.mxu0 %v129
    %5207 = vmatpush.msra.mxu0 %v125
    %5208 = vmatpush.msra.mxu0 %v121
    %5209 = vmatpush.msra.mxu0 %v117
    %5210 = vmatpush.msra.mxu0 %v113
    %5211 = vmatpush.msra.mxu0 %v109
    %5212 = vmatmul.f32.gmra.mxu0 %v5071
    %v5213 = vpop.f32.mrf.mxu0
    %v5214 = vadd.f32 %v1194, %v5213
    %5215 = vdwg.mxu0
    %5216 = vmatpush.msra.mxu0 %v233
    %5217 = vmatpush.msra.mxu0 %v229
    %5218 = vmatpush.msra.mxu0 %v225
    %5219 = vmatpush.msra.mxu0 %v221
    %5220 = vmatpush.msra.mxu0 %v217
    %5221 = vmatpush.msra.mxu0 %v213
    %5222 = vmatpush.msra.mxu0 %v209
    %5223 = vmatpush.msra.mxu0 %v205
    %5224 = vmatpush.msra.mxu0 %v201
    %5225 = vmatpush.msra.mxu0 %v197
    %5226 = vmatpush.msra.mxu0 %v193
    %5227 = vmatpush.msra.mxu0 %v189
    %5228 = vmatpush.msra.mxu0 %v185
    %5229 = vmatpush.msra.mxu0 %v181
    %5230 = vmatpush.msra.mxu0 %v177
    %5231 = vmatpush.msra.mxu0 %v173
    %5232 = vmatmul.f32.gmra.mxu0 %v5073
    %v5233 = vpop.f32.mrf.mxu0
    %v5234 = vadd.f32 %v5214, %v5233
    %5235 = vdwg.mxu0
    %v5236 = vxor.u32 %v5114, 2147483648
    %v5237 = vmul.f32 %v5236, 1.442695
    %v5238 = vpow.pop %v5237
    %v5239 = vadd.f32 %v5238, 1.0
    %v5240 = vrcp.pop %v5239
    %v5241 = vmul.f32 %v5239, %v5240
    %v5242 = vsub.f32 1.0, %v5241
    %v5243 = vmul.f32 %v5240, %v5242
    %v5244 = vadd.f32 %v5240, %v5243
    %vm5245 = vweird.f32 %v5239
    %vm5246 = vweird.f32 %v5240
    %vm5247 = vmor %vm5245, %vm5246
    %v5248 = vsel %vm5247, %v5240, %v5244
    %v5249 = vand.u32 2147483647, %v5239
    %vm5250 = vcmp.eq.f32.partialorder %v5249, 8.507059e+37
    %v5251 = vand.u32 %v5239, 2147483648
    %v5252 = vor.u32 1.1754944e-38, %v5251
    %v5253 = vsel %vm5250, %v5252, %v5248
    %v5254 = vmul.f32 1.0, %v5253
    %v5255 = vxor.u32 %v5154, 2147483648
    %v5256 = vmul.f32 %v5255, 1.442695
    %v5257 = vpow.pop %v5256
    %v5258 = vadd.f32 %v5257, 1.0
    %v5259 = vrcp.pop %v5258
    %v5260 = vmul.f32 %v5258, %v5259
    %v5261 = vsub.f32 1.0, %v5260
    %v5262 = vmul.f32 %v5259, %v5261
    %v5263 = vadd.f32 %v5259, %v5262
    %vm5264 = vweird.f32 %v5258
    %vm5265 = vweird.f32 %v5259
    %vm5266 = vmor %vm5264, %vm5265
    %v5267 = vsel %vm5266, %v5259, %v5263
    %v5268 = vand.u32 2147483647, %v5258
    %vm5269 = vcmp.eq.f32.partialorder %v5268, 8.507059e+37
    %v5270 = vand.u32 %v5258, 2147483648
    %v5271 = vor.u32 1.1754944e-38, %v5270
    %v5272 = vsel %vm5269, %v5271, %v5267
    %v5273 = vmul.f32 1.0, %v5272
    %v5274 = vtanh.pop %v5194
    %v5275 = vxor.u32 %v5234, 2147483648
    %v5276 = vmul.f32 %v5275, 1.442695
    %v5277 = vpow.pop %v5276
    %v5278 = vadd.f32 %v5277, 1.0
    %v5279 = vrcp.pop %v5278
    %v5280 = vmul.f32 %v5278, %v5279
    %v5281 = vsub.f32 1.0, %v5280
    %v5282 = vmul.f32 %v5279, %v5281
    %v5283 = vadd.f32 %v5279, %v5282
    %vm5284 = vweird.f32 %v5278
    %vm5285 = vweird.f32 %v5279
    %vm5286 = vmor %vm5284, %vm5285
    %v5287 = vsel %vm5286, %v5279, %v5283
    %v5288 = vand.u32 2147483647, %v5278
    %vm5289 = vcmp.eq.f32.partialorder %v5288, 8.507059e+37
    %v5290 = vand.u32 %v5278, 2147483648
    %v5291 = vor.u32 1.1754944e-38, %v5290
    %v5292 = vsel %vm5289, %v5291, %v5287
    %v5293 = vmul.f32 1.0, %v5292
    %v5294 = vmul.f32 %v5273, %v4323
    %v5295 = vmul.f32 %v5254, %v5274
    %v5296 = vadd.f32 %v5294, %v5295
    %v5297 = vtanh.pop %v5296
    %v5298 = vmul.f32 %v5293, %v5297
    %v5299 = vrot.slane %v5037, 4
    %v5300 = vrot.slane %v5038, 3
    %v5301 = vsel %vm1169, %v5300, %v5299
    %v5302 = vrot.slane %v5039, 2
    %v5303 = vsel %vm1172, %v5302, %v5301
    %v5304 = vrot.slane %v5040, 1
    %v5305 = vsel %vm1175, %v5304, %v5303
    %v5306 = vsel %vm1178, %v5041, %v5305
    %v5307 = vrot.slane %v5042, 7
    %v5308 = vsel %vm1181, %v5307, %v5306
    %v5309 = vrot.slane %v5043, 6
    %v5310 = vsel %vm1184, %v5309, %v5308
    %v5311 = vrot.slane %v5044, 5
    %v5312 = vsel %vm1187, %v5311, %v5310
    %5314 = vmatpush.msra.mxu0 %v102
    %5315 = vmatpush.msra.mxu0 %v98
    %5316 = vmatpush.msra.mxu0 %v94
    %5317 = vmatpush.msra.mxu0 %v90
    %5318 = vmatpush.msra.mxu0 %v86
    %5319 = vmatpush.msra.mxu0 %v82
    %5320 = vmatpush.msra.mxu0 %v78
    %5321 = vmatpush.msra.mxu0 %v74
    %5322 = vmatpush.msra.mxu0 %v70
    %5323 = vmatpush.msra.mxu0 %v66
    %5324 = vmatpush.msra.mxu0 %v62
    %5325 = vmatpush.msra.mxu0 %v58
    %5326 = vmatpush.msra.mxu0 %v54
    %5327 = vmatpush.msra.mxu0 %v50
    %5328 = vmatpush.msra.mxu0 %v46
    %5329 = vmatpush.msra.mxu0 %v42
    %5330 = vmatmul.f32.gmra.mxu0 %v5312
    %v5331 = vpop.f32.mrf.mxu0
    %v5332 = vadd.f32 0.0, %v5331
    %5333 = vdwg.mxu0
    %5334 = vmatpush.msra.mxu0 %v103
    %5335 = vmatpush.msra.mxu0 %v99
    %5336 = vmatpush.msra.mxu0 %v95
    %5337 = vmatpush.msra.mxu0 %v91
    %5338 = vmatpush.msra.mxu0 %v87
    %5339 = vmatpush.msra.mxu0 %v83
    %5340 = vmatpush.msra.mxu0 %v79
    %5341 = vmatpush.msra.mxu0 %v75
    %5342 = vmatpush.msra.mxu0 %v71
    %5343 = vmatpush.msra.mxu0 %v67
    %5344 = vmatpush.msra.mxu0 %v63
    %5345 = vmatpush.msra.mxu0 %v59
    %5346 = vmatpush.msra.mxu0 %v55
    %5347 = vmatpush.msra.mxu0 %v51
    %5348 = vmatpush.msra.mxu0 %v47
    %5349 = vmatpush.msra.mxu0 %v43
    %5350 = vmatmul.f32.gmra.mxu0 %v5312
    %v5351 = vpop.f32.mrf.mxu0
    %v5352 = vadd.f32 0.0, %v5351
    %5353 = vdwg.mxu0
    %5354 = vmatpush.msra.mxu0 %v104
    %5355 = vmatpush.msra.mxu0 %v100
    %5356 = vmatpush.msra.mxu0 %v96
    %5357 = vmatpush.msra.mxu0 %v92
    %5358 = vmatpush.msra.mxu0 %v88
    %5359 = vmatpush.msra.mxu0 %v84
    %5360 = vmatpush.msra.mxu0 %v80
    %5361 = vmatpush.msra.mxu0 %v76
    %5362 = vmatpush.msra.mxu0 %v72
    %5363 = vmatpush.msra.mxu0 %v68
    %5364 = vmatpush.msra.mxu0 %v64
    %5365 = vmatpush.msra.mxu0 %v60
    %5366 = vmatpush.msra.mxu0 %v56
    %5367 = vmatpush.msra.mxu0 %v52
    %5368 = vmatpush.msra.mxu0 %v48
    %5369 = vmatpush.msra.mxu0 %v44
    %5370 = vmatmul.f32.gmra.mxu0 %v5312
    %v5371 = vpop.f32.mrf.mxu0
    %v5372 = vadd.f32 0.0, %v5371
    %5373 = vdwg.mxu0
    %5374 = vmatpush.msra.mxu0 %v105
    %5375 = vmatpush.msra.mxu0 %v101
    %5376 = vmatpush.msra.mxu0 %v97
    %5377 = vmatpush.msra.mxu0 %v93
    %5378 = vmatpush.msra.mxu0 %v89
    %5379 = vmatpush.msra.mxu0 %v85
    %5380 = vmatpush.msra.mxu0 %v81
    %5381 = vmatpush.msra.mxu0 %v77
    %5382 = vmatpush.msra.mxu0 %v73
    %5383 = vmatpush.msra.mxu0 %v69
    %5384 = vmatpush.msra.mxu0 %v65
    %5385 = vmatpush.msra.mxu0 %v61
    %5386 = vmatpush.msra.mxu0 %v57
    %5387 = vmatpush.msra.mxu0 %v53
    %5388 = vmatpush.msra.mxu0 %v49
    %5389 = vmatpush.msra.mxu0 %v45
    %5390 = vmatmul.f32.gmra.mxu0 %v5312
    %v5391 = vpop.f32.mrf.mxu0
    %v5392 = vadd.f32 0.0, %v5391
    %5393 = vdwg.mxu0
    %v5398 = vrot.slane %v5332, 3
    %v5399 = vrot.slane %v5352, 3
    %v5400 = vrot.slane %v5372, 3
    %v5401 = vrot.slane %v5392, 3
    %v5402 = vrot.slane %v5332, 4
    %v5403 = vrot.slane %v5352, 4
    %v5404 = vrot.slane %v5372, 4
    %v5405 = vrot.slane %v5392, 4
    %v5406 = vrot.slane %v5332, 5
    %v5407 = vrot.slane %v5352, 5
    %v5408 = vrot.slane %v5372, 5
    %v5409 = vrot.slane %v5392, 5
    %v5410 = vrot.slane %v5332, 6
    %v5411 = vrot.slane %v5352, 6
    %v5412 = vrot.slane %v5372, 6
    %v5413 = vrot.slane %v5392, 6
    %v5414 = vrot.slane %v5332, 7
    %v5415 = vrot.slane %v5352, 7
    %v5416 = vrot.slane %v5372, 7
    %v5417 = vrot.slane %v5392, 7
    %v5418 = vrot.slane %v5332, 1
    %v5419 = vrot.slane %v5352, 1
    %v5420 = vrot.slane %v5372, 1
    %v5421 = vrot.slane %v5392, 1
    %v5422 = vrot.slane %v5332, 2
    %v5423 = vrot.slane %v5352, 2
    %v5424 = vrot.slane %v5372, 2
    %v5425 = vrot.slane %v5392, 2
    %v5458 = vadd.f32 %v312, %v5398
    %v5459 = vadd.f32 %v353, %v5399
    %v5460 = vadd.f32 %v394, %v5400
    %v5461 = vadd.f32 %v435, %v5401
    %v5462 = vadd.f32 %v315, %v5402
    %v5463 = vadd.f32 %v356, %v5403
    %v5464 = vadd.f32 %v397, %v5404
    %v5465 = vadd.f32 %v438, %v5405
    %v5466 = vadd.f32 %v318, %v5406
    %v5467 = vadd.f32 %v359, %v5407
    %v5468 = vadd.f32 %v400, %v5408
    %v5469 = vadd.f32 %v441, %v5409
    %v5470 = vadd.f32 %v321, %v5410
    %v5471 = vadd.f32 %v362, %v5411
    %v5472 = vadd.f32 %v403, %v5412
    %v5473 = vadd.f32 %v444, %v5413
    %v5474 = vadd.f32 %v324, %v5414
    %v5475 = vadd.f32 %v365, %v5415
    %v5476 = vadd.f32 %v406, %v5416
    %v5477 = vadd.f32 %v447, %v5417
    %v5478 = vadd.f32 %v327, %v5332
    %v5479 = vadd.f32 %v368, %v5352
    %v5480 = vadd.f32 %v409, %v5372
    %v5481 = vadd.f32 %v450, %v5392
    %v5482 = vadd.f32 %v330, %v5418
    %v5483 = vadd.f32 %v371, %v5419
    %v5484 = vadd.f32 %v412, %v5420
    %v5485 = vadd.f32 %v453, %v5421
    %v5486 = vadd.f32 %v333, %v5422
    %v5487 = vadd.f32 %v374, %v5423
    %v5488 = vadd.f32 %v415, %v5424
    %v5489 = vadd.f32 %v456, %v5425
    %v5490 = vxor.u32 %v5458, 2147483648
    %v5491 = vxor.u32 %v5462, 2147483648
    %v5492 = vxor.u32 %v5466, 2147483648
    %v5493 = vxor.u32 %v5470, 2147483648
    %v5494 = vxor.u32 %v5474, 2147483648
    %v5495 = vxor.u32 %v5478, 2147483648
    %v5496 = vxor.u32 %v5482, 2147483648
    %v5497 = vxor.u32 %v5486, 2147483648
    %v5498 = vmul.f32 %v5490, 1.442695
    %v5499 = vpow.pop %v5498
    %v5500 = vmul.f32 %v5491, 1.442695
    %v5501 = vpow.pop %v5500
    %v5502 = vmul.f32 %v5492, 1.442695
    %v5503 = vpow.pop %v5502
    %v5504 = vmul.f32 %v5493, 1.442695
    %v5505 = vpow.pop %v5504
    %v5506 = vmul.f32 %v5494, 1.442695
    %v5507 = vpow.pop %v5506
    %v5508 = vmul.f32 %v5495, 1.442695
    %v5509 = vpow.pop %v5508
    %v5510 = vmul.f32 %v5496, 1.442695
    %v5511 = vpow.pop %v5510
    %v5512 = vmul.f32 %v5497, 1.442695
    %v5513 = vpow.pop %v5512
    %v5514 = vadd.f32 %v5499, 1.0
    %v5515 = vadd.f32 %v5501, 1.0
    %v5516 = vadd.f32 %v5503, 1.0
    %v5517 = vadd.f32 %v5505, 1.0
    %v5518 = vadd.f32 %v5507, 1.0
    %v5519 = vadd.f32 %v5509, 1.0
    %v5520 = vadd.f32 %v5511, 1.0
    %v5521 = vadd.f32 %v5513, 1.0
    %v5522 = vrcp.pop %v5514
    %v5523 = vmul.f32 %v5514, %v5522
    %v5524 = vsub.f32 1.0, %v5523
    %v5525 = vmul.f32 %v5522, %v5524
    %v5526 = vadd.f32 %v5522, %v5525
    %vm5527 = vweird.f32 %v5514
    %vm5528 = vweird.f32 %v5522
    %vm5529 = vmor %vm5527, %vm5528
    %v5530 = vsel %vm5529, %v5522, %v5526
    %v5531 = vand.u32 2147483647, %v5514
    %vm5532 = vcmp.eq.f32.partialorder %v5531, 8.507059e+37
    %v5533 = vand.u32 %v5514, 2147483648
    %v5534 = vor.u32 1.1754944e-38, %v5533
    %v5535 = vsel %vm5532, %v5534, %v5530
    %v5536 = vmul.f32 1.0, %v5535
    %v5537 = vrcp.pop %v5515
    %v5538 = vmul.f32 %v5515, %v5537
    %v5539 = vsub.f32 1.0, %v5538
    %v5540 = vmul.f32 %v5537, %v5539
    %v5541 = vadd.f32 %v5537, %v5540
    %vm5542 = vweird.f32 %v5515
    %vm5543 = vweird.f32 %v5537
    %vm5544 = vmor %vm5542, %vm5543
    %v5545 = vsel %vm5544, %v5537, %v5541
    %v5546 = vand.u32 2147483647, %v5515
    %vm5547 = vcmp.eq.f32.partialorder %v5546, 8.507059e+37
    %v5548 = vand.u32 %v5515, 2147483648
    %v5549 = vor.u32 1.1754944e-38, %v5548
    %v5550 = vsel %vm5547, %v5549, %v5545
    %v5551 = vmul.f32 1.0, %v5550
    %v5552 = vrcp.pop %v5516
    %v5553 = vmul.f32 %v5516, %v5552
    %v5554 = vsub.f32 1.0, %v5553
    %v5555 = vmul.f32 %v5552, %v5554
    %v5556 = vadd.f32 %v5552, %v5555
    %vm5557 = vweird.f32 %v5516
    %vm5558 = vweird.f32 %v5552
    %vm5559 = vmor %vm5557, %vm5558
    %v5560 = vsel %vm5559, %v5552, %v5556
    %v5561 = vand.u32 2147483647, %v5516
    %vm5562 = vcmp.eq.f32.partialorder %v5561, 8.507059e+37
    %v5563 = vand.u32 %v5516, 2147483648
    %v5564 = vor.u32 1.1754944e-38, %v5563
    %v5565 = vsel %vm5562, %v5564, %v5560
    %v5566 = vmul.f32 1.0, %v5565
    %v5567 = vrcp.pop %v5517
    %v5568 = vmul.f32 %v5517, %v5567
    %v5569 = vsub.f32 1.0, %v5568
    %v5570 = vmul.f32 %v5567, %v5569
    %v5571 = vadd.f32 %v5567, %v5570
    %vm5572 = vweird.f32 %v5517
    %vm5573 = vweird.f32 %v5567
    %vm5574 = vmor %vm5572, %vm5573
    %v5575 = vsel %vm5574, %v5567, %v5571
    %v5576 = vand.u32 2147483647, %v5517
    %vm5577 = vcmp.eq.f32.partialorder %v5576, 8.507059e+37
    %v5578 = vand.u32 %v5517, 2147483648
    %v5579 = vor.u32 1.1754944e-38, %v5578
    %v5580 = vsel %vm5577, %v5579, %v5575
    %v5581 = vmul.f32 1.0, %v5580
    %v5582 = vrcp.pop %v5518
    %v5583 = vmul.f32 %v5518, %v5582
    %v5584 = vsub.f32 1.0, %v5583
    %v5585 = vmul.f32 %v5582, %v5584
    %v5586 = vadd.f32 %v5582, %v5585
    %vm5587 = vweird.f32 %v5518
    %vm5588 = vweird.f32 %v5582
    %vm5589 = vmor %vm5587, %vm5588
    %v5590 = vsel %vm5589, %v5582, %v5586
    %v5591 = vand.u32 2147483647, %v5518
    %vm5592 = vcmp.eq.f32.partialorder %v5591, 8.507059e+37
    %v5593 = vand.u32 %v5518, 2147483648
    %v5594 = vor.u32 1.1754944e-38, %v5593
    %v5595 = vsel %vm5592, %v5594, %v5590
    %v5596 = vmul.f32 1.0, %v5595
    %v5597 = vrcp.pop %v5519
    %v5598 = vmul.f32 %v5519, %v5597
    %v5599 = vsub.f32 1.0, %v5598
    %v5600 = vmul.f32 %v5597, %v5599
    %v5601 = vadd.f32 %v5597, %v5600
    %vm5602 = vweird.f32 %v5519
    %vm5603 = vweird.f32 %v5597
    %vm5604 = vmor %vm5602, %vm5603
    %v5605 = vsel %vm5604, %v5597, %v5601
    %v5606 = vand.u32 2147483647, %v5519
    %vm5607 = vcmp.eq.f32.partialorder %v5606, 8.507059e+37
    %v5608 = vand.u32 %v5519, 2147483648
    %v5609 = vor.u32 1.1754944e-38, %v5608
    %v5610 = vsel %vm5607, %v5609, %v5605
    %v5611 = vmul.f32 1.0, %v5610
    %v5612 = vrcp.pop %v5520
    %v5613 = vmul.f32 %v5520, %v5612
    %v5614 = vsub.f32 1.0, %v5613
    %v5615 = vmul.f32 %v5612, %v5614
    %v5616 = vadd.f32 %v5612, %v5615
    %vm5617 = vweird.f32 %v5520
    %vm5618 = vweird.f32 %v5612
    %vm5619 = vmor %vm5617, %vm5618
    %v5620 = vsel %vm5619, %v5612, %v5616
    %v5621 = vand.u32 2147483647, %v5520
    %vm5622 = vcmp.eq.f32.partialorder %v5621, 8.507059e+37
    %v5623 = vand.u32 %v5520, 2147483648
    %v5624 = vor.u32 1.1754944e-38, %v5623
    %v5625 = vsel %vm5622, %v5624, %v5620
    %v5626 = vmul.f32 1.0, %v5625
    %v5627 = vrcp.pop %v5521
    %v5628 = vmul.f32 %v5521, %v5627
    %v5629 = vsub.f32 1.0, %v5628
    %v5630 = vmul.f32 %v5627, %v5629
    %v5631 = vadd.f32 %v5627, %v5630
    %vm5632 = vweird.f32 %v5521
    %vm5633 = vweird.f32 %v5627
    %vm5634 = vmor %vm5632, %vm5633
    %v5635 = vsel %vm5634, %v5627, %v5631
    %v5636 = vand.u32 2147483647, %v5521
    %vm5637 = vcmp.eq.f32.partialorder %v5636, 8.507059e+37
    %v5638 = vand.u32 %v5521, 2147483648
    %v5639 = vor.u32 1.1754944e-38, %v5638
    %v5640 = vsel %vm5637, %v5639, %v5635
    %v5641 = vmul.f32 1.0, %v5640
    %v5642 = vxor.u32 %v5459, 2147483648
    %v5643 = vxor.u32 %v5463, 2147483648
    %v5644 = vxor.u32 %v5467, 2147483648
    %v5645 = vxor.u32 %v5471, 2147483648
    %v5646 = vxor.u32 %v5475, 2147483648
    %v5647 = vxor.u32 %v5479, 2147483648
    %v5648 = vxor.u32 %v5483, 2147483648
    %v5649 = vxor.u32 %v5487, 2147483648
    %v5650 = vmul.f32 %v5642, 1.442695
    %v5651 = vpow.pop %v5650
    %v5652 = vmul.f32 %v5643, 1.442695
    %v5653 = vpow.pop %v5652
    %v5654 = vmul.f32 %v5644, 1.442695
    %v5655 = vpow.pop %v5654
    %v5656 = vmul.f32 %v5645, 1.442695
    %v5657 = vpow.pop %v5656
    %v5658 = vmul.f32 %v5646, 1.442695
    %v5659 = vpow.pop %v5658
    %v5660 = vmul.f32 %v5647, 1.442695
    %v5661 = vpow.pop %v5660
    %v5662 = vmul.f32 %v5648, 1.442695
    %v5663 = vpow.pop %v5662
    %v5664 = vmul.f32 %v5649, 1.442695
    %v5665 = vpow.pop %v5664
    %v5666 = vadd.f32 %v5651, 1.0
    %v5667 = vadd.f32 %v5653, 1.0
    %v5668 = vadd.f32 %v5655, 1.0
    %v5669 = vadd.f32 %v5657, 1.0
    %v5670 = vadd.f32 %v5659, 1.0
    %v5671 = vadd.f32 %v5661, 1.0
    %v5672 = vadd.f32 %v5663, 1.0
    %v5673 = vadd.f32 %v5665, 1.0
    %v5674 = vrcp.pop %v5666
    %v5675 = vmul.f32 %v5666, %v5674
    %v5676 = vsub.f32 1.0, %v5675
    %v5677 = vmul.f32 %v5674, %v5676
    %v5678 = vadd.f32 %v5674, %v5677
    %vm5679 = vweird.f32 %v5666
    %vm5680 = vweird.f32 %v5674
    %vm5681 = vmor %vm5679, %vm5680
    %v5682 = vsel %vm5681, %v5674, %v5678
    %v5683 = vand.u32 2147483647, %v5666
    %vm5684 = vcmp.eq.f32.partialorder %v5683, 8.507059e+37
    %v5685 = vand.u32 %v5666, 2147483648
    %v5686 = vor.u32 1.1754944e-38, %v5685
    %v5687 = vsel %vm5684, %v5686, %v5682
    %v5688 = vmul.f32 1.0, %v5687
    %v5689 = vrcp.pop %v5667
    %v5690 = vmul.f32 %v5667, %v5689
    %v5691 = vsub.f32 1.0, %v5690
    %v5692 = vmul.f32 %v5689, %v5691
    %v5693 = vadd.f32 %v5689, %v5692
    %vm5694 = vweird.f32 %v5667
    %vm5695 = vweird.f32 %v5689
    %vm5696 = vmor %vm5694, %vm5695
    %v5697 = vsel %vm5696, %v5689, %v5693
    %v5698 = vand.u32 2147483647, %v5667
    %vm5699 = vcmp.eq.f32.partialorder %v5698, 8.507059e+37
    %v5700 = vand.u32 %v5667, 2147483648
    %v5701 = vor.u32 1.1754944e-38, %v5700
    %v5702 = vsel %vm5699, %v5701, %v5697
    %v5703 = vmul.f32 1.0, %v5702
    %v5704 = vrcp.pop %v5668
    %v5705 = vmul.f32 %v5668, %v5704
    %v5706 = vsub.f32 1.0, %v5705
    %v5707 = vmul.f32 %v5704, %v5706
    %v5708 = vadd.f32 %v5704, %v5707
    %vm5709 = vweird.f32 %v5668
    %vm5710 = vweird.f32 %v5704
    %vm5711 = vmor %vm5709, %vm5710
    %v5712 = vsel %vm5711, %v5704, %v5708
    %v5713 = vand.u32 2147483647, %v5668
    %vm5714 = vcmp.eq.f32.partialorder %v5713, 8.507059e+37
    %v5715 = vand.u32 %v5668, 2147483648
    %v5716 = vor.u32 1.1754944e-38, %v5715
    %v5717 = vsel %vm5714, %v5716, %v5712
    %v5718 = vmul.f32 1.0, %v5717
    %v5719 = vrcp.pop %v5669
    %v5720 = vmul.f32 %v5669, %v5719
    %v5721 = vsub.f32 1.0, %v5720
    %v5722 = vmul.f32 %v5719, %v5721
    %v5723 = vadd.f32 %v5719, %v5722
    %vm5724 = vweird.f32 %v5669
    %vm5725 = vweird.f32 %v5719
    %vm5726 = vmor %vm5724, %vm5725
    %v5727 = vsel %vm5726, %v5719, %v5723
    %v5728 = vand.u32 2147483647, %v5669
    %vm5729 = vcmp.eq.f32.partialorder %v5728, 8.507059e+37
    %v5730 = vand.u32 %v5669, 2147483648
    %v5731 = vor.u32 1.1754944e-38, %v5730
    %v5732 = vsel %vm5729, %v5731, %v5727
    %v5733 = vmul.f32 1.0, %v5732
    %v5734 = vrcp.pop %v5670
    %v5735 = vmul.f32 %v5670, %v5734
    %v5736 = vsub.f32 1.0, %v5735
    %v5737 = vmul.f32 %v5734, %v5736
    %v5738 = vadd.f32 %v5734, %v5737
    %vm5739 = vweird.f32 %v5670
    %vm5740 = vweird.f32 %v5734
    %vm5741 = vmor %vm5739, %vm5740
    %v5742 = vsel %vm5741, %v5734, %v5738
    %v5743 = vand.u32 2147483647, %v5670
    %vm5744 = vcmp.eq.f32.partialorder %v5743, 8.507059e+37
    %v5745 = vand.u32 %v5670, 2147483648
    %v5746 = vor.u32 1.1754944e-38, %v5745
    %v5747 = vsel %vm5744, %v5746, %v5742
    %v5748 = vmul.f32 1.0, %v5747
    %v5749 = vrcp.pop %v5671
    %v5750 = vmul.f32 %v5671, %v5749
    %v5751 = vsub.f32 1.0, %v5750
    %v5752 = vmul.f32 %v5749, %v5751
    %v5753 = vadd.f32 %v5749, %v5752
    %vm5754 = vweird.f32 %v5671
    %vm5755 = vweird.f32 %v5749
    %vm5756 = vmor %vm5754, %vm5755
    %v5757 = vsel %vm5756, %v5749, %v5753
    %v5758 = vand.u32 2147483647, %v5671
    %vm5759 = vcmp.eq.f32.partialorder %v5758, 8.507059e+37
    %v5760 = vand.u32 %v5671, 2147483648
    %v5761 = vor.u32 1.1754944e-38, %v5760
    %v5762 = vsel %vm5759, %v5761, %v5757
    %v5763 = vmul.f32 1.0, %v5762
    %v5764 = vrcp.pop %v5672
    %v5765 = vmul.f32 %v5672, %v5764
    %v5766 = vsub.f32 1.0, %v5765
    %v5767 = vmul.f32 %v5764, %v5766
    %v5768 = vadd.f32 %v5764, %v5767
    %vm5769 = vweird.f32 %v5672
    %vm5770 = vweird.f32 %v5764
    %vm5771 = vmor %vm5769, %vm5770
    %v5772 = vsel %vm5771, %v5764, %v5768
    %v5773 = vand.u32 2147483647, %v5672
    %vm5774 = vcmp.eq.f32.partialorder %v5773, 8.507059e+37
    %v5775 = vand.u32 %v5672, 2147483648
    %v5776 = vor.u32 1.1754944e-38, %v5775
    %v5777 = vsel %vm5774, %v5776, %v5772
    %v5778 = vmul.f32 1.0, %v5777
    %v5779 = vrcp.pop %v5673
    %v5780 = vmul.f32 %v5673, %v5779
    %v5781 = vsub.f32 1.0, %v5780
    %v5782 = vmul.f32 %v5779, %v5781
    %v5783 = vadd.f32 %v5779, %v5782
    %vm5784 = vweird.f32 %v5673
    %vm5785 = vweird.f32 %v5779
    %vm5786 = vmor %vm5784, %vm5785
    %v5787 = vsel %vm5786, %v5779, %v5783
    %v5788 = vand.u32 2147483647, %v5673
    %vm5789 = vcmp.eq.f32.partialorder %v5788, 8.507059e+37
    %v5790 = vand.u32 %v5673, 2147483648
    %v5791 = vor.u32 1.1754944e-38, %v5790
    %v5792 = vsel %vm5789, %v5791, %v5787
    %v5793 = vmul.f32 1.0, %v5792
    %v5794 = vtanh.pop %v5460
    %v5795 = vtanh.pop %v5464
    %v5796 = vtanh.pop %v5468
    %v5797 = vtanh.pop %v5472
    %v5798 = vtanh.pop %v5476
    %v5799 = vtanh.pop %v5480
    %v5800 = vtanh.pop %v5484
    %v5801 = vtanh.pop %v5488
    %v5802 = vxor.u32 %v5461, 2147483648
    %v5803 = vxor.u32 %v5465, 2147483648
    %v5804 = vxor.u32 %v5469, 2147483648
    %v5805 = vxor.u32 %v5473, 2147483648
    %v5806 = vxor.u32 %v5477, 2147483648
    %v5807 = vxor.u32 %v5481, 2147483648
    %v5808 = vxor.u32 %v5485, 2147483648
    %v5809 = vxor.u32 %v5489, 2147483648
    %v5810 = vmul.f32 %v5802, 1.442695
    %v5811 = vpow.pop %v5810
    %v5812 = vmul.f32 %v5803, 1.442695
    %v5813 = vpow.pop %v5812
    %v5814 = vmul.f32 %v5804, 1.442695
    %v5815 = vpow.pop %v5814
    %v5816 = vmul.f32 %v5805, 1.442695
    %v5817 = vpow.pop %v5816
    %v5818 = vmul.f32 %v5806, 1.442695
    %v5819 = vpow.pop %v5818
    %v5820 = vmul.f32 %v5807, 1.442695
    %v5821 = vpow.pop %v5820
    %v5822 = vmul.f32 %v5808, 1.442695
    %v5823 = vpow.pop %v5822
    %v5824 = vmul.f32 %v5809, 1.442695
    %v5825 = vpow.pop %v5824
    %v5826 = vadd.f32 %v5811, 1.0
    %v5827 = vadd.f32 %v5813, 1.0
    %v5828 = vadd.f32 %v5815, 1.0
    %v5829 = vadd.f32 %v5817, 1.0
    %v5830 = vadd.f32 %v5819, 1.0
    %v5831 = vadd.f32 %v5821, 1.0
    %v5832 = vadd.f32 %v5823, 1.0
    %v5833 = vadd.f32 %v5825, 1.0
    %v5834 = vrcp.pop %v5826
    %v5835 = vmul.f32 %v5826, %v5834
    %v5836 = vsub.f32 1.0, %v5835
    %v5837 = vmul.f32 %v5834, %v5836
    %v5838 = vadd.f32 %v5834, %v5837
    %vm5839 = vweird.f32 %v5826
    %vm5840 = vweird.f32 %v5834
    %vm5841 = vmor %vm5839, %vm5840
    %v5842 = vsel %vm5841, %v5834, %v5838
    %v5843 = vand.u32 2147483647, %v5826
    %vm5844 = vcmp.eq.f32.partialorder %v5843, 8.507059e+37
    %v5845 = vand.u32 %v5826, 2147483648
    %v5846 = vor.u32 1.1754944e-38, %v5845
    %v5847 = vsel %vm5844, %v5846, %v5842
    %v5848 = vmul.f32 1.0, %v5847
    %v5849 = vrcp.pop %v5827
    %v5850 = vmul.f32 %v5827, %v5849
    %v5851 = vsub.f32 1.0, %v5850
    %v5852 = vmul.f32 %v5849, %v5851
    %v5853 = vadd.f32 %v5849, %v5852
    %vm5854 = vweird.f32 %v5827
    %vm5855 = vweird.f32 %v5849
    %vm5856 = vmor %vm5854, %vm5855
    %v5857 = vsel %vm5856, %v5849, %v5853
    %v5858 = vand.u32 2147483647, %v5827
    %vm5859 = vcmp.eq.f32.partialorder %v5858, 8.507059e+37
    %v5860 = vand.u32 %v5827, 2147483648
    %v5861 = vor.u32 1.1754944e-38, %v5860
    %v5862 = vsel %vm5859, %v5861, %v5857
    %v5863 = vmul.f32 1.0, %v5862
    %v5864 = vrcp.pop %v5828
    %v5865 = vmul.f32 %v5828, %v5864
    %v5866 = vsub.f32 1.0, %v5865
    %v5867 = vmul.f32 %v5864, %v5866
    %v5868 = vadd.f32 %v5864, %v5867
    %vm5869 = vweird.f32 %v5828
    %vm5870 = vweird.f32 %v5864
    %vm5871 = vmor %vm5869, %vm5870
    %v5872 = vsel %vm5871, %v5864, %v5868
    %v5873 = vand.u32 2147483647, %v5828
    %vm5874 = vcmp.eq.f32.partialorder %v5873, 8.507059e+37
    %v5875 = vand.u32 %v5828, 2147483648
    %v5876 = vor.u32 1.1754944e-38, %v5875
    %v5877 = vsel %vm5874, %v5876, %v5872
    %v5878 = vmul.f32 1.0, %v5877
    %v5879 = vrcp.pop %v5829
    %v5880 = vmul.f32 %v5829, %v5879
    %v5881 = vsub.f32 1.0, %v5880
    %v5882 = vmul.f32 %v5879, %v5881
    %v5883 = vadd.f32 %v5879, %v5882
    %vm5884 = vweird.f32 %v5829
    %vm5885 = vweird.f32 %v5879
    %vm5886 = vmor %vm5884, %vm5885
    %v5887 = vsel %vm5886, %v5879, %v5883
    %v5888 = vand.u32 2147483647, %v5829
    %vm5889 = vcmp.eq.f32.partialorder %v5888, 8.507059e+37
    %v5890 = vand.u32 %v5829, 2147483648
    %v5891 = vor.u32 1.1754944e-38, %v5890
    %v5892 = vsel %vm5889, %v5891, %v5887
    %v5893 = vmul.f32 1.0, %v5892
    %v5894 = vrcp.pop %v5830
    %v5895 = vmul.f32 %v5830, %v5894
    %v5896 = vsub.f32 1.0, %v5895
    %v5897 = vmul.f32 %v5894, %v5896
    %v5898 = vadd.f32 %v5894, %v5897
    %vm5899 = vweird.f32 %v5830
    %vm5900 = vweird.f32 %v5894
    %vm5901 = vmor %vm5899, %vm5900
    %v5902 = vsel %vm5901, %v5894, %v5898
    %v5903 = vand.u32 2147483647, %v5830
    %vm5904 = vcmp.eq.f32.partialorder %v5903, 8.507059e+37
    %v5905 = vand.u32 %v5830, 2147483648
    %v5906 = vor.u32 1.1754944e-38, %v5905
    %v5907 = vsel %vm5904, %v5906, %v5902
    %v5908 = vmul.f32 1.0, %v5907
    %v5909 = vrcp.pop %v5831
    %v5910 = vmul.f32 %v5831, %v5909
    %v5911 = vsub.f32 1.0, %v5910
    %v5912 = vmul.f32 %v5909, %v5911
    %v5913 = vadd.f32 %v5909, %v5912
    %vm5914 = vweird.f32 %v5831
    %vm5915 = vweird.f32 %v5909
    %vm5916 = vmor %vm5914, %vm5915
    %v5917 = vsel %vm5916, %v5909, %v5913
    %v5918 = vand.u32 2147483647, %v5831
    %vm5919 = vcmp.eq.f32.partialorder %v5918, 8.507059e+37
    %v5920 = vand.u32 %v5831, 2147483648
    %v5921 = vor.u32 1.1754944e-38, %v5920
    %v5922 = vsel %vm5919, %v5921, %v5917
    %v5923 = vmul.f32 1.0, %v5922
    %v5924 = vrcp.pop %v5832
    %v5925 = vmul.f32 %v5832, %v5924
    %v5926 = vsub.f32 1.0, %v5925
    %v5927 = vmul.f32 %v5924, %v5926
    %v5928 = vadd.f32 %v5924, %v5927
    %vm5929 = vweird.f32 %v5832
    %vm5930 = vweird.f32 %v5924
    %vm5931 = vmor %vm5929, %vm5930
    %v5932 = vsel %vm5931, %v5924, %v5928
    %v5933 = vand.u32 2147483647, %v5832
    %vm5934 = vcmp.eq.f32.partialorder %v5933, 8.507059e+37
    %v5935 = vand.u32 %v5832, 2147483648
    %v5936 = vor.u32 1.1754944e-38, %v5935
    %v5937 = vsel %vm5934, %v5936, %v5932
    %v5938 = vmul.f32 1.0, %v5937
    %v5939 = vrcp.pop %v5833
    %v5940 = vmul.f32 %v5833, %v5939
    %v5941 = vsub.f32 1.0, %v5940
    %v5942 = vmul.f32 %v5939, %v5941
    %v5943 = vadd.f32 %v5939, %v5942
    %vm5944 = vweird.f32 %v5833
    %vm5945 = vweird.f32 %v5939
    %vm5946 = vmor %vm5944, %vm5945
    %v5947 = vsel %vm5946, %v5939, %v5943
    %v5948 = vand.u32 2147483647, %v5833
    %vm5949 = vcmp.eq.f32.partialorder %v5948, 8.507059e+37
    %v5950 = vand.u32 %v5833, 2147483648
    %v5951 = vor.u32 1.1754944e-38, %v5950
    %v5952 = vsel %vm5949, %v5951, %v5947
    %v5953 = vmul.f32 1.0, %v5952
    %v5962 = vrot.slane %v5021, 7
    %v5963 = vrot.slane %v5022, 7
    %v5964 = vrot.slane %v5023, 7
    %v5965 = vrot.slane %v5024, 7
    %v5966 = vrot.slane %v5025, 7
    %v5967 = vrot.slane %v5026, 7
    %v5968 = vrot.slane %v5027, 7
    %v5969 = vrot.slane %v5028, 7
    %v5978 = vmul.f32 %v5688, %v5962
    %v5979 = vmul.f32 %v5703, %v5963
    %v5980 = vmul.f32 %v5718, %v5964
    %v5981 = vmul.f32 %v5733, %v5965
    %v5982 = vmul.f32 %v5748, %v5966
    %v5983 = vmul.f32 %v5763, %v5967
    %v5984 = vmul.f32 %v5778, %v5968
    %v5985 = vmul.f32 %v5793, %v5969
    %v5986 = vmul.f32 %v5536, %v5794
    %v5987 = vmul.f32 %v5551, %v5795
    %v5988 = vmul.f32 %v5566, %v5796
    %v5989 = vmul.f32 %v5581, %v5797
    %v5990 = vmul.f32 %v5596, %v5798
    %v5991 = vmul.f32 %v5611, %v5799
    %v5992 = vmul.f32 %v5626, %v5800
    %v5993 = vmul.f32 %v5641, %v5801
    %v5994 = vadd.f32 %v5978, %v5986
    %v5995 = vadd.f32 %v5979, %v5987
    %v5996 = vadd.f32 %v5980, %v5988
    %v5997 = vadd.f32 %v5981, %v5989
    %v5998 = vadd.f32 %v5982, %v5990
    %v5999 = vadd.f32 %v5983, %v5991
    %v6000 = vadd.f32 %v5984, %v5992
    %v6001 = vadd.f32 %v5985, %v5993
    %v6002 = vtanh.pop %v5994
    %v6003 = vtanh.pop %v5995
    %v6004 = vtanh.pop %v5996
    %v6005 = vtanh.pop %v5997
    %v6006 = vtanh.pop %v5998
    %v6007 = vtanh.pop %v5999
    %v6008 = vtanh.pop %v6000
    %v6009 = vtanh.pop %v6001
    %v6010 = vmul.f32 %v5848, %v6002
    %v6011 = vmul.f32 %v5863, %v6003
    %v6012 = vmul.f32 %v5878, %v6004
    %v6013 = vmul.f32 %v5893, %v6005
    %v6014 = vmul.f32 %v5908, %v6006
    %v6015 = vmul.f32 %v5923, %v6007
    %v6016 = vmul.f32 %v5938, %v6008
    %v6017 = vmul.f32 %v5953, %v6009
    %v6026 = vrot.slane %v6011, 7
    %v6027 = vsel %vm1184, %v6026, %v6010
    %v6028 = vrot.slane %v6012, 6
    %v6029 = vsel %vm1187, %v6028, %v6027
    %v6030 = vrot.slane %v6013, 5
    %v6031 = vrot.slane %v6014, 4
    %v6032 = vsel %vm1169, %v6031, %v6030
    %v6033 = vrot.slane %v6015, 3
    %v6034 = vsel %vm1172, %v6033, %v6032
    %v6035 = vrot.slane %v6016, 2
    %v6036 = vsel %vm1175, %v6035, %v6034
    %v6037 = vrot.slane %v6017, 1
    %v6038 = vsel %vm1178, %v6037, %v6036
    %v6040 = vrot.slane %v5298, 3
    %vm6041 = vcmask 1042432
    %v6042 = vrot.slane %v6029, 5
    %v6043 = vrot.slane %v6038, 5
    %v6044 = vsel %vm6041, %v6042, %v6043
    %v6045 = vrot.slane %v6040, 5
    %v6046 = vsel %vm6041, %v6045, %v6045
    %6049 = vmatpush.msra.mxu0 %v166
    %6050 = vmatpush.msra.mxu0 %v162
    %6051 = vmatpush.msra.mxu0 %v158
    %6052 = vmatpush.msra.mxu0 %v154
    %6053 = vmatpush.msra.mxu0 %v150
    %6054 = vmatpush.msra.mxu0 %v146
    %6055 = vmatpush.msra.mxu0 %v142
    %6056 = vmatpush.msra.mxu0 %v138
    %6057 = vmatpush.msra.mxu0 %v134
    %6058 = vmatpush.msra.mxu0 %v130
    %6059 = vmatpush.msra.mxu0 %v126
    %6060 = vmatpush.msra.mxu0 %v122
    %6061 = vmatpush.msra.mxu0 %v118
    %6062 = vmatpush.msra.mxu0 %v114
    %6063 = vmatpush.msra.mxu0 %v110
    %6064 = vmatpush.msra.mxu0 %v106
    %6065 = vmatmul.f32.gmra.mxu0 %v6044
    %v6066 = vpop.f32.mrf.mxu0
    %v6067 = vadd.f32 %v1191, %v6066
    %6068 = vdwg.mxu0
    %6069 = vmatpush.msra.mxu0 %v230
    %6070 = vmatpush.msra.mxu0 %v226
    %6071 = vmatpush.msra.mxu0 %v222
    %6072 = vmatpush.msra.mxu0 %v218
    %6073 = vmatpush.msra.mxu0 %v214
    %6074 = vmatpush.msra.mxu0 %v210
    %6075 = vmatpush.msra.mxu0 %v206
    %6076 = vmatpush.msra.mxu0 %v202
    %6077 = vmatpush.msra.mxu0 %v198
    %6078 = vmatpush.msra.mxu0 %v194
    %6079 = vmatpush.msra.mxu0 %v190
    %6080 = vmatpush.msra.mxu0 %v186
    %6081 = vmatpush.msra.mxu0 %v182
    %6082 = vmatpush.msra.mxu0 %v178
    %6083 = vmatpush.msra.mxu0 %v174
    %6084 = vmatpush.msra.mxu0 %v170
    %6085 = vmatmul.f32.gmra.mxu0 %v6046
    %v6086 = vpop.f32.mrf.mxu0
    %v6087 = vadd.f32 %v6067, %v6086
    %6088 = vdwg.mxu0
    %6089 = vmatpush.msra.mxu0 %v167
    %6090 = vmatpush.msra.mxu0 %v163
    %6091 = vmatpush.msra.mxu0 %v159
    %6092 = vmatpush.msra.mxu0 %v155
    %6093 = vmatpush.msra.mxu0 %v151
    %6094 = vmatpush.msra.mxu0 %v147
    %6095 = vmatpush.msra.mxu0 %v143
    %6096 = vmatpush.msra.mxu0 %v139
    %6097 = vmatpush.msra.mxu0 %v135
    %6098 = vmatpush.msra.mxu0 %v131
    %6099 = vmatpush.msra.mxu0 %v127
    %6100 = vmatpush.msra.mxu0 %v123
    %6101 = vmatpush.msra.mxu0 %v119
    %6102 = vmatpush.msra.mxu0 %v115
    %6103 = vmatpush.msra.mxu0 %v111
    %6104 = vmatpush.msra.mxu0 %v107
    %6105 = vmatmul.f32.gmra.mxu0 %v6044
    %v6106 = vpop.f32.mrf.mxu0
    %v6107 = vadd.f32 %v1192, %v6106
    %6108 = vdwg.mxu0
    %6109 = vmatpush.msra.mxu0 %v231
    %6110 = vmatpush.msra.mxu0 %v227
    %6111 = vmatpush.msra.mxu0 %v223
    %6112 = vmatpush.msra.mxu0 %v219
    %6113 = vmatpush.msra.mxu0 %v215
    %6114 = vmatpush.msra.mxu0 %v211
    %6115 = vmatpush.msra.mxu0 %v207
    %6116 = vmatpush.msra.mxu0 %v203
    %6117 = vmatpush.msra.mxu0 %v199
    %6118 = vmatpush.msra.mxu0 %v195
    %6119 = vmatpush.msra.mxu0 %v191
    %6120 = vmatpush.msra.mxu0 %v187
    %6121 = vmatpush.msra.mxu0 %v183
    %6122 = vmatpush.msra.mxu0 %v179
    %6123 = vmatpush.msra.mxu0 %v175
    %6124 = vmatpush.msra.mxu0 %v171
    %6125 = vmatmul.f32.gmra.mxu0 %v6046
    %v6126 = vpop.f32.mrf.mxu0
    %v6127 = vadd.f32 %v6107, %v6126
    %6128 = vdwg.mxu0
    %6129 = vmatpush.msra.mxu0 %v168
    %6130 = vmatpush.msra.mxu0 %v164
    %6131 = vmatpush.msra.mxu0 %v160
    %6132 = vmatpush.msra.mxu0 %v156
    %6133 = vmatpush.msra.mxu0 %v152
    %6134 = vmatpush.msra.mxu0 %v148
    %6135 = vmatpush.msra.mxu0 %v144
    %6136 = vmatpush.msra.mxu0 %v140
    %6137 = vmatpush.msra.mxu0 %v136
    %6138 = vmatpush.msra.mxu0 %v132
    %6139 = vmatpush.msra.mxu0 %v128
    %6140 = vmatpush.msra.mxu0 %v124
    %6141 = vmatpush.msra.mxu0 %v120
    %6142 = vmatpush.msra.mxu0 %v116
    %6143 = vmatpush.msra.mxu0 %v112
    %6144 = vmatpush.msra.mxu0 %v108
    %6145 = vmatmul.f32.gmra.mxu0 %v6044
    %v6146 = vpop.f32.mrf.mxu0
    %v6147 = vadd.f32 %v1193, %v6146
    %6148 = vdwg.mxu0
    %6149 = vmatpush.msra.mxu0 %v232
    %6150 = vmatpush.msra.mxu0 %v228
    %6151 = vmatpush.msra.mxu0 %v224
    %6152 = vmatpush.msra.mxu0 %v220
    %6153 = vmatpush.msra.mxu0 %v216
    %6154 = vmatpush.msra.mxu0 %v212
    %6155 = vmatpush.msra.mxu0 %v208
    %6156 = vmatpush.msra.mxu0 %v204
    %6157 = vmatpush.msra.mxu0 %v200
    %6158 = vmatpush.msra.mxu0 %v196
    %6159 = vmatpush.msra.mxu0 %v192
    %6160 = vmatpush.msra.mxu0 %v188
    %6161 = vmatpush.msra.mxu0 %v184
    %6162 = vmatpush.msra.mxu0 %v180
    %6163 = vmatpush.msra.mxu0 %v176
    %6164 = vmatpush.msra.mxu0 %v172
    %6165 = vmatmul.f32.gmra.mxu0 %v6046
    %v6166 = vpop.f32.mrf.mxu0
    %v6167 = vadd.f32 %v6147, %v6166
    %6168 = vdwg.mxu0
    %6169 = vmatpush.msra.mxu0 %v169
    %6170 = vmatpush.msra.mxu0 %v165
    %6171 = vmatpush.msra.mxu0 %v161
    %6172 = vmatpush.msra.mxu0 %v157
    %6173 = vmatpush.msra.mxu0 %v153
    %6174 = vmatpush.msra.mxu0 %v149
    %6175 = vmatpush.msra.mxu0 %v145
    %6176 = vmatpush.msra.mxu0 %v141
    %6177 = vmatpush.msra.mxu0 %v137
    %6178 = vmatpush.msra.mxu0 %v133
    %6179 = vmatpush.msra.mxu0 %v129
    %6180 = vmatpush.msra.mxu0 %v125
    %6181 = vmatpush.msra.mxu0 %v121
    %6182 = vmatpush.msra.mxu0 %v117
    %6183 = vmatpush.msra.mxu0 %v113
    %6184 = vmatpush.msra.mxu0 %v109
    %6185 = vmatmul.f32.gmra.mxu0 %v6044
    %v6186 = vpop.f32.mrf.mxu0
    %v6187 = vadd.f32 %v1194, %v6186
    %6188 = vdwg.mxu0
    %6189 = vmatpush.msra.mxu0 %v233
    %6190 = vmatpush.msra.mxu0 %v229
    %6191 = vmatpush.msra.mxu0 %v225
    %6192 = vmatpush.msra.mxu0 %v221
    %6193 = vmatpush.msra.mxu0 %v217
    %6194 = vmatpush.msra.mxu0 %v213
    %6195 = vmatpush.msra.mxu0 %v209
    %6196 = vmatpush.msra.mxu0 %v205
    %6197 = vmatpush.msra.mxu0 %v201
    %6198 = vmatpush.msra.mxu0 %v197
    %6199 = vmatpush.msra.mxu0 %v193
    %6200 = vmatpush.msra.mxu0 %v189
    %6201 = vmatpush.msra.mxu0 %v185
    %6202 = vmatpush.msra.mxu0 %v181
    %6203 = vmatpush.msra.mxu0 %v177
    %6204 = vmatpush.msra.mxu0 %v173
    %6205 = vmatmul.f32.gmra.mxu0 %v6046
    %v6206 = vpop.f32.mrf.mxu0
    %v6207 = vadd.f32 %v6187, %v6206
    %6208 = vdwg.mxu0
    %v6209 = vxor.u32 %v6087, 2147483648
    %v6210 = vmul.f32 %v6209, 1.442695
    %v6211 = vpow.pop %v6210
    %v6212 = vadd.f32 %v6211, 1.0
    %v6213 = vrcp.pop %v6212
    %v6214 = vmul.f32 %v6212, %v6213
    %v6215 = vsub.f32 1.0, %v6214
    %v6216 = vmul.f32 %v6213, %v6215
    %v6217 = vadd.f32 %v6213, %v6216
    %vm6218 = vweird.f32 %v6212
    %vm6219 = vweird.f32 %v6213
    %vm6220 = vmor %vm6218, %vm6219
    %v6221 = vsel %vm6220, %v6213, %v6217
    %v6222 = vand.u32 2147483647, %v6212
    %vm6223 = vcmp.eq.f32.partialorder %v6222, 8.507059e+37
    %v6224 = vand.u32 %v6212, 2147483648
    %v6225 = vor.u32 1.1754944e-38, %v6224
    %v6226 = vsel %vm6223, %v6225, %v6221
    %v6227 = vmul.f32 1.0, %v6226
    %v6228 = vxor.u32 %v6127, 2147483648
    %v6229 = vmul.f32 %v6228, 1.442695
    %v6230 = vpow.pop %v6229
    %v6231 = vadd.f32 %v6230, 1.0
    %v6232 = vrcp.pop %v6231
    %v6233 = vmul.f32 %v6231, %v6232
    %v6234 = vsub.f32 1.0, %v6233
    %v6235 = vmul.f32 %v6232, %v6234
    %v6236 = vadd.f32 %v6232, %v6235
    %vm6237 = vweird.f32 %v6231
    %vm6238 = vweird.f32 %v6232
    %vm6239 = vmor %vm6237, %vm6238
    %v6240 = vsel %vm6239, %v6232, %v6236
    %v6241 = vand.u32 2147483647, %v6231
    %vm6242 = vcmp.eq.f32.partialorder %v6241, 8.507059e+37
    %v6243 = vand.u32 %v6231, 2147483648
    %v6244 = vor.u32 1.1754944e-38, %v6243
    %v6245 = vsel %vm6242, %v6244, %v6240
    %v6246 = vmul.f32 1.0, %v6245
    %v6247 = vtanh.pop %v6167
    %v6248 = vxor.u32 %v6207, 2147483648
    %v6249 = vmul.f32 %v6248, 1.442695
    %v6250 = vpow.pop %v6249
    %v6251 = vadd.f32 %v6250, 1.0
    %v6252 = vrcp.pop %v6251
    %v6253 = vmul.f32 %v6251, %v6252
    %v6254 = vsub.f32 1.0, %v6253
    %v6255 = vmul.f32 %v6252, %v6254
    %v6256 = vadd.f32 %v6252, %v6255
    %vm6257 = vweird.f32 %v6251
    %vm6258 = vweird.f32 %v6252
    %vm6259 = vmor %vm6257, %vm6258
    %v6260 = vsel %vm6259, %v6252, %v6256
    %v6261 = vand.u32 2147483647, %v6251
    %vm6262 = vcmp.eq.f32.partialorder %v6261, 8.507059e+37
    %v6263 = vand.u32 %v6251, 2147483648
    %v6264 = vor.u32 1.1754944e-38, %v6263
    %v6265 = vsel %vm6262, %v6264, %v6260
    %v6266 = vmul.f32 1.0, %v6265
    %v6267 = vmul.f32 %v6246, %v5296
    %v6268 = vmul.f32 %v6227, %v6247
    %v6269 = vadd.f32 %v6267, %v6268
    %v6270 = vtanh.pop %v6269
    %v6271 = vmul.f32 %v6266, %v6270
    %v6272 = vrot.slane %v6010, 5
    %v6273 = vrot.slane %v6011, 4
    %v6274 = vsel %vm1169, %v6273, %v6272
    %v6275 = vrot.slane %v6012, 3
    %v6276 = vsel %vm1172, %v6275, %v6274
    %v6277 = vrot.slane %v6013, 2
    %v6278 = vsel %vm1175, %v6277, %v6276
    %v6279 = vrot.slane %v6014, 1
    %v6280 = vsel %vm1178, %v6279, %v6278
    %v6281 = vsel %vm1181, %v6015, %v6280
    %v6282 = vrot.slane %v6016, 7
    %v6283 = vsel %vm1184, %v6282, %v6281
    %v6284 = vrot.slane %v6017, 6
    %v6285 = vsel %vm1187, %v6284, %v6283
    %6287 = vmatpush.msra.mxu0 %v102
    %6288 = vmatpush.msra.mxu0 %v98
    %6289 = vmatpush.msra.mxu0 %v94
    %6290 = vmatpush.msra.mxu0 %v90
    %6291 = vmatpush.msra.mxu0 %v86
    %6292 = vmatpush.msra.mxu0 %v82
    %6293 = vmatpush.msra.mxu0 %v78
    %6294 = vmatpush.msra.mxu0 %v74
    %6295 = vmatpush.msra.mxu0 %v70
    %6296 = vmatpush.msra.mxu0 %v66
    %6297 = vmatpush.msra.mxu0 %v62
    %6298 = vmatpush.msra.mxu0 %v58
    %6299 = vmatpush.msra.mxu0 %v54
    %6300 = vmatpush.msra.mxu0 %v50
    %6301 = vmatpush.msra.mxu0 %v46
    %6302 = vmatpush.msra.mxu0 %v42
    %6303 = vmatmul.f32.gmra.mxu0 %v6285
    %v6304 = vpop.f32.mrf.mxu0
    %v6305 = vadd.f32 0.0, %v6304
    %6306 = vdwg.mxu0
    %6307 = vmatpush.msra.mxu0 %v103
    %6308 = vmatpush.msra.mxu0 %v99
    %6309 = vmatpush.msra.mxu0 %v95
    %6310 = vmatpush.msra.mxu0 %v91
    %6311 = vmatpush.msra.mxu0 %v87
    %6312 = vmatpush.msra.mxu0 %v83
    %6313 = vmatpush.msra.mxu0 %v79
    %6314 = vmatpush.msra.mxu0 %v75
    %6315 = vmatpush.msra.mxu0 %v71
    %6316 = vmatpush.msra.mxu0 %v67
    %6317 = vmatpush.msra.mxu0 %v63
    %6318 = vmatpush.msra.mxu0 %v59
    %6319 = vmatpush.msra.mxu0 %v55
    %6320 = vmatpush.msra.mxu0 %v51
    %6321 = vmatpush.msra.mxu0 %v47
    %6322 = vmatpush.msra.mxu0 %v43
    %6323 = vmatmul.f32.gmra.mxu0 %v6285
    %v6324 = vpop.f32.mrf.mxu0
    %v6325 = vadd.f32 0.0, %v6324
    %6326 = vdwg.mxu0
    %6327 = vmatpush.msra.mxu0 %v104
    %6328 = vmatpush.msra.mxu0 %v100
    %6329 = vmatpush.msra.mxu0 %v96
    %6330 = vmatpush.msra.mxu0 %v92
    %6331 = vmatpush.msra.mxu0 %v88
    %6332 = vmatpush.msra.mxu0 %v84
    %6333 = vmatpush.msra.mxu0 %v80
    %6334 = vmatpush.msra.mxu0 %v76
    %6335 = vmatpush.msra.mxu0 %v72
    %6336 = vmatpush.msra.mxu0 %v68
    %6337 = vmatpush.msra.mxu0 %v64
    %6338 = vmatpush.msra.mxu0 %v60
    %6339 = vmatpush.msra.mxu0 %v56
    %6340 = vmatpush.msra.mxu0 %v52
    %6341 = vmatpush.msra.mxu0 %v48
    %6342 = vmatpush.msra.mxu0 %v44
    %6343 = vmatmul.f32.gmra.mxu0 %v6285
    %v6344 = vpop.f32.mrf.mxu0
    %v6345 = vadd.f32 0.0, %v6344
    %6346 = vdwg.mxu0
    %6347 = vmatpush.msra.mxu0 %v105
    %6348 = vmatpush.msra.mxu0 %v101
    %6349 = vmatpush.msra.mxu0 %v97
    %6350 = vmatpush.msra.mxu0 %v93
    %6351 = vmatpush.msra.mxu0 %v89
    %6352 = vmatpush.msra.mxu0 %v85
    %6353 = vmatpush.msra.mxu0 %v81
    %6354 = vmatpush.msra.mxu0 %v77
    %6355 = vmatpush.msra.mxu0 %v73
    %6356 = vmatpush.msra.mxu0 %v69
    %6357 = vmatpush.msra.mxu0 %v65
    %6358 = vmatpush.msra.mxu0 %v61
    %6359 = vmatpush.msra.mxu0 %v57
    %6360 = vmatpush.msra.mxu0 %v53
    %6361 = vmatpush.msra.mxu0 %v49
    %6362 = vmatpush.msra.mxu0 %v45
    %6363 = vmatmul.f32.gmra.mxu0 %v6285
    %v6364 = vpop.f32.mrf.mxu0
    %v6365 = vadd.f32 0.0, %v6364
    %6366 = vdwg.mxu0
    %v6371 = vrot.slane %v6305, 2
    %v6372 = vrot.slane %v6325, 2
    %v6373 = vrot.slane %v6345, 2
    %v6374 = vrot.slane %v6365, 2
    %v6375 = vrot.slane %v6305, 3
    %v6376 = vrot.slane %v6325, 3
    %v6377 = vrot.slane %v6345, 3
    %v6378 = vrot.slane %v6365, 3
    %v6379 = vrot.slane %v6305, 4
    %v6380 = vrot.slane %v6325, 4
    %v6381 = vrot.slane %v6345, 4
    %v6382 = vrot.slane %v6365, 4
    %v6383 = vrot.slane %v6305, 5
    %v6384 = vrot.slane %v6325, 5
    %v6385 = vrot.slane %v6345, 5
    %v6386 = vrot.slane %v6365, 5
    %v6387 = vrot.slane %v6305, 6
    %v6388 = vrot.slane %v6325, 6
    %v6389 = vrot.slane %v6345, 6
    %v6390 = vrot.slane %v6365, 6
    %v6391 = vrot.slane %v6305, 7
    %v6392 = vrot.slane %v6325, 7
    %v6393 = vrot.slane %v6345, 7
    %v6394 = vrot.slane %v6365, 7
    %v6395 = vrot.slane %v6305, 1
    %v6396 = vrot.slane %v6325, 1
    %v6397 = vrot.slane %v6345, 1
    %v6398 = vrot.slane %v6365, 1
    %v6431 = vadd.f32 %v312, %v6371
    %v6432 = vadd.f32 %v353, %v6372
    %v6433 = vadd.f32 %v394, %v6373
    %v6434 = vadd.f32 %v435, %v6374
    %v6435 = vadd.f32 %v315, %v6375
    %v6436 = vadd.f32 %v356, %v6376
    %v6437 = vadd.f32 %v397, %v6377
    %v6438 = vadd.f32 %v438, %v6378
    %v6439 = vadd.f32 %v318, %v6379
    %v6440 = vadd.f32 %v359, %v6380
    %v6441 = vadd.f32 %v400, %v6381
    %v6442 = vadd.f32 %v441, %v6382
    %v6443 = vadd.f32 %v321, %v6383
    %v6444 = vadd.f32 %v362, %v6384
    %v6445 = vadd.f32 %v403, %v6385
    %v6446 = vadd.f32 %v444, %v6386
    %v6447 = vadd.f32 %v324, %v6387
    %v6448 = vadd.f32 %v365, %v6388
    %v6449 = vadd.f32 %v406, %v6389
    %v6450 = vadd.f32 %v447, %v6390
    %v6451 = vadd.f32 %v327, %v6391
    %v6452 = vadd.f32 %v368, %v6392
    %v6453 = vadd.f32 %v409, %v6393
    %v6454 = vadd.f32 %v450, %v6394
    %v6455 = vadd.f32 %v330, %v6305
    %v6456 = vadd.f32 %v371, %v6325
    %v6457 = vadd.f32 %v412, %v6345
    %v6458 = vadd.f32 %v453, %v6365
    %v6459 = vadd.f32 %v333, %v6395
    %v6460 = vadd.f32 %v374, %v6396
    %v6461 = vadd.f32 %v415, %v6397
    %v6462 = vadd.f32 %v456, %v6398
    %v6463 = vxor.u32 %v6431, 2147483648
    %v6464 = vxor.u32 %v6435, 2147483648
    %v6465 = vxor.u32 %v6439, 2147483648
    %v6466 = vxor.u32 %v6443, 2147483648
    %v6467 = vxor.u32 %v6447, 2147483648
    %v6468 = vxor.u32 %v6451, 2147483648
    %v6469 = vxor.u32 %v6455, 2147483648
    %v6470 = vxor.u32 %v6459, 2147483648
    %v6471 = vmul.f32 %v6463, 1.442695
    %v6472 = vpow.pop %v6471
    %v6473 = vmul.f32 %v6464, 1.442695
    %v6474 = vpow.pop %v6473
    %v6475 = vmul.f32 %v6465, 1.442695
    %v6476 = vpow.pop %v6475
    %v6477 = vmul.f32 %v6466, 1.442695
    %v6478 = vpow.pop %v6477
    %v6479 = vmul.f32 %v6467, 1.442695
    %v6480 = vpow.pop %v6479
    %v6481 = vmul.f32 %v6468, 1.442695
    %v6482 = vpow.pop %v6481
    %v6483 = vmul.f32 %v6469, 1.442695
    %v6484 = vpow.pop %v6483
    %v6485 = vmul.f32 %v6470, 1.442695
    %v6486 = vpow.pop %v6485
    %v6487 = vadd.f32 %v6472, 1.0
    %v6488 = vadd.f32 %v6474, 1.0
    %v6489 = vadd.f32 %v6476, 1.0
    %v6490 = vadd.f32 %v6478, 1.0
    %v6491 = vadd.f32 %v6480, 1.0
    %v6492 = vadd.f32 %v6482, 1.0
    %v6493 = vadd.f32 %v6484, 1.0
    %v6494 = vadd.f32 %v6486, 1.0
    %v6495 = vrcp.pop %v6487
    %v6496 = vmul.f32 %v6487, %v6495
    %v6497 = vsub.f32 1.0, %v6496
    %v6498 = vmul.f32 %v6495, %v6497
    %v6499 = vadd.f32 %v6495, %v6498
    %vm6500 = vweird.f32 %v6487
    %vm6501 = vweird.f32 %v6495
    %vm6502 = vmor %vm6500, %vm6501
    %v6503 = vsel %vm6502, %v6495, %v6499
    %v6504 = vand.u32 2147483647, %v6487
    %vm6505 = vcmp.eq.f32.partialorder %v6504, 8.507059e+37
    %v6506 = vand.u32 %v6487, 2147483648
    %v6507 = vor.u32 1.1754944e-38, %v6506
    %v6508 = vsel %vm6505, %v6507, %v6503
    %v6509 = vmul.f32 1.0, %v6508
    %v6510 = vrcp.pop %v6488
    %v6511 = vmul.f32 %v6488, %v6510
    %v6512 = vsub.f32 1.0, %v6511
    %v6513 = vmul.f32 %v6510, %v6512
    %v6514 = vadd.f32 %v6510, %v6513
    %vm6515 = vweird.f32 %v6488
    %vm6516 = vweird.f32 %v6510
    %vm6517 = vmor %vm6515, %vm6516
    %v6518 = vsel %vm6517, %v6510, %v6514
    %v6519 = vand.u32 2147483647, %v6488
    %vm6520 = vcmp.eq.f32.partialorder %v6519, 8.507059e+37
    %v6521 = vand.u32 %v6488, 2147483648
    %v6522 = vor.u32 1.1754944e-38, %v6521
    %v6523 = vsel %vm6520, %v6522, %v6518
    %v6524 = vmul.f32 1.0, %v6523
    %v6525 = vrcp.pop %v6489
    %v6526 = vmul.f32 %v6489, %v6525
    %v6527 = vsub.f32 1.0, %v6526
    %v6528 = vmul.f32 %v6525, %v6527
    %v6529 = vadd.f32 %v6525, %v6528
    %vm6530 = vweird.f32 %v6489
    %vm6531 = vweird.f32 %v6525
    %vm6532 = vmor %vm6530, %vm6531
    %v6533 = vsel %vm6532, %v6525, %v6529
    %v6534 = vand.u32 2147483647, %v6489
    %vm6535 = vcmp.eq.f32.partialorder %v6534, 8.507059e+37
    %v6536 = vand.u32 %v6489, 2147483648
    %v6537 = vor.u32 1.1754944e-38, %v6536
    %v6538 = vsel %vm6535, %v6537, %v6533
    %v6539 = vmul.f32 1.0, %v6538
    %v6540 = vrcp.pop %v6490
    %v6541 = vmul.f32 %v6490, %v6540
    %v6542 = vsub.f32 1.0, %v6541
    %v6543 = vmul.f32 %v6540, %v6542
    %v6544 = vadd.f32 %v6540, %v6543
    %vm6545 = vweird.f32 %v6490
    %vm6546 = vweird.f32 %v6540
    %vm6547 = vmor %vm6545, %vm6546
    %v6548 = vsel %vm6547, %v6540, %v6544
    %v6549 = vand.u32 2147483647, %v6490
    %vm6550 = vcmp.eq.f32.partialorder %v6549, 8.507059e+37
    %v6551 = vand.u32 %v6490, 2147483648
    %v6552 = vor.u32 1.1754944e-38, %v6551
    %v6553 = vsel %vm6550, %v6552, %v6548
    %v6554 = vmul.f32 1.0, %v6553
    %v6555 = vrcp.pop %v6491
    %v6556 = vmul.f32 %v6491, %v6555
    %v6557 = vsub.f32 1.0, %v6556
    %v6558 = vmul.f32 %v6555, %v6557
    %v6559 = vadd.f32 %v6555, %v6558
    %vm6560 = vweird.f32 %v6491
    %vm6561 = vweird.f32 %v6555
    %vm6562 = vmor %vm6560, %vm6561
    %v6563 = vsel %vm6562, %v6555, %v6559
    %v6564 = vand.u32 2147483647, %v6491
    %vm6565 = vcmp.eq.f32.partialorder %v6564, 8.507059e+37
    %v6566 = vand.u32 %v6491, 2147483648
    %v6567 = vor.u32 1.1754944e-38, %v6566
    %v6568 = vsel %vm6565, %v6567, %v6563
    %v6569 = vmul.f32 1.0, %v6568
    %v6570 = vrcp.pop %v6492
    %v6571 = vmul.f32 %v6492, %v6570
    %v6572 = vsub.f32 1.0, %v6571
    %v6573 = vmul.f32 %v6570, %v6572
    %v6574 = vadd.f32 %v6570, %v6573
    %vm6575 = vweird.f32 %v6492
    %vm6576 = vweird.f32 %v6570
    %vm6577 = vmor %vm6575, %vm6576
    %v6578 = vsel %vm6577, %v6570, %v6574
    %v6579 = vand.u32 2147483647, %v6492
    %vm6580 = vcmp.eq.f32.partialorder %v6579, 8.507059e+37
    %v6581 = vand.u32 %v6492, 2147483648
    %v6582 = vor.u32 1.1754944e-38, %v6581
    %v6583 = vsel %vm6580, %v6582, %v6578
    %v6584 = vmul.f32 1.0, %v6583
    %v6585 = vrcp.pop %v6493
    %v6586 = vmul.f32 %v6493, %v6585
    %v6587 = vsub.f32 1.0, %v6586
    %v6588 = vmul.f32 %v6585, %v6587
    %v6589 = vadd.f32 %v6585, %v6588
    %vm6590 = vweird.f32 %v6493
    %vm6591 = vweird.f32 %v6585
    %vm6592 = vmor %vm6590, %vm6591
    %v6593 = vsel %vm6592, %v6585, %v6589
    %v6594 = vand.u32 2147483647, %v6493
    %vm6595 = vcmp.eq.f32.partialorder %v6594, 8.507059e+37
    %v6596 = vand.u32 %v6493, 2147483648
    %v6597 = vor.u32 1.1754944e-38, %v6596
    %v6598 = vsel %vm6595, %v6597, %v6593
    %v6599 = vmul.f32 1.0, %v6598
    %v6600 = vrcp.pop %v6494
    %v6601 = vmul.f32 %v6494, %v6600
    %v6602 = vsub.f32 1.0, %v6601
    %v6603 = vmul.f32 %v6600, %v6602
    %v6604 = vadd.f32 %v6600, %v6603
    %vm6605 = vweird.f32 %v6494
    %vm6606 = vweird.f32 %v6600
    %vm6607 = vmor %vm6605, %vm6606
    %v6608 = vsel %vm6607, %v6600, %v6604
    %v6609 = vand.u32 2147483647, %v6494
    %vm6610 = vcmp.eq.f32.partialorder %v6609, 8.507059e+37
    %v6611 = vand.u32 %v6494, 2147483648
    %v6612 = vor.u32 1.1754944e-38, %v6611
    %v6613 = vsel %vm6610, %v6612, %v6608
    %v6614 = vmul.f32 1.0, %v6613
    %v6615 = vxor.u32 %v6432, 2147483648
    %v6616 = vxor.u32 %v6436, 2147483648
    %v6617 = vxor.u32 %v6440, 2147483648
    %v6618 = vxor.u32 %v6444, 2147483648
    %v6619 = vxor.u32 %v6448, 2147483648
    %v6620 = vxor.u32 %v6452, 2147483648
    %v6621 = vxor.u32 %v6456, 2147483648
    %v6622 = vxor.u32 %v6460, 2147483648
    %v6623 = vmul.f32 %v6615, 1.442695
    %v6624 = vpow.pop %v6623
    %v6625 = vmul.f32 %v6616, 1.442695
    %v6626 = vpow.pop %v6625
    %v6627 = vmul.f32 %v6617, 1.442695
    %v6628 = vpow.pop %v6627
    %v6629 = vmul.f32 %v6618, 1.442695
    %v6630 = vpow.pop %v6629
    %v6631 = vmul.f32 %v6619, 1.442695
    %v6632 = vpow.pop %v6631
    %v6633 = vmul.f32 %v6620, 1.442695
    %v6634 = vpow.pop %v6633
    %v6635 = vmul.f32 %v6621, 1.442695
    %v6636 = vpow.pop %v6635
    %v6637 = vmul.f32 %v6622, 1.442695
    %v6638 = vpow.pop %v6637
    %v6639 = vadd.f32 %v6624, 1.0
    %v6640 = vadd.f32 %v6626, 1.0
    %v6641 = vadd.f32 %v6628, 1.0
    %v6642 = vadd.f32 %v6630, 1.0
    %v6643 = vadd.f32 %v6632, 1.0
    %v6644 = vadd.f32 %v6634, 1.0
    %v6645 = vadd.f32 %v6636, 1.0
    %v6646 = vadd.f32 %v6638, 1.0
    %v6647 = vrcp.pop %v6639
    %v6648 = vmul.f32 %v6639, %v6647
    %v6649 = vsub.f32 1.0, %v6648
    %v6650 = vmul.f32 %v6647, %v6649
    %v6651 = vadd.f32 %v6647, %v6650
    %vm6652 = vweird.f32 %v6639
    %vm6653 = vweird.f32 %v6647
    %vm6654 = vmor %vm6652, %vm6653
    %v6655 = vsel %vm6654, %v6647, %v6651
    %v6656 = vand.u32 2147483647, %v6639
    %vm6657 = vcmp.eq.f32.partialorder %v6656, 8.507059e+37
    %v6658 = vand.u32 %v6639, 2147483648
    %v6659 = vor.u32 1.1754944e-38, %v6658
    %v6660 = vsel %vm6657, %v6659, %v6655
    %v6661 = vmul.f32 1.0, %v6660
    %v6662 = vrcp.pop %v6640
    %v6663 = vmul.f32 %v6640, %v6662
    %v6664 = vsub.f32 1.0, %v6663
    %v6665 = vmul.f32 %v6662, %v6664
    %v6666 = vadd.f32 %v6662, %v6665
    %vm6667 = vweird.f32 %v6640
    %vm6668 = vweird.f32 %v6662
    %vm6669 = vmor %vm6667, %vm6668
    %v6670 = vsel %vm6669, %v6662, %v6666
    %v6671 = vand.u32 2147483647, %v6640
    %vm6672 = vcmp.eq.f32.partialorder %v6671, 8.507059e+37
    %v6673 = vand.u32 %v6640, 2147483648
    %v6674 = vor.u32 1.1754944e-38, %v6673
    %v6675 = vsel %vm6672, %v6674, %v6670
    %v6676 = vmul.f32 1.0, %v6675
    %v6677 = vrcp.pop %v6641
    %v6678 = vmul.f32 %v6641, %v6677
    %v6679 = vsub.f32 1.0, %v6678
    %v6680 = vmul.f32 %v6677, %v6679
    %v6681 = vadd.f32 %v6677, %v6680
    %vm6682 = vweird.f32 %v6641
    %vm6683 = vweird.f32 %v6677
    %vm6684 = vmor %vm6682, %vm6683
    %v6685 = vsel %vm6684, %v6677, %v6681
    %v6686 = vand.u32 2147483647, %v6641
    %vm6687 = vcmp.eq.f32.partialorder %v6686, 8.507059e+37
    %v6688 = vand.u32 %v6641, 2147483648
    %v6689 = vor.u32 1.1754944e-38, %v6688
    %v6690 = vsel %vm6687, %v6689, %v6685
    %v6691 = vmul.f32 1.0, %v6690
    %v6692 = vrcp.pop %v6642
    %v6693 = vmul.f32 %v6642, %v6692
    %v6694 = vsub.f32 1.0, %v6693
    %v6695 = vmul.f32 %v6692, %v6694
    %v6696 = vadd.f32 %v6692, %v6695
    %vm6697 = vweird.f32 %v6642
    %vm6698 = vweird.f32 %v6692
    %vm6699 = vmor %vm6697, %vm6698
    %v6700 = vsel %vm6699, %v6692, %v6696
    %v6701 = vand.u32 2147483647, %v6642
    %vm6702 = vcmp.eq.f32.partialorder %v6701, 8.507059e+37
    %v6703 = vand.u32 %v6642, 2147483648
    %v6704 = vor.u32 1.1754944e-38, %v6703
    %v6705 = vsel %vm6702, %v6704, %v6700
    %v6706 = vmul.f32 1.0, %v6705
    %v6707 = vrcp.pop %v6643
    %v6708 = vmul.f32 %v6643, %v6707
    %v6709 = vsub.f32 1.0, %v6708
    %v6710 = vmul.f32 %v6707, %v6709
    %v6711 = vadd.f32 %v6707, %v6710
    %vm6712 = vweird.f32 %v6643
    %vm6713 = vweird.f32 %v6707
    %vm6714 = vmor %vm6712, %vm6713
    %v6715 = vsel %vm6714, %v6707, %v6711
    %v6716 = vand.u32 2147483647, %v6643
    %vm6717 = vcmp.eq.f32.partialorder %v6716, 8.507059e+37
    %v6718 = vand.u32 %v6643, 2147483648
    %v6719 = vor.u32 1.1754944e-38, %v6718
    %v6720 = vsel %vm6717, %v6719, %v6715
    %v6721 = vmul.f32 1.0, %v6720
    %v6722 = vrcp.pop %v6644
    %v6723 = vmul.f32 %v6644, %v6722
    %v6724 = vsub.f32 1.0, %v6723
    %v6725 = vmul.f32 %v6722, %v6724
    %v6726 = vadd.f32 %v6722, %v6725
    %vm6727 = vweird.f32 %v6644
    %vm6728 = vweird.f32 %v6722
    %vm6729 = vmor %vm6727, %vm6728
    %v6730 = vsel %vm6729, %v6722, %v6726
    %v6731 = vand.u32 2147483647, %v6644
    %vm6732 = vcmp.eq.f32.partialorder %v6731, 8.507059e+37
    %v6733 = vand.u32 %v6644, 2147483648
    %v6734 = vor.u32 1.1754944e-38, %v6733
    %v6735 = vsel %vm6732, %v6734, %v6730
    %v6736 = vmul.f32 1.0, %v6735
    %v6737 = vrcp.pop %v6645
    %v6738 = vmul.f32 %v6645, %v6737
    %v6739 = vsub.f32 1.0, %v6738
    %v6740 = vmul.f32 %v6737, %v6739
    %v6741 = vadd.f32 %v6737, %v6740
    %vm6742 = vweird.f32 %v6645
    %vm6743 = vweird.f32 %v6737
    %vm6744 = vmor %vm6742, %vm6743
    %v6745 = vsel %vm6744, %v6737, %v6741
    %v6746 = vand.u32 2147483647, %v6645
    %vm6747 = vcmp.eq.f32.partialorder %v6746, 8.507059e+37
    %v6748 = vand.u32 %v6645, 2147483648
    %v6749 = vor.u32 1.1754944e-38, %v6748
    %v6750 = vsel %vm6747, %v6749, %v6745
    %v6751 = vmul.f32 1.0, %v6750
    %v6752 = vrcp.pop %v6646
    %v6753 = vmul.f32 %v6646, %v6752
    %v6754 = vsub.f32 1.0, %v6753
    %v6755 = vmul.f32 %v6752, %v6754
    %v6756 = vadd.f32 %v6752, %v6755
    %vm6757 = vweird.f32 %v6646
    %vm6758 = vweird.f32 %v6752
    %vm6759 = vmor %vm6757, %vm6758
    %v6760 = vsel %vm6759, %v6752, %v6756
    %v6761 = vand.u32 2147483647, %v6646
    %vm6762 = vcmp.eq.f32.partialorder %v6761, 8.507059e+37
    %v6763 = vand.u32 %v6646, 2147483648
    %v6764 = vor.u32 1.1754944e-38, %v6763
    %v6765 = vsel %vm6762, %v6764, %v6760
    %v6766 = vmul.f32 1.0, %v6765
    %v6767 = vtanh.pop %v6433
    %v6768 = vtanh.pop %v6437
    %v6769 = vtanh.pop %v6441
    %v6770 = vtanh.pop %v6445
    %v6771 = vtanh.pop %v6449
    %v6772 = vtanh.pop %v6453
    %v6773 = vtanh.pop %v6457
    %v6774 = vtanh.pop %v6461
    %v6775 = vxor.u32 %v6434, 2147483648
    %v6776 = vxor.u32 %v6438, 2147483648
    %v6777 = vxor.u32 %v6442, 2147483648
    %v6778 = vxor.u32 %v6446, 2147483648
    %v6779 = vxor.u32 %v6450, 2147483648
    %v6780 = vxor.u32 %v6454, 2147483648
    %v6781 = vxor.u32 %v6458, 2147483648
    %v6782 = vxor.u32 %v6462, 2147483648
    %v6783 = vmul.f32 %v6775, 1.442695
    %v6784 = vpow.pop %v6783
    %v6785 = vmul.f32 %v6776, 1.442695
    %v6786 = vpow.pop %v6785
    %v6787 = vmul.f32 %v6777, 1.442695
    %v6788 = vpow.pop %v6787
    %v6789 = vmul.f32 %v6778, 1.442695
    %v6790 = vpow.pop %v6789
    %v6791 = vmul.f32 %v6779, 1.442695
    %v6792 = vpow.pop %v6791
    %v6793 = vmul.f32 %v6780, 1.442695
    %v6794 = vpow.pop %v6793
    %v6795 = vmul.f32 %v6781, 1.442695
    %v6796 = vpow.pop %v6795
    %v6797 = vmul.f32 %v6782, 1.442695
    %v6798 = vpow.pop %v6797
    %v6799 = vadd.f32 %v6784, 1.0
    %v6800 = vadd.f32 %v6786, 1.0
    %v6801 = vadd.f32 %v6788, 1.0
    %v6802 = vadd.f32 %v6790, 1.0
    %v6803 = vadd.f32 %v6792, 1.0
    %v6804 = vadd.f32 %v6794, 1.0
    %v6805 = vadd.f32 %v6796, 1.0
    %v6806 = vadd.f32 %v6798, 1.0
    %v6807 = vrcp.pop %v6799
    %v6808 = vmul.f32 %v6799, %v6807
    %v6809 = vsub.f32 1.0, %v6808
    %v6810 = vmul.f32 %v6807, %v6809
    %v6811 = vadd.f32 %v6807, %v6810
    %vm6812 = vweird.f32 %v6799
    %vm6813 = vweird.f32 %v6807
    %vm6814 = vmor %vm6812, %vm6813
    %v6815 = vsel %vm6814, %v6807, %v6811
    %v6816 = vand.u32 2147483647, %v6799
    %vm6817 = vcmp.eq.f32.partialorder %v6816, 8.507059e+37
    %v6818 = vand.u32 %v6799, 2147483648
    %v6819 = vor.u32 1.1754944e-38, %v6818
    %v6820 = vsel %vm6817, %v6819, %v6815
    %v6821 = vmul.f32 1.0, %v6820
    %v6822 = vrcp.pop %v6800
    %v6823 = vmul.f32 %v6800, %v6822
    %v6824 = vsub.f32 1.0, %v6823
    %v6825 = vmul.f32 %v6822, %v6824
    %v6826 = vadd.f32 %v6822, %v6825
    %vm6827 = vweird.f32 %v6800
    %vm6828 = vweird.f32 %v6822
    %vm6829 = vmor %vm6827, %vm6828
    %v6830 = vsel %vm6829, %v6822, %v6826
    %v6831 = vand.u32 2147483647, %v6800
    %vm6832 = vcmp.eq.f32.partialorder %v6831, 8.507059e+37
    %v6833 = vand.u32 %v6800, 2147483648
    %v6834 = vor.u32 1.1754944e-38, %v6833
    %v6835 = vsel %vm6832, %v6834, %v6830
    %v6836 = vmul.f32 1.0, %v6835
    %v6837 = vrcp.pop %v6801
    %v6838 = vmul.f32 %v6801, %v6837
    %v6839 = vsub.f32 1.0, %v6838
    %v6840 = vmul.f32 %v6837, %v6839
    %v6841 = vadd.f32 %v6837, %v6840
    %vm6842 = vweird.f32 %v6801
    %vm6843 = vweird.f32 %v6837
    %vm6844 = vmor %vm6842, %vm6843
    %v6845 = vsel %vm6844, %v6837, %v6841
    %v6846 = vand.u32 2147483647, %v6801
    %vm6847 = vcmp.eq.f32.partialorder %v6846, 8.507059e+37
    %v6848 = vand.u32 %v6801, 2147483648
    %v6849 = vor.u32 1.1754944e-38, %v6848
    %v6850 = vsel %vm6847, %v6849, %v6845
    %v6851 = vmul.f32 1.0, %v6850
    %v6852 = vrcp.pop %v6802
    %v6853 = vmul.f32 %v6802, %v6852
    %v6854 = vsub.f32 1.0, %v6853
    %v6855 = vmul.f32 %v6852, %v6854
    %v6856 = vadd.f32 %v6852, %v6855
    %vm6857 = vweird.f32 %v6802
    %vm6858 = vweird.f32 %v6852
    %vm6859 = vmor %vm6857, %vm6858
    %v6860 = vsel %vm6859, %v6852, %v6856
    %v6861 = vand.u32 2147483647, %v6802
    %vm6862 = vcmp.eq.f32.partialorder %v6861, 8.507059e+37
    %v6863 = vand.u32 %v6802, 2147483648
    %v6864 = vor.u32 1.1754944e-38, %v6863
    %v6865 = vsel %vm6862, %v6864, %v6860
    %v6866 = vmul.f32 1.0, %v6865
    %v6867 = vrcp.pop %v6803
    %v6868 = vmul.f32 %v6803, %v6867
    %v6869 = vsub.f32 1.0, %v6868
    %v6870 = vmul.f32 %v6867, %v6869
    %v6871 = vadd.f32 %v6867, %v6870
    %vm6872 = vweird.f32 %v6803
    %vm6873 = vweird.f32 %v6867
    %vm6874 = vmor %vm6872, %vm6873
    %v6875 = vsel %vm6874, %v6867, %v6871
    %v6876 = vand.u32 2147483647, %v6803
    %vm6877 = vcmp.eq.f32.partialorder %v6876, 8.507059e+37
    %v6878 = vand.u32 %v6803, 2147483648
    %v6879 = vor.u32 1.1754944e-38, %v6878
    %v6880 = vsel %vm6877, %v6879, %v6875
    %v6881 = vmul.f32 1.0, %v6880
    %v6882 = vrcp.pop %v6804
    %v6883 = vmul.f32 %v6804, %v6882
    %v6884 = vsub.f32 1.0, %v6883
    %v6885 = vmul.f32 %v6882, %v6884
    %v6886 = vadd.f32 %v6882, %v6885
    %vm6887 = vweird.f32 %v6804
    %vm6888 = vweird.f32 %v6882
    %vm6889 = vmor %vm6887, %vm6888
    %v6890 = vsel %vm6889, %v6882, %v6886
    %v6891 = vand.u32 2147483647, %v6804
    %vm6892 = vcmp.eq.f32.partialorder %v6891, 8.507059e+37
    %v6893 = vand.u32 %v6804, 2147483648
    %v6894 = vor.u32 1.1754944e-38, %v6893
    %v6895 = vsel %vm6892, %v6894, %v6890
    %v6896 = vmul.f32 1.0, %v6895
    %v6897 = vrcp.pop %v6805
    %v6898 = vmul.f32 %v6805, %v6897
    %v6899 = vsub.f32 1.0, %v6898
    %v6900 = vmul.f32 %v6897, %v6899
    %v6901 = vadd.f32 %v6897, %v6900
    %vm6902 = vweird.f32 %v6805
    %vm6903 = vweird.f32 %v6897
    %vm6904 = vmor %vm6902, %vm6903
    %v6905 = vsel %vm6904, %v6897, %v6901
    %v6906 = vand.u32 2147483647, %v6805
    %vm6907 = vcmp.eq.f32.partialorder %v6906, 8.507059e+37
    %v6908 = vand.u32 %v6805, 2147483648
    %v6909 = vor.u32 1.1754944e-38, %v6908
    %v6910 = vsel %vm6907, %v6909, %v6905
    %v6911 = vmul.f32 1.0, %v6910
    %v6912 = vrcp.pop %v6806
    %v6913 = vmul.f32 %v6806, %v6912
    %v6914 = vsub.f32 1.0, %v6913
    %v6915 = vmul.f32 %v6912, %v6914
    %v6916 = vadd.f32 %v6912, %v6915
    %vm6917 = vweird.f32 %v6806
    %vm6918 = vweird.f32 %v6912
    %vm6919 = vmor %vm6917, %vm6918
    %v6920 = vsel %vm6919, %v6912, %v6916
    %v6921 = vand.u32 2147483647, %v6806
    %vm6922 = vcmp.eq.f32.partialorder %v6921, 8.507059e+37
    %v6923 = vand.u32 %v6806, 2147483648
    %v6924 = vor.u32 1.1754944e-38, %v6923
    %v6925 = vsel %vm6922, %v6924, %v6920
    %v6926 = vmul.f32 1.0, %v6925
    %v6935 = vrot.slane %v5994, 7
    %v6936 = vrot.slane %v5995, 7
    %v6937 = vrot.slane %v5996, 7
    %v6938 = vrot.slane %v5997, 7
    %v6939 = vrot.slane %v5998, 7
    %v6940 = vrot.slane %v5999, 7
    %v6941 = vrot.slane %v6000, 7
    %v6942 = vrot.slane %v6001, 7
    %v6951 = vmul.f32 %v6661, %v6935
    %v6952 = vmul.f32 %v6676, %v6936
    %v6953 = vmul.f32 %v6691, %v6937
    %v6954 = vmul.f32 %v6706, %v6938
    %v6955 = vmul.f32 %v6721, %v6939
    %v6956 = vmul.f32 %v6736, %v6940
    %v6957 = vmul.f32 %v6751, %v6941
    %v6958 = vmul.f32 %v6766, %v6942
    %v6959 = vmul.f32 %v6509, %v6767
    %v6960 = vmul.f32 %v6524, %v6768
    %v6961 = vmul.f32 %v6539, %v6769
    %v6962 = vmul.f32 %v6554, %v6770
    %v6963 = vmul.f32 %v6569, %v6771
    %v6964 = vmul.f32 %v6584, %v6772
    %v6965 = vmul.f32 %v6599, %v6773
    %v6966 = vmul.f32 %v6614, %v6774
    %v6967 = vadd.f32 %v6951, %v6959
    %v6968 = vadd.f32 %v6952, %v6960
    %v6969 = vadd.f32 %v6953, %v6961
    %v6970 = vadd.f32 %v6954, %v6962
    %v6971 = vadd.f32 %v6955, %v6963
    %v6972 = vadd.f32 %v6956, %v6964
    %v6973 = vadd.f32 %v6957, %v6965
    %v6974 = vadd.f32 %v6958, %v6966
    %v6975 = vtanh.pop %v6967
    %v6976 = vtanh.pop %v6968
    %v6977 = vtanh.pop %v6969
    %v6978 = vtanh.pop %v6970
    %v6979 = vtanh.pop %v6971
    %v6980 = vtanh.pop %v6972
    %v6981 = vtanh.pop %v6973
    %v6982 = vtanh.pop %v6974
    %v6983 = vmul.f32 %v6821, %v6975
    %v6984 = vmul.f32 %v6836, %v6976
    %v6985 = vmul.f32 %v6851, %v6977
    %v6986 = vmul.f32 %v6866, %v6978
    %v6987 = vmul.f32 %v6881, %v6979
    %v6988 = vmul.f32 %v6896, %v6980
    %v6989 = vmul.f32 %v6911, %v6981
    %v6990 = vmul.f32 %v6926, %v6982
    %v6999 = vrot.slane %v6984, 7
    %v7000 = vsel %vm1187, %v6999, %v6983
    %v7001 = vrot.slane %v6985, 6
    %v7002 = vrot.slane %v6986, 5
    %v7003 = vsel %vm1169, %v7002, %v7001
    %v7004 = vrot.slane %v6987, 4
    %v7005 = vsel %vm1172, %v7004, %v7003
    %v7006 = vrot.slane %v6988, 3
    %v7007 = vsel %vm1175, %v7006, %v7005
    %v7008 = vrot.slane %v6989, 2
    %v7009 = vsel %vm1178, %v7008, %v7007
    %v7010 = vrot.slane %v6990, 1
    %v7011 = vsel %vm1181, %v7010, %v7009
    %v7013 = vrot.slane %v6271, 2
    %vm7014 = vcmask 1041408
    %v7015 = vrot.slane %v7000, 6
    %v7016 = vrot.slane %v7011, 6
    %v7017 = vsel %vm7014, %v7015, %v7016
    %v7018 = vrot.slane %v7013, 6
    %v7019 = vsel %vm7014, %v7018, %v7018
    %7022 = vmatpush.msra.mxu0 %v166
    %7023 = vmatpush.msra.mxu0 %v162
    %7024 = vmatpush.msra.mxu0 %v158
    %7025 = vmatpush.msra.mxu0 %v154
    %7026 = vmatpush.msra.mxu0 %v150
    %7027 = vmatpush.msra.mxu0 %v146
    %7028 = vmatpush.msra.mxu0 %v142
    %7029 = vmatpush.msra.mxu0 %v138
    %7030 = vmatpush.msra.mxu0 %v134
    %7031 = vmatpush.msra.mxu0 %v130
    %7032 = vmatpush.msra.mxu0 %v126
    %7033 = vmatpush.msra.mxu0 %v122
    %7034 = vmatpush.msra.mxu0 %v118
    %7035 = vmatpush.msra.mxu0 %v114
    %7036 = vmatpush.msra.mxu0 %v110
    %7037 = vmatpush.msra.mxu0 %v106
    %7038 = vmatmul.f32.gmra.mxu0 %v7017
    %v7039 = vpop.f32.mrf.mxu0
    %v7040 = vadd.f32 %v1191, %v7039
    %7041 = vdwg.mxu0
    %7042 = vmatpush.msra.mxu0 %v230
    %7043 = vmatpush.msra.mxu0 %v226
    %7044 = vmatpush.msra.mxu0 %v222
    %7045 = vmatpush.msra.mxu0 %v218
    %7046 = vmatpush.msra.mxu0 %v214
    %7047 = vmatpush.msra.mxu0 %v210
    %7048 = vmatpush.msra.mxu0 %v206
    %7049 = vmatpush.msra.mxu0 %v202
    %7050 = vmatpush.msra.mxu0 %v198
    %7051 = vmatpush.msra.mxu0 %v194
    %7052 = vmatpush.msra.mxu0 %v190
    %7053 = vmatpush.msra.mxu0 %v186
    %7054 = vmatpush.msra.mxu0 %v182
    %7055 = vmatpush.msra.mxu0 %v178
    %7056 = vmatpush.msra.mxu0 %v174
    %7057 = vmatpush.msra.mxu0 %v170
    %7058 = vmatmul.f32.gmra.mxu0 %v7019
    %v7059 = vpop.f32.mrf.mxu0
    %v7060 = vadd.f32 %v7040, %v7059
    %7061 = vdwg.mxu0
    %7062 = vmatpush.msra.mxu0 %v167
    %7063 = vmatpush.msra.mxu0 %v163
    %7064 = vmatpush.msra.mxu0 %v159
    %7065 = vmatpush.msra.mxu0 %v155
    %7066 = vmatpush.msra.mxu0 %v151
    %7067 = vmatpush.msra.mxu0 %v147
    %7068 = vmatpush.msra.mxu0 %v143
    %7069 = vmatpush.msra.mxu0 %v139
    %7070 = vmatpush.msra.mxu0 %v135
    %7071 = vmatpush.msra.mxu0 %v131
    %7072 = vmatpush.msra.mxu0 %v127
    %7073 = vmatpush.msra.mxu0 %v123
    %7074 = vmatpush.msra.mxu0 %v119
    %7075 = vmatpush.msra.mxu0 %v115
    %7076 = vmatpush.msra.mxu0 %v111
    %7077 = vmatpush.msra.mxu0 %v107
    %7078 = vmatmul.f32.gmra.mxu0 %v7017
    %v7079 = vpop.f32.mrf.mxu0
    %v7080 = vadd.f32 %v1192, %v7079
    %7081 = vdwg.mxu0
    %7082 = vmatpush.msra.mxu0 %v231
    %7083 = vmatpush.msra.mxu0 %v227
    %7084 = vmatpush.msra.mxu0 %v223
    %7085 = vmatpush.msra.mxu0 %v219
    %7086 = vmatpush.msra.mxu0 %v215
    %7087 = vmatpush.msra.mxu0 %v211
    %7088 = vmatpush.msra.mxu0 %v207
    %7089 = vmatpush.msra.mxu0 %v203
    %7090 = vmatpush.msra.mxu0 %v199
    %7091 = vmatpush.msra.mxu0 %v195
    %7092 = vmatpush.msra.mxu0 %v191
    %7093 = vmatpush.msra.mxu0 %v187
    %7094 = vmatpush.msra.mxu0 %v183
    %7095 = vmatpush.msra.mxu0 %v179
    %7096 = vmatpush.msra.mxu0 %v175
    %7097 = vmatpush.msra.mxu0 %v171
    %7098 = vmatmul.f32.gmra.mxu0 %v7019
    %v7099 = vpop.f32.mrf.mxu0
    %v7100 = vadd.f32 %v7080, %v7099
    %7101 = vdwg.mxu0
    %7102 = vmatpush.msra.mxu0 %v168
    %7103 = vmatpush.msra.mxu0 %v164
    %7104 = vmatpush.msra.mxu0 %v160
    %7105 = vmatpush.msra.mxu0 %v156
    %7106 = vmatpush.msra.mxu0 %v152
    %7107 = vmatpush.msra.mxu0 %v148
    %7108 = vmatpush.msra.mxu0 %v144
    %7109 = vmatpush.msra.mxu0 %v140
    %7110 = vmatpush.msra.mxu0 %v136
    %7111 = vmatpush.msra.mxu0 %v132
    %7112 = vmatpush.msra.mxu0 %v128
    %7113 = vmatpush.msra.mxu0 %v124
    %7114 = vmatpush.msra.mxu0 %v120
    %7115 = vmatpush.msra.mxu0 %v116
    %7116 = vmatpush.msra.mxu0 %v112
    %7117 = vmatpush.msra.mxu0 %v108
    %7118 = vmatmul.f32.gmra.mxu0 %v7017
    %v7119 = vpop.f32.mrf.mxu0
    %v7120 = vadd.f32 %v1193, %v7119
    %7121 = vdwg.mxu0
    %7122 = vmatpush.msra.mxu0 %v232
    %7123 = vmatpush.msra.mxu0 %v228
    %7124 = vmatpush.msra.mxu0 %v224
    %7125 = vmatpush.msra.mxu0 %v220
    %7126 = vmatpush.msra.mxu0 %v216
    %7127 = vmatpush.msra.mxu0 %v212
    %7128 = vmatpush.msra.mxu0 %v208
    %7129 = vmatpush.msra.mxu0 %v204
    %7130 = vmatpush.msra.mxu0 %v200
    %7131 = vmatpush.msra.mxu0 %v196
    %7132 = vmatpush.msra.mxu0 %v192
    %7133 = vmatpush.msra.mxu0 %v188
    %7134 = vmatpush.msra.mxu0 %v184
    %7135 = vmatpush.msra.mxu0 %v180
    %7136 = vmatpush.msra.mxu0 %v176
    %7137 = vmatpush.msra.mxu0 %v172
    %7138 = vmatmul.f32.gmra.mxu0 %v7019
    %v7139 = vpop.f32.mrf.mxu0
    %v7140 = vadd.f32 %v7120, %v7139
    %7141 = vdwg.mxu0
    %7142 = vmatpush.msra.mxu0 %v169
    %7143 = vmatpush.msra.mxu0 %v165
    %7144 = vmatpush.msra.mxu0 %v161
    %7145 = vmatpush.msra.mxu0 %v157
    %7146 = vmatpush.msra.mxu0 %v153
    %7147 = vmatpush.msra.mxu0 %v149
    %7148 = vmatpush.msra.mxu0 %v145
    %7149 = vmatpush.msra.mxu0 %v141
    %7150 = vmatpush.msra.mxu0 %v137
    %7151 = vmatpush.msra.mxu0 %v133
    %7152 = vmatpush.msra.mxu0 %v129
    %7153 = vmatpush.msra.mxu0 %v125
    %7154 = vmatpush.msra.mxu0 %v121
    %7155 = vmatpush.msra.mxu0 %v117
    %7156 = vmatpush.msra.mxu0 %v113
    %7157 = vmatpush.msra.mxu0 %v109
    %7158 = vmatmul.f32.gmra.mxu0 %v7017
    %v7159 = vpop.f32.mrf.mxu0
    %v7160 = vadd.f32 %v1194, %v7159
    %7161 = vdwg.mxu0
    %7162 = vmatpush.msra.mxu0 %v233
    %7163 = vmatpush.msra.mxu0 %v229
    %7164 = vmatpush.msra.mxu0 %v225
    %7165 = vmatpush.msra.mxu0 %v221
    %7166 = vmatpush.msra.mxu0 %v217
    %7167 = vmatpush.msra.mxu0 %v213
    %7168 = vmatpush.msra.mxu0 %v209
    %7169 = vmatpush.msra.mxu0 %v205
    %7170 = vmatpush.msra.mxu0 %v201
    %7171 = vmatpush.msra.mxu0 %v197
    %7172 = vmatpush.msra.mxu0 %v193
    %7173 = vmatpush.msra.mxu0 %v189
    %7174 = vmatpush.msra.mxu0 %v185
    %7175 = vmatpush.msra.mxu0 %v181
    %7176 = vmatpush.msra.mxu0 %v177
    %7177 = vmatpush.msra.mxu0 %v173
    %7178 = vmatmul.f32.gmra.mxu0 %v7019
    %v7179 = vpop.f32.mrf.mxu0
    %v7180 = vadd.f32 %v7160, %v7179
    %7181 = vdwg.mxu0
    %v7182 = vxor.u32 %v7060, 2147483648
    %v7183 = vmul.f32 %v7182, 1.442695
    %v7184 = vpow.pop %v7183
    %v7185 = vadd.f32 %v7184, 1.0
    %v7186 = vrcp.pop %v7185
    %v7187 = vmul.f32 %v7185, %v7186
    %v7188 = vsub.f32 1.0, %v7187
    %v7189 = vmul.f32 %v7186, %v7188
    %v7190 = vadd.f32 %v7186, %v7189
    %vm7191 = vweird.f32 %v7185
    %vm7192 = vweird.f32 %v7186
    %vm7193 = vmor %vm7191, %vm7192
    %v7194 = vsel %vm7193, %v7186, %v7190
    %v7195 = vand.u32 2147483647, %v7185
    %vm7196 = vcmp.eq.f32.partialorder %v7195, 8.507059e+37
    %v7197 = vand.u32 %v7185, 2147483648
    %v7198 = vor.u32 1.1754944e-38, %v7197
    %v7199 = vsel %vm7196, %v7198, %v7194
    %v7200 = vmul.f32 1.0, %v7199
    %v7201 = vxor.u32 %v7100, 2147483648
    %v7202 = vmul.f32 %v7201, 1.442695
    %v7203 = vpow.pop %v7202
    %v7204 = vadd.f32 %v7203, 1.0
    %v7205 = vrcp.pop %v7204
    %v7206 = vmul.f32 %v7204, %v7205
    %v7207 = vsub.f32 1.0, %v7206
    %v7208 = vmul.f32 %v7205, %v7207
    %v7209 = vadd.f32 %v7205, %v7208
    %vm7210 = vweird.f32 %v7204
    %vm7211 = vweird.f32 %v7205
    %vm7212 = vmor %vm7210, %vm7211
    %v7213 = vsel %vm7212, %v7205, %v7209
    %v7214 = vand.u32 2147483647, %v7204
    %vm7215 = vcmp.eq.f32.partialorder %v7214, 8.507059e+37
    %v7216 = vand.u32 %v7204, 2147483648
    %v7217 = vor.u32 1.1754944e-38, %v7216
    %v7218 = vsel %vm7215, %v7217, %v7213
    %v7219 = vmul.f32 1.0, %v7218
    %v7220 = vtanh.pop %v7140
    %v7221 = vxor.u32 %v7180, 2147483648
    %v7222 = vmul.f32 %v7221, 1.442695
    %v7223 = vpow.pop %v7222
    %v7224 = vadd.f32 %v7223, 1.0
    %v7225 = vrcp.pop %v7224
    %v7226 = vmul.f32 %v7224, %v7225
    %v7227 = vsub.f32 1.0, %v7226
    %v7228 = vmul.f32 %v7225, %v7227
    %v7229 = vadd.f32 %v7225, %v7228
    %vm7230 = vweird.f32 %v7224
    %vm7231 = vweird.f32 %v7225
    %vm7232 = vmor %vm7230, %vm7231
    %v7233 = vsel %vm7232, %v7225, %v7229
    %v7234 = vand.u32 2147483647, %v7224
    %vm7235 = vcmp.eq.f32.partialorder %v7234, 8.507059e+37
    %v7236 = vand.u32 %v7224, 2147483648
    %v7237 = vor.u32 1.1754944e-38, %v7236
    %v7238 = vsel %vm7235, %v7237, %v7233
    %v7239 = vmul.f32 1.0, %v7238
    %v7240 = vmul.f32 %v7219, %v6269
    %v7241 = vmul.f32 %v7200, %v7220
    %v7242 = vadd.f32 %v7240, %v7241
    %v7243 = vtanh.pop %v7242
    %v7244 = vmul.f32 %v7239, %v7243
    %v7245 = vrot.slane %v6983, 6
    %v7246 = vrot.slane %v6984, 5
    %v7247 = vsel %vm1169, %v7246, %v7245
    %v7248 = vrot.slane %v6985, 4
    %v7249 = vsel %vm1172, %v7248, %v7247
    %v7250 = vrot.slane %v6986, 3
    %v7251 = vsel %vm1175, %v7250, %v7249
    %v7252 = vrot.slane %v6987, 2
    %v7253 = vsel %vm1178, %v7252, %v7251
    %v7254 = vrot.slane %v6988, 1
    %v7255 = vsel %vm1181, %v7254, %v7253
    %v7256 = vsel %vm1184, %v6989, %v7255
    %v7257 = vrot.slane %v6990, 7
    %v7258 = vsel %vm1187, %v7257, %v7256
    %7260 = vmatpush.msra.mxu0 %v102
    %7261 = vmatpush.msra.mxu0 %v98
    %7262 = vmatpush.msra.mxu0 %v94
    %7263 = vmatpush.msra.mxu0 %v90
    %7264 = vmatpush.msra.mxu0 %v86
    %7265 = vmatpush.msra.mxu0 %v82
    %7266 = vmatpush.msra.mxu0 %v78
    %7267 = vmatpush.msra.mxu0 %v74
    %7268 = vmatpush.msra.mxu0 %v70
    %7269 = vmatpush.msra.mxu0 %v66
    %7270 = vmatpush.msra.mxu0 %v62
    %7271 = vmatpush.msra.mxu0 %v58
    %7272 = vmatpush.msra.mxu0 %v54
    %7273 = vmatpush.msra.mxu0 %v50
    %7274 = vmatpush.msra.mxu0 %v46
    %7275 = vmatpush.msra.mxu0 %v42
    %7276 = vmatmul.f32.gmra.mxu0 %v7258
    %v7277 = vpop.f32.mrf.mxu0
    %v7278 = vadd.f32 0.0, %v7277
    %7279 = vdwg.mxu0
    %7280 = vmatpush.msra.mxu0 %v103
    %7281 = vmatpush.msra.mxu0 %v99
    %7282 = vmatpush.msra.mxu0 %v95
    %7283 = vmatpush.msra.mxu0 %v91
    %7284 = vmatpush.msra.mxu0 %v87
    %7285 = vmatpush.msra.mxu0 %v83
    %7286 = vmatpush.msra.mxu0 %v79
    %7287 = vmatpush.msra.mxu0 %v75
    %7288 = vmatpush.msra.mxu0 %v71
    %7289 = vmatpush.msra.mxu0 %v67
    %7290 = vmatpush.msra.mxu0 %v63
    %7291 = vmatpush.msra.mxu0 %v59
    %7292 = vmatpush.msra.mxu0 %v55
    %7293 = vmatpush.msra.mxu0 %v51
    %7294 = vmatpush.msra.mxu0 %v47
    %7295 = vmatpush.msra.mxu0 %v43
    %7296 = vmatmul.f32.gmra.mxu0 %v7258
    %v7297 = vpop.f32.mrf.mxu0
    %v7298 = vadd.f32 0.0, %v7297
    %7299 = vdwg.mxu0
    %7300 = vmatpush.msra.mxu0 %v104
    %7301 = vmatpush.msra.mxu0 %v100
    %7302 = vmatpush.msra.mxu0 %v96
    %7303 = vmatpush.msra.mxu0 %v92
    %7304 = vmatpush.msra.mxu0 %v88
    %7305 = vmatpush.msra.mxu0 %v84
    %7306 = vmatpush.msra.mxu0 %v80
    %7307 = vmatpush.msra.mxu0 %v76
    %7308 = vmatpush.msra.mxu0 %v72
    %7309 = vmatpush.msra.mxu0 %v68
    %7310 = vmatpush.msra.mxu0 %v64
    %7311 = vmatpush.msra.mxu0 %v60
    %7312 = vmatpush.msra.mxu0 %v56
    %7313 = vmatpush.msra.mxu0 %v52
    %7314 = vmatpush.msra.mxu0 %v48
    %7315 = vmatpush.msra.mxu0 %v44
    %7316 = vmatmul.f32.gmra.mxu0 %v7258
    %v7317 = vpop.f32.mrf.mxu0
    %v7318 = vadd.f32 0.0, %v7317
    %7319 = vdwg.mxu0
    %7320 = vmatpush.msra.mxu0 %v105
    %7321 = vmatpush.msra.mxu0 %v101
    %7322 = vmatpush.msra.mxu0 %v97
    %7323 = vmatpush.msra.mxu0 %v93
    %7324 = vmatpush.msra.mxu0 %v89
    %7325 = vmatpush.msra.mxu0 %v85
    %7326 = vmatpush.msra.mxu0 %v81
    %7327 = vmatpush.msra.mxu0 %v77
    %7328 = vmatpush.msra.mxu0 %v73
    %7329 = vmatpush.msra.mxu0 %v69
    %7330 = vmatpush.msra.mxu0 %v65
    %7331 = vmatpush.msra.mxu0 %v61
    %7332 = vmatpush.msra.mxu0 %v57
    %7333 = vmatpush.msra.mxu0 %v53
    %7334 = vmatpush.msra.mxu0 %v49
    %7335 = vmatpush.msra.mxu0 %v45
    %7336 = vmatmul.f32.gmra.mxu0 %v7258
    %v7337 = vpop.f32.mrf.mxu0
    %v7338 = vadd.f32 0.0, %v7337
    %7339 = vdwg.mxu0
    %v7344 = vrot.slane %v7278, 1
    %v7345 = vrot.slane %v7298, 1
    %v7346 = vrot.slane %v7318, 1
    %v7347 = vrot.slane %v7338, 1
    %v7348 = vrot.slane %v7278, 2
    %v7349 = vrot.slane %v7298, 2
    %v7350 = vrot.slane %v7318, 2
    %v7351 = vrot.slane %v7338, 2
    %v7352 = vrot.slane %v7278, 3
    %v7353 = vrot.slane %v7298, 3
    %v7354 = vrot.slane %v7318, 3
    %v7355 = vrot.slane %v7338, 3
    %v7356 = vrot.slane %v7278, 4
    %v7357 = vrot.slane %v7298, 4
    %v7358 = vrot.slane %v7318, 4
    %v7359 = vrot.slane %v7338, 4
    %v7360 = vrot.slane %v7278, 5
    %v7361 = vrot.slane %v7298, 5
    %v7362 = vrot.slane %v7318, 5
    %v7363 = vrot.slane %v7338, 5
    %v7364 = vrot.slane %v7278, 6
    %v7365 = vrot.slane %v7298, 6
    %v7366 = vrot.slane %v7318, 6
    %v7367 = vrot.slane %v7338, 6
    %v7368 = vrot.slane %v7278, 7
    %v7369 = vrot.slane %v7298, 7
    %v7370 = vrot.slane %v7318, 7
    %v7371 = vrot.slane %v7338, 7
    %v7404 = vadd.f32 %v312, %v7344
    %v7405 = vadd.f32 %v353, %v7345
    %v7406 = vadd.f32 %v394, %v7346
    %v7407 = vadd.f32 %v435, %v7347
    %v7408 = vadd.f32 %v315, %v7348
    %v7409 = vadd.f32 %v356, %v7349
    %v7410 = vadd.f32 %v397, %v7350
    %v7411 = vadd.f32 %v438, %v7351
    %v7412 = vadd.f32 %v318, %v7352
    %v7413 = vadd.f32 %v359, %v7353
    %v7414 = vadd.f32 %v400, %v7354
    %v7415 = vadd.f32 %v441, %v7355
    %v7416 = vadd.f32 %v321, %v7356
    %v7417 = vadd.f32 %v362, %v7357
    %v7418 = vadd.f32 %v403, %v7358
    %v7419 = vadd.f32 %v444, %v7359
    %v7420 = vadd.f32 %v324, %v7360
    %v7421 = vadd.f32 %v365, %v7361
    %v7422 = vadd.f32 %v406, %v7362
    %v7423 = vadd.f32 %v447, %v7363
    %v7424 = vadd.f32 %v327, %v7364
    %v7425 = vadd.f32 %v368, %v7365
    %v7426 = vadd.f32 %v409, %v7366
    %v7427 = vadd.f32 %v450, %v7367
    %v7428 = vadd.f32 %v330, %v7368
    %v7429 = vadd.f32 %v371, %v7369
    %v7430 = vadd.f32 %v412, %v7370
    %v7431 = vadd.f32 %v453, %v7371
    %v7432 = vadd.f32 %v333, %v7278
    %v7433 = vadd.f32 %v374, %v7298
    %v7434 = vadd.f32 %v415, %v7318
    %v7435 = vadd.f32 %v456, %v7338
    %v7436 = vxor.u32 %v7404, 2147483648
    %v7437 = vxor.u32 %v7408, 2147483648
    %v7438 = vxor.u32 %v7412, 2147483648
    %v7439 = vxor.u32 %v7416, 2147483648
    %v7440 = vxor.u32 %v7420, 2147483648
    %v7441 = vxor.u32 %v7424, 2147483648
    %v7442 = vxor.u32 %v7428, 2147483648
    %v7443 = vxor.u32 %v7432, 2147483648
    %v7444 = vmul.f32 %v7436, 1.442695
    %v7445 = vpow.pop %v7444
    %v7446 = vmul.f32 %v7437, 1.442695
    %v7447 = vpow.pop %v7446
    %v7448 = vmul.f32 %v7438, 1.442695
    %v7449 = vpow.pop %v7448
    %v7450 = vmul.f32 %v7439, 1.442695
    %v7451 = vpow.pop %v7450
    %v7452 = vmul.f32 %v7440, 1.442695
    %v7453 = vpow.pop %v7452
    %v7454 = vmul.f32 %v7441, 1.442695
    %v7455 = vpow.pop %v7454
    %v7456 = vmul.f32 %v7442, 1.442695
    %v7457 = vpow.pop %v7456
    %v7458 = vmul.f32 %v7443, 1.442695
    %v7459 = vpow.pop %v7458
    %v7460 = vadd.f32 %v7445, 1.0
    %v7461 = vadd.f32 %v7447, 1.0
    %v7462 = vadd.f32 %v7449, 1.0
    %v7463 = vadd.f32 %v7451, 1.0
    %v7464 = vadd.f32 %v7453, 1.0
    %v7465 = vadd.f32 %v7455, 1.0
    %v7466 = vadd.f32 %v7457, 1.0
    %v7467 = vadd.f32 %v7459, 1.0
    %v7468 = vrcp.pop %v7460
    %v7469 = vmul.f32 %v7460, %v7468
    %v7470 = vsub.f32 1.0, %v7469
    %v7471 = vmul.f32 %v7468, %v7470
    %v7472 = vadd.f32 %v7468, %v7471
    %vm7473 = vweird.f32 %v7460
    %vm7474 = vweird.f32 %v7468
    %vm7475 = vmor %vm7473, %vm7474
    %v7476 = vsel %vm7475, %v7468, %v7472
    %v7477 = vand.u32 2147483647, %v7460
    %vm7478 = vcmp.eq.f32.partialorder %v7477, 8.507059e+37
    %v7479 = vand.u32 %v7460, 2147483648
    %v7480 = vor.u32 1.1754944e-38, %v7479
    %v7481 = vsel %vm7478, %v7480, %v7476
    %v7482 = vmul.f32 1.0, %v7481
    %v7483 = vrcp.pop %v7461
    %v7484 = vmul.f32 %v7461, %v7483
    %v7485 = vsub.f32 1.0, %v7484
    %v7486 = vmul.f32 %v7483, %v7485
    %v7487 = vadd.f32 %v7483, %v7486
    %vm7488 = vweird.f32 %v7461
    %vm7489 = vweird.f32 %v7483
    %vm7490 = vmor %vm7488, %vm7489
    %v7491 = vsel %vm7490, %v7483, %v7487
    %v7492 = vand.u32 2147483647, %v7461
    %vm7493 = vcmp.eq.f32.partialorder %v7492, 8.507059e+37
    %v7494 = vand.u32 %v7461, 2147483648
    %v7495 = vor.u32 1.1754944e-38, %v7494
    %v7496 = vsel %vm7493, %v7495, %v7491
    %v7497 = vmul.f32 1.0, %v7496
    %v7498 = vrcp.pop %v7462
    %v7499 = vmul.f32 %v7462, %v7498
    %v7500 = vsub.f32 1.0, %v7499
    %v7501 = vmul.f32 %v7498, %v7500
    %v7502 = vadd.f32 %v7498, %v7501
    %vm7503 = vweird.f32 %v7462
    %vm7504 = vweird.f32 %v7498
    %vm7505 = vmor %vm7503, %vm7504
    %v7506 = vsel %vm7505, %v7498, %v7502
    %v7507 = vand.u32 2147483647, %v7462
    %vm7508 = vcmp.eq.f32.partialorder %v7507, 8.507059e+37
    %v7509 = vand.u32 %v7462, 2147483648
    %v7510 = vor.u32 1.1754944e-38, %v7509
    %v7511 = vsel %vm7508, %v7510, %v7506
    %v7512 = vmul.f32 1.0, %v7511
    %v7513 = vrcp.pop %v7463
    %v7514 = vmul.f32 %v7463, %v7513
    %v7515 = vsub.f32 1.0, %v7514
    %v7516 = vmul.f32 %v7513, %v7515
    %v7517 = vadd.f32 %v7513, %v7516
    %vm7518 = vweird.f32 %v7463
    %vm7519 = vweird.f32 %v7513
    %vm7520 = vmor %vm7518, %vm7519
    %v7521 = vsel %vm7520, %v7513, %v7517
    %v7522 = vand.u32 2147483647, %v7463
    %vm7523 = vcmp.eq.f32.partialorder %v7522, 8.507059e+37
    %v7524 = vand.u32 %v7463, 2147483648
    %v7525 = vor.u32 1.1754944e-38, %v7524
    %v7526 = vsel %vm7523, %v7525, %v7521
    %v7527 = vmul.f32 1.0, %v7526
    %v7528 = vrcp.pop %v7464
    %v7529 = vmul.f32 %v7464, %v7528
    %v7530 = vsub.f32 1.0, %v7529
    %v7531 = vmul.f32 %v7528, %v7530
    %v7532 = vadd.f32 %v7528, %v7531
    %vm7533 = vweird.f32 %v7464
    %vm7534 = vweird.f32 %v7528
    %vm7535 = vmor %vm7533, %vm7534
    %v7536 = vsel %vm7535, %v7528, %v7532
    %v7537 = vand.u32 2147483647, %v7464
    %vm7538 = vcmp.eq.f32.partialorder %v7537, 8.507059e+37
    %v7539 = vand.u32 %v7464, 2147483648
    %v7540 = vor.u32 1.1754944e-38, %v7539
    %v7541 = vsel %vm7538, %v7540, %v7536
    %v7542 = vmul.f32 1.0, %v7541
    %v7543 = vrcp.pop %v7465
    %v7544 = vmul.f32 %v7465, %v7543
    %v7545 = vsub.f32 1.0, %v7544
    %v7546 = vmul.f32 %v7543, %v7545
    %v7547 = vadd.f32 %v7543, %v7546
    %vm7548 = vweird.f32 %v7465
    %vm7549 = vweird.f32 %v7543
    %vm7550 = vmor %vm7548, %vm7549
    %v7551 = vsel %vm7550, %v7543, %v7547
    %v7552 = vand.u32 2147483647, %v7465
    %vm7553 = vcmp.eq.f32.partialorder %v7552, 8.507059e+37
    %v7554 = vand.u32 %v7465, 2147483648
    %v7555 = vor.u32 1.1754944e-38, %v7554
    %v7556 = vsel %vm7553, %v7555, %v7551
    %v7557 = vmul.f32 1.0, %v7556
    %v7558 = vrcp.pop %v7466
    %v7559 = vmul.f32 %v7466, %v7558
    %v7560 = vsub.f32 1.0, %v7559
    %v7561 = vmul.f32 %v7558, %v7560
    %v7562 = vadd.f32 %v7558, %v7561
    %vm7563 = vweird.f32 %v7466
    %vm7564 = vweird.f32 %v7558
    %vm7565 = vmor %vm7563, %vm7564
    %v7566 = vsel %vm7565, %v7558, %v7562
    %v7567 = vand.u32 2147483647, %v7466
    %vm7568 = vcmp.eq.f32.partialorder %v7567, 8.507059e+37
    %v7569 = vand.u32 %v7466, 2147483648
    %v7570 = vor.u32 1.1754944e-38, %v7569
    %v7571 = vsel %vm7568, %v7570, %v7566
    %v7572 = vmul.f32 1.0, %v7571
    %v7573 = vrcp.pop %v7467
    %v7574 = vmul.f32 %v7467, %v7573
    %v7575 = vsub.f32 1.0, %v7574
    %v7576 = vmul.f32 %v7573, %v7575
    %v7577 = vadd.f32 %v7573, %v7576
    %vm7578 = vweird.f32 %v7467
    %vm7579 = vweird.f32 %v7573
    %vm7580 = vmor %vm7578, %vm7579
    %v7581 = vsel %vm7580, %v7573, %v7577
    %v7582 = vand.u32 2147483647, %v7467
    %vm7583 = vcmp.eq.f32.partialorder %v7582, 8.507059e+37
    %v7584 = vand.u32 %v7467, 2147483648
    %v7585 = vor.u32 1.1754944e-38, %v7584
    %v7586 = vsel %vm7583, %v7585, %v7581
    %v7587 = vmul.f32 1.0, %v7586
    %v7588 = vxor.u32 %v7405, 2147483648
    %v7589 = vxor.u32 %v7409, 2147483648
    %v7590 = vxor.u32 %v7413, 2147483648
    %v7591 = vxor.u32 %v7417, 2147483648
    %v7592 = vxor.u32 %v7421, 2147483648
    %v7593 = vxor.u32 %v7425, 2147483648
    %v7594 = vxor.u32 %v7429, 2147483648
    %v7595 = vxor.u32 %v7433, 2147483648
    %v7596 = vmul.f32 %v7588, 1.442695
    %v7597 = vpow.pop %v7596
    %v7598 = vmul.f32 %v7589, 1.442695
    %v7599 = vpow.pop %v7598
    %v7600 = vmul.f32 %v7590, 1.442695
    %v7601 = vpow.pop %v7600
    %v7602 = vmul.f32 %v7591, 1.442695
    %v7603 = vpow.pop %v7602
    %v7604 = vmul.f32 %v7592, 1.442695
    %v7605 = vpow.pop %v7604
    %v7606 = vmul.f32 %v7593, 1.442695
    %v7607 = vpow.pop %v7606
    %v7608 = vmul.f32 %v7594, 1.442695
    %v7609 = vpow.pop %v7608
    %v7610 = vmul.f32 %v7595, 1.442695
    %v7611 = vpow.pop %v7610
    %v7612 = vadd.f32 %v7597, 1.0
    %v7613 = vadd.f32 %v7599, 1.0
    %v7614 = vadd.f32 %v7601, 1.0
    %v7615 = vadd.f32 %v7603, 1.0
    %v7616 = vadd.f32 %v7605, 1.0
    %v7617 = vadd.f32 %v7607, 1.0
    %v7618 = vadd.f32 %v7609, 1.0
    %v7619 = vadd.f32 %v7611, 1.0
    %v7620 = vrcp.pop %v7612
    %v7621 = vmul.f32 %v7612, %v7620
    %v7622 = vsub.f32 1.0, %v7621
    %v7623 = vmul.f32 %v7620, %v7622
    %v7624 = vadd.f32 %v7620, %v7623
    %vm7625 = vweird.f32 %v7612
    %vm7626 = vweird.f32 %v7620
    %vm7627 = vmor %vm7625, %vm7626
    %v7628 = vsel %vm7627, %v7620, %v7624
    %v7629 = vand.u32 2147483647, %v7612
    %vm7630 = vcmp.eq.f32.partialorder %v7629, 8.507059e+37
    %v7631 = vand.u32 %v7612, 2147483648
    %v7632 = vor.u32 1.1754944e-38, %v7631
    %v7633 = vsel %vm7630, %v7632, %v7628
    %v7634 = vmul.f32 1.0, %v7633
    %v7635 = vrcp.pop %v7613
    %v7636 = vmul.f32 %v7613, %v7635
    %v7637 = vsub.f32 1.0, %v7636
    %v7638 = vmul.f32 %v7635, %v7637
    %v7639 = vadd.f32 %v7635, %v7638
    %vm7640 = vweird.f32 %v7613
    %vm7641 = vweird.f32 %v7635
    %vm7642 = vmor %vm7640, %vm7641
    %v7643 = vsel %vm7642, %v7635, %v7639
    %v7644 = vand.u32 2147483647, %v7613
    %vm7645 = vcmp.eq.f32.partialorder %v7644, 8.507059e+37
    %v7646 = vand.u32 %v7613, 2147483648
    %v7647 = vor.u32 1.1754944e-38, %v7646
    %v7648 = vsel %vm7645, %v7647, %v7643
    %v7649 = vmul.f32 1.0, %v7648
    %v7650 = vrcp.pop %v7614
    %v7651 = vmul.f32 %v7614, %v7650
    %v7652 = vsub.f32 1.0, %v7651
    %v7653 = vmul.f32 %v7650, %v7652
    %v7654 = vadd.f32 %v7650, %v7653
    %vm7655 = vweird.f32 %v7614
    %vm7656 = vweird.f32 %v7650
    %vm7657 = vmor %vm7655, %vm7656
    %v7658 = vsel %vm7657, %v7650, %v7654
    %v7659 = vand.u32 2147483647, %v7614
    %vm7660 = vcmp.eq.f32.partialorder %v7659, 8.507059e+37
    %v7661 = vand.u32 %v7614, 2147483648
    %v7662 = vor.u32 1.1754944e-38, %v7661
    %v7663 = vsel %vm7660, %v7662, %v7658
    %v7664 = vmul.f32 1.0, %v7663
    %v7665 = vrcp.pop %v7615
    %v7666 = vmul.f32 %v7615, %v7665
    %v7667 = vsub.f32 1.0, %v7666
    %v7668 = vmul.f32 %v7665, %v7667
    %v7669 = vadd.f32 %v7665, %v7668
    %vm7670 = vweird.f32 %v7615
    %vm7671 = vweird.f32 %v7665
    %vm7672 = vmor %vm7670, %vm7671
    %v7673 = vsel %vm7672, %v7665, %v7669
    %v7674 = vand.u32 2147483647, %v7615
    %vm7675 = vcmp.eq.f32.partialorder %v7674, 8.507059e+37
    %v7676 = vand.u32 %v7615, 2147483648
    %v7677 = vor.u32 1.1754944e-38, %v7676
    %v7678 = vsel %vm7675, %v7677, %v7673
    %v7679 = vmul.f32 1.0, %v7678
    %v7680 = vrcp.pop %v7616
    %v7681 = vmul.f32 %v7616, %v7680
    %v7682 = vsub.f32 1.0, %v7681
    %v7683 = vmul.f32 %v7680, %v7682
    %v7684 = vadd.f32 %v7680, %v7683
    %vm7685 = vweird.f32 %v7616
    %vm7686 = vweird.f32 %v7680
    %vm7687 = vmor %vm7685, %vm7686
    %v7688 = vsel %vm7687, %v7680, %v7684
    %v7689 = vand.u32 2147483647, %v7616
    %vm7690 = vcmp.eq.f32.partialorder %v7689, 8.507059e+37
    %v7691 = vand.u32 %v7616, 2147483648
    %v7692 = vor.u32 1.1754944e-38, %v7691
    %v7693 = vsel %vm7690, %v7692, %v7688
    %v7694 = vmul.f32 1.0, %v7693
    %v7695 = vrcp.pop %v7617
    %v7696 = vmul.f32 %v7617, %v7695
    %v7697 = vsub.f32 1.0, %v7696
    %v7698 = vmul.f32 %v7695, %v7697
    %v7699 = vadd.f32 %v7695, %v7698
    %vm7700 = vweird.f32 %v7617
    %vm7701 = vweird.f32 %v7695
    %vm7702 = vmor %vm7700, %vm7701
    %v7703 = vsel %vm7702, %v7695, %v7699
    %v7704 = vand.u32 2147483647, %v7617
    %vm7705 = vcmp.eq.f32.partialorder %v7704, 8.507059e+37
    %v7706 = vand.u32 %v7617, 2147483648
    %v7707 = vor.u32 1.1754944e-38, %v7706
    %v7708 = vsel %vm7705, %v7707, %v7703
    %v7709 = vmul.f32 1.0, %v7708
    %v7710 = vrcp.pop %v7618
    %v7711 = vmul.f32 %v7618, %v7710
    %v7712 = vsub.f32 1.0, %v7711
    %v7713 = vmul.f32 %v7710, %v7712
    %v7714 = vadd.f32 %v7710, %v7713
    %vm7715 = vweird.f32 %v7618
    %vm7716 = vweird.f32 %v7710
    %vm7717 = vmor %vm7715, %vm7716
    %v7718 = vsel %vm7717, %v7710, %v7714
    %v7719 = vand.u32 2147483647, %v7618
    %vm7720 = vcmp.eq.f32.partialorder %v7719, 8.507059e+37
    %v7721 = vand.u32 %v7618, 2147483648
    %v7722 = vor.u32 1.1754944e-38, %v7721
    %v7723 = vsel %vm7720, %v7722, %v7718
    %v7724 = vmul.f32 1.0, %v7723
    %v7725 = vrcp.pop %v7619
    %v7726 = vmul.f32 %v7619, %v7725
    %v7727 = vsub.f32 1.0, %v7726
    %v7728 = vmul.f32 %v7725, %v7727
    %v7729 = vadd.f32 %v7725, %v7728
    %vm7730 = vweird.f32 %v7619
    %vm7731 = vweird.f32 %v7725
    %vm7732 = vmor %vm7730, %vm7731
    %v7733 = vsel %vm7732, %v7725, %v7729
    %v7734 = vand.u32 2147483647, %v7619
    %vm7735 = vcmp.eq.f32.partialorder %v7734, 8.507059e+37
    %v7736 = vand.u32 %v7619, 2147483648
    %v7737 = vor.u32 1.1754944e-38, %v7736
    %v7738 = vsel %vm7735, %v7737, %v7733
    %v7739 = vmul.f32 1.0, %v7738
    %v7740 = vtanh.pop %v7406
    %v7741 = vtanh.pop %v7410
    %v7742 = vtanh.pop %v7414
    %v7743 = vtanh.pop %v7418
    %v7744 = vtanh.pop %v7422
    %v7745 = vtanh.pop %v7426
    %v7746 = vtanh.pop %v7430
    %v7747 = vtanh.pop %v7434
    %v7748 = vxor.u32 %v7407, 2147483648
    %v7749 = vxor.u32 %v7411, 2147483648
    %v7750 = vxor.u32 %v7415, 2147483648
    %v7751 = vxor.u32 %v7419, 2147483648
    %v7752 = vxor.u32 %v7423, 2147483648
    %v7753 = vxor.u32 %v7427, 2147483648
    %v7754 = vxor.u32 %v7431, 2147483648
    %v7755 = vxor.u32 %v7435, 2147483648
    %v7756 = vmul.f32 %v7748, 1.442695
    %v7757 = vpow.pop %v7756
    %v7758 = vmul.f32 %v7749, 1.442695
    %v7759 = vpow.pop %v7758
    %v7760 = vmul.f32 %v7750, 1.442695
    %v7761 = vpow.pop %v7760
    %v7762 = vmul.f32 %v7751, 1.442695
    %v7763 = vpow.pop %v7762
    %v7764 = vmul.f32 %v7752, 1.442695
    %v7765 = vpow.pop %v7764
    %v7766 = vmul.f32 %v7753, 1.442695
    %v7767 = vpow.pop %v7766
    %v7768 = vmul.f32 %v7754, 1.442695
    %v7769 = vpow.pop %v7768
    %v7770 = vmul.f32 %v7755, 1.442695
    %v7771 = vpow.pop %v7770
    %v7772 = vadd.f32 %v7757, 1.0
    %v7773 = vadd.f32 %v7759, 1.0
    %v7774 = vadd.f32 %v7761, 1.0
    %v7775 = vadd.f32 %v7763, 1.0
    %v7776 = vadd.f32 %v7765, 1.0
    %v7777 = vadd.f32 %v7767, 1.0
    %v7778 = vadd.f32 %v7769, 1.0
    %v7779 = vadd.f32 %v7771, 1.0
    %v7780 = vrcp.pop %v7772
    %v7781 = vmul.f32 %v7772, %v7780
    %v7782 = vsub.f32 1.0, %v7781
    %v7783 = vmul.f32 %v7780, %v7782
    %v7784 = vadd.f32 %v7780, %v7783
    %vm7785 = vweird.f32 %v7772
    %vm7786 = vweird.f32 %v7780
    %vm7787 = vmor %vm7785, %vm7786
    %v7788 = vsel %vm7787, %v7780, %v7784
    %v7789 = vand.u32 2147483647, %v7772
    %vm7790 = vcmp.eq.f32.partialorder %v7789, 8.507059e+37
    %v7791 = vand.u32 %v7772, 2147483648
    %v7792 = vor.u32 1.1754944e-38, %v7791
    %v7793 = vsel %vm7790, %v7792, %v7788
    %v7794 = vmul.f32 1.0, %v7793
    %v7795 = vrcp.pop %v7773
    %v7796 = vmul.f32 %v7773, %v7795
    %v7797 = vsub.f32 1.0, %v7796
    %v7798 = vmul.f32 %v7795, %v7797
    %v7799 = vadd.f32 %v7795, %v7798
    %vm7800 = vweird.f32 %v7773
    %vm7801 = vweird.f32 %v7795
    %vm7802 = vmor %vm7800, %vm7801
    %v7803 = vsel %vm7802, %v7795, %v7799
    %v7804 = vand.u32 2147483647, %v7773
    %vm7805 = vcmp.eq.f32.partialorder %v7804, 8.507059e+37
    %v7806 = vand.u32 %v7773, 2147483648
    %v7807 = vor.u32 1.1754944e-38, %v7806
    %v7808 = vsel %vm7805, %v7807, %v7803
    %v7809 = vmul.f32 1.0, %v7808
    %v7810 = vrcp.pop %v7774
    %v7811 = vmul.f32 %v7774, %v7810
    %v7812 = vsub.f32 1.0, %v7811
    %v7813 = vmul.f32 %v7810, %v7812
    %v7814 = vadd.f32 %v7810, %v7813
    %vm7815 = vweird.f32 %v7774
    %vm7816 = vweird.f32 %v7810
    %vm7817 = vmor %vm7815, %vm7816
    %v7818 = vsel %vm7817, %v7810, %v7814
    %v7819 = vand.u32 2147483647, %v7774
    %vm7820 = vcmp.eq.f32.partialorder %v7819, 8.507059e+37
    %v7821 = vand.u32 %v7774, 2147483648
    %v7822 = vor.u32 1.1754944e-38, %v7821
    %v7823 = vsel %vm7820, %v7822, %v7818
    %v7824 = vmul.f32 1.0, %v7823
    %v7825 = vrcp.pop %v7775
    %v7826 = vmul.f32 %v7775, %v7825
    %v7827 = vsub.f32 1.0, %v7826
    %v7828 = vmul.f32 %v7825, %v7827
    %v7829 = vadd.f32 %v7825, %v7828
    %vm7830 = vweird.f32 %v7775
    %vm7831 = vweird.f32 %v7825
    %vm7832 = vmor %vm7830, %vm7831
    %v7833 = vsel %vm7832, %v7825, %v7829
    %v7834 = vand.u32 2147483647, %v7775
    %vm7835 = vcmp.eq.f32.partialorder %v7834, 8.507059e+37
    %v7836 = vand.u32 %v7775, 2147483648
    %v7837 = vor.u32 1.1754944e-38, %v7836
    %v7838 = vsel %vm7835, %v7837, %v7833
    %v7839 = vmul.f32 1.0, %v7838
    %v7840 = vrcp.pop %v7776
    %v7841 = vmul.f32 %v7776, %v7840
    %v7842 = vsub.f32 1.0, %v7841
    %v7843 = vmul.f32 %v7840, %v7842
    %v7844 = vadd.f32 %v7840, %v7843
    %vm7845 = vweird.f32 %v7776
    %vm7846 = vweird.f32 %v7840
    %vm7847 = vmor %vm7845, %vm7846
    %v7848 = vsel %vm7847, %v7840, %v7844
    %v7849 = vand.u32 2147483647, %v7776
    %vm7850 = vcmp.eq.f32.partialorder %v7849, 8.507059e+37
    %v7851 = vand.u32 %v7776, 2147483648
    %v7852 = vor.u32 1.1754944e-38, %v7851
    %v7853 = vsel %vm7850, %v7852, %v7848
    %v7854 = vmul.f32 1.0, %v7853
    %v7855 = vrcp.pop %v7777
    %v7856 = vmul.f32 %v7777, %v7855
    %v7857 = vsub.f32 1.0, %v7856
    %v7858 = vmul.f32 %v7855, %v7857
    %v7859 = vadd.f32 %v7855, %v7858
    %vm7860 = vweird.f32 %v7777
    %vm7861 = vweird.f32 %v7855
    %vm7862 = vmor %vm7860, %vm7861
    %v7863 = vsel %vm7862, %v7855, %v7859
    %v7864 = vand.u32 2147483647, %v7777
    %vm7865 = vcmp.eq.f32.partialorder %v7864, 8.507059e+37
    %v7866 = vand.u32 %v7777, 2147483648
    %v7867 = vor.u32 1.1754944e-38, %v7866
    %v7868 = vsel %vm7865, %v7867, %v7863
    %v7869 = vmul.f32 1.0, %v7868
    %v7870 = vrcp.pop %v7778
    %v7871 = vmul.f32 %v7778, %v7870
    %v7872 = vsub.f32 1.0, %v7871
    %v7873 = vmul.f32 %v7870, %v7872
    %v7874 = vadd.f32 %v7870, %v7873
    %vm7875 = vweird.f32 %v7778
    %vm7876 = vweird.f32 %v7870
    %vm7877 = vmor %vm7875, %vm7876
    %v7878 = vsel %vm7877, %v7870, %v7874
    %v7879 = vand.u32 2147483647, %v7778
    %vm7880 = vcmp.eq.f32.partialorder %v7879, 8.507059e+37
    %v7881 = vand.u32 %v7778, 2147483648
    %v7882 = vor.u32 1.1754944e-38, %v7881
    %v7883 = vsel %vm7880, %v7882, %v7878
    %v7884 = vmul.f32 1.0, %v7883
    %v7885 = vrcp.pop %v7779
    %v7886 = vmul.f32 %v7779, %v7885
    %v7887 = vsub.f32 1.0, %v7886
    %v7888 = vmul.f32 %v7885, %v7887
    %v7889 = vadd.f32 %v7885, %v7888
    %vm7890 = vweird.f32 %v7779
    %vm7891 = vweird.f32 %v7885
    %vm7892 = vmor %vm7890, %vm7891
    %v7893 = vsel %vm7892, %v7885, %v7889
    %v7894 = vand.u32 2147483647, %v7779
    %vm7895 = vcmp.eq.f32.partialorder %v7894, 8.507059e+37
    %v7896 = vand.u32 %v7779, 2147483648
    %v7897 = vor.u32 1.1754944e-38, %v7896
    %v7898 = vsel %vm7895, %v7897, %v7893
    %v7899 = vmul.f32 1.0, %v7898
    %v7908 = vrot.slane %v6967, 7
    %v7909 = vrot.slane %v6968, 7
    %v7910 = vrot.slane %v6969, 7
    %v7911 = vrot.slane %v6970, 7
    %v7912 = vrot.slane %v6971, 7
    %v7913 = vrot.slane %v6972, 7
    %v7914 = vrot.slane %v6973, 7
    %v7915 = vrot.slane %v6974, 7
    %v7924 = vmul.f32 %v7634, %v7908
    %v7925 = vmul.f32 %v7649, %v7909
    %v7926 = vmul.f32 %v7664, %v7910
    %v7927 = vmul.f32 %v7679, %v7911
    %v7928 = vmul.f32 %v7694, %v7912
    %v7929 = vmul.f32 %v7709, %v7913
    %v7930 = vmul.f32 %v7724, %v7914
    %v7931 = vmul.f32 %v7739, %v7915
    %v7932 = vmul.f32 %v7482, %v7740
    %v7933 = vmul.f32 %v7497, %v7741
    %v7934 = vmul.f32 %v7512, %v7742
    %v7935 = vmul.f32 %v7527, %v7743
    %v7936 = vmul.f32 %v7542, %v7744
    %v7937 = vmul.f32 %v7557, %v7745
    %v7938 = vmul.f32 %v7572, %v7746
    %v7939 = vmul.f32 %v7587, %v7747
    %v7940 = vadd.f32 %v7924, %v7932
    %v7941 = vadd.f32 %v7925, %v7933
    %v7942 = vadd.f32 %v7926, %v7934
    %v7943 = vadd.f32 %v7927, %v7935
    %v7944 = vadd.f32 %v7928, %v7936
    %v7945 = vadd.f32 %v7929, %v7937
    %v7946 = vadd.f32 %v7930, %v7938
    %v7947 = vadd.f32 %v7931, %v7939
    %v7948 = vtanh.pop %v7940
    %v7949 = vtanh.pop %v7941
    %v7950 = vtanh.pop %v7942
    %v7951 = vtanh.pop %v7943
    %v7952 = vtanh.pop %v7944
    %v7953 = vtanh.pop %v7945
    %v7954 = vtanh.pop %v7946
    %v7955 = vtanh.pop %v7947
    %v7956 = vmul.f32 %v7794, %v7948
    %v7957 = vmul.f32 %v7809, %v7949
    %v7958 = vmul.f32 %v7824, %v7950
    %v7959 = vmul.f32 %v7839, %v7951
    %v7960 = vmul.f32 %v7854, %v7952
    %v7961 = vmul.f32 %v7869, %v7953
    %v7962 = vmul.f32 %v7884, %v7954
    %v7963 = vmul.f32 %v7899, %v7955
    %v7972 = vrot.slane %v7957, 7
    %v7973 = vrot.slane %v7958, 6
    %v7974 = vsel %vm1169, %v7973, %v7972
    %v7975 = vrot.slane %v7959, 5
    %v7976 = vsel %vm1172, %v7975, %v7974
    %v7977 = vrot.slane %v7960, 4
    %v7978 = vsel %vm1175, %v7977, %v7976
    %v7979 = vrot.slane %v7961, 3
    %v7980 = vsel %vm1178, %v7979, %v7978
    %v7981 = vrot.slane %v7962, 2
    %v7982 = vsel %vm1181, %v7981, %v7980
    %v7983 = vrot.slane %v7963, 1
    %v7984 = vsel %vm1184, %v7983, %v7982
    %v7986 = vrot.slane %v7244, 1
    %vm7987 = vcmask 1040384
    %v7988 = vrot.slane %v7956, 7
    %v7989 = vrot.slane %v7984, 7
    %v7990 = vsel %vm7987, %v7988, %v7989
    %v7991 = vrot.slane %v7986, 7
    %v7992 = vsel %vm7987, %v7991, %v7991
    %7995 = vmatpush.msra.mxu0 %v166
    %7996 = vmatpush.msra.mxu0 %v162
    %7997 = vmatpush.msra.mxu0 %v158
    %7998 = vmatpush.msra.mxu0 %v154
    %7999 = vmatpush.msra.mxu0 %v150
    %8000 = vmatpush.msra.mxu0 %v146
    %8001 = vmatpush.msra.mxu0 %v142
    %8002 = vmatpush.msra.mxu0 %v138
    %8003 = vmatpush.msra.mxu0 %v134
    %8004 = vmatpush.msra.mxu0 %v130
    %8005 = vmatpush.msra.mxu0 %v126
    %8006 = vmatpush.msra.mxu0 %v122
    %8007 = vmatpush.msra.mxu0 %v118
    %8008 = vmatpush.msra.mxu0 %v114
    %8009 = vmatpush.msra.mxu0 %v110
    %8010 = vmatpush.msra.mxu0 %v106
    %8011 = vmatmul.f32.gmra.mxu0 %v7990
    %v8012 = vpop.f32.mrf.mxu0
    %v8013 = vadd.f32 %v1191, %v8012
    %8014 = vdwg.mxu0
    %8015 = vmatpush.msra.mxu0 %v230
    %8016 = vmatpush.msra.mxu0 %v226
    %8017 = vmatpush.msra.mxu0 %v222
    %8018 = vmatpush.msra.mxu0 %v218
    %8019 = vmatpush.msra.mxu0 %v214
    %8020 = vmatpush.msra.mxu0 %v210
    %8021 = vmatpush.msra.mxu0 %v206
    %8022 = vmatpush.msra.mxu0 %v202
    %8023 = vmatpush.msra.mxu0 %v198
    %8024 = vmatpush.msra.mxu0 %v194
    %8025 = vmatpush.msra.mxu0 %v190
    %8026 = vmatpush.msra.mxu0 %v186
    %8027 = vmatpush.msra.mxu0 %v182
    %8028 = vmatpush.msra.mxu0 %v178
    %8029 = vmatpush.msra.mxu0 %v174
    %8030 = vmatpush.msra.mxu0 %v170
    %8031 = vmatmul.f32.gmra.mxu0 %v7992
    %v8032 = vpop.f32.mrf.mxu0
    %v8033 = vadd.f32 %v8013, %v8032
    %8034 = vdwg.mxu0
    %8035 = vmatpush.msra.mxu0 %v167
    %8036 = vmatpush.msra.mxu0 %v163
    %8037 = vmatpush.msra.mxu0 %v159
    %8038 = vmatpush.msra.mxu0 %v155
    %8039 = vmatpush.msra.mxu0 %v151
    %8040 = vmatpush.msra.mxu0 %v147
    %8041 = vmatpush.msra.mxu0 %v143
    %8042 = vmatpush.msra.mxu0 %v139
    %8043 = vmatpush.msra.mxu0 %v135
    %8044 = vmatpush.msra.mxu0 %v131
    %8045 = vmatpush.msra.mxu0 %v127
    %8046 = vmatpush.msra.mxu0 %v123
    %8047 = vmatpush.msra.mxu0 %v119
    %8048 = vmatpush.msra.mxu0 %v115
    %8049 = vmatpush.msra.mxu0 %v111
    %8050 = vmatpush.msra.mxu0 %v107
    %8051 = vmatmul.f32.gmra.mxu0 %v7990
    %v8052 = vpop.f32.mrf.mxu0
    %v8053 = vadd.f32 %v1192, %v8052
    %8054 = vdwg.mxu0
    %8055 = vmatpush.msra.mxu0 %v231
    %8056 = vmatpush.msra.mxu0 %v227
    %8057 = vmatpush.msra.mxu0 %v223
    %8058 = vmatpush.msra.mxu0 %v219
    %8059 = vmatpush.msra.mxu0 %v215
    %8060 = vmatpush.msra.mxu0 %v211
    %8061 = vmatpush.msra.mxu0 %v207
    %8062 = vmatpush.msra.mxu0 %v203
    %8063 = vmatpush.msra.mxu0 %v199
    %8064 = vmatpush.msra.mxu0 %v195
    %8065 = vmatpush.msra.mxu0 %v191
    %8066 = vmatpush.msra.mxu0 %v187
    %8067 = vmatpush.msra.mxu0 %v183
    %8068 = vmatpush.msra.mxu0 %v179
    %8069 = vmatpush.msra.mxu0 %v175
    %8070 = vmatpush.msra.mxu0 %v171
    %8071 = vmatmul.f32.gmra.mxu0 %v7992
    %v8072 = vpop.f32.mrf.mxu0
    %v8073 = vadd.f32 %v8053, %v8072
    %8074 = vdwg.mxu0
    %8075 = vmatpush.msra.mxu0 %v168
    %8076 = vmatpush.msra.mxu0 %v164
    %8077 = vmatpush.msra.mxu0 %v160
    %8078 = vmatpush.msra.mxu0 %v156
    %8079 = vmatpush.msra.mxu0 %v152
    %8080 = vmatpush.msra.mxu0 %v148
    %8081 = vmatpush.msra.mxu0 %v144
    %8082 = vmatpush.msra.mxu0 %v140
    %8083 = vmatpush.msra.mxu0 %v136
    %8084 = vmatpush.msra.mxu0 %v132
    %8085 = vmatpush.msra.mxu0 %v128
    %8086 = vmatpush.msra.mxu0 %v124
    %8087 = vmatpush.msra.mxu0 %v120
    %8088 = vmatpush.msra.mxu0 %v116
    %8089 = vmatpush.msra.mxu0 %v112
    %8090 = vmatpush.msra.mxu0 %v108
    %8091 = vmatmul.f32.gmra.mxu0 %v7990
    %v8092 = vpop.f32.mrf.mxu0
    %v8093 = vadd.f32 %v1193, %v8092
    %8094 = vdwg.mxu0
    %8095 = vmatpush.msra.mxu0 %v232
    %8096 = vmatpush.msra.mxu0 %v228
    %8097 = vmatpush.msra.mxu0 %v224
    %8098 = vmatpush.msra.mxu0 %v220
    %8099 = vmatpush.msra.mxu0 %v216
    %8100 = vmatpush.msra.mxu0 %v212
    %8101 = vmatpush.msra.mxu0 %v208
    %8102 = vmatpush.msra.mxu0 %v204
    %8103 = vmatpush.msra.mxu0 %v200
    %8104 = vmatpush.msra.mxu0 %v196
    %8105 = vmatpush.msra.mxu0 %v192
    %8106 = vmatpush.msra.mxu0 %v188
    %8107 = vmatpush.msra.mxu0 %v184
    %8108 = vmatpush.msra.mxu0 %v180
    %8109 = vmatpush.msra.mxu0 %v176
    %8110 = vmatpush.msra.mxu0 %v172
    %8111 = vmatmul.f32.gmra.mxu0 %v7992
    %v8112 = vpop.f32.mrf.mxu0
    %v8113 = vadd.f32 %v8093, %v8112
    %8114 = vdwg.mxu0
    %8115 = vmatpush.msra.mxu0 %v169
    %8116 = vmatpush.msra.mxu0 %v165
    %8117 = vmatpush.msra.mxu0 %v161
    %8118 = vmatpush.msra.mxu0 %v157
    %8119 = vmatpush.msra.mxu0 %v153
    %8120 = vmatpush.msra.mxu0 %v149
    %8121 = vmatpush.msra.mxu0 %v145
    %8122 = vmatpush.msra.mxu0 %v141
    %8123 = vmatpush.msra.mxu0 %v137
    %8124 = vmatpush.msra.mxu0 %v133
    %8125 = vmatpush.msra.mxu0 %v129
    %8126 = vmatpush.msra.mxu0 %v125
    %8127 = vmatpush.msra.mxu0 %v121
    %8128 = vmatpush.msra.mxu0 %v117
    %8129 = vmatpush.msra.mxu0 %v113
    %8130 = vmatpush.msra.mxu0 %v109
    %8131 = vmatmul.f32.gmra.mxu0 %v7990
    %v8132 = vpop.f32.mrf.mxu0
    %v8133 = vadd.f32 %v1194, %v8132
    %8134 = vdwg.mxu0
    %8135 = vmatpush.msra.mxu0 %v233
    %8136 = vmatpush.msra.mxu0 %v229
    %8137 = vmatpush.msra.mxu0 %v225
    %8138 = vmatpush.msra.mxu0 %v221
    %8139 = vmatpush.msra.mxu0 %v217
    %8140 = vmatpush.msra.mxu0 %v213
    %8141 = vmatpush.msra.mxu0 %v209
    %8142 = vmatpush.msra.mxu0 %v205
    %8143 = vmatpush.msra.mxu0 %v201
    %8144 = vmatpush.msra.mxu0 %v197
    %8145 = vmatpush.msra.mxu0 %v193
    %8146 = vmatpush.msra.mxu0 %v189
    %8147 = vmatpush.msra.mxu0 %v185
    %8148 = vmatpush.msra.mxu0 %v181
    %8149 = vmatpush.msra.mxu0 %v177
    %8150 = vmatpush.msra.mxu0 %v173
    %8151 = vmatmul.f32.gmra.mxu0 %v7992
    %v8152 = vpop.f32.mrf.mxu0
    %v8153 = vadd.f32 %v8133, %v8152
    %8154 = vdwg.mxu0
    %v8155 = vxor.u32 %v8033, 2147483648
    %v8156 = vmul.f32 %v8155, 1.442695
    %v8157 = vpow.pop %v8156
    %v8158 = vadd.f32 %v8157, 1.0
    %v8159 = vrcp.pop %v8158
    %v8160 = vmul.f32 %v8158, %v8159
    %v8161 = vsub.f32 1.0, %v8160
    %v8162 = vmul.f32 %v8159, %v8161
    %v8163 = vadd.f32 %v8159, %v8162
    %vm8164 = vweird.f32 %v8158
    %vm8165 = vweird.f32 %v8159
    %vm8166 = vmor %vm8164, %vm8165
    %v8167 = vsel %vm8166, %v8159, %v8163
    %v8168 = vand.u32 2147483647, %v8158
    %vm8169 = vcmp.eq.f32.partialorder %v8168, 8.507059e+37
    %v8170 = vand.u32 %v8158, 2147483648
    %v8171 = vor.u32 1.1754944e-38, %v8170
    %v8172 = vsel %vm8169, %v8171, %v8167
    %v8173 = vmul.f32 1.0, %v8172
    %v8174 = vxor.u32 %v8073, 2147483648
    %v8175 = vmul.f32 %v8174, 1.442695
    %v8176 = vpow.pop %v8175
    %v8177 = vadd.f32 %v8176, 1.0
    %v8178 = vrcp.pop %v8177
    %v8179 = vmul.f32 %v8177, %v8178
    %v8180 = vsub.f32 1.0, %v8179
    %v8181 = vmul.f32 %v8178, %v8180
    %v8182 = vadd.f32 %v8178, %v8181
    %vm8183 = vweird.f32 %v8177
    %vm8184 = vweird.f32 %v8178
    %vm8185 = vmor %vm8183, %vm8184
    %v8186 = vsel %vm8185, %v8178, %v8182
    %v8187 = vand.u32 2147483647, %v8177
    %vm8188 = vcmp.eq.f32.partialorder %v8187, 8.507059e+37
    %v8189 = vand.u32 %v8177, 2147483648
    %v8190 = vor.u32 1.1754944e-38, %v8189
    %v8191 = vsel %vm8188, %v8190, %v8186
    %v8192 = vmul.f32 1.0, %v8191
    %v8193 = vtanh.pop %v8113
    %v8194 = vxor.u32 %v8153, 2147483648
    %v8195 = vmul.f32 %v8194, 1.442695
    %v8196 = vpow.pop %v8195
    %v8197 = vadd.f32 %v8196, 1.0
    %v8198 = vrcp.pop %v8197
    %v8199 = vmul.f32 %v8197, %v8198
    %v8200 = vsub.f32 1.0, %v8199
    %v8201 = vmul.f32 %v8198, %v8200
    %v8202 = vadd.f32 %v8198, %v8201
    %vm8203 = vweird.f32 %v8197
    %vm8204 = vweird.f32 %v8198
    %vm8205 = vmor %vm8203, %vm8204
    %v8206 = vsel %vm8205, %v8198, %v8202
    %v8207 = vand.u32 2147483647, %v8197
    %vm8208 = vcmp.eq.f32.partialorder %v8207, 8.507059e+37
    %v8209 = vand.u32 %v8197, 2147483648
    %v8210 = vor.u32 1.1754944e-38, %v8209
    %v8211 = vsel %vm8208, %v8210, %v8206
    %v8212 = vmul.f32 1.0, %v8211
    %v8213 = vmul.f32 %v8192, %v7242
    %v8214 = vmul.f32 %v8173, %v8193
    %v8215 = vadd.f32 %v8213, %v8214
    %v8216 = vtanh.pop %v8215
    %v8217 = vmul.f32 %v8212, %v8216
    %v8218 = vrot.slane %v1421, 1
    %v8219 = vrot.slane %v1421, 2
    %v8220 = vrot.slane %v1421, 3
    %v8221 = vrot.slane %v1421, 4
    %v8222 = vrot.slane %v1421, 5
    %v8223 = vrot.slane %v1421, 6
    %v8231 = vrot.slane %v2379, 1
    %v8232 = vrot.slane %v2379, 2
    %v8233 = vrot.slane %v2379, 3
    %v8234 = vrot.slane %v2379, 4
    %v8235 = vrot.slane %v2379, 5
    %v8236 = vrot.slane %v2379, 7
    %v8237 = vrot.slane %v3352, 1
    %v8238 = vrot.slane %v3352, 2
    %v8239 = vrot.slane %v3352, 3
    %v8240 = vrot.slane %v3352, 4
    %v8241 = vrot.slane %v3352, 6
    %v8242 = vrot.slane %v3352, 7
    %v8243 = vrot.slane %v4325, 1
    %v8244 = vrot.slane %v4325, 2
    %v8245 = vrot.slane %v4325, 3
    %v8246 = vrot.slane %v4325, 5
    %v8247 = vrot.slane %v4325, 6
    %v8248 = vrot.slane %v4325, 7
    %v8249 = vrot.slane %v5298, 1
    %v8250 = vrot.slane %v5298, 2
    %v8251 = vrot.slane %v5298, 4
    %v8252 = vrot.slane %v5298, 5
    %v8253 = vrot.slane %v5298, 6
    %v8254 = vrot.slane %v5298, 7
    %v8255 = vrot.slane %v6271, 1
    %v8256 = vrot.slane %v6271, 3
    %v8257 = vrot.slane %v6271, 4
    %v8258 = vrot.slane %v6271, 5
    %v8259 = vrot.slane %v6271, 6
    %v8260 = vrot.slane %v6271, 7
    %v8261 = vrot.slane %v7244, 2
    %v8262 = vrot.slane %v7244, 3
    %v8263 = vrot.slane %v7244, 4
    %v8264 = vrot.slane %v7244, 5
    %v8265 = vrot.slane %v7244, 6
    %v8266 = vrot.slane %v7244, 7
    %v8268 = vrot.slane %v8217, 1
    %v8269 = vrot.slane %v8217, 2
    %v8270 = vrot.slane %v8217, 3
    %v8271 = vrot.slane %v8217, 4
    %v8272 = vrot.slane %v8217, 5
    %v8273 = vrot.slane %v8217, 6
    %v8274 = vrot.slane %v8217, 7
    %v8275 = vperm.slane %v2379, 0
    %v8276 = vperm.slane %v8231, 0
    %v8277 = vperm.slane %v8232, 0
    %v8278 = vperm.slane %v8233, 0
    %v8279 = vperm.slane %v8234, 0
    %v8280 = vperm.slane %v8235, 0
    %v8281 = vperm.slane %v3121, 0
    %v8282 = vperm.slane %v8236, 0
    %v8291 = vperm.slane %v3352, 0
    %v8292 = vperm.slane %v8237, 0
    %v8293 = vperm.slane %v8238, 0
    %v8294 = vperm.slane %v8239, 0
    %v8295 = vperm.slane %v8240, 0
    %v8296 = vperm.slane %v4094, 0
    %v8297 = vperm.slane %v8241, 0
    %v8298 = vperm.slane %v8242, 0
    %v8307 = vperm.slane %v4325, 0
    %v8308 = vperm.slane %v8243, 0
    %v8309 = vperm.slane %v8244, 0
    %v8310 = vperm.slane %v8245, 0
    %v8311 = vperm.slane %v5067, 0
    %v8312 = vperm.slane %v8246, 0
    %v8313 = vperm.slane %v8247, 0
    %v8314 = vperm.slane %v8248, 0
    %v8323 = vperm.slane %v5298, 0
    %v8324 = vperm.slane %v8249, 0
    %v8325 = vperm.slane %v8250, 0
    %v8326 = vperm.slane %v6040, 0
    %v8327 = vperm.slane %v8251, 0
    %v8328 = vperm.slane %v8252, 0
    %v8329 = vperm.slane %v8253, 0
    %v8330 = vperm.slane %v8254, 0
    %v8339 = vperm.slane %v6271, 0
    %v8340 = vperm.slane %v8255, 0
    %v8341 = vperm.slane %v7013, 0
    %v8342 = vperm.slane %v8256, 0
    %v8343 = vperm.slane %v8257, 0
    %v8344 = vperm.slane %v8258, 0
    %v8345 = vperm.slane %v8259, 0
    %v8346 = vperm.slane %v8260, 0
    %v8355 = vperm.slane %v7244, 0
    %v8356 = vperm.slane %v7986, 0
    %v8357 = vperm.slane %v8261, 0
    %v8358 = vperm.slane %v8262, 0
    %v8359 = vperm.slane %v8263, 0
    %v8360 = vperm.slane %v8264, 0
    %v8361 = vperm.slane %v8265, 0
    %v8362 = vperm.slane %v8266, 0
    %v8371 = vperm.slane %v8217, 0
    %v8372 = vperm.slane %v8268, 0
    %v8373 = vperm.slane %v8269, 0
    %v8374 = vperm.slane %v8270, 0
    %v8375 = vperm.slane %v8271, 0
    %v8376 = vperm.slane %v8272, 0
    %v8377 = vperm.slane %v8273, 0
    %v8378 = vperm.slane %v8274, 0
    %v8387 = vsel %vm7987, %v1421, %v8275
    %v8388 = vsel %vm7987, %v8218, %v8276
    %v8389 = vsel %vm7987, %v8219, %v8277
    %v8390 = vsel %vm7987, %v8220, %v8278
    %v8391 = vsel %vm7987, %v8221, %v8279
    %v8392 = vsel %vm7987, %v8222, %v8280
    %v8393 = vsel %vm7987, %v8223, %v8281
    %v8394 = vsel %vm7987, %v2148, %v8282
    %v8395 = vsel %vm7014, %v8387, %v8291
    %v8396 = vsel %vm7014, %v8388, %v8292
    %v8397 = vsel %vm7014, %v8389, %v8293
    %v8398 = vsel %vm7014, %v8390, %v8294
    %v8399 = vsel %vm7014, %v8391, %v8295
    %v8400 = vsel %vm7014, %v8392, %v8296
    %v8401 = vsel %vm7014, %v8393, %v8297
    %v8402 = vsel %vm7014, %v8394, %v8298
    %v8403 = vsel %vm6041, %v8395, %v8307
    %v8404 = vsel %vm6041, %v8396, %v8308
    %v8405 = vsel %vm6041, %v8397, %v8309
    %v8406 = vsel %vm6041, %v8398, %v8310
    %v8407 = vsel %vm6041, %v8399, %v8311
    %v8408 = vsel %vm6041, %v8400, %v8312
    %v8409 = vsel %vm6041, %v8401, %v8313
    %v8410 = vsel %vm6041, %v8402, %v8314
    %v8411 = vsel %vm5068, %v8403, %v8323
    %v8412 = vsel %vm5068, %v8404, %v8324
    %v8413 = vsel %vm5068, %v8405, %v8325
    %v8414 = vsel %vm5068, %v8406, %v8326
    %v8415 = vsel %vm5068, %v8407, %v8327
    %v8416 = vsel %vm5068, %v8408, %v8328
    %v8417 = vsel %vm5068, %v8409, %v8329
    %v8418 = vsel %vm5068, %v8410, %v8330
    %v8419 = vsel %vm4095, %v8411, %v8339
    %v8420 = vsel %vm4095, %v8412, %v8340
    %v8421 = vsel %vm4095, %v8413, %v8341
    %v8422 = vsel %vm4095, %v8414, %v8342
    %v8423 = vsel %vm4095, %v8415, %v8343
    %v8424 = vsel %vm4095, %v8416, %v8344
    %v8425 = vsel %vm4095, %v8417, %v8345
    %v8426 = vsel %vm4095, %v8418, %v8346
    %v8427 = vsel %vm3122, %v8419, %v8355
    %v8428 = vsel %vm3122, %v8420, %v8356
    %v8429 = vsel %vm3122, %v8421, %v8357
    %v8430 = vsel %vm3122, %v8422, %v8358
    %v8431 = vsel %vm3122, %v8423, %v8359
    %v8432 = vsel %vm3122, %v8424, %v8360
    %v8433 = vsel %vm3122, %v8425, %v8361
    %v8434 = vsel %vm3122, %v8426, %v8362
    %v8435 = vsel %vm2149, %v8427, %v8371
    %v8436 = vsel %vm2149, %v8428, %v8372
    %v8437 = vsel %vm2149, %v8429, %v8373
    %v8438 = vsel %vm2149, %v8430, %v8374
    %v8439 = vsel %vm2149, %v8431, %v8375
    %v8440 = vsel %vm2149, %v8432, %v8376
    %v8441 = vsel %vm2149, %v8433, %v8377
    %v8442 = vsel %vm2149, %v8434, %v8378
    %8443 = vst [vmem:[#allocation2] sm:$0xff] %v8435
    %8444 = vst [vmem:[#allocation2 + $0x8] sm:$0xff] %v8436
    %8445 = vst [vmem:[#allocation2 + $0x10] sm:$0xff] %v8437
    %8446 = vst [vmem:[#allocation2 + $0x18] sm:$0xff] %v8438
    %8447 = vst [vmem:[#allocation2 + $0x20] sm:$0xff] %v8439
    %8448 = vst [vmem:[#allocation2 + $0x28] sm:$0xff] %v8440
    %8449 = vst [vmem:[#allocation2 + $0x30] sm:$0xff] %v8441
    %8450 = vst [vmem:[#allocation2 + $0x38] sm:$0xff] %v8442
    %8453 = vst [vmem:[%s11 - $0x7] sm:$0x80] %v7956
    %8454 = vst [vmem:[%s11 + $0x1] sm:$0x7f] %v7984
    %s8455 = scalar_lea.vmem %s11, 8
    %8456 = vst [vmem:[%s8455] sm:$0xff] %v8217
    %v8465 = vrot.slane %v7941, 7
    %v8466 = vrot.slane %v7942, 6
    %v8467 = vsel %vm1169, %v8466, %v8465
    %v8468 = vrot.slane %v7943, 5
    %v8469 = vsel %vm1172, %v8468, %v8467
    %v8470 = vrot.slane %v7944, 4
    %v8471 = vsel %vm1175, %v8470, %v8469
    %v8472 = vrot.slane %v7945, 3
    %v8473 = vsel %vm1178, %v8472, %v8471
    %v8474 = vrot.slane %v7946, 2
    %v8475 = vsel %vm1181, %v8474, %v8473
    %v8476 = vrot.slane %v7947, 1
    %v8477 = vsel %vm1184, %v8476, %v8475
    %8480 = vst [vmem:[%s12 - $0x7] sm:$0x80] %v7940
    %8481 = vst [vmem:[%s12 + $0x1] sm:$0x7f] %v8477
    %s8482 = scalar_lea.vmem %s12, 8
    %8483 = vst [vmem:[%s8482] sm:$0xff] %v8215
  $region45: #{poetry_forward.1} parent=0 // pred_fallthru
    _
  %v8484 = vld [vmem:[#allocation2] sm:$0xff]
  %v8485 = vld [vmem:[#allocation2 + $0x8] sm:$0xff]
  %v8486 = vld [vmem:[#allocation2 + $0x10] sm:$0xff]
  %v8487 = vld [vmem:[#allocation2 + $0x18] sm:$0xff]
  %v8488 = vld [vmem:[#allocation2 + $0x20] sm:$0xff]
  %v8489 = vld [vmem:[#allocation2 + $0x28] sm:$0xff]
  %v8490 = vld [vmem:[#allocation2 + $0x30] sm:$0xff]
  %v8491 = vld [vmem:[#allocation2 + $0x38] sm:$0xff]
  %v8492 = vld [vmem:[%s8] sm:$0xff]
  %v8493 = vld [vmem:[%s8 + $0x8] sm:$0xff]
  %v8494 = vld [vmem:[%s8 + $0x10] sm:$0xff]
  %v8495 = vld [vmem:[%s8 + $0x18] sm:$0xff]
  %v8496 = vld [vmem:[%s8 + $0x20] sm:$0xff]
  %v8497 = vld [vmem:[%s8 + $0x28] sm:$0xff]
  %v8498 = vld [vmem:[%s8 + $0x30] sm:$0xff]
  %v8499 = vld [vmem:[%s8 + $0x38] sm:$0xff]
  %v8500 = vld [vmem:[%s8 + $0x40] sm:$0xff]
  %v8501 = vld [vmem:[%s8 + $0x48] sm:$0xff]
  %v8502 = vld [vmem:[%s8 + $0x50] sm:$0xff]
  %v8503 = vld [vmem:[%s8 + $0x58] sm:$0xff]
  %v8504 = vld [vmem:[%s8 + $0x60] sm:$0xff]
  %v8505 = vld [vmem:[%s8 + $0x68] sm:$0xff]
  %v8506 = vld [vmem:[%s8 + $0x70] sm:$0xff]
  %v8507 = vld [vmem:[%s8 + $0x78] sm:$0xff]
  %v8508 = vld [vmem:[%s9] sm:$0x1]
  %v8510 = vperm.slane %v8508, 0
  %8512 = vmatpush.msra.mxu0 %v8507
  %8513 = vmatpush.msra.mxu0 %v8506
  %8514 = vmatpush.msra.mxu0 %v8505
  %8515 = vmatpush.msra.mxu0 %v8504
  %8516 = vmatpush.msra.mxu0 %v8503
  %8517 = vmatpush.msra.mxu0 %v8502
  %8518 = vmatpush.msra.mxu0 %v8501
  %8519 = vmatpush.msra.mxu0 %v8500
  %8520 = vmatpush.msra.mxu0 %v8499
  %8521 = vmatpush.msra.mxu0 %v8498
  %8522 = vmatpush.msra.mxu0 %v8497
  %8523 = vmatpush.msra.mxu0 %v8496
  %8524 = vmatpush.msra.mxu0 %v8495
  %8525 = vmatpush.msra.mxu0 %v8494
  %8526 = vmatpush.msra.mxu0 %v8493
  %8527 = vmatpush.msra.mxu0 %v8492
  %8528 = vmatmul.f32.gmra.mxu0 %v8484
  %v8529 = vpop.f32.mrf.mxu0
  %v8530 = vadd.f32 %v8510, %v8529
  %8531 = vmatmul.f32.gmra.mxu0 %v8485
  %v8532 = vpop.f32.mrf.mxu0
  %v8533 = vadd.f32 %v8510, %v8532
  %8534 = vmatmul.f32.gmra.mxu0 %v8486
  %v8535 = vpop.f32.mrf.mxu0
  %v8536 = vadd.f32 %v8510, %v8535
  %8537 = vmatmul.f32.gmra.mxu0 %v8487
  %v8538 = vpop.f32.mrf.mxu0
  %v8539 = vadd.f32 %v8510, %v8538
  %8540 = vmatmul.f32.gmra.mxu0 %v8488
  %v8541 = vpop.f32.mrf.mxu0
  %v8542 = vadd.f32 %v8510, %v8541
  %8543 = vmatmul.f32.gmra.mxu0 %v8489
  %v8544 = vpop.f32.mrf.mxu0
  %v8545 = vadd.f32 %v8510, %v8544
  %8546 = vmatmul.f32.gmra.mxu0 %v8490
  %v8547 = vpop.f32.mrf.mxu0
  %v8548 = vadd.f32 %v8510, %v8547
  %8549 = vmatmul.f32.gmra.mxu0 %v8491
  %v8550 = vpop.f32.mrf.mxu0
  %v8551 = vadd.f32 %v8510, %v8550
  %8552 = vdwg.mxu0
  %8553 = vst [vmem:[%s10] sm:$0xff] %v8530
  %8554 = vst [vmem:[%s10 + $0x8] sm:$0xff] %v8533
  %8555 = vst [vmem:[%s10 + $0x10] sm:$0xff] %v8536
  %8556 = vst [vmem:[%s10 + $0x18] sm:$0xff] %v8539
  %8557 = vst [vmem:[%s10 + $0x20] sm:$0xff] %v8542
  %8558 = vst [vmem:[%s10 + $0x28] sm:$0xff] %v8545
  %8559 = vst [vmem:[%s10 + $0x30] sm:$0xff] %v8548
  %8560 = vst [vmem:[%s10 + $0x38] sm:$0xff] %v8551
  // Predicated region
  $region46: #{poetry_forward.1} parent=0 // pred_check
    _
  $region47: #{poetry_forward.1} parent=0 // pred_check_branch
    %8562 = sbr.rel (0) target = $region49
  $region48: #{poetry_forward.1} parent=0 // pred_region
    _
  $region49: #{poetry_forward.1} parent=0 // pred_fallthru
    _
  // Predicated region
  $region50: #{poetry_forward.1} parent=0 // pred_check
    _
  $region51: #{poetry_forward.1} parent=0 // pred_check_branch
    %8564 = sbr.rel (0) target = $region53
  $region52: #{poetry_forward.1} parent=0 // pred_region
    _
  $region53: #{poetry_forward.1} parent=0 // pred_fallthru
    _
  // Predicated region
  $region54: #{poetry_forward.1} parent=0 // pred_check
    _
  $region55: #{poetry_forward.1} parent=0 // pred_check_branch
    %8566 = sbr.rel (0) target = $region57
  $region56: #{poetry_forward.1} parent=0 // pred_region
    _
  $region57: #{poetry_forward.1} parent=0 // pred_fallthru
    _
  // Predicated region
  $region58: #{poetry_forward.1} parent=0 // pred_check
    _
  $region59: #{poetry_forward.1} parent=0 // pred_check_branch
    %8568 = sbr.rel (0) target = $region61
  $region60: #{poetry_forward.1} parent=0 // pred_region
    _
  $region61: #{poetry_forward.1} parent=0 // pred_fallthru
    _
  // Predicated region
  $region62: #{poetry_forward.1} parent=0 // pred_check
    _
  $region63: #{poetry_forward.1} parent=0 // pred_check_branch
    %8570 = sbr.rel (0) target = $region65
  $region64: #{poetry_forward.1} parent=0 // pred_region
    _
  $region65: #{poetry_forward.1} parent=0 // pred_fallthru
    _
  // Predicated region
  $region66: #{poetry_forward.1} parent=0 // pred_check
    _
  $region67: #{poetry_forward.1} parent=0 // pred_check_branch
    %8572 = sbr.rel (0) target = $region69
  $region68: #{poetry_forward.1} parent=0 // pred_region
    _
  $region69: #{poetry_forward.1} parent=0 // pred_fallthru
    _

</llo_original>
